<compile_context>
chip_gen: v6e
topology: v6e:2x2x1
jax: 0.10.0
libtpu: 0.0.40
codegen_flags: <defaults>
</compile_context>

<pallas_src>
import functools

import jax
import jax.numpy as jnp
from jax.experimental import pallas as pl
from jax.experimental.pallas import tpu as pltpu


def _round_up(x, m):
    return ((x + m - 1) // m) * m


def _pad2(x, rows, cols, dtype=None):
    """Zero-pad a 2-D array to (rows, cols); optionally cast."""
    x = jnp.pad(x, ((0, rows - x.shape[0]), (0, cols - x.shape[1])))
    return x if dtype is None else x.astype(dtype)


def _vae_kernel(max_action, state_p, latent_p, compute_dtype,
                sa_ref, eps_ref,
                we1_ref, be1_ref,
                we2_ref, be2_ref,
                wh_ref, bh_ref,
                wd1_ref, bd1_ref,
                wd2_ref, bd2_ref,
                wd3_ref, bd3_ref,
                u_ref, mean_ref, std_ref,
                sz_ref):
    f32 = jnp.float32
    cd = compute_dtype

    sa = sa_ref[...]                                   # (TB, Sp+Ap), compute dtype

    # ----- encoder: one full-depth K=(Sp+Ap) matmul (concat done host-side) -----
    h = jnp.dot(sa, we1_ref[...], preferred_element_type=f32) + be1_ref[...]
    h = jnp.maximum(h, 0.0).astype(cd)

    h = jnp.dot(h, we2_ref[...], preferred_element_type=f32) + be2_ref[...]
    h = jnp.maximum(h, 0.0).astype(cd)

    # Fused mean / log_std heads: (TB, 2*latent_p); halves are 128-aligned.
    heads = jnp.dot(h, wh_ref[...], preferred_element_type=f32) + bh_ref[...]
    mean = heads[:, :latent_p]
    log_std = jnp.clip(heads[:, latent_p:], -4.0, 15.0)
    std = jnp.exp(log_std)
    # NOTE: padded lanes of std are exp(0)=1, but eps padding is 0, so padded
    # z lanes stay 0 (exact); outputs are sliced back to latent_dim outside.

    # Reparameterization (epsilon supplied externally) -- f32 epilogue.
    z = (mean + std * eps_ref[...]).astype(cd)

    # ----- decoder: stage [state | z] into VMEM scratch at 128-lane-aligned
    # offsets so the first decoder layer is one full-depth K=(Sp+Lp) matmul. -----
    sz_ref[:, :state_p] = sa[:, :state_p]
    sz_ref[:, state_p:] = z

    d = jnp.dot(sz_ref[...], wd1_ref[...], preferred_element_type=f32) + bd1_ref[...]
    d = jnp.maximum(d, 0.0).astype(cd)

    d = jnp.dot(d, wd2_ref[...], preferred_element_type=f32) + bd2_ref[...]
    d = jnp.maximum(d, 0.0).astype(cd)

    d = jnp.dot(d, wd3_ref[...], preferred_element_type=f32) + bd3_ref[...]

    u_ref[...] = (jnp.tanh(d) * max_action).astype(u_ref.dtype)
    mean_ref[...] = mean.astype(mean_ref.dtype)
    std_ref[...] = std.astype(std_ref.dtype)


def vae_forward(state, action, eps, params, max_action,
                compute_dtype=jnp.bfloat16, batch_tile=512):
    """Full VAE forward in one Pallas call.

    state:  (B, state_dim) f32
    action: (B, action_dim) f32
    eps:    (B, latent_dim) f32 standard-normal noise (torch.randn_like(std)).
    Returns (u, mean, std), each (B, *) f32.
    """
    B, state_dim = state.shape
    action_dim = action.shape[1]
    latent_dim = eps.shape[1]
    hidden = params["we2"].shape[0]          # 750 in the PyTorch spec

    # Lane-aligned padded dims.
    Sp = _round_up(state_dim, 128)
    Ap = _round_up(action_dim, 128)
    Lp = _round_up(latent_dim, 128)
    Hp = _round_up(hidden, 128)              # 750 -> 768

    # Batch tile: multiple of 8, <= batch_tile, capped at ceil(B/2) so the grid
    # has >=2 steps whenever B > 8 (lets v7x shard the batch across both TCs).
    half = _round_up(max(1, -(-B // 2)), 8)
    TB = max(8, min(batch_tile, half))
    Bp = _round_up(max(B, TB), TB)

    cd = jnp.dtype(compute_dtype)
    f32 = jnp.float32

    # --- inputs: host-side cat([state, action]) into one lane-padded slab,
    #     cast to compute dtype (halves streamed input DMA in bf16). ---
    sa = jnp.zeros((Bp, Sp + Ap), cd)
    sa = sa.at[:B, :state_dim].set(state.astype(cd))
    sa = sa.at[:B, Sp:Sp + action_dim].set(action.astype(cd))
    eps_p = _pad2(eps, Bp, Lp)

    # --- weights: (in, out) layout, zero-padded; cat-splits re-fused to
    #     full-depth contractions (K = Sp+Ap for ENCO1, K = Sp+Lp for DECO1). ---
    we1 = jnp.concatenate([_pad2(params["we1s"], Sp, Hp, cd),
                           _pad2(params["we1a"], Ap, Hp, cd)], axis=0)
    be1 = _pad2(params["be1"], 1, Hp)
    we2 = _pad2(params["we2"], Hp, Hp, cd)
    be2 = _pad2(params["be2"], 1, Hp)
    # Fused mean / log_std head: (Hp, 2*Lp).
    wh = jnp.concatenate([_pad2(params["wm"], Hp, Lp, cd),
                          _pad2(params["wls"], Hp, Lp, cd)], axis=1)
    bh = jnp.concatenate([_pad2(params["bm"], 1, Lp),
                          _pad2(params["bls"], 1, Lp)], axis=1)
    wd1 = jnp.concatenate([_pad2(params["wd1s"], Sp, Hp, cd),
                           _pad2(params["wd1z"], Lp, Hp, cd)], axis=0)
    bd1 = _pad2(params["bd1"], 1, Hp)
    wd2 = _pad2(params["wd2"], Hp, Hp, cd)
    bd2 = _pad2(params["bd2"], 1, Hp)
    wd3 = _pad2(params["wd3"], Hp, Ap, cd)
    bd3 = _pad2(params["bd3"], 1, Ap)

    weights = (we1, be1, we2, be2, wh, bh, wd1, bd1, wd2, bd2, wd3, bd3)

    # --- block specs ---
    def batch_spec(cols):
        return pl.BlockSpec((TB, cols), lambda i: (i, 0))

    def resident_spec(arr, single_buffer):
        # Full-array block + constant index map: fetched once, VMEM-resident.
        if single_buffer:
            return pl.BlockSpec(arr.shape, lambda i: (0, 0),
                                pipeline_mode=pl.Buffered(1))
        return pl.BlockSpec(arr.shape, lambda i: (0, 0))

    out_specs = (batch_spec(Ap), batch_spec(Lp), batch_spec(Lp))
    out_shape = (jax.ShapeDtypeStruct((Bp, Ap), f32),
                 jax.ShapeDtypeStruct((Bp, Lp), f32),
                 jax.ShapeDtypeStruct((Bp, Lp), f32))
    grid = (Bp // TB,)
    kernel = functools.partial(_vae_kernel, float(max_action), Sp, Lp, cd)
    scratch_shapes = [pltpu.VMEM((TB, Sp + Lp), cd)]

    # --- VMEM budget: weights (x1 if single-buffered) + batch-tile IO (x2
    #     pipeline buffers) + ~3 live (TB, Hp) f32 temporaries + [s|z] scratch,
    #     clamped well under v7x's 64 MiB per-core physical VMEM. ---
    w_bytes = sum(int(w.size) * w.dtype.itemsize for w in weights)
    io_bytes = TB * (cd.itemsize * (Sp + Ap) + 4 * (3 * Lp + Ap))
    inter_bytes = 3 * TB * Hp * 4 + TB * (Sp + Lp) * cd.itemsize

    def run(single_buffer):
        n_wbuf = 1 if single_buffer else 2
        vmem_limit = n_wbuf * w_bytes + 2 * io_bytes + inter_bytes + (4 << 20)
        vmem_limit = int(min(max(vmem_limit, 32 << 20), 48 << 20))
        in_specs = ([batch_spec(Sp + Ap), batch_spec(Lp)]
                    + [resident_spec(w, single_buffer) for w in weights])
        return pl.pallas_call(
            kernel,
            grid=grid,
            out_shape=out_shape,
            in_specs=in_specs,
            out_specs=out_specs,
            scratch_shapes=scratch_shapes,
            compiler_params=pltpu.CompilerParams(
                dimension_semantics=("parallel",),
                vmem_limit_bytes=vmem_limit),
        )(sa, eps_p, *weights)

    try:
        u, mean, std = run(single_buffer=True)
    except Exception:
        # Fallback if this Pallas build rejects Buffered(1) on invariant
        # weights: default double-buffering (correct, slightly more VMEM).
        u, mean, std = run(single_buffer=False)

    return u[:B, :action_dim], mean[:B, :latent_dim], std[:B, :latent_dim]


def init_params(key, state_dim, action_dim, latent_dim, hidden=750):
    """Deterministic init mirroring nn.Linear; weights (in, out), biases (1, out)."""
    def linear(k, fan_in, fan_out):
        kw, kb = jax.random.split(k)
        bound = 1.0 / jnp.sqrt(jnp.float32(fan_in))
        w = jax.random.uniform(kw, (fan_in, fan_out), jnp.float32, -bound, bound)
        b = jax.random.uniform(kb, (1, fan_out), jnp.float32, -bound, bound)
        return w, b

    keys = jax.random.split(key, 7)
    w_e1, b_e1 = linear(keys[0], state_dim + action_dim, hidden)
    w_e2, b_e2 = linear(keys[1], hidden, hidden)
    w_m, b_m = linear(keys[2], hidden, latent_dim)
    w_ls, b_ls = linear(keys[3], hidden, latent_dim)
    w_d1, b_d1 = linear(keys[4], state_dim + latent_dim, hidden)
    w_d2, b_d2 = linear(keys[5], hidden, hidden)
    w_d3, b_d3 = linear(keys[6], hidden, action_dim)

    return {
        # split cat([state, action]) @ W_e1 (re-stacked inside vae_forward)
        "we1s": w_e1[:state_dim], "we1a": w_e1[state_dim:], "be1": b_e1,
        "we2": w_e2, "be2": b_e2,
        "wm": w_m, "bm": b_m,
        "wls": w_ls, "bls": b_ls,
        # split cat([state, z]) @ W_d1 (re-stacked inside vae_forward)
        "wd1s": w_d1[:state_dim], "wd1z": w_d1[state_dim:], "bd1": b_d1,
        "wd2": w_d2, "bd2": b_d2,
        "wd3": w_d3, "bd3": b_d3,
    }


def vae_reference(state, action, eps, params, max_action):
    """Pure-JAX reference mirroring the PyTorch forward (f32, unpadded)."""
    x = jnp.concatenate([state, action], axis=1)
    w_e1 = jnp.concatenate([params["we1s"], params["we1a"]], axis=0)
    z = jax.nn.relu(x @ w_e1 + params["be1"])
    z = jax.nn.relu(z @ params["we2"] + params["be2"])
    mean = z @ params["wm"] + params["bm"]
    log_std = jnp.clip(z @ params["wls"] + params["bls"], -4.0, 15.0)
    std = jnp.exp(log_std)
    zz = mean + std * eps
    w_d1 = jnp.concatenate([params["wd1s"], params["wd1z"]], axis=0)
    x2 = jnp.concatenate([state, zz], axis=1)
    a = jax.nn.relu(x2 @ w_d1 + params["bd1"])
    a = jax.nn.relu(a @ params["wd2"] + params["bd2"])
    a = a @ params["wd3"] + params["bd3"]
    u = jnp.tanh(a) * max_action
    return u, mean, std


if __name__ == "__main__":
    # Small, deterministic example shapes.
    B, state_dim, action_dim, latent_dim = 2, 8, 4, 4
    max_action = 1.0

    key = jax.random.PRNGKey(0)
    k_params, k_state, k_action, k_eps = jax.random.split(key, 4)

    params = init_params(k_params, state_dim, action_dim, latent_dim)
    state = jax.random.normal(k_state, (B, state_dim), jnp.float32)
    action = jax.random.normal(k_action, (B, action_dim), jnp.float32)
    # TODO(synk): torch.randn_like(std) has no deterministic in-kernel match;
    # epsilon is sampled here with jax.random and passed into the kernel.
    eps = jax.random.normal(k_eps, (B, latent_dim), jnp.float32)

    u_ref, mean_ref, std_ref = vae_reference(state, action, eps, params, max_action)

    # f32 compute path: tight check of the fused/padded kernel math.
    u32, m32, s32 = vae_forward(state, action, eps, params, max_action,
                                compute_dtype=jnp.float32)
    jax.block_until_ready((u32, m32, s32))
    assert jnp.allclose(u32, u_ref, atol=1e-4, rtol=1e-4)
    assert jnp.allclose(m32, mean_ref, atol=1e-4, rtol=1e-4)
    assert jnp.allclose(s32, std_ref, atol=1e-4, rtol=1e-4)

    # Default bf16 MXU path (f32 accumulation + f32 epilogue): looser tolerance.
    u, mean, std = vae_forward(state, action, eps, params, max_action)
    jax.block_until_ready((u, mean, std))
    assert jnp.allclose(u, u_ref, atol=1e-1, rtol=1e-1)
    assert jnp.allclose(mean, mean_ref, atol=1e-1, rtol=1e-1)
    assert jnp.allclose(std, std_ref, atol=1e-1, rtol=1e-1)

    print("KERNEL_OK")
</pallas_src>

<mosaic_0001>
module attributes {stable_mosaic.version = 11 : i64} {
  func.func @_vae_kernel(%arg0: i32, %arg1: memref<8x256xf32, #tpu.memory_space<vmem>>, %arg2: memref<8x128xf32, #tpu.memory_space<vmem>>, %arg3: memref<256x768xf32, #tpu.memory_space<vmem>>, %arg4: memref<1x768xf32, #tpu.memory_space<vmem>>, %arg5: memref<768x768xf32, #tpu.memory_space<vmem>>, %arg6: memref<1x768xf32, #tpu.memory_space<vmem>>, %arg7: memref<768x256xf32, #tpu.memory_space<vmem>>, %arg8: memref<1x256xf32, #tpu.memory_space<vmem>>, %arg9: memref<256x768xf32, #tpu.memory_space<vmem>>, %arg10: memref<1x768xf32, #tpu.memory_space<vmem>>, %arg11: memref<768x768xf32, #tpu.memory_space<vmem>>, %arg12: memref<1x768xf32, #tpu.memory_space<vmem>>, %arg13: memref<768x128xf32, #tpu.memory_space<vmem>>, %arg14: memref<1x128xf32, #tpu.memory_space<vmem>>, %arg15: memref<8x128xf32, #tpu.memory_space<vmem>>, %arg16: memref<8x128xf32, #tpu.memory_space<vmem>>, %arg17: memref<8x128xf32, #tpu.memory_space<vmem>>, %arg18: memref<8x256xf32, #tpu.memory_space<vmem>>) attributes {dimension_semantics = [#tpu.dimension_semantics<parallel>], iteration_bounds = array<i64: 1>, scalar_prefetch = 0 : i64, scratch_operands = 1 : i64, tpu.core_type = #tpu.core_type<tc>, window_params = [{transform_indices = @transform_0, window_bounds = array<i64: 8, 256>}, {transform_indices = @transform_1, window_bounds = array<i64: 8, 128>}, {pipeline_mode = #tpu.pipeline_mode<synchronous>, transform_indices = @transform_2, window_bounds = array<i64: 256, 768>}, {pipeline_mode = #tpu.pipeline_mode<synchronous>, transform_indices = @transform_3, window_bounds = array<i64: 1, 768>}, {pipeline_mode = #tpu.pipeline_mode<synchronous>, transform_indices = @transform_4, window_bounds = array<i64: 768, 768>}, {pipeline_mode = #tpu.pipeline_mode<synchronous>, transform_indices = @transform_5, window_bounds = array<i64: 1, 768>}, {pipeline_mode = #tpu.pipeline_mode<synchronous>, transform_indices = @transform_6, window_bounds = array<i64: 768, 256>}, {pipeline_mode = #tpu.pipeline_mode<synchronous>, transform_indices = @transform_7, window_bounds = array<i64: 1, 256>}, {pipeline_mode = #tpu.pipeline_mode<synchronous>, transform_indices = @transform_8, window_bounds = array<i64: 256, 768>}, {pipeline_mode = #tpu.pipeline_mode<synchronous>, transform_indices = @transform_9, window_bounds = array<i64: 1, 768>}, {pipeline_mode = #tpu.pipeline_mode<synchronous>, transform_indices = @transform_10, window_bounds = array<i64: 768, 768>}, {pipeline_mode = #tpu.pipeline_mode<synchronous>, transform_indices = @transform_11, window_bounds = array<i64: 1, 768>}, {pipeline_mode = #tpu.pipeline_mode<synchronous>, transform_indices = @transform_12, window_bounds = array<i64: 768, 128>}, {pipeline_mode = #tpu.pipeline_mode<synchronous>, transform_indices = @transform_13, window_bounds = array<i64: 1, 128>}, {transform_indices = @transform_14, window_bounds = array<i64: 8, 128>}, {transform_indices = @transform_15, window_bounds = array<i64: 8, 128>}, {transform_indices = @transform_16, window_bounds = array<i64: 8, 128>}]} {
    %c0 = arith.constant 0 : index
    %c0_0 = arith.constant 0 : index
    %0 = vector.load %arg1[%c0, %c0_0] : memref<8x256xf32, #tpu.memory_space<vmem>>, vector<8x256xf32>
    %c0_1 = arith.constant 0 : index
    %c0_2 = arith.constant 0 : index
    %1 = vector.load %arg3[%c0_1, %c0_2] : memref<256x768xf32, #tpu.memory_space<vmem>>, vector<256x768xf32>
    %cst = arith.constant dense<0.000000e+00> : vector<8x768xf32>
    %2 = tpu.matmul %0, %1, %cst {dimension_numbers = #tpu.dot_dimension_numbers<[1], [0], [0], [1], [0, 0, 1, 1], [], []>} : vector<8x256xf32>, vector<256x768xf32>, vector<8x768xf32> -> vector<8x768xf32>
    %c0_3 = arith.constant 0 : index
    %c0_4 = arith.constant 0 : index
    %3 = vector.load %arg4[%c0_3, %c0_4] : memref<1x768xf32, #tpu.memory_space<vmem>>, vector<1x768xf32>
    %4 = vector.broadcast %3 : vector<1x768xf32> to vector<8x768xf32>
    %5 = arith.addf %2, %4 : vector<8x768xf32>
    %cst_5 = arith.constant 0.000000e+00 : f32
    %6 = vector.broadcast %cst_5 : f32 to vector<8x768xf32>
    %7 = arith.maximumf %5, %6 : vector<8x768xf32>
    %c0_6 = arith.constant 0 : index
    %c0_7 = arith.constant 0 : index
    %8 = vector.load %arg5[%c0_6, %c0_7] : memref<768x768xf32, #tpu.memory_space<vmem>>, vector<768x768xf32>
    %cst_8 = arith.constant dense<0.000000e+00> : vector<8x768xf32>
    %9 = tpu.matmul %7, %8, %cst_8 {dimension_numbers = #tpu.dot_dimension_numbers<[1], [0], [0], [1], [0, 0, 1, 1], [], []>} : vector<8x768xf32>, vector<768x768xf32>, vector<8x768xf32> -> vector<8x768xf32>
    %c0_9 = arith.constant 0 : index
    %c0_10 = arith.constant 0 : index
    %10 = vector.load %arg6[%c0_9, %c0_10] : memref<1x768xf32, #tpu.memory_space<vmem>>, vector<1x768xf32>
    %11 = vector.broadcast %10 : vector<1x768xf32> to vector<8x768xf32>
    %12 = arith.addf %9, %11 : vector<8x768xf32>
    %cst_11 = arith.constant 0.000000e+00 : f32
    %13 = vector.broadcast %cst_11 : f32 to vector<8x768xf32>
    %14 = arith.maximumf %12, %13 : vector<8x768xf32>
    %c0_12 = arith.constant 0 : index
    %c0_13 = arith.constant 0 : index
    %15 = vector.load %arg7[%c0_12, %c0_13] : memref<768x256xf32, #tpu.memory_space<vmem>>, vector<768x256xf32>
    %cst_14 = arith.constant dense<0.000000e+00> : vector<8x256xf32>
    %16 = tpu.matmul %14, %15, %cst_14 {dimension_numbers = #tpu.dot_dimension_numbers<[1], [0], [0], [1], [0, 0, 1, 1], [], []>} : vector<8x768xf32>, vector<768x256xf32>, vector<8x256xf32> -> vector<8x256xf32>
    %c0_15 = arith.constant 0 : index
    %c0_16 = arith.constant 0 : index
    %17 = vector.load %arg8[%c0_15, %c0_16] : memref<1x256xf32, #tpu.memory_space<vmem>>, vector<1x256xf32>
    %18 = vector.broadcast %17 : vector<1x256xf32> to vector<8x256xf32>
    %19 = arith.addf %16, %18 : vector<8x256xf32>
    %20 = vector.extract_strided_slice %19 {offsets = [0, 0], sizes = [8, 128], strides = [1, 1]} : vector<8x256xf32> to vector<8x128xf32>
    %21 = vector.extract_strided_slice %19 {offsets = [0, 128], sizes = [8, 128], strides = [1, 1]} : vector<8x256xf32> to vector<8x128xf32>
    %cst_17 = arith.constant -4.000000e+00 : f32
    %cst_18 = arith.constant 1.500000e+01 : f32
    %22 = vector.broadcast %cst_17 : f32 to vector<8x128xf32>
    %23 = arith.maximumf %22, %21 : vector<8x128xf32>
    %24 = vector.broadcast %cst_18 : f32 to vector<8x128xf32>
    %25 = arith.minimumf %24, %23 : vector<8x128xf32>
    %26 = math.exp %25 : vector<8x128xf32>
    %c0_19 = arith.constant 0 : index
    %c0_20 = arith.constant 0 : index
    %27 = vector.load %arg2[%c0_19, %c0_20] : memref<8x128xf32, #tpu.memory_space<vmem>>, vector<8x128xf32>
    %28 = arith.mulf %26, %27 : vector<8x128xf32>
    %29 = arith.addf %20, %28 : vector<8x128xf32>
    %30 = vector.extract_strided_slice %0 {offsets = [0, 0], sizes = [8, 128], strides = [1, 1]} : vector<8x256xf32> to vector<8x128xf32>
    %c0_21 = arith.constant 0 : index
    %c0_22 = arith.constant 0 : index
    %31 = vector.load %arg18[%c0_21, %c0_22] : memref<8x256xf32, #tpu.memory_space<vmem>>, vector<8x128xf32>
    tpu.vector_store %arg18[%c0_21, %c0_22], %30 {strides = array<i32>} : memref<8x256xf32, #tpu.memory_space<vmem>>, vector<8x128xf32>,
    %c0_23 = arith.constant 0 : index
    %c128 = arith.constant 128 : index
    %32 = vector.load %arg18[%c0_23, %c128] : memref<8x256xf32, #tpu.memory_space<vmem>>, vector<8x128xf32>
    tpu.vector_store %arg18[%c0_23, %c128], %29 {strides = array<i32>} : memref<8x256xf32, #tpu.memory_space<vmem>>, vector<8x128xf32>,
    %c0_24 = arith.constant 0 : index
    %c0_25 = arith.constant 0 : index
    %33 = vector.load %arg18[%c0_24, %c0_25] : memref<8x256xf32, #tpu.memory_space<vmem>>, vector<8x256xf32>
    %c0_26 = arith.constant 0 : index
    %c0_27 = arith.constant 0 : index
    %34 = vector.load %arg9[%c0_26, %c0_27] : memref<256x768xf32, #tpu.memory_space<vmem>>, vector<256x768xf32>
    %cst_28 = arith.constant dense<0.000000e+00> : vector<8x768xf32>
    %35 = tpu.matmul %33, %34, %cst_28 {dimension_numbers = #tpu.dot_dimension_numbers<[1], [0], [0], [1], [0, 0, 1, 1], [], []>} : vector<8x256xf32>, vector<256x768xf32>, vector<8x768xf32> -> vector<8x768xf32>
    %c0_29 = arith.constant 0 : index
    %c0_30 = arith.constant 0 : index
    %36 = vector.load %arg10[%c0_29, %c0_30] : memref<1x768xf32, #tpu.memory_space<vmem>>, vector<1x768xf32>
    %37 = vector.broadcast %36 : vector<1x768xf32> to vector<8x768xf32>
    %38 = arith.addf %35, %37 : vector<8x768xf32>
    %cst_31 = arith.constant 0.000000e+00 : f32
    %39 = vector.broadcast %cst_31 : f32 to vector<8x768xf32>
    %40 = arith.maximumf %38, %39 : vector<8x768xf32>
    %c0_32 = arith.constant 0 : index
    %c0_33 = arith.constant 0 : index
    %41 = vector.load %arg11[%c0_32, %c0_33] : memref<768x768xf32, #tpu.memory_space<vmem>>, vector<768x768xf32>
    %cst_34 = arith.constant dense<0.000000e+00> : vector<8x768xf32>
    %42 = tpu.matmul %40, %41, %cst_34 {dimension_numbers = #tpu.dot_dimension_numbers<[1], [0], [0], [1], [0, 0, 1, 1], [], []>} : vector<8x768xf32>, vector<768x768xf32>, vector<8x768xf32> -> vector<8x768xf32>
    %c0_35 = arith.constant 0 : index
    %c0_36 = arith.constant 0 : index
    %43 = vector.load %arg12[%c0_35, %c0_36] : memref<1x768xf32, #tpu.memory_space<vmem>>, vector<1x768xf32>
    %44 = vector.broadcast %43 : vector<1x768xf32> to vector<8x768xf32>
    %45 = arith.addf %42, %44 : vector<8x768xf32>
    %cst_37 = arith.constant 0.000000e+00 : f32
    %46 = vector.broadcast %cst_37 : f32 to vector<8x768xf32>
    %47 = arith.maximumf %45, %46 : vector<8x768xf32>
    %c0_38 = arith.constant 0 : index
    %c0_39 = arith.constant 0 : index
    %48 = vector.load %arg13[%c0_38, %c0_39] : memref<768x128xf32, #tpu.memory_space<vmem>>, vector<768x128xf32>
    %cst_40 = arith.constant dense<0.000000e+00> : vector<8x128xf32>
    %49 = tpu.matmul %47, %48, %cst_40 {dimension_numbers = #tpu.dot_dimension_numbers<[1], [0], [0], [1], [0, 0, 1, 1], [], []>} : vector<8x768xf32>, vector<768x128xf32>, vector<8x128xf32> -> vector<8x128xf32>
    %c0_41 = arith.constant 0 : index
    %c0_42 = arith.constant 0 : index
    %50 = vector.load %arg14[%c0_41, %c0_42] : memref<1x128xf32, #tpu.memory_space<vmem>>, vector<1x128xf32>
    %51 = vector.broadcast %50 : vector<1x128xf32> to vector<8x128xf32>
    %52 = arith.addf %49, %51 : vector<8x128xf32>
    %53 = math.tanh %52 : vector<8x128xf32>
    %cst_43 = arith.constant 1.000000e+00 : f32
    %54 = vector.broadcast %cst_43 : f32 to vector<8x128xf32>
    %55 = arith.mulf %53, %54 : vector<8x128xf32>
    %c0_44 = arith.constant 0 : index
    %c0_45 = arith.constant 0 : index
    %56 = vector.load %arg15[%c0_44, %c0_45] : memref<8x128xf32, #tpu.memory_space<vmem>>, vector<8x128xf32>
    tpu.vector_store %arg15[%c0_44, %c0_45], %55 {strides = array<i32>} : memref<8x128xf32, #tpu.memory_space<vmem>>, vector<8x128xf32>,
    %c0_46 = arith.constant 0 : index
    %c0_47 = arith.constant 0 : index
    %57 = vector.load %arg16[%c0_46, %c0_47] : memref<8x128xf32, #tpu.memory_space<vmem>>, vector<8x128xf32>
    tpu.vector_store %arg16[%c0_46, %c0_47], %20 {strides = array<i32>} : memref<8x128xf32, #tpu.memory_space<vmem>>, vector<8x128xf32>,
    %c0_48 = arith.constant 0 : index
    %c0_49 = arith.constant 0 : index
    %58 = vector.load %arg17[%c0_48, %c0_49] : memref<8x128xf32, #tpu.memory_space<vmem>>, vector<8x128xf32>
    tpu.vector_store %arg17[%c0_48, %c0_49], %26 {strides = array<i32>} : memref<8x128xf32, #tpu.memory_space<vmem>>, vector<8x128xf32>,
    return
  }
  func.func @transform_0(%arg0: i32) -> (i32, i32) {
    %c0_i32 = arith.constant 0 : i32
    %c0_i32_0 = arith.constant 0 : i32
    return %arg0, %c0_i32 : i32, i32
  }
  func.func @transform_1(%arg0: i32) -> (i32, i32) {
    %c0_i32 = arith.constant 0 : i32
    %c0_i32_0 = arith.constant 0 : i32
    return %arg0, %c0_i32 : i32, i32
  }
  func.func @transform_2(%arg0: i32) -> (i32, i32) {
    %c0_i32 = arith.constant 0 : i32
    %c0_i32_0 = arith.constant 0 : i32
    %c0_i32_1 = arith.constant 0 : i32
    return %c0_i32, %c0_i32_0 : i32, i32
  }
  func.func @transform_3(%arg0: i32) -> (i32, i32) {
    %c0_i32 = arith.constant 0 : i32
    %c0_i32_0 = arith.constant 0 : i32
    %c0_i32_1 = arith.constant 0 : i32
    return %c0_i32, %c0_i32_0 : i32, i32
  }
  func.func @transform_4(%arg0: i32) -> (i32, i32) {
    %c0_i32 = arith.constant 0 : i32
    %c0_i32_0 = arith.constant 0 : i32
    %c0_i32_1 = arith.constant 0 : i32
    return %c0_i32, %c0_i32_0 : i32, i32
  }
  func.func @transform_5(%arg0: i32) -> (i32, i32) {
    %c0_i32 = arith.constant 0 : i32
    %c0_i32_0 = arith.constant 0 : i32
    %c0_i32_1 = arith.constant 0 : i32
    return %c0_i32, %c0_i32_0 : i32, i32
  }
  func.func @transform_6(%arg0: i32) -> (i32, i32) {
    %c0_i32 = arith.constant 0 : i32
    %c0_i32_0 = arith.constant 0 : i32
    %c0_i32_1 = arith.constant 0 : i32
    return %c0_i32, %c0_i32_0 : i32, i32
  }
  func.func @transform_7(%arg0: i32) -> (i32, i32) {
    %c0_i32 = arith.constant 0 : i32
    %c0_i32_0 = arith.constant 0 : i32
    %c0_i32_1 = arith.constant 0 : i32
    return %c0_i32, %c0_i32_0 : i32, i32
  }
  func.func @transform_8(%arg0: i32) -> (i32, i32) {
    %c0_i32 = arith.constant 0 : i32
    %c0_i32_0 = arith.constant 0 : i32
    %c0_i32_1 = arith.constant 0 : i32
    return %c0_i32, %c0_i32_0 : i32, i32
  }
  func.func @transform_9(%arg0: i32) -> (i32, i32) {
    %c0_i32 = arith.constant 0 : i32
    %c0_i32_0 = arith.constant 0 : i32
    %c0_i32_1 = arith.constant 0 : i32
    return %c0_i32, %c0_i32_0 : i32, i32
  }
  func.func @transform_10(%arg0: i32) -> (i32, i32) {
    %c0_i32 = arith.constant 0 : i32
    %c0_i32_0 = arith.constant 0 : i32
    %c0_i32_1 = arith.constant 0 : i32
    return %c0_i32, %c0_i32_0 : i32, i32
  }
  func.func @transform_11(%arg0: i32) -> (i32, i32) {
    %c0_i32 = arith.constant 0 : i32
    %c0_i32_0 = arith.constant 0 : i32
    %c0_i32_1 = arith.constant 0 : i32
    return %c0_i32, %c0_i32_0 : i32, i32
  }
  func.func @transform_12(%arg0: i32) -> (i32, i32) {
    %c0_i32 = arith.constant 0 : i32
    %c0_i32_0 = arith.constant 0 : i32
    %c0_i32_1 = arith.constant 0 : i32
    return %c0_i32, %c0_i32_0 : i32, i32
  }
  func.func @transform_13(%arg0: i32) -> (i32, i32) {
    %c0_i32 = arith.constant 0 : i32
    %c0_i32_0 = arith.constant 0 : i32
    %c0_i32_1 = arith.constant 0 : i32
    return %c0_i32, %c0_i32_0 : i32, i32
  }
  func.func @transform_14(%arg0: i32) -> (i32, i32) {
    %c0_i32 = arith.constant 0 : i32
    %c0_i32_0 = arith.constant 0 : i32
    return %arg0, %c0_i32 : i32, i32
  }
  func.func @transform_15(%arg0: i32) -> (i32, i32) {
    %c0_i32 = arith.constant 0 : i32
    %c0_i32_0 = arith.constant 0 : i32
    return %arg0, %c0_i32 : i32, i32
  }
  func.func @transform_16(%arg0: i32) -> (i32, i32) {
    %c0_i32 = arith.constant 0 : i32
    %c0_i32_0 = arith.constant 0 : i32
    return %arg0, %c0_i32 : i32, i32
  }
}

module attributes {stable_mosaic.version = 11 : i64} {
  func.func @_vae_kernel(%arg0: i32, %arg1: memref<8x256xf32, #tpu.memory_space<vmem>>, %arg2: memref<8x128xf32, #tpu.memory_space<vmem>>, %arg3: memref<256x768xf32, #tpu.memory_space<vmem>>, %arg4: memref<1x768xf32, #tpu.memory_space<vmem>>, %arg5: memref<768x768xf32, #tpu.memory_space<vmem>>, %arg6: memref<1x768xf32, #tpu.memory_space<vmem>>, %arg7: memref<768x256xf32, #tpu.memory_space<vmem>>, %arg8: memref<1x256xf32, #tpu.memory_space<vmem>>, %arg9: memref<256x768xf32, #tpu.memory_space<vmem>>, %arg10: memref<1x768xf32, #tpu.memory_space<vmem>>, %arg11: memref<768x768xf32, #tpu.memory_space<vmem>>, %arg12: memref<1x768xf32, #tpu.memory_space<vmem>>, %arg13: memref<768x128xf32, #tpu.memory_space<vmem>>, %arg14: memref<1x128xf32, #tpu.memory_space<vmem>>, %arg15: memref<8x128xf32, #tpu.memory_space<vmem>>, %arg16: memref<8x128xf32, #tpu.memory_space<vmem>>, %arg17: memref<8x128xf32, #tpu.memory_space<vmem>>, %arg18: memref<8x256xf32, #tpu.memory_space<vmem>>) attributes {dimension_semantics = [#tpu.dimension_semantics<parallel>], iteration_bounds = array<i64: 1>, scalar_prefetch = 0 : i64, scratch_operands = 1 : i64, tpu.core_type = #tpu.core_type<tc>, window_params = [{transform_indices = @transform_0, window_bounds = array<i64: 8, 256>}, {transform_indices = @transform_1, window_bounds = array<i64: 8, 128>}, {pipeline_mode = #tpu.pipeline_mode<synchronous>, transform_indices = @transform_2, window_bounds = array<i64: 256, 768>}, {pipeline_mode = #tpu.pipeline_mode<synchronous>, transform_indices = @transform_3, window_bounds = array<i64: 1, 768>}, {pipeline_mode = #tpu.pipeline_mode<synchronous>, transform_indices = @transform_4, window_bounds = array<i64: 768, 768>}, {pipeline_mode = #tpu.pipeline_mode<synchronous>, transform_indices = @transform_5, window_bounds = array<i64: 1, 768>}, {pipeline_mode = #tpu.pipeline_mode<synchronous>, transform_indices = @transform_6, window_bounds = array<i64: 768, 256>}, {pipeline_mode = #tpu.pipeline_mode<synchronous>, transform_indices = @transform_7, window_bounds = array<i64: 1, 256>}, {pipeline_mode = #tpu.pipeline_mode<synchronous>, transform_indices = @transform_8, window_bounds = array<i64: 256, 768>}, {pipeline_mode = #tpu.pipeline_mode<synchronous>, transform_indices = @transform_9, window_bounds = array<i64: 1, 768>}, {pipeline_mode = #tpu.pipeline_mode<synchronous>, transform_indices = @transform_10, window_bounds = array<i64: 768, 768>}, {pipeline_mode = #tpu.pipeline_mode<synchronous>, transform_indices = @transform_11, window_bounds = array<i64: 1, 768>}, {pipeline_mode = #tpu.pipeline_mode<synchronous>, transform_indices = @transform_12, window_bounds = array<i64: 768, 128>}, {pipeline_mode = #tpu.pipeline_mode<synchronous>, transform_indices = @transform_13, window_bounds = array<i64: 1, 128>}, {transform_indices = @transform_14, window_bounds = array<i64: 8, 128>}, {transform_indices = @transform_15, window_bounds = array<i64: 8, 128>}, {transform_indices = @transform_16, window_bounds = array<i64: 8, 128>}]} {
    %c0 = arith.constant 0 : index
    %c0_0 = arith.constant 0 : index
    %0 = vector.load %arg1[%c0, %c0_0] : memref<8x256xf32, #tpu.memory_space<vmem>>, vector<8x256xf32>
    %c0_1 = arith.constant 0 : index
    %c0_2 = arith.constant 0 : index
    %1 = vector.load %arg3[%c0_1, %c0_2] : memref<256x768xf32, #tpu.memory_space<vmem>>, vector<256x768xf32>
    %cst = arith.constant dense<0.000000e+00> : vector<8x768xf32>
    %2 = tpu.matmul %0, %1, %cst {dimension_numbers = #tpu.dot_dimension_numbers<[1], [0], [0], [1], [0, 0, 1, 1], [], []>} : vector<8x256xf32>, vector<256x768xf32>, vector<8x768xf32> -> vector<8x768xf32>
    %c0_3 = arith.constant 0 : index
    %c0_4 = arith.constant 0 : index
    %3 = vector.load %arg4[%c0_3, %c0_4] : memref<1x768xf32, #tpu.memory_space<vmem>>, vector<1x768xf32>
    %4 = vector.broadcast %3 : vector<1x768xf32> to vector<8x768xf32>
    %5 = arith.addf %2, %4 : vector<8x768xf32>
    %cst_5 = arith.constant 0.000000e+00 : f32
    %6 = vector.broadcast %cst_5 : f32 to vector<8x768xf32>
    %7 = arith.maximumf %5, %6 : vector<8x768xf32>
    %c0_6 = arith.constant 0 : index
    %c0_7 = arith.constant 0 : index
    %8 = vector.load %arg5[%c0_6, %c0_7] : memref<768x768xf32, #tpu.memory_space<vmem>>, vector<768x768xf32>
    %cst_8 = arith.constant dense<0.000000e+00> : vector<8x768xf32>
    %9 = tpu.matmul %7, %8, %cst_8 {dimension_numbers = #tpu.dot_dimension_numbers<[1], [0], [0], [1], [0, 0, 1, 1], [], []>} : vector<8x768xf32>, vector<768x768xf32>, vector<8x768xf32> -> vector<8x768xf32>
    %c0_9 = arith.constant 0 : index
    %c0_10 = arith.constant 0 : index
    %10 = vector.load %arg6[%c0_9, %c0_10] : memref<1x768xf32, #tpu.memory_space<vmem>>, vector<1x768xf32>
    %11 = vector.broadcast %10 : vector<1x768xf32> to vector<8x768xf32>
    %12 = arith.addf %9, %11 : vector<8x768xf32>
    %cst_11 = arith.constant 0.000000e+00 : f32
    %13 = vector.broadcast %cst_11 : f32 to vector<8x768xf32>
    %14 = arith.maximumf %12, %13 : vector<8x768xf32>
    %c0_12 = arith.constant 0 : index
    %c0_13 = arith.constant 0 : index
    %15 = vector.load %arg7[%c0_12, %c0_13] : memref<768x256xf32, #tpu.memory_space<vmem>>, vector<768x256xf32>
    %cst_14 = arith.constant dense<0.000000e+00> : vector<8x256xf32>
    %16 = tpu.matmul %14, %15, %cst_14 {dimension_numbers = #tpu.dot_dimension_numbers<[1], [0], [0], [1], [0, 0, 1, 1], [], []>} : vector<8x768xf32>, vector<768x256xf32>, vector<8x256xf32> -> vector<8x256xf32>
    %c0_15 = arith.constant 0 : index
    %c0_16 = arith.constant 0 : index
    %17 = vector.load %arg8[%c0_15, %c0_16] : memref<1x256xf32, #tpu.memory_space<vmem>>, vector<1x256xf32>
    %18 = vector.broadcast %17 : vector<1x256xf32> to vector<8x256xf32>
    %19 = arith.addf %16, %18 : vector<8x256xf32>
    %20 = vector.extract_strided_slice %19 {offsets = [0, 0], sizes = [8, 128], strides = [1, 1]} : vector<8x256xf32> to vector<8x128xf32>
    %21 = vector.extract_strided_slice %19 {offsets = [0, 128], sizes = [8, 128], strides = [1, 1]} : vector<8x256xf32> to vector<8x128xf32>
    %cst_17 = arith.constant -4.000000e+00 : f32
    %cst_18 = arith.constant 1.500000e+01 : f32
    %22 = vector.broadcast %cst_17 : f32 to vector<8x128xf32>
    %23 = arith.maximumf %22, %21 : vector<8x128xf32>
    %24 = vector.broadcast %cst_18 : f32 to vector<8x128xf32>
    %25 = arith.minimumf %24, %23 : vector<8x128xf32>
    %26 = math.exp %25 : vector<8x128xf32>
    %c0_19 = arith.constant 0 : index
    %c0_20 = arith.constant 0 : index
    %27 = vector.load %arg2[%c0_19, %c0_20] : memref<8x128xf32, #tpu.memory_space<vmem>>, vector<8x128xf32>
    %28 = arith.mulf %26, %27 : vector<8x128xf32>
    %29 = arith.addf %20, %28 : vector<8x128xf32>
    %30 = vector.extract_strided_slice %0 {offsets = [0, 0], sizes = [8, 128], strides = [1, 1]} : vector<8x256xf32> to vector<8x128xf32>
    %c0_21 = arith.constant 0 : index
    %c0_22 = arith.constant 0 : index
    %31 = vector.load %arg18[%c0_21, %c0_22] : memref<8x256xf32, #tpu.memory_space<vmem>>, vector<8x128xf32>
    tpu.vector_store %arg18[%c0_21, %c0_22], %30 {strides = array<i32>} : memref<8x256xf32, #tpu.memory_space<vmem>>, vector<8x128xf32>,
    %c0_23 = arith.constant 0 : index
    %c128 = arith.constant 128 : index
    %32 = vector.load %arg18[%c0_23, %c128] : memref<8x256xf32, #tpu.memory_space<vmem>>, vector<8x128xf32>
    tpu.vector_store %arg18[%c0_23, %c128], %29 {strides = array<i32>} : memref<8x256xf32, #tpu.memory_space<vmem>>, vector<8x128xf32>,
    %c0_24 = arith.constant 0 : index
    %c0_25 = arith.constant 0 : index
    %33 = vector.load %arg18[%c0_24, %c0_25] : memref<8x256xf32, #tpu.memory_space<vmem>>, vector<8x256xf32>
    %c0_26 = arith.constant 0 : index
    %c0_27 = arith.constant 0 : index
    %34 = vector.load %arg9[%c0_26, %c0_27] : memref<256x768xf32, #tpu.memory_space<vmem>>, vector<256x768xf32>
    %cst_28 = arith.constant dense<0.000000e+00> : vector<8x768xf32>
    %35 = tpu.matmul %33, %34, %cst_28 {dimension_numbers = #tpu.dot_dimension_numbers<[1], [0], [0], [1], [0, 0, 1, 1], [], []>} : vector<8x256xf32>, vector<256x768xf32>, vector<8x768xf32> -> vector<8x768xf32>
    %c0_29 = arith.constant 0 : index
    %c0_30 = arith.constant 0 : index
    %36 = vector.load %arg10[%c0_29, %c0_30] : memref<1x768xf32, #tpu.memory_space<vmem>>, vector<1x768xf32>
    %37 = vector.broadcast %36 : vector<1x768xf32> to vector<8x768xf32>
    %38 = arith.addf %35, %37 : vector<8x768xf32>
    %cst_31 = arith.constant 0.000000e+00 : f32
    %39 = vector.broadcast %cst_31 : f32 to vector<8x768xf32>
    %40 = arith.maximumf %38, %39 : vector<8x768xf32>
    %c0_32 = arith.constant 0 : index
    %c0_33 = arith.constant 0 : index
    %41 = vector.load %arg11[%c0_32, %c0_33] : memref<768x768xf32, #tpu.memory_space<vmem>>, vector<768x768xf32>
    %cst_34 = arith.constant dense<0.000000e+00> : vector<8x768xf32>
    %42 = tpu.matmul %40, %41, %cst_34 {dimension_numbers = #tpu.dot_dimension_numbers<[1], [0], [0], [1], [0, 0, 1, 1], [], []>} : vector<8x768xf32>, vector<768x768xf32>, vector<8x768xf32> -> vector<8x768xf32>
    %c0_35 = arith.constant 0 : index
    %c0_36 = arith.constant 0 : index
    %43 = vector.load %arg12[%c0_35, %c0_36] : memref<1x768xf32, #tpu.memory_space<vmem>>, vector<1x768xf32>
    %44 = vector.broadcast %43 : vector<1x768xf32> to vector<8x768xf32>
    %45 = arith.addf %42, %44 : vector<8x768xf32>
    %cst_37 = arith.constant 0.000000e+00 : f32
    %46 = vector.broadcast %cst_37 : f32 to vector<8x768xf32>
    %47 = arith.maximumf %45, %46 : vector<8x768xf32>
    %c0_38 = arith.constant 0 : index
    %c0_39 = arith.constant 0 : index
    %48 = vector.load %arg13[%c0_38, %c0_39] : memref<768x128xf32, #tpu.memory_space<vmem>>, vector<768x128xf32>
    %cst_40 = arith.constant dense<0.000000e+00> : vector<8x128xf32>
    %49 = tpu.matmul %47, %48, %cst_40 {dimension_numbers = #tpu.dot_dimension_numbers<[1], [0], [0], [1], [0, 0, 1, 1], [], []>} : vector<8x768xf32>, vector<768x128xf32>, vector<8x128xf32> -> vector<8x128xf32>
    %c0_41 = arith.constant 0 : index
    %c0_42 = arith.constant 0 : index
    %50 = vector.load %arg14[%c0_41, %c0_42] : memref<1x128xf32, #tpu.memory_space<vmem>>, vector<1x128xf32>
    %51 = vector.broadcast %50 : vector<1x128xf32> to vector<8x128xf32>
    %52 = arith.addf %49, %51 : vector<8x128xf32>
    %53 = math.tanh %52 : vector<8x128xf32>
    %cst_43 = arith.constant 1.000000e+00 : f32
    %54 = vector.broadcast %cst_43 : f32 to vector<8x128xf32>
    %55 = arith.mulf %53, %54 : vector<8x128xf32>
    %c0_44 = arith.constant 0 : index
    %c0_45 = arith.constant 0 : index
    %56 = vector.load %arg15[%c0_44, %c0_45] : memref<8x128xf32, #tpu.memory_space<vmem>>, vector<8x128xf32>
    tpu.vector_store %arg15[%c0_44, %c0_45], %55 {strides = array<i32>} : memref<8x128xf32, #tpu.memory_space<vmem>>, vector<8x128xf32>,
    %c0_46 = arith.constant 0 : index
    %c0_47 = arith.constant 0 : index
    %57 = vector.load %arg16[%c0_46, %c0_47] : memref<8x128xf32, #tpu.memory_space<vmem>>, vector<8x128xf32>
    tpu.vector_store %arg16[%c0_46, %c0_47], %20 {strides = array<i32>} : memref<8x128xf32, #tpu.memory_space<vmem>>, vector<8x128xf32>,
    %c0_48 = arith.constant 0 : index
    %c0_49 = arith.constant 0 : index
    %58 = vector.load %arg17[%c0_48, %c0_49] : memref<8x128xf32, #tpu.memory_space<vmem>>, vector<8x128xf32>
    tpu.vector_store %arg17[%c0_48, %c0_49], %26 {strides = array<i32>} : memref<8x128xf32, #tpu.memory_space<vmem>>, vector<8x128xf32>,
    return
  }
  func.func @transform_0(%arg0: i32) -> (i32, i32) {
    %c0_i32 = arith.constant 0 : i32
    %c0_i32_0 = arith.constant 0 : i32
    return %arg0, %c0_i32 : i32, i32
  }
  func.func @transform_1(%arg0: i32) -> (i32, i32) {
    %c0_i32 = arith.constant 0 : i32
    %c0_i32_0 = arith.constant 0 : i32
    return %arg0, %c0_i32 : i32, i32
  }
  func.func @transform_2(%arg0: i32) -> (i32, i32) {
    %c0_i32 = arith.constant 0 : i32
    %c0_i32_0 = arith.constant 0 : i32
    %c0_i32_1 = arith.constant 0 : i32
    return %c0_i32, %c0_i32_0 : i32, i32
  }
  func.func @transform_3(%arg0: i32) -> (i32, i32) {
    %c0_i32 = arith.constant 0 : i32
    %c0_i32_0 = arith.constant 0 : i32
    %c0_i32_1 = arith.constant 0 : i32
    return %c0_i32, %c0_i32_0 : i32, i32
  }
  func.func @transform_4(%arg0: i32) -> (i32, i32) {
    %c0_i32 = arith.constant 0 : i32
    %c0_i32_0 = arith.constant 0 : i32
    %c0_i32_1 = arith.constant 0 : i32
    return %c0_i32, %c0_i32_0 : i32, i32
  }
  func.func @transform_5(%arg0: i32) -> (i32, i32) {
    %c0_i32 = arith.constant 0 : i32
    %c0_i32_0 = arith.constant 0 : i32
    %c0_i32_1 = arith.constant 0 : i32
    return %c0_i32, %c0_i32_0 : i32, i32
  }
  func.func @transform_6(%arg0: i32) -> (i32, i32) {
    %c0_i32 = arith.constant 0 : i32
    %c0_i32_0 = arith.constant 0 : i32
    %c0_i32_1 = arith.constant 0 : i32
    return %c0_i32, %c0_i32_0 : i32, i32
  }
  func.func @transform_7(%arg0: i32) -> (i32, i32) {
    %c0_i32 = arith.constant 0 : i32
    %c0_i32_0 = arith.constant 0 : i32
    %c0_i32_1 = arith.constant 0 : i32
    return %c0_i32, %c0_i32_0 : i32, i32
  }
  func.func @transform_8(%arg0: i32) -> (i32, i32) {
    %c0_i32 = arith.constant 0 : i32
    %c0_i32_0 = arith.constant 0 : i32
    %c0_i32_1 = arith.constant 0 : i32
    return %c0_i32, %c0_i32_0 : i32, i32
  }
  func.func @transform_9(%arg0: i32) -> (i32, i32) {
    %c0_i32 = arith.constant 0 : i32
    %c0_i32_0 = arith.constant 0 : i32
    %c0_i32_1 = arith.constant 0 : i32
    return %c0_i32, %c0_i32_0 : i32, i32
  }
  func.func @transform_10(%arg0: i32) -> (i32, i32) {
    %c0_i32 = arith.constant 0 : i32
    %c0_i32_0 = arith.constant 0 : i32
    %c0_i32_1 = arith.constant 0 : i32
    return %c0_i32, %c0_i32_0 : i32, i32
  }
  func.func @transform_11(%arg0: i32) -> (i32, i32) {
    %c0_i32 = arith.constant 0 : i32
    %c0_i32_0 = arith.constant 0 : i32
    %c0_i32_1 = arith.constant 0 : i32
    return %c0_i32, %c0_i32_0 : i32, i32
  }
  func.func @transform_12(%arg0: i32) -> (i32, i32) {
    %c0_i32 = arith.constant 0 : i32
    %c0_i32_0 = arith.constant 0 : i32
    %c0_i32_1 = arith.constant 0 : i32
    return %c0_i32, %c0_i32_0 : i32, i32
  }
  func.func @transform_13(%arg0: i32) -> (i32, i32) {
    %c0_i32 = arith.constant 0 : i32
    %c0_i32_0 = arith.constant 0 : i32
    %c0_i32_1 = arith.constant 0 : i32
    return %c0_i32, %c0_i32_0 : i32, i32
  }
  func.func @transform_14(%arg0: i32) -> (i32, i32) {
    %c0_i32 = arith.constant 0 : i32
    %c0_i32_0 = arith.constant 0 : i32
    return %arg0, %c0_i32 : i32, i32
  }
  func.func @transform_15(%arg0: i32) -> (i32, i32) {
    %c0_i32 = arith.constant 0 : i32
    %c0_i32_0 = arith.constant 0 : i32
    return %arg0, %c0_i32 : i32, i32
  }
  func.func @transform_16(%arg0: i32) -> (i32, i32) {
    %c0_i32 = arith.constant 0 : i32
    %c0_i32_0 = arith.constant 0 : i32
    return %arg0, %c0_i32 : i32, i32
  }
}

</mosaic_0001>

<llo_original>
// kernel: tpu_custom_call.1
$region0: #{tpu_custom_call.1}
  #allocation0 [shape = 'u32[]', space=smem, size = 0x4, offset = 0x4, fixed_abs, tag = 'smem constant byte address 0x4 - core index']
  #allocation1 [shape = 'u32[144,128]{1,0:T(1,128)}', space=vmem, size = 0x12000, scoped, tag = 'internal scratch']
  #allocation2 [shape = 'f32[8,256]{1,0:T(8,128)}', space=vmem, size = 0x2000, scoped, tag = 'scratch operand']
  %s0 = inlined_call_operand.hbm [shape: f32[8,256], index: 0, kind: input, shape index: {}]
  %s1 = inlined_call_operand.hbm [shape: f32[8,128], index: 1, kind: input, shape index: {}]
  %s2 = inlined_call_operand.hbm [shape: f32[256,768], index: 2, kind: input, shape index: {}]
  %s3 = inlined_call_operand.hbm [shape: f32[1,768], index: 3, kind: input, shape index: {}]
  %s4 = inlined_call_operand.hbm [shape: f32[768,768], index: 4, kind: input, shape index: {}]
  %s5 = inlined_call_operand.hbm [shape: f32[1,768], index: 5, kind: input, shape index: {}]
  %s6 = inlined_call_operand.hbm [shape: f32[768,256], index: 6, kind: input, shape index: {}]
  %s7 = inlined_call_operand.hbm [shape: f32[1,256], index: 7, kind: input, shape index: {}]
  %s8 = inlined_call_operand.hbm [shape: f32[256,768], index: 8, kind: input, shape index: {}]
  %s9 = inlined_call_operand.hbm [shape: f32[1,768], index: 9, kind: input, shape index: {}]
  %s10 = inlined_call_operand.hbm [shape: f32[768,768], index: 10, kind: input, shape index: {}]
  %s11 = inlined_call_operand.hbm [shape: f32[1,768], index: 11, kind: input, shape index: {}]
  %s12 = inlined_call_operand.hbm [shape: f32[768,128], index: 12, kind: input, shape index: {}]
  %s13 = inlined_call_operand.hbm [shape: f32[1,128], index: 13, kind: input, shape index: {}]
  %s14 = inlined_call_operand.hbm [shape: f32[8,128], index: 14, kind: output, shape index: {0}]
  %s15 = inlined_call_operand.hbm [shape: f32[8,128], index: 15, kind: output, shape index: {1}]
  %s16 = inlined_call_operand.hbm [shape: f32[8,128], index: 16, kind: output, shape index: {2}]
  %17 = xla_tuple %s14, %s15, %s16
  %s18 = sld [smem:[#allocation0]]
  $region138: #{tpu_custom_call.1} parent=0
    _
  %s20 = ssub.s32 1, %s18
  %s21 = scalar_select 0, %s20, %s18
  $region1: #{tpu_custom_call.1} parent=0
    #allocation3 [shape = 'u8[8192]{0}', space=vmem, size = 0x2000, scoped, tag = 'input window, operand 0, single buffered']
    #allocation4 [shape = 's32[1]{0}', space=sflag, size = 0x4, scoped, tag = 'scoped memory for tpu_custom_call.1']
    #allocation5 [shape = 's32[1]{0}', space=sflag, size = 0x4, scoped, tag = 'scoped memory for tpu_custom_call.1']
    #allocation6 [shape = 'u8[4096]{0}', space=vmem, size = 0x1000, scoped, tag = 'input window, operand 1, single buffered']
    #allocation7 [shape = 's32[1]{0}', space=sflag, size = 0x4, scoped, tag = 'scoped memory for tpu_custom_call.1']
    #allocation8 [shape = 'u8[786432]{0}', space=vmem, size = 0xc0000, scoped, tag = 'input window, operand 2, single buffered']
    #allocation9 [shape = 'u8[3072]{0}', space=vmem, size = 0xc00, scoped, tag = 'input window, operand 3, single buffered']
    #allocation10 [shape = 's32[1]{0}', space=sflag, size = 0x4, scoped, tag = 'scoped memory for tpu_custom_call.1']
    #allocation11 [shape = 'u8[2359296]{0}', space=vmem, size = 0x240000, scoped, tag = 'input window, operand 4, single buffered']
    #allocation12 [shape = 'u8[3072]{0}', space=vmem, size = 0xc00, scoped, tag = 'input window, operand 5, single buffered']
    #allocation13 [shape = 's32[1]{0}', space=sflag, size = 0x4, scoped, tag = 'scoped memory for tpu_custom_call.1']
    #allocation14 [shape = 'u8[786432]{0}', space=vmem, size = 0xc0000, scoped, tag = 'input window, operand 6, single buffered']
    #allocation15 [shape = 'u8[1024]{0}', space=vmem, size = 0x400, scoped, tag = 'input window, operand 7, single buffered']
    #allocation16 [shape = 's32[1]{0}', space=sflag, size = 0x4, scoped, tag = 'scoped memory for tpu_custom_call.1']
    #allocation17 [shape = 'u8[786432]{0}', space=vmem, size = 0xc0000, scoped, tag = 'input window, operand 8, single buffered']
    #allocation18 [shape = 'u8[3072]{0}', space=vmem, size = 0xc00, scoped, tag = 'input window, operand 9, single buffered']
    #allocation19 [shape = 's32[1]{0}', space=sflag, size = 0x4, scoped, tag = 'scoped memory for tpu_custom_call.1']
    #allocation20 [shape = 'u8[2359296]{0}', space=vmem, size = 0x240000, scoped, tag = 'input window, operand 10, single buffered']
    #allocation21 [shape = 'u8[3072]{0}', space=vmem, size = 0xc00, scoped, tag = 'input window, operand 11, single buffered']
    #allocation22 [shape = 's32[1]{0}', space=sflag, size = 0x4, scoped, tag = 'scoped memory for tpu_custom_call.1']
    #allocation23 [shape = 'u8[393216]{0}', space=vmem, size = 0x60000, scoped, tag = 'input window, operand 12, single buffered']
    #allocation24 [shape = 'u8[512]{0}', space=vmem, size = 0x400, scoped, tag = 'input window, operand 13, single buffered']
    #allocation25 [shape = 's32[1]{0}', space=sflag, size = 0x4, scoped, tag = 'scoped memory for tpu_custom_call.1']
    #allocation26 [shape = 'u8[4096]{0}', space=vmem, size = 0x1000, scoped, tag = 'output window, operand 0, single buffered']
    #allocation27 [shape = 'u8[4096]{0}', space=vmem, size = 0x1000, scoped, tag = 'output window, operand 1, single buffered']
    #allocation28 [shape = 's32[1]{0}', space=sflag, size = 0x4, scoped, tag = 'scoped memory for tpu_custom_call.1']
    #allocation29 [shape = 'u8[4096]{0}', space=vmem, size = 0x1000, scoped, tag = 'output window, operand 2, single buffered']
    %22 = vsyncpa [#allocation4], 0
    %23 = vsyncpa [#allocation7], 0
    %24 = vsyncpa [#allocation10], 0
    %25 = vsyncpa [#allocation13], 0
    %26 = vsyncpa [#allocation16], 0
    %27 = vsyncpa [#allocation19], 0
    %28 = vsyncpa [#allocation22], 0
    %29 = vsyncpa [#allocation25], 0
    %30 = vsyncpa [#allocation5], 0
    %31 = vsyncpa [#allocation28], 0
    // Predicated region
    $region2: #{tpu_custom_call.1} parent=1 // pred_check
      _
    $region3: #{tpu_custom_call.1} parent=1 // pred_check_branch
      %33 = sbr.rel (0) target = $region5
    $region4: #{tpu_custom_call.1} parent=1 // pred_region
      %s35 = ssub.s32 256, 256
      %36 = vsyncadd [#allocation4], %s35
      %s38 = sshll.u32 [#allocation3], 4
      %s39 = int_to_ptr.vmem [resolvable:$true] %s38
      %41 = dma.hbm_to_vmem [thread:$0]  %s0, 256, %s39, [#allocation4]
    $region5: #{tpu_custom_call.1} parent=1 // pred_fallthru
      _
    // Predicated region
    $region6: #{tpu_custom_call.1} parent=1 // pred_check
      _
    $region7: #{tpu_custom_call.1} parent=1 // pred_check_branch
      %43 = sbr.rel (0) target = $region9
    $region8: #{tpu_custom_call.1} parent=1 // pred_region
      %s45 = ssub.s32 128, 128
      %46 = vsyncadd [#allocation7], %s45
      %s48 = sshll.u32 [#allocation6], 4
      %s49 = int_to_ptr.vmem [resolvable:$true] %s48
      %51 = dma.hbm_to_vmem [thread:$0]  %s1, 128, %s49, [#allocation7]
    $region9: #{tpu_custom_call.1} parent=1 // pred_fallthru
      _
    // Predicated region
    $region10: #{tpu_custom_call.1} parent=1 // pred_check
      _
    $region11: #{tpu_custom_call.1} parent=1 // pred_check_branch
      %53 = sbr.rel (0) target = $region13
    $region12: #{tpu_custom_call.1} parent=1 // pred_region
      %s55 = ssub.s32 24576, 24576
      %56 = vsyncadd [#allocation7], %s55
      %s57 = sshll.u32 [#allocation8], 4
      %s58 = int_to_ptr.vmem [resolvable:$true] %s57
      %63 = dma.hbm_to_vmem [thread:$0]  %s2, 24576, %s58, [#allocation7], 768, 768, 48
    $region13: #{tpu_custom_call.1} parent=1 // pred_fallthru
      _
    // Predicated region
    $region14: #{tpu_custom_call.1} parent=1 // pred_check
      _
    $region15: #{tpu_custom_call.1} parent=1 // pred_check_branch
      %65 = sbr.rel (0) target = $region17
    $region16: #{tpu_custom_call.1} parent=1 // pred_region
      %s67 = ssub.s32 96, 96
      %68 = vsyncadd [#allocation10], %s67
      %s70 = sshll.u32 [#allocation9], 4
      %s71 = int_to_ptr.vmem [resolvable:$true] %s70
      %73 = dma.hbm_to_vmem [thread:$0]  %s3, 96, %s71, [#allocation10]
    $region17: #{tpu_custom_call.1} parent=1 // pred_fallthru
      _
    // Predicated region
    $region18: #{tpu_custom_call.1} parent=1 // pred_check
      _
    $region19: #{tpu_custom_call.1} parent=1 // pred_check_branch
      %75 = sbr.rel (0) target = $region21
    $region20: #{tpu_custom_call.1} parent=1 // pred_region
      %s77 = ssub.s32 73728, 73728
      %78 = vsyncadd [#allocation10], %s77
      %s79 = sshll.u32 [#allocation11], 4
      %s80 = int_to_ptr.vmem [resolvable:$true] %s79
      %85 = dma.hbm_to_vmem [thread:$0]  %s4, 73728, %s80, [#allocation10], 768, 768, 48
    $region21: #{tpu_custom_call.1} parent=1 // pred_fallthru
      _
    // Predicated region
    $region22: #{tpu_custom_call.1} parent=1 // pred_check
      _
    $region23: #{tpu_custom_call.1} parent=1 // pred_check_branch
      %87 = sbr.rel (0) target = $region25
    $region24: #{tpu_custom_call.1} parent=1 // pred_region
      %s89 = ssub.s32 96, 96
      %90 = vsyncadd [#allocation13], %s89
      %s92 = sshll.u32 [#allocation12], 4
      %s93 = int_to_ptr.vmem [resolvable:$true] %s92
      %95 = dma.hbm_to_vmem [thread:$0]  %s5, 96, %s93, [#allocation13]
    $region25: #{tpu_custom_call.1} parent=1 // pred_fallthru
      _
    // Predicated region
    $region26: #{tpu_custom_call.1} parent=1 // pred_check
      _
    $region27: #{tpu_custom_call.1} parent=1 // pred_check_branch
      %97 = sbr.rel (0) target = $region29
    $region28: #{tpu_custom_call.1} parent=1 // pred_region
      %s99 = ssub.s32 24576, 24576
      %100 = vsyncadd [#allocation13], %s99
      %s101 = sshll.u32 [#allocation14], 4
      %s102 = int_to_ptr.vmem [resolvable:$true] %s101
      %107 = dma.hbm_to_vmem [thread:$0]  %s6, 24576, %s102, [#allocation13], 256, 256, 16
    $region29: #{tpu_custom_call.1} parent=1 // pred_fallthru
      _
    // Predicated region
    $region30: #{tpu_custom_call.1} parent=1 // pred_check
      _
    $region31: #{tpu_custom_call.1} parent=1 // pred_check_branch
      %109 = sbr.rel (0) target = $region33
    $region32: #{tpu_custom_call.1} parent=1 // pred_region
      %s111 = ssub.s32 32, 32
      %112 = vsyncadd [#allocation16], %s111
      %s114 = sshll.u32 [#allocation15], 4
      %s115 = int_to_ptr.vmem [resolvable:$true] %s114
      %117 = dma.hbm_to_vmem [thread:$0]  %s7, 32, %s115, [#allocation16]
    $region33: #{tpu_custom_call.1} parent=1 // pred_fallthru
      _
    // Predicated region
    $region34: #{tpu_custom_call.1} parent=1 // pred_check
      _
    $region35: #{tpu_custom_call.1} parent=1 // pred_check_branch
      %119 = sbr.rel (0) target = $region37
    $region36: #{tpu_custom_call.1} parent=1 // pred_region
      %s121 = ssub.s32 24576, 24576
      %122 = vsyncadd [#allocation16], %s121
      %s123 = sshll.u32 [#allocation17], 4
      %s124 = int_to_ptr.vmem [resolvable:$true] %s123
      %129 = dma.hbm_to_vmem [thread:$0]  %s8, 24576, %s124, [#allocation16], 768, 768, 48
    $region37: #{tpu_custom_call.1} parent=1 // pred_fallthru
      _
    // Predicated region
    $region38: #{tpu_custom_call.1} parent=1 // pred_check
      _
    $region39: #{tpu_custom_call.1} parent=1 // pred_check_branch
      %131 = sbr.rel (0) target = $region41
    $region40: #{tpu_custom_call.1} parent=1 // pred_region
      %s133 = ssub.s32 96, 96
      %134 = vsyncadd [#allocation19], %s133
      %s136 = sshll.u32 [#allocation18], 4
      %s137 = int_to_ptr.vmem [resolvable:$true] %s136
      %139 = dma.hbm_to_vmem [thread:$0]  %s9, 96, %s137, [#allocation19]
    $region41: #{tpu_custom_call.1} parent=1 // pred_fallthru
      _
    // Predicated region
    $region42: #{tpu_custom_call.1} parent=1 // pred_check
      _
    $region43: #{tpu_custom_call.1} parent=1 // pred_check_branch
      %141 = sbr.rel (0) target = $region45
    $region44: #{tpu_custom_call.1} parent=1 // pred_region
      %s143 = ssub.s32 73728, 73728
      %144 = vsyncadd [#allocation19], %s143
      %s145 = sshll.u32 [#allocation20], 4
      %s146 = int_to_ptr.vmem [resolvable:$true] %s145
      %151 = dma.hbm_to_vmem [thread:$0]  %s10, 73728, %s146, [#allocation19], 768, 768, 48
    $region45: #{tpu_custom_call.1} parent=1 // pred_fallthru
      _
    // Predicated region
    $region46: #{tpu_custom_call.1} parent=1 // pred_check
      _
    $region47: #{tpu_custom_call.1} parent=1 // pred_check_branch
      %153 = sbr.rel (0) target = $region49
    $region48: #{tpu_custom_call.1} parent=1 // pred_region
      %s155 = ssub.s32 96, 96
      %156 = vsyncadd [#allocation22], %s155
      %s158 = sshll.u32 [#allocation21], 4
      %s159 = int_to_ptr.vmem [resolvable:$true] %s158
      %161 = dma.hbm_to_vmem [thread:$0]  %s11, 96, %s159, [#allocation22]
    $region49: #{tpu_custom_call.1} parent=1 // pred_fallthru
      _
    // Predicated region
    $region50: #{tpu_custom_call.1} parent=1 // pred_check
      _
    $region51: #{tpu_custom_call.1} parent=1 // pred_check_branch
      %163 = sbr.rel (0) target = $region53
    $region52: #{tpu_custom_call.1} parent=1 // pred_region
      %s165 = ssub.s32 12288, 12288
      %166 = vsyncadd [#allocation22], %s165
      %s167 = sshll.u32 [#allocation23], 4
      %s168 = int_to_ptr.vmem [resolvable:$true] %s167
      %173 = dma.hbm_to_vmem [thread:$0]  %s12, 12288, %s168, [#allocation22], 128, 128, 8
    $region53: #{tpu_custom_call.1} parent=1 // pred_fallthru
      _
    // Predicated region
    $region54: #{tpu_custom_call.1} parent=1 // pred_check
      _
    $region55: #{tpu_custom_call.1} parent=1 // pred_check_branch
      %175 = sbr.rel (0) target = $region57
    $region56: #{tpu_custom_call.1} parent=1 // pred_region
      %s177 = ssub.s32 16, 16
      %178 = vsyncadd [#allocation25], %s177
      %s180 = sshll.u32 [#allocation24], 4
      %s181 = int_to_ptr.vmem [resolvable:$true] %s180
      %183 = dma.hbm_to_vmem [thread:$0]  %s13, 16, %s181, [#allocation25]
    $region57: #{tpu_custom_call.1} parent=1 // pred_fallthru
      _
    // Predicated region
    $region58: #{tpu_custom_call.1} parent=1 // pred_check
      _
    $region59: #{tpu_custom_call.1} parent=1 // pred_check_branch
      %185 = sbr.rel (0) target = $region61
    $region60: #{tpu_custom_call.1} parent=1 // pred_region
      %186 = dma.done [#allocation4], 256
    $region61: #{tpu_custom_call.1} parent=1 // pred_fallthru
      _
    // Predicated region
    $region62: #{tpu_custom_call.1} parent=1 // pred_check
      _
    $region63: #{tpu_custom_call.1} parent=1 // pred_check_branch
      %188 = sbr.rel (0) target = $region65
    $region64: #{tpu_custom_call.1} parent=1 // pred_region
      %189 = dma.done [#allocation7], 128
    $region65: #{tpu_custom_call.1} parent=1 // pred_fallthru
      _
    // Predicated region
    $region66: #{tpu_custom_call.1} parent=1 // pred_check
      _
    $region67: #{tpu_custom_call.1} parent=1 // pred_check_branch
      %191 = sbr.rel (0) target = $region69
    $region68: #{tpu_custom_call.1} parent=1 // pred_region
      %192 = dma.done [#allocation7], 24576
    $region69: #{tpu_custom_call.1} parent=1 // pred_fallthru
      _
    // Predicated region
    $region70: #{tpu_custom_call.1} parent=1 // pred_check
      _
    $region71: #{tpu_custom_call.1} parent=1 // pred_check_branch
      %194 = sbr.rel (0) target = $region73
    $region72: #{tpu_custom_call.1} parent=1 // pred_region
      %195 = dma.done [#allocation10], 96
    $region73: #{tpu_custom_call.1} parent=1 // pred_fallthru
      _
    // Predicated region
    $region74: #{tpu_custom_call.1} parent=1 // pred_check
      _
    $region75: #{tpu_custom_call.1} parent=1 // pred_check_branch
      %197 = sbr.rel (0) target = $region77
    $region76: #{tpu_custom_call.1} parent=1 // pred_region
      %198 = dma.done [#allocation10], 73728
    $region77: #{tpu_custom_call.1} parent=1 // pred_fallthru
      _
    // Predicated region
    $region78: #{tpu_custom_call.1} parent=1 // pred_check
      _
    $region79: #{tpu_custom_call.1} parent=1 // pred_check_branch
      %200 = sbr.rel (0) target = $region81
    $region80: #{tpu_custom_call.1} parent=1 // pred_region
      %201 = dma.done [#allocation13], 96
    $region81: #{tpu_custom_call.1} parent=1 // pred_fallthru
      _
    // Predicated region
    $region82: #{tpu_custom_call.1} parent=1 // pred_check
      _
    $region83: #{tpu_custom_call.1} parent=1 // pred_check_branch
      %203 = sbr.rel (0) target = $region85
    $region84: #{tpu_custom_call.1} parent=1 // pred_region
      %204 = dma.done [#allocation13], 24576
    $region85: #{tpu_custom_call.1} parent=1 // pred_fallthru
      _
    // Predicated region
    $region86: #{tpu_custom_call.1} parent=1 // pred_check
      _
    $region87: #{tpu_custom_call.1} parent=1 // pred_check_branch
      %206 = sbr.rel (0) target = $region89
    $region88: #{tpu_custom_call.1} parent=1 // pred_region
      %207 = dma.done [#allocation16], 32
    $region89: #{tpu_custom_call.1} parent=1 // pred_fallthru
      _
    // Predicated region
    $region90: #{tpu_custom_call.1} parent=1 // pred_check
      _
    $region91: #{tpu_custom_call.1} parent=1 // pred_check_branch
      %209 = sbr.rel (0) target = $region93
    $region92: #{tpu_custom_call.1} parent=1 // pred_region
      %210 = dma.done [#allocation16], 24576
    $region93: #{tpu_custom_call.1} parent=1 // pred_fallthru
      _
    // Predicated region
    $region94: #{tpu_custom_call.1} parent=1 // pred_check
      _
    $region95: #{tpu_custom_call.1} parent=1 // pred_check_branch
      %212 = sbr.rel (0) target = $region97
    $region96: #{tpu_custom_call.1} parent=1 // pred_region
      %213 = dma.done [#allocation19], 96
    $region97: #{tpu_custom_call.1} parent=1 // pred_fallthru
      _
    // Predicated region
    $region98: #{tpu_custom_call.1} parent=1 // pred_check
      _
    $region99: #{tpu_custom_call.1} parent=1 // pred_check_branch
      %215 = sbr.rel (0) target = $region101
    $region100: #{tpu_custom_call.1} parent=1 // pred_region
      %216 = dma.done [#allocation19], 73728
    $region101: #{tpu_custom_call.1} parent=1 // pred_fallthru
      _
    // Predicated region
    $region102: #{tpu_custom_call.1} parent=1 // pred_check
      _
    $region103: #{tpu_custom_call.1} parent=1 // pred_check_branch
      %218 = sbr.rel (0) target = $region105
    $region104: #{tpu_custom_call.1} parent=1 // pred_region
      %219 = dma.done [#allocation22], 96
    $region105: #{tpu_custom_call.1} parent=1 // pred_fallthru
      _
    // Predicated region
    $region106: #{tpu_custom_call.1} parent=1 // pred_check
      _
    $region107: #{tpu_custom_call.1} parent=1 // pred_check_branch
      %221 = sbr.rel (0) target = $region109
    $region108: #{tpu_custom_call.1} parent=1 // pred_region
      %222 = dma.done [#allocation22], 12288
    $region109: #{tpu_custom_call.1} parent=1 // pred_fallthru
      _
    // Predicated region
    $region110: #{tpu_custom_call.1} parent=1 // pred_check
      _
    $region111: #{tpu_custom_call.1} parent=1 // pred_check_branch
      %224 = sbr.rel (0) target = $region113
    $region112: #{tpu_custom_call.1} parent=1 // pred_region
      %225 = dma.done [#allocation25], 16
    $region113: #{tpu_custom_call.1} parent=1 // pred_fallthru
      _
    %v226 = vld [vmem:[#allocation3] sm:$0xff]
    %v227 = vld [vmem:[#allocation3 + $0x8] sm:$0xff]
    %v228 = vld [vmem:[#allocation8] sm:$0xff]
    %v229 = vld [vmem:[#allocation8 + $0x8] sm:$0xff]
    %v230 = vld [vmem:[#allocation8 + $0x10] sm:$0xff]
    %v231 = vld [vmem:[#allocation8 + $0x18] sm:$0xff]
    %v232 = vld [vmem:[#allocation8 + $0x20] sm:$0xff]
    %v233 = vld [vmem:[#allocation8 + $0x28] sm:$0xff]
    %v234 = vld [vmem:[#allocation8 + $0x30] sm:$0xff]
    %v235 = vld [vmem:[#allocation8 + $0x38] sm:$0xff]
    %v236 = vld [vmem:[#allocation8 + $0x40] sm:$0xff]
    %v237 = vld [vmem:[#allocation8 + $0x48] sm:$0xff]
    %v238 = vld [vmem:[#allocation8 + $0x50] sm:$0xff]
    %v239 = vld [vmem:[#allocation8 + $0x58] sm:$0xff]
    %v240 = vld [vmem:[#allocation8 + $0x60] sm:$0xff]
    %v241 = vld [vmem:[#allocation8 + $0x68] sm:$0xff]
    %v242 = vld [vmem:[#allocation8 + $0x70] sm:$0xff]
    %v243 = vld [vmem:[#allocation8 + $0x78] sm:$0xff]
    %v244 = vld [vmem:[#allocation8 + $0x80] sm:$0xff]
    %v245 = vld [vmem:[#allocation8 + $0x88] sm:$0xff]
    %v246 = vld [vmem:[#allocation8 + $0x90] sm:$0xff]
    %v247 = vld [vmem:[#allocation8 + $0x98] sm:$0xff]
    %v248 = vld [vmem:[#allocation8 + $0xa0] sm:$0xff]
    %v249 = vld [vmem:[#allocation8 + $0xa8] sm:$0xff]
    %v250 = vld [vmem:[#allocation8 + $0xb0] sm:$0xff]
    %v251 = vld [vmem:[#allocation8 + $0xb8] sm:$0xff]
    %v252 = vld [vmem:[#allocation8 + $0xc0] sm:$0xff]
    %v253 = vld [vmem:[#allocation8 + $0xc8] sm:$0xff]
    %v254 = vld [vmem:[#allocation8 + $0xd0] sm:$0xff]
    %v255 = vld [vmem:[#allocation8 + $0xd8] sm:$0xff]
    %v256 = vld [vmem:[#allocation8 + $0xe0] sm:$0xff]
    %v257 = vld [vmem:[#allocation8 + $0xe8] sm:$0xff]
    %v258 = vld [vmem:[#allocation8 + $0xf0] sm:$0xff]
    %v259 = vld [vmem:[#allocation8 + $0xf8] sm:$0xff]
    %v260 = vld [vmem:[#allocation8 + $0x100] sm:$0xff]
    %v261 = vld [vmem:[#allocation8 + $0x108] sm:$0xff]
    %v262 = vld [vmem:[#allocation8 + $0x110] sm:$0xff]
    %v263 = vld [vmem:[#allocation8 + $0x118] sm:$0xff]
    %v264 = vld [vmem:[#allocation8 + $0x120] sm:$0xff]
    %v265 = vld [vmem:[#allocation8 + $0x128] sm:$0xff]
    %v266 = vld [vmem:[#allocation8 + $0x130] sm:$0xff]
    %v267 = vld [vmem:[#allocation8 + $0x138] sm:$0xff]
    %v268 = vld [vmem:[#allocation8 + $0x140] sm:$0xff]
    %v269 = vld [vmem:[#allocation8 + $0x148] sm:$0xff]
    %v270 = vld [vmem:[#allocation8 + $0x150] sm:$0xff]
    %v271 = vld [vmem:[#allocation8 + $0x158] sm:$0xff]
    %v272 = vld [vmem:[#allocation8 + $0x160] sm:$0xff]
    %v273 = vld [vmem:[#allocation8 + $0x168] sm:$0xff]
    %v274 = vld [vmem:[#allocation8 + $0x170] sm:$0xff]
    %v275 = vld [vmem:[#allocation8 + $0x178] sm:$0xff]
    %v276 = vld [vmem:[#allocation8 + $0x180] sm:$0xff]
    %v277 = vld [vmem:[#allocation8 + $0x188] sm:$0xff]
    %v278 = vld [vmem:[#allocation8 + $0x190] sm:$0xff]
    %v279 = vld [vmem:[#allocation8 + $0x198] sm:$0xff]
    %v280 = vld [vmem:[#allocation8 + $0x1a0] sm:$0xff]
    %v281 = vld [vmem:[#allocation8 + $0x1a8] sm:$0xff]
    %v282 = vld [vmem:[#allocation8 + $0x1b0] sm:$0xff]
    %v283 = vld [vmem:[#allocation8 + $0x1b8] sm:$0xff]
    %v284 = vld [vmem:[#allocation8 + $0x1c0] sm:$0xff]
    %v285 = vld [vmem:[#allocation8 + $0x1c8] sm:$0xff]
    %v286 = vld [vmem:[#allocation8 + $0x1d0] sm:$0xff]
    %v287 = vld [vmem:[#allocation8 + $0x1d8] sm:$0xff]
    %v288 = vld [vmem:[#allocation8 + $0x1e0] sm:$0xff]
    %v289 = vld [vmem:[#allocation8 + $0x1e8] sm:$0xff]
    %v290 = vld [vmem:[#allocation8 + $0x1f0] sm:$0xff]
    %v291 = vld [vmem:[#allocation8 + $0x1f8] sm:$0xff]
    %v292 = vld [vmem:[#allocation8 + $0x200] sm:$0xff]
    %v293 = vld [vmem:[#allocation8 + $0x208] sm:$0xff]
    %v294 = vld [vmem:[#allocation8 + $0x210] sm:$0xff]
    %v295 = vld [vmem:[#allocation8 + $0x218] sm:$0xff]
    %v296 = vld [vmem:[#allocation8 + $0x220] sm:$0xff]
    %v297 = vld [vmem:[#allocation8 + $0x228] sm:$0xff]
    %v298 = vld [vmem:[#allocation8 + $0x230] sm:$0xff]
    %v299 = vld [vmem:[#allocation8 + $0x238] sm:$0xff]
    %v300 = vld [vmem:[#allocation8 + $0x240] sm:$0xff]
    %v301 = vld [vmem:[#allocation8 + $0x248] sm:$0xff]
    %v302 = vld [vmem:[#allocation8 + $0x250] sm:$0xff]
    %v303 = vld [vmem:[#allocation8 + $0x258] sm:$0xff]
    %v304 = vld [vmem:[#allocation8 + $0x260] sm:$0xff]
    %v305 = vld [vmem:[#allocation8 + $0x268] sm:$0xff]
    %v306 = vld [vmem:[#allocation8 + $0x270] sm:$0xff]
    %v307 = vld [vmem:[#allocation8 + $0x278] sm:$0xff]
    %v308 = vld [vmem:[#allocation8 + $0x280] sm:$0xff]
    %v309 = vld [vmem:[#allocation8 + $0x288] sm:$0xff]
    %v310 = vld [vmem:[#allocation8 + $0x290] sm:$0xff]
    %v311 = vld [vmem:[#allocation8 + $0x298] sm:$0xff]
    %v312 = vld [vmem:[#allocation8 + $0x2a0] sm:$0xff]
    %v313 = vld [vmem:[#allocation8 + $0x2a8] sm:$0xff]
    %v314 = vld [vmem:[#allocation8 + $0x2b0] sm:$0xff]
    %v315 = vld [vmem:[#allocation8 + $0x2b8] sm:$0xff]
    %v316 = vld [vmem:[#allocation8 + $0x2c0] sm:$0xff]
    %v317 = vld [vmem:[#allocation8 + $0x2c8] sm:$0xff]
    %v318 = vld [vmem:[#allocation8 + $0x2d0] sm:$0xff]
    %v319 = vld [vmem:[#allocation8 + $0x2d8] sm:$0xff]
    %v320 = vld [vmem:[#allocation8 + $0x2e0] sm:$0xff]
    %v321 = vld [vmem:[#allocation8 + $0x2e8] sm:$0xff]
    %v322 = vld [vmem:[#allocation8 + $0x2f0] sm:$0xff]
    %v323 = vld [vmem:[#allocation8 + $0x2f8] sm:$0xff]
    %v324 = vld [vmem:[#allocation8 + $0x300] sm:$0xff]
    %v325 = vld [vmem:[#allocation8 + $0x308] sm:$0xff]
    %v326 = vld [vmem:[#allocation8 + $0x310] sm:$0xff]
    %v327 = vld [vmem:[#allocation8 + $0x318] sm:$0xff]
    %v328 = vld [vmem:[#allocation8 + $0x320] sm:$0xff]
    %v329 = vld [vmem:[#allocation8 + $0x328] sm:$0xff]
    %v330 = vld [vmem:[#allocation8 + $0x330] sm:$0xff]
    %v331 = vld [vmem:[#allocation8 + $0x338] sm:$0xff]
    %v332 = vld [vmem:[#allocation8 + $0x340] sm:$0xff]
    %v333 = vld [vmem:[#allocation8 + $0x348] sm:$0xff]
    %v334 = vld [vmem:[#allocation8 + $0x350] sm:$0xff]
    %v335 = vld [vmem:[#allocation8 + $0x358] sm:$0xff]
    %v336 = vld [vmem:[#allocation8 + $0x360] sm:$0xff]
    %v337 = vld [vmem:[#allocation8 + $0x368] sm:$0xff]
    %v338 = vld [vmem:[#allocation8 + $0x370] sm:$0xff]
    %v339 = vld [vmem:[#allocation8 + $0x378] sm:$0xff]
    %v340 = vld [vmem:[#allocation8 + $0x380] sm:$0xff]
    %v341 = vld [vmem:[#allocation8 + $0x388] sm:$0xff]
    %v342 = vld [vmem:[#allocation8 + $0x390] sm:$0xff]
    %v343 = vld [vmem:[#allocation8 + $0x398] sm:$0xff]
    %v344 = vld [vmem:[#allocation8 + $0x3a0] sm:$0xff]
    %v345 = vld [vmem:[#allocation8 + $0x3a8] sm:$0xff]
    %v346 = vld [vmem:[#allocation8 + $0x3b0] sm:$0xff]
    %v347 = vld [vmem:[#allocation8 + $0x3b8] sm:$0xff]
    %v348 = vld [vmem:[#allocation8 + $0x3c0] sm:$0xff]
    %v349 = vld [vmem:[#allocation8 + $0x3c8] sm:$0xff]
    %v350 = vld [vmem:[#allocation8 + $0x3d0] sm:$0xff]
    %v351 = vld [vmem:[#allocation8 + $0x3d8] sm:$0xff]
    %v352 = vld [vmem:[#allocation8 + $0x3e0] sm:$0xff]
    %v353 = vld [vmem:[#allocation8 + $0x3e8] sm:$0xff]
    %v354 = vld [vmem:[#allocation8 + $0x3f0] sm:$0xff]
    %v355 = vld [vmem:[#allocation8 + $0x3f8] sm:$0xff]
    %v356 = vld [vmem:[#allocation8 + $0x400] sm:$0xff]
    %v357 = vld [vmem:[#allocation8 + $0x408] sm:$0xff]
    %v358 = vld [vmem:[#allocation8 + $0x410] sm:$0xff]
    %v359 = vld [vmem:[#allocation8 + $0x418] sm:$0xff]
    %v360 = vld [vmem:[#allocation8 + $0x420] sm:$0xff]
    %v361 = vld [vmem:[#allocation8 + $0x428] sm:$0xff]
    %v362 = vld [vmem:[#allocation8 + $0x430] sm:$0xff]
    %v363 = vld [vmem:[#allocation8 + $0x438] sm:$0xff]
    %v364 = vld [vmem:[#allocation8 + $0x440] sm:$0xff]
    %v365 = vld [vmem:[#allocation8 + $0x448] sm:$0xff]
    %v366 = vld [vmem:[#allocation8 + $0x450] sm:$0xff]
    %v367 = vld [vmem:[#allocation8 + $0x458] sm:$0xff]
    %v368 = vld [vmem:[#allocation8 + $0x460] sm:$0xff]
    %v369 = vld [vmem:[#allocation8 + $0x468] sm:$0xff]
    %v370 = vld [vmem:[#allocation8 + $0x470] sm:$0xff]
    %v371 = vld [vmem:[#allocation8 + $0x478] sm:$0xff]
    %v372 = vld [vmem:[#allocation8 + $0x480] sm:$0xff]
    %v373 = vld [vmem:[#allocation8 + $0x488] sm:$0xff]
    %v374 = vld [vmem:[#allocation8 + $0x490] sm:$0xff]
    %v375 = vld [vmem:[#allocation8 + $0x498] sm:$0xff]
    %v376 = vld [vmem:[#allocation8 + $0x4a0] sm:$0xff]
    %v377 = vld [vmem:[#allocation8 + $0x4a8] sm:$0xff]
    %v378 = vld [vmem:[#allocation8 + $0x4b0] sm:$0xff]
    %v379 = vld [vmem:[#allocation8 + $0x4b8] sm:$0xff]
    %v380 = vld [vmem:[#allocation8 + $0x4c0] sm:$0xff]
    %v381 = vld [vmem:[#allocation8 + $0x4c8] sm:$0xff]
    %v382 = vld [vmem:[#allocation8 + $0x4d0] sm:$0xff]
    %v383 = vld [vmem:[#allocation8 + $0x4d8] sm:$0xff]
    %v384 = vld [vmem:[#allocation8 + $0x4e0] sm:$0xff]
    %v385 = vld [vmem:[#allocation8 + $0x4e8] sm:$0xff]
    %v386 = vld [vmem:[#allocation8 + $0x4f0] sm:$0xff]
    %v387 = vld [vmem:[#allocation8 + $0x4f8] sm:$0xff]
    %v388 = vld [vmem:[#allocation8 + $0x500] sm:$0xff]
    %v389 = vld [vmem:[#allocation8 + $0x508] sm:$0xff]
    %v390 = vld [vmem:[#allocation8 + $0x510] sm:$0xff]
    %v391 = vld [vmem:[#allocation8 + $0x518] sm:$0xff]
    %v392 = vld [vmem:[#allocation8 + $0x520] sm:$0xff]
    %v393 = vld [vmem:[#allocation8 + $0x528] sm:$0xff]
    %v394 = vld [vmem:[#allocation8 + $0x530] sm:$0xff]
    %v395 = vld [vmem:[#allocation8 + $0x538] sm:$0xff]
    %v396 = vld [vmem:[#allocation8 + $0x540] sm:$0xff]
    %v397 = vld [vmem:[#allocation8 + $0x548] sm:$0xff]
    %v398 = vld [vmem:[#allocation8 + $0x550] sm:$0xff]
    %v399 = vld [vmem:[#allocation8 + $0x558] sm:$0xff]
    %v400 = vld [vmem:[#allocation8 + $0x560] sm:$0xff]
    %v401 = vld [vmem:[#allocation8 + $0x568] sm:$0xff]
    %v402 = vld [vmem:[#allocation8 + $0x570] sm:$0xff]
    %v403 = vld [vmem:[#allocation8 + $0x578] sm:$0xff]
    %v404 = vld [vmem:[#allocation8 + $0x580] sm:$0xff]
    %v405 = vld [vmem:[#allocation8 + $0x588] sm:$0xff]
    %v406 = vld [vmem:[#allocation8 + $0x590] sm:$0xff]
    %v407 = vld [vmem:[#allocation8 + $0x598] sm:$0xff]
    %v408 = vld [vmem:[#allocation8 + $0x5a0] sm:$0xff]
    %v409 = vld [vmem:[#allocation8 + $0x5a8] sm:$0xff]
    %v410 = vld [vmem:[#allocation8 + $0x5b0] sm:$0xff]
    %v411 = vld [vmem:[#allocation8 + $0x5b8] sm:$0xff]
    %v412 = vld [vmem:[#allocation8 + $0x5c0] sm:$0xff]
    %v413 = vld [vmem:[#allocation8 + $0x5c8] sm:$0xff]
    %v414 = vld [vmem:[#allocation8 + $0x5d0] sm:$0xff]
    %v415 = vld [vmem:[#allocation8 + $0x5d8] sm:$0xff]
    %v416 = vld [vmem:[#allocation8 + $0x5e0] sm:$0xff]
    %v417 = vld [vmem:[#allocation8 + $0x5e8] sm:$0xff]
    %v418 = vld [vmem:[#allocation8 + $0x5f0] sm:$0xff]
    %v419 = vld [vmem:[#allocation8 + $0x5f8] sm:$0xff]
    %v420 = vld [vmem:[#allocation9] sm:$0x3f]
    %v422 = vlaneseq
    %v423 = vshrl.u32 %v422, 7
    %v424 = vsub.s32 0, %v423
    %v425 = vrot.slane %v420, %v424
    %v426 = vlaneseq
    %v427 = vshrl.u32 %v426, 7
    %v428 = vsub.s32 1, %v427
    %v429 = vrot.slane %v420, %v428
    %v430 = vlaneseq
    %v431 = vshrl.u32 %v430, 7
    %v432 = vsub.s32 2, %v431
    %v433 = vrot.slane %v420, %v432
    %v434 = vlaneseq
    %v435 = vshrl.u32 %v434, 7
    %v436 = vsub.s32 3, %v435
    %v437 = vrot.slane %v420, %v436
    %v438 = vlaneseq
    %v439 = vshrl.u32 %v438, 7
    %v440 = vsub.s32 4, %v439
    %v441 = vrot.slane %v420, %v440
    %v442 = vlaneseq
    %v443 = vshrl.u32 %v442, 7
    %v444 = vsub.s32 5, %v443
    %v445 = vrot.slane %v420, %v444
    %452 = vmatprep.subr.mxu0 %v319
    %453 = vmatpush1.msra.mxu0 %v318
    %454 = vmatprep.subr.mxu0 %v313
    %455 = vmatpush1.msra.mxu0 %v312
    %456 = vmatprep.subr.mxu0 %v307
    %457 = vmatpush1.msra.mxu0 %v306
    %458 = vmatprep.subr.mxu0 %v301
    %459 = vmatpush1.msra.mxu0 %v300
    %460 = vmatprep.subr.mxu0 %v295
    %461 = vmatpush1.msra.mxu0 %v294
    %462 = vmatprep.subr.mxu0 %v289
    %463 = vmatpush1.msra.mxu0 %v288
    %464 = vmatprep.subr.mxu0 %v283
    %465 = vmatpush1.msra.mxu0 %v282
    %466 = vmatprep.subr.mxu0 %v277
    %467 = vmatpush1.msra.mxu0 %v276
    %468 = vmatprep.subr.mxu0 %v271
    %469 = vmatpush1.msra.mxu0 %v270
    %470 = vmatprep.subr.mxu0 %v265
    %471 = vmatpush1.msra.mxu0 %v264
    %472 = vmatprep.subr.mxu0 %v259
    %473 = vmatpush1.msra.mxu0 %v258
    %474 = vmatprep.subr.mxu0 %v253
    %475 = vmatpush1.msra.mxu0 %v252
    %476 = vmatprep.subr.mxu0 %v247
    %477 = vmatpush1.msra.mxu0 %v246
    %478 = vmatprep.subr.mxu0 %v241
    %479 = vmatpush1.msra.mxu0 %v240
    %480 = vmatprep.subr.mxu0 %v235
    %481 = vmatpush1.msra.mxu0 %v234
    %482 = vmatprep.subr.mxu0 %v229
    %483 = vmatpush1.msra.mxu0 %v228
    %484 = vmatprep.subr.mxu0 %v415
    %485 = vmatpush2.msra.mxu0 %v414
    %486 = vmatprep.subr.mxu0 %v409
    %487 = vmatpush2.msra.mxu0 %v408
    %488 = vmatprep.subr.mxu0 %v403
    %489 = vmatpush2.msra.mxu0 %v402
    %490 = vmatprep.subr.mxu0 %v397
    %491 = vmatpush2.msra.mxu0 %v396
    %492 = vmatprep.subr.mxu0 %v391
    %493 = vmatpush2.msra.mxu0 %v390
    %494 = vmatprep.subr.mxu0 %v385
    %495 = vmatpush2.msra.mxu0 %v384
    %496 = vmatprep.subr.mxu0 %v379
    %497 = vmatpush2.msra.mxu0 %v378
    %498 = vmatprep.subr.mxu0 %v373
    %499 = vmatpush2.msra.mxu0 %v372
    %500 = vmatprep.subr.mxu0 %v367
    %501 = vmatpush2.msra.mxu0 %v366
    %502 = vmatprep.subr.mxu0 %v361
    %503 = vmatpush2.msra.mxu0 %v360
    %504 = vmatprep.subr.mxu0 %v355
    %505 = vmatpush2.msra.mxu0 %v354
    %506 = vmatprep.subr.mxu0 %v349
    %507 = vmatpush2.msra.mxu0 %v348
    %508 = vmatprep.subr.mxu0 %v343
    %509 = vmatpush2.msra.mxu0 %v342
    %510 = vmatprep.subr.mxu0 %v337
    %511 = vmatpush2.msra.mxu0 %v336
    %512 = vmatprep.subr.mxu0 %v331
    %513 = vmatpush2.msra.mxu0 %v330
    %514 = vmatprep.subr.mxu0 %v325
    %515 = vmatpush2.msra.mxu0 %v324
    %516 = vmatprep.mubr.f32.mxu0 %v227
    %517 = vmatmul.mubr.f32.gmra.mxu0 %v226
    %v518 = vpop.f32.mrf.mxu0
    %v519 = vadd.f32 %v425, %v518
    %v520 = vpop.f32.mrf.mxu0
    %v521 = vadd.f32 %v429, %v520
    %522 = vdwg.mxu0
    %523 = vmatprep.subr.mxu0 %v321
    %524 = vmatpush1.msra.mxu0 %v320
    %525 = vmatprep.subr.mxu0 %v315
    %526 = vmatpush1.msra.mxu0 %v314
    %527 = vmatprep.subr.mxu0 %v309
    %528 = vmatpush1.msra.mxu0 %v308
    %529 = vmatprep.subr.mxu0 %v303
    %530 = vmatpush1.msra.mxu0 %v302
    %531 = vmatprep.subr.mxu0 %v297
    %532 = vmatpush1.msra.mxu0 %v296
    %533 = vmatprep.subr.mxu0 %v291
    %534 = vmatpush1.msra.mxu0 %v290
    %535 = vmatprep.subr.mxu0 %v285
    %536 = vmatpush1.msra.mxu0 %v284
    %537 = vmatprep.subr.mxu0 %v279
    %538 = vmatpush1.msra.mxu0 %v278
    %539 = vmatprep.subr.mxu0 %v273
    %540 = vmatpush1.msra.mxu0 %v272
    %541 = vmatprep.subr.mxu0 %v267
    %542 = vmatpush1.msra.mxu0 %v266
    %543 = vmatprep.subr.mxu0 %v261
    %544 = vmatpush1.msra.mxu0 %v260
    %545 = vmatprep.subr.mxu0 %v255
    %546 = vmatpush1.msra.mxu0 %v254
    %547 = vmatprep.subr.mxu0 %v249
    %548 = vmatpush1.msra.mxu0 %v248
    %549 = vmatprep.subr.mxu0 %v243
    %550 = vmatpush1.msra.mxu0 %v242
    %551 = vmatprep.subr.mxu0 %v237
    %552 = vmatpush1.msra.mxu0 %v236
    %553 = vmatprep.subr.mxu0 %v231
    %554 = vmatpush1.msra.mxu0 %v230
    %555 = vmatprep.subr.mxu0 %v417
    %556 = vmatpush2.msra.mxu0 %v416
    %557 = vmatprep.subr.mxu0 %v411
    %558 = vmatpush2.msra.mxu0 %v410
    %559 = vmatprep.subr.mxu0 %v405
    %560 = vmatpush2.msra.mxu0 %v404
    %561 = vmatprep.subr.mxu0 %v399
    %562 = vmatpush2.msra.mxu0 %v398
    %563 = vmatprep.subr.mxu0 %v393
    %564 = vmatpush2.msra.mxu0 %v392
    %565 = vmatprep.subr.mxu0 %v387
    %566 = vmatpush2.msra.mxu0 %v386
    %567 = vmatprep.subr.mxu0 %v381
    %568 = vmatpush2.msra.mxu0 %v380
    %569 = vmatprep.subr.mxu0 %v375
    %570 = vmatpush2.msra.mxu0 %v374
    %571 = vmatprep.subr.mxu0 %v369
    %572 = vmatpush2.msra.mxu0 %v368
    %573 = vmatprep.subr.mxu0 %v363
    %574 = vmatpush2.msra.mxu0 %v362
    %575 = vmatprep.subr.mxu0 %v357
    %576 = vmatpush2.msra.mxu0 %v356
    %577 = vmatprep.subr.mxu0 %v351
    %578 = vmatpush2.msra.mxu0 %v350
    %579 = vmatprep.subr.mxu0 %v345
    %580 = vmatpush2.msra.mxu0 %v344
    %581 = vmatprep.subr.mxu0 %v339
    %582 = vmatpush2.msra.mxu0 %v338
    %583 = vmatprep.subr.mxu0 %v333
    %584 = vmatpush2.msra.mxu0 %v332
    %585 = vmatprep.subr.mxu0 %v327
    %586 = vmatpush2.msra.mxu0 %v326
    %587 = vmatprep.mubr.f32.mxu0 %v227
    %588 = vmatmul.mubr.f32.gmra.mxu0 %v226
    %v589 = vpop.f32.mrf.mxu0
    %v590 = vadd.f32 %v433, %v589
    %v591 = vpop.f32.mrf.mxu0
    %v592 = vadd.f32 %v437, %v591
    %593 = vdwg.mxu0
    %594 = vmatprep.subr.mxu0 %v323
    %595 = vmatpush1.msra.mxu0 %v322
    %596 = vmatprep.subr.mxu0 %v317
    %597 = vmatpush1.msra.mxu0 %v316
    %598 = vmatprep.subr.mxu0 %v311
    %599 = vmatpush1.msra.mxu0 %v310
    %600 = vmatprep.subr.mxu0 %v305
    %601 = vmatpush1.msra.mxu0 %v304
    %602 = vmatprep.subr.mxu0 %v299
    %603 = vmatpush1.msra.mxu0 %v298
    %604 = vmatprep.subr.mxu0 %v293
    %605 = vmatpush1.msra.mxu0 %v292
    %606 = vmatprep.subr.mxu0 %v287
    %607 = vmatpush1.msra.mxu0 %v286
    %608 = vmatprep.subr.mxu0 %v281
    %609 = vmatpush1.msra.mxu0 %v280
    %610 = vmatprep.subr.mxu0 %v275
    %611 = vmatpush1.msra.mxu0 %v274
    %612 = vmatprep.subr.mxu0 %v269
    %613 = vmatpush1.msra.mxu0 %v268
    %614 = vmatprep.subr.mxu0 %v263
    %615 = vmatpush1.msra.mxu0 %v262
    %616 = vmatprep.subr.mxu0 %v257
    %617 = vmatpush1.msra.mxu0 %v256
    %618 = vmatprep.subr.mxu0 %v251
    %619 = vmatpush1.msra.mxu0 %v250
    %620 = vmatprep.subr.mxu0 %v245
    %621 = vmatpush1.msra.mxu0 %v244
    %622 = vmatprep.subr.mxu0 %v239
    %623 = vmatpush1.msra.mxu0 %v238
    %624 = vmatprep.subr.mxu0 %v233
    %625 = vmatpush1.msra.mxu0 %v232
    %626 = vmatprep.subr.mxu0 %v419
    %627 = vmatpush2.msra.mxu0 %v418
    %628 = vmatprep.subr.mxu0 %v413
    %629 = vmatpush2.msra.mxu0 %v412
    %630 = vmatprep.subr.mxu0 %v407
    %631 = vmatpush2.msra.mxu0 %v406
    %632 = vmatprep.subr.mxu0 %v401
    %633 = vmatpush2.msra.mxu0 %v400
    %634 = vmatprep.subr.mxu0 %v395
    %635 = vmatpush2.msra.mxu0 %v394
    %636 = vmatprep.subr.mxu0 %v389
    %637 = vmatpush2.msra.mxu0 %v388
    %638 = vmatprep.subr.mxu0 %v383
    %639 = vmatpush2.msra.mxu0 %v382
    %640 = vmatprep.subr.mxu0 %v377
    %641 = vmatpush2.msra.mxu0 %v376
    %642 = vmatprep.subr.mxu0 %v371
    %643 = vmatpush2.msra.mxu0 %v370
    %644 = vmatprep.subr.mxu0 %v365
    %645 = vmatpush2.msra.mxu0 %v364
    %646 = vmatprep.subr.mxu0 %v359
    %647 = vmatpush2.msra.mxu0 %v358
    %648 = vmatprep.subr.mxu0 %v353
    %649 = vmatpush2.msra.mxu0 %v352
    %650 = vmatprep.subr.mxu0 %v347
    %651 = vmatpush2.msra.mxu0 %v346
    %652 = vmatprep.subr.mxu0 %v341
    %653 = vmatpush2.msra.mxu0 %v340
    %654 = vmatprep.subr.mxu0 %v335
    %655 = vmatpush2.msra.mxu0 %v334
    %656 = vmatprep.subr.mxu0 %v329
    %657 = vmatpush2.msra.mxu0 %v328
    %658 = vmatprep.mubr.f32.mxu0 %v227
    %659 = vmatmul.mubr.f32.gmra.mxu0 %v226
    %v660 = vpop.f32.mrf.mxu0
    %v661 = vadd.f32 %v441, %v660
    %v662 = vpop.f32.mrf.mxu0
    %v663 = vadd.f32 %v445, %v662
    %664 = vdwg.mxu0
    %v665 = vmax.f32 %v519, 0.0
    %v666 = vmax.f32 %v521, 0.0
    %v667 = vmax.f32 %v590, 0.0
    %v668 = vmax.f32 %v592, 0.0
    %v669 = vmax.f32 %v661, 0.0
    %v670 = vmax.f32 %v663, 0.0
    %v671 = vld [vmem:[#allocation11] sm:$0xff]
    %v672 = vld [vmem:[#allocation11 + $0x8] sm:$0xff]
    %v673 = vld [vmem:[#allocation11 + $0x10] sm:$0xff]
    %v674 = vld [vmem:[#allocation11 + $0x18] sm:$0xff]
    %v675 = vld [vmem:[#allocation11 + $0x20] sm:$0xff]
    %v676 = vld [vmem:[#allocation11 + $0x28] sm:$0xff]
    %v677 = vld [vmem:[#allocation11 + $0x30] sm:$0xff]
    %v678 = vld [vmem:[#allocation11 + $0x38] sm:$0xff]
    %v679 = vld [vmem:[#allocation11 + $0x40] sm:$0xff]
    %v680 = vld [vmem:[#allocation11 + $0x48] sm:$0xff]
    %v681 = vld [vmem:[#allocation11 + $0x50] sm:$0xff]
    %v682 = vld [vmem:[#allocation11 + $0x58] sm:$0xff]
    %v683 = vld [vmem:[#allocation11 + $0x60] sm:$0xff]
    %v684 = vld [vmem:[#allocation11 + $0x68] sm:$0xff]
    %v685 = vld [vmem:[#allocation11 + $0x70] sm:$0xff]
    %v686 = vld [vmem:[#allocation11 + $0x78] sm:$0xff]
    %v687 = vld [vmem:[#allocation11 + $0x80] sm:$0xff]
    %v688 = vld [vmem:[#allocation11 + $0x88] sm:$0xff]
    %v689 = vld [vmem:[#allocation11 + $0x90] sm:$0xff]
    %v690 = vld [vmem:[#allocation11 + $0x98] sm:$0xff]
    %v691 = vld [vmem:[#allocation11 + $0xa0] sm:$0xff]
    %v692 = vld [vmem:[#allocation11 + $0xa8] sm:$0xff]
    %v693 = vld [vmem:[#allocation11 + $0xb0] sm:$0xff]
    %v694 = vld [vmem:[#allocation11 + $0xb8] sm:$0xff]
    %v695 = vld [vmem:[#allocation11 + $0xc0] sm:$0xff]
    %v696 = vld [vmem:[#allocation11 + $0xc8] sm:$0xff]
    %v697 = vld [vmem:[#allocation11 + $0xd0] sm:$0xff]
    %v698 = vld [vmem:[#allocation11 + $0xd8] sm:$0xff]
    %v699 = vld [vmem:[#allocation11 + $0xe0] sm:$0xff]
    %v700 = vld [vmem:[#allocation11 + $0xe8] sm:$0xff]
    %v701 = vld [vmem:[#allocation11 + $0xf0] sm:$0xff]
    %v702 = vld [vmem:[#allocation11 + $0xf8] sm:$0xff]
    %v703 = vld [vmem:[#allocation11 + $0x100] sm:$0xff]
    %v704 = vld [vmem:[#allocation11 + $0x108] sm:$0xff]
    %v705 = vld [vmem:[#allocation11 + $0x110] sm:$0xff]
    %v706 = vld [vmem:[#allocation11 + $0x118] sm:$0xff]
    %v707 = vld [vmem:[#allocation11 + $0x120] sm:$0xff]
    %v708 = vld [vmem:[#allocation11 + $0x128] sm:$0xff]
    %v709 = vld [vmem:[#allocation11 + $0x130] sm:$0xff]
    %v710 = vld [vmem:[#allocation11 + $0x138] sm:$0xff]
    %v711 = vld [vmem:[#allocation11 + $0x140] sm:$0xff]
    %v712 = vld [vmem:[#allocation11 + $0x148] sm:$0xff]
    %v713 = vld [vmem:[#allocation11 + $0x150] sm:$0xff]
    %v714 = vld [vmem:[#allocation11 + $0x158] sm:$0xff]
    %v715 = vld [vmem:[#allocation11 + $0x160] sm:$0xff]
    %v716 = vld [vmem:[#allocation11 + $0x168] sm:$0xff]
    %v717 = vld [vmem:[#allocation11 + $0x170] sm:$0xff]
    %v718 = vld [vmem:[#allocation11 + $0x178] sm:$0xff]
    %v719 = vld [vmem:[#allocation11 + $0x180] sm:$0xff]
    %v720 = vld [vmem:[#allocation11 + $0x188] sm:$0xff]
    %v721 = vld [vmem:[#allocation11 + $0x190] sm:$0xff]
    %v722 = vld [vmem:[#allocation11 + $0x198] sm:$0xff]
    %v723 = vld [vmem:[#allocation11 + $0x1a0] sm:$0xff]
    %v724 = vld [vmem:[#allocation11 + $0x1a8] sm:$0xff]
    %v725 = vld [vmem:[#allocation11 + $0x1b0] sm:$0xff]
    %v726 = vld [vmem:[#allocation11 + $0x1b8] sm:$0xff]
    %v727 = vld [vmem:[#allocation11 + $0x1c0] sm:$0xff]
    %v728 = vld [vmem:[#allocation11 + $0x1c8] sm:$0xff]
    %v729 = vld [vmem:[#allocation11 + $0x1d0] sm:$0xff]
    %v730 = vld [vmem:[#allocation11 + $0x1d8] sm:$0xff]
    %v731 = vld [vmem:[#allocation11 + $0x1e0] sm:$0xff]
    %v732 = vld [vmem:[#allocation11 + $0x1e8] sm:$0xff]
    %v733 = vld [vmem:[#allocation11 + $0x1f0] sm:$0xff]
    %v734 = vld [vmem:[#allocation11 + $0x1f8] sm:$0xff]
    %v735 = vld [vmem:[#allocation11 + $0x200] sm:$0xff]
    %v736 = vld [vmem:[#allocation11 + $0x208] sm:$0xff]
    %v737 = vld [vmem:[#allocation11 + $0x210] sm:$0xff]
    %v738 = vld [vmem:[#allocation11 + $0x218] sm:$0xff]
    %v739 = vld [vmem:[#allocation11 + $0x220] sm:$0xff]
    %v740 = vld [vmem:[#allocation11 + $0x228] sm:$0xff]
    %v741 = vld [vmem:[#allocation11 + $0x230] sm:$0xff]
    %v742 = vld [vmem:[#allocation11 + $0x238] sm:$0xff]
    %v743 = vld [vmem:[#allocation11 + $0x240] sm:$0xff]
    %v744 = vld [vmem:[#allocation11 + $0x248] sm:$0xff]
    %v745 = vld [vmem:[#allocation11 + $0x250] sm:$0xff]
    %v746 = vld [vmem:[#allocation11 + $0x258] sm:$0xff]
    %v747 = vld [vmem:[#allocation11 + $0x260] sm:$0xff]
    %v748 = vld [vmem:[#allocation11 + $0x268] sm:$0xff]
    %v749 = vld [vmem:[#allocation11 + $0x270] sm:$0xff]
    %v750 = vld [vmem:[#allocation11 + $0x278] sm:$0xff]
    %v751 = vld [vmem:[#allocation11 + $0x280] sm:$0xff]
    %v752 = vld [vmem:[#allocation11 + $0x288] sm:$0xff]
    %v753 = vld [vmem:[#allocation11 + $0x290] sm:$0xff]
    %v754 = vld [vmem:[#allocation11 + $0x298] sm:$0xff]
    %v755 = vld [vmem:[#allocation11 + $0x2a0] sm:$0xff]
    %v756 = vld [vmem:[#allocation11 + $0x2a8] sm:$0xff]
    %v757 = vld [vmem:[#allocation11 + $0x2b0] sm:$0xff]
    %v758 = vld [vmem:[#allocation11 + $0x2b8] sm:$0xff]
    %v759 = vld [vmem:[#allocation11 + $0x2c0] sm:$0xff]
    %v760 = vld [vmem:[#allocation11 + $0x2c8] sm:$0xff]
    %v761 = vld [vmem:[#allocation11 + $0x2d0] sm:$0xff]
    %v762 = vld [vmem:[#allocation11 + $0x2d8] sm:$0xff]
    %v763 = vld [vmem:[#allocation11 + $0x2e0] sm:$0xff]
    %v764 = vld [vmem:[#allocation11 + $0x2e8] sm:$0xff]
    %v765 = vld [vmem:[#allocation11 + $0x2f0] sm:$0xff]
    %v766 = vld [vmem:[#allocation11 + $0x2f8] sm:$0xff]
    %v767 = vld [vmem:[#allocation11 + $0x300] sm:$0xff]
    %v768 = vld [vmem:[#allocation11 + $0x308] sm:$0xff]
    %v769 = vld [vmem:[#allocation11 + $0x310] sm:$0xff]
    %v770 = vld [vmem:[#allocation11 + $0x318] sm:$0xff]
    %v771 = vld [vmem:[#allocation11 + $0x320] sm:$0xff]
    %v772 = vld [vmem:[#allocation11 + $0x328] sm:$0xff]
    %v773 = vld [vmem:[#allocation11 + $0x330] sm:$0xff]
    %v774 = vld [vmem:[#allocation11 + $0x338] sm:$0xff]
    %v775 = vld [vmem:[#allocation11 + $0x340] sm:$0xff]
    %v776 = vld [vmem:[#allocation11 + $0x348] sm:$0xff]
    %v777 = vld [vmem:[#allocation11 + $0x350] sm:$0xff]
    %v778 = vld [vmem:[#allocation11 + $0x358] sm:$0xff]
    %v779 = vld [vmem:[#allocation11 + $0x360] sm:$0xff]
    %v780 = vld [vmem:[#allocation11 + $0x368] sm:$0xff]
    %v781 = vld [vmem:[#allocation11 + $0x370] sm:$0xff]
    %v782 = vld [vmem:[#allocation11 + $0x378] sm:$0xff]
    %v783 = vld [vmem:[#allocation11 + $0x380] sm:$0xff]
    %v784 = vld [vmem:[#allocation11 + $0x388] sm:$0xff]
    %v785 = vld [vmem:[#allocation11 + $0x390] sm:$0xff]
    %v786 = vld [vmem:[#allocation11 + $0x398] sm:$0xff]
    %v787 = vld [vmem:[#allocation11 + $0x3a0] sm:$0xff]
    %v788 = vld [vmem:[#allocation11 + $0x3a8] sm:$0xff]
    %v789 = vld [vmem:[#allocation11 + $0x3b0] sm:$0xff]
    %v790 = vld [vmem:[#allocation11 + $0x3b8] sm:$0xff]
    %v791 = vld [vmem:[#allocation11 + $0x3c0] sm:$0xff]
    %v792 = vld [vmem:[#allocation11 + $0x3c8] sm:$0xff]
    %v793 = vld [vmem:[#allocation11 + $0x3d0] sm:$0xff]
    %v794 = vld [vmem:[#allocation11 + $0x3d8] sm:$0xff]
    %v795 = vld [vmem:[#allocation11 + $0x3e0] sm:$0xff]
    %v796 = vld [vmem:[#allocation11 + $0x3e8] sm:$0xff]
    %v797 = vld [vmem:[#allocation11 + $0x3f0] sm:$0xff]
    %v798 = vld [vmem:[#allocation11 + $0x3f8] sm:$0xff]
    %v799 = vld [vmem:[#allocation11 + $0x400] sm:$0xff]
    %v800 = vld [vmem:[#allocation11 + $0x408] sm:$0xff]
    %v801 = vld [vmem:[#allocation11 + $0x410] sm:$0xff]
    %v802 = vld [vmem:[#allocation11 + $0x418] sm:$0xff]
    %v803 = vld [vmem:[#allocation11 + $0x420] sm:$0xff]
    %v804 = vld [vmem:[#allocation11 + $0x428] sm:$0xff]
    %v805 = vld [vmem:[#allocation11 + $0x430] sm:$0xff]
    %v806 = vld [vmem:[#allocation11 + $0x438] sm:$0xff]
    %v807 = vld [vmem:[#allocation11 + $0x440] sm:$0xff]
    %v808 = vld [vmem:[#allocation11 + $0x448] sm:$0xff]
    %v809 = vld [vmem:[#allocation11 + $0x450] sm:$0xff]
    %v810 = vld [vmem:[#allocation11 + $0x458] sm:$0xff]
    %v811 = vld [vmem:[#allocation11 + $0x460] sm:$0xff]
    %v812 = vld [vmem:[#allocation11 + $0x468] sm:$0xff]
    %v813 = vld [vmem:[#allocation11 + $0x470] sm:$0xff]
    %v814 = vld [vmem:[#allocation11 + $0x478] sm:$0xff]
    %v815 = vld [vmem:[#allocation11 + $0x480] sm:$0xff]
    %v816 = vld [vmem:[#allocation11 + $0x488] sm:$0xff]
    %v817 = vld [vmem:[#allocation11 + $0x490] sm:$0xff]
    %v818 = vld [vmem:[#allocation11 + $0x498] sm:$0xff]
    %v819 = vld [vmem:[#allocation11 + $0x4a0] sm:$0xff]
    %v820 = vld [vmem:[#allocation11 + $0x4a8] sm:$0xff]
    %v821 = vld [vmem:[#allocation11 + $0x4b0] sm:$0xff]
    %v822 = vld [vmem:[#allocation11 + $0x4b8] sm:$0xff]
    %v823 = vld [vmem:[#allocation11 + $0x4c0] sm:$0xff]
    %v824 = vld [vmem:[#allocation11 + $0x4c8] sm:$0xff]
    %v825 = vld [vmem:[#allocation11 + $0x4d0] sm:$0xff]
    %v826 = vld [vmem:[#allocation11 + $0x4d8] sm:$0xff]
    %v827 = vld [vmem:[#allocation11 + $0x4e0] sm:$0xff]
    %v828 = vld [vmem:[#allocation11 + $0x4e8] sm:$0xff]
    %v829 = vld [vmem:[#allocation11 + $0x4f0] sm:$0xff]
    %v830 = vld [vmem:[#allocation11 + $0x4f8] sm:$0xff]
    %v831 = vld [vmem:[#allocation11 + $0x500] sm:$0xff]
    %v832 = vld [vmem:[#allocation11 + $0x508] sm:$0xff]
    %v833 = vld [vmem:[#allocation11 + $0x510] sm:$0xff]
    %v834 = vld [vmem:[#allocation11 + $0x518] sm:$0xff]
    %v835 = vld [vmem:[#allocation11 + $0x520] sm:$0xff]
    %v836 = vld [vmem:[#allocation11 + $0x528] sm:$0xff]
    %v837 = vld [vmem:[#allocation11 + $0x530] sm:$0xff]
    %v838 = vld [vmem:[#allocation11 + $0x538] sm:$0xff]
    %v839 = vld [vmem:[#allocation11 + $0x540] sm:$0xff]
    %v840 = vld [vmem:[#allocation11 + $0x548] sm:$0xff]
    %v841 = vld [vmem:[#allocation11 + $0x550] sm:$0xff]
    %v842 = vld [vmem:[#allocation11 + $0x558] sm:$0xff]
    %v843 = vld [vmem:[#allocation11 + $0x560] sm:$0xff]
    %v844 = vld [vmem:[#allocation11 + $0x568] sm:$0xff]
    %v845 = vld [vmem:[#allocation11 + $0x570] sm:$0xff]
    %v846 = vld [vmem:[#allocation11 + $0x578] sm:$0xff]
    %v847 = vld [vmem:[#allocation11 + $0x580] sm:$0xff]
    %v848 = vld [vmem:[#allocation11 + $0x588] sm:$0xff]
    %v849 = vld [vmem:[#allocation11 + $0x590] sm:$0xff]
    %v850 = vld [vmem:[#allocation11 + $0x598] sm:$0xff]
    %v851 = vld [vmem:[#allocation11 + $0x5a0] sm:$0xff]
    %v852 = vld [vmem:[#allocation11 + $0x5a8] sm:$0xff]
    %v853 = vld [vmem:[#allocation11 + $0x5b0] sm:$0xff]
    %v854 = vld [vmem:[#allocation11 + $0x5b8] sm:$0xff]
    %v855 = vld [vmem:[#allocation11 + $0x5c0] sm:$0xff]
    %v856 = vld [vmem:[#allocation11 + $0x5c8] sm:$0xff]
    %v857 = vld [vmem:[#allocation11 + $0x5d0] sm:$0xff]
    %v858 = vld [vmem:[#allocation11 + $0x5d8] sm:$0xff]
    %v859 = vld [vmem:[#allocation11 + $0x5e0] sm:$0xff]
    %v860 = vld [vmem:[#allocation11 + $0x5e8] sm:$0xff]
    %v861 = vld [vmem:[#allocation11 + $0x5f0] sm:$0xff]
    %v862 = vld [vmem:[#allocation11 + $0x5f8] sm:$0xff]
    %v863 = vld [vmem:[#allocation11 + $0x600] sm:$0xff]
    %v864 = vld [vmem:[#allocation11 + $0x608] sm:$0xff]
    %v865 = vld [vmem:[#allocation11 + $0x610] sm:$0xff]
    %v866 = vld [vmem:[#allocation11 + $0x618] sm:$0xff]
    %v867 = vld [vmem:[#allocation11 + $0x620] sm:$0xff]
    %v868 = vld [vmem:[#allocation11 + $0x628] sm:$0xff]
    %v869 = vld [vmem:[#allocation11 + $0x630] sm:$0xff]
    %v870 = vld [vmem:[#allocation11 + $0x638] sm:$0xff]
    %v871 = vld [vmem:[#allocation11 + $0x640] sm:$0xff]
    %v872 = vld [vmem:[#allocation11 + $0x648] sm:$0xff]
    %v873 = vld [vmem:[#allocation11 + $0x650] sm:$0xff]
    %v874 = vld [vmem:[#allocation11 + $0x658] sm:$0xff]
    %v875 = vld [vmem:[#allocation11 + $0x660] sm:$0xff]
    %v876 = vld [vmem:[#allocation11 + $0x668] sm:$0xff]
    %v877 = vld [vmem:[#allocation11 + $0x670] sm:$0xff]
    %v878 = vld [vmem:[#allocation11 + $0x678] sm:$0xff]
    %v879 = vld [vmem:[#allocation11 + $0x680] sm:$0xff]
    %v880 = vld [vmem:[#allocation11 + $0x688] sm:$0xff]
    %v881 = vld [vmem:[#allocation11 + $0x690] sm:$0xff]
    %v882 = vld [vmem:[#allocation11 + $0x698] sm:$0xff]
    %v883 = vld [vmem:[#allocation11 + $0x6a0] sm:$0xff]
    %v884 = vld [vmem:[#allocation11 + $0x6a8] sm:$0xff]
    %v885 = vld [vmem:[#allocation11 + $0x6b0] sm:$0xff]
    %v886 = vld [vmem:[#allocation11 + $0x6b8] sm:$0xff]
    %v887 = vld [vmem:[#allocation11 + $0x6c0] sm:$0xff]
    %v888 = vld [vmem:[#allocation11 + $0x6c8] sm:$0xff]
    %v889 = vld [vmem:[#allocation11 + $0x6d0] sm:$0xff]
    %v890 = vld [vmem:[#allocation11 + $0x6d8] sm:$0xff]
    %v891 = vld [vmem:[#allocation11 + $0x6e0] sm:$0xff]
    %v892 = vld [vmem:[#allocation11 + $0x6e8] sm:$0xff]
    %v893 = vld [vmem:[#allocation11 + $0x6f0] sm:$0xff]
    %v894 = vld [vmem:[#allocation11 + $0x6f8] sm:$0xff]
    %v895 = vld [vmem:[#allocation11 + $0x700] sm:$0xff]
    %v896 = vld [vmem:[#allocation11 + $0x708] sm:$0xff]
    %v897 = vld [vmem:[#allocation11 + $0x710] sm:$0xff]
    %v898 = vld [vmem:[#allocation11 + $0x718] sm:$0xff]
    %v899 = vld [vmem:[#allocation11 + $0x720] sm:$0xff]
    %v900 = vld [vmem:[#allocation11 + $0x728] sm:$0xff]
    %v901 = vld [vmem:[#allocation11 + $0x730] sm:$0xff]
    %v902 = vld [vmem:[#allocation11 + $0x738] sm:$0xff]
    %v903 = vld [vmem:[#allocation11 + $0x740] sm:$0xff]
    %v904 = vld [vmem:[#allocation11 + $0x748] sm:$0xff]
    %v905 = vld [vmem:[#allocation11 + $0x750] sm:$0xff]
    %v906 = vld [vmem:[#allocation11 + $0x758] sm:$0xff]
    %v907 = vld [vmem:[#allocation11 + $0x760] sm:$0xff]
    %v908 = vld [vmem:[#allocation11 + $0x768] sm:$0xff]
    %v909 = vld [vmem:[#allocation11 + $0x770] sm:$0xff]
    %v910 = vld [vmem:[#allocation11 + $0x778] sm:$0xff]
    %v911 = vld [vmem:[#allocation11 + $0x780] sm:$0xff]
    %v912 = vld [vmem:[#allocation11 + $0x788] sm:$0xff]
    %v913 = vld [vmem:[#allocation11 + $0x790] sm:$0xff]
    %v914 = vld [vmem:[#allocation11 + $0x798] sm:$0xff]
    %v915 = vld [vmem:[#allocation11 + $0x7a0] sm:$0xff]
    %v916 = vld [vmem:[#allocation11 + $0x7a8] sm:$0xff]
    %v917 = vld [vmem:[#allocation11 + $0x7b0] sm:$0xff]
    %v918 = vld [vmem:[#allocation11 + $0x7b8] sm:$0xff]
    %v919 = vld [vmem:[#allocation11 + $0x7c0] sm:$0xff]
    %v920 = vld [vmem:[#allocation11 + $0x7c8] sm:$0xff]
    %v921 = vld [vmem:[#allocation11 + $0x7d0] sm:$0xff]
    %v922 = vld [vmem:[#allocation11 + $0x7d8] sm:$0xff]
    %v923 = vld [vmem:[#allocation11 + $0x7e0] sm:$0xff]
    %v924 = vld [vmem:[#allocation11 + $0x7e8] sm:$0xff]
    %v925 = vld [vmem:[#allocation11 + $0x7f0] sm:$0xff]
    %v926 = vld [vmem:[#allocation11 + $0x7f8] sm:$0xff]
    %v927 = vld [vmem:[#allocation11 + $0x800] sm:$0xff]
    %v928 = vld [vmem:[#allocation11 + $0x808] sm:$0xff]
    %v929 = vld [vmem:[#allocation11 + $0x810] sm:$0xff]
    %v930 = vld [vmem:[#allocation11 + $0x818] sm:$0xff]
    %v931 = vld [vmem:[#allocation11 + $0x820] sm:$0xff]
    %v932 = vld [vmem:[#allocation11 + $0x828] sm:$0xff]
    %v933 = vld [vmem:[#allocation11 + $0x830] sm:$0xff]
    %v934 = vld [vmem:[#allocation11 + $0x838] sm:$0xff]
    %v935 = vld [vmem:[#allocation11 + $0x840] sm:$0xff]
    %v936 = vld [vmem:[#allocation11 + $0x848] sm:$0xff]
    %v937 = vld [vmem:[#allocation11 + $0x850] sm:$0xff]
    %v938 = vld [vmem:[#allocation11 + $0x858] sm:$0xff]
    %v939 = vld [vmem:[#allocation11 + $0x860] sm:$0xff]
    %v940 = vld [vmem:[#allocation11 + $0x868] sm:$0xff]
    %v941 = vld [vmem:[#allocation11 + $0x870] sm:$0xff]
    %v942 = vld [vmem:[#allocation11 + $0x878] sm:$0xff]
    %v943 = vld [vmem:[#allocation11 + $0x880] sm:$0xff]
    %v944 = vld [vmem:[#allocation11 + $0x888] sm:$0xff]
    %v945 = vld [vmem:[#allocation11 + $0x890] sm:$0xff]
    %v946 = vld [vmem:[#allocation11 + $0x898] sm:$0xff]
    %v947 = vld [vmem:[#allocation11 + $0x8a0] sm:$0xff]
    %v948 = vld [vmem:[#allocation11 + $0x8a8] sm:$0xff]
    %v949 = vld [vmem:[#allocation11 + $0x8b0] sm:$0xff]
    %v950 = vld [vmem:[#allocation11 + $0x8b8] sm:$0xff]
    %v951 = vld [vmem:[#allocation11 + $0x8c0] sm:$0xff]
    %v952 = vld [vmem:[#allocation11 + $0x8c8] sm:$0xff]
    %v953 = vld [vmem:[#allocation11 + $0x8d0] sm:$0xff]
    %v954 = vld [vmem:[#allocation11 + $0x8d8] sm:$0xff]
    %v955 = vld [vmem:[#allocation11 + $0x8e0] sm:$0xff]
    %v956 = vld [vmem:[#allocation11 + $0x8e8] sm:$0xff]
    %v957 = vld [vmem:[#allocation11 + $0x8f0] sm:$0xff]
    %v958 = vld [vmem:[#allocation11 + $0x8f8] sm:$0xff]
    %v959 = vld [vmem:[#allocation11 + $0x900] sm:$0xff]
    %v960 = vld [vmem:[#allocation11 + $0x908] sm:$0xff]
    %v961 = vld [vmem:[#allocation11 + $0x910] sm:$0xff]
    %v962 = vld [vmem:[#allocation11 + $0x918] sm:$0xff]
    %v963 = vld [vmem:[#allocation11 + $0x920] sm:$0xff]
    %v964 = vld [vmem:[#allocation11 + $0x928] sm:$0xff]
    %v965 = vld [vmem:[#allocation11 + $0x930] sm:$0xff]
    %v966 = vld [vmem:[#allocation11 + $0x938] sm:$0xff]
    %v967 = vld [vmem:[#allocation11 + $0x940] sm:$0xff]
    %v968 = vld [vmem:[#allocation11 + $0x948] sm:$0xff]
    %v969 = vld [vmem:[#allocation11 + $0x950] sm:$0xff]
    %v970 = vld [vmem:[#allocation11 + $0x958] sm:$0xff]
    %v971 = vld [vmem:[#allocation11 + $0x960] sm:$0xff]
    %v972 = vld [vmem:[#allocation11 + $0x968] sm:$0xff]
    %v973 = vld [vmem:[#allocation11 + $0x970] sm:$0xff]
    %v974 = vld [vmem:[#allocation11 + $0x978] sm:$0xff]
    %v975 = vld [vmem:[#allocation11 + $0x980] sm:$0xff]
    %v976 = vld [vmem:[#allocation11 + $0x988] sm:$0xff]
    %v977 = vld [vmem:[#allocation11 + $0x990] sm:$0xff]
    %v978 = vld [vmem:[#allocation11 + $0x998] sm:$0xff]
    %v979 = vld [vmem:[#allocation11 + $0x9a0] sm:$0xff]
    %v980 = vld [vmem:[#allocation11 + $0x9a8] sm:$0xff]
    %v981 = vld [vmem:[#allocation11 + $0x9b0] sm:$0xff]
    %v982 = vld [vmem:[#allocation11 + $0x9b8] sm:$0xff]
    %v983 = vld [vmem:[#allocation11 + $0x9c0] sm:$0xff]
    %v984 = vld [vmem:[#allocation11 + $0x9c8] sm:$0xff]
    %v985 = vld [vmem:[#allocation11 + $0x9d0] sm:$0xff]
    %v986 = vld [vmem:[#allocation11 + $0x9d8] sm:$0xff]
    %v987 = vld [vmem:[#allocation11 + $0x9e0] sm:$0xff]
    %v988 = vld [vmem:[#allocation11 + $0x9e8] sm:$0xff]
    %v989 = vld [vmem:[#allocation11 + $0x9f0] sm:$0xff]
    %v990 = vld [vmem:[#allocation11 + $0x9f8] sm:$0xff]
    %v991 = vld [vmem:[#allocation11 + $0xa00] sm:$0xff]
    %v992 = vld [vmem:[#allocation11 + $0xa08] sm:$0xff]
    %v993 = vld [vmem:[#allocation11 + $0xa10] sm:$0xff]
    %v994 = vld [vmem:[#allocation11 + $0xa18] sm:$0xff]
    %v995 = vld [vmem:[#allocation11 + $0xa20] sm:$0xff]
    %v996 = vld [vmem:[#allocation11 + $0xa28] sm:$0xff]
    %v997 = vld [vmem:[#allocation11 + $0xa30] sm:$0xff]
    %v998 = vld [vmem:[#allocation11 + $0xa38] sm:$0xff]
    %v999 = vld [vmem:[#allocation11 + $0xa40] sm:$0xff]
    %v1000 = vld [vmem:[#allocation11 + $0xa48] sm:$0xff]
    %v1001 = vld [vmem:[#allocation11 + $0xa50] sm:$0xff]
    %v1002 = vld [vmem:[#allocation11 + $0xa58] sm:$0xff]
    %v1003 = vld [vmem:[#allocation11 + $0xa60] sm:$0xff]
    %v1004 = vld [vmem:[#allocation11 + $0xa68] sm:$0xff]
    %v1005 = vld [vmem:[#allocation11 + $0xa70] sm:$0xff]
    %v1006 = vld [vmem:[#allocation11 + $0xa78] sm:$0xff]
    %v1007 = vld [vmem:[#allocation11 + $0xa80] sm:$0xff]
    %v1008 = vld [vmem:[#allocation11 + $0xa88] sm:$0xff]
    %v1009 = vld [vmem:[#allocation11 + $0xa90] sm:$0xff]
    %v1010 = vld [vmem:[#allocation11 + $0xa98] sm:$0xff]
    %v1011 = vld [vmem:[#allocation11 + $0xaa0] sm:$0xff]
    %v1012 = vld [vmem:[#allocation11 + $0xaa8] sm:$0xff]
    %v1013 = vld [vmem:[#allocation11 + $0xab0] sm:$0xff]
    %v1014 = vld [vmem:[#allocation11 + $0xab8] sm:$0xff]
    %v1015 = vld [vmem:[#allocation11 + $0xac0] sm:$0xff]
    %v1016 = vld [vmem:[#allocation11 + $0xac8] sm:$0xff]
    %v1017 = vld [vmem:[#allocation11 + $0xad0] sm:$0xff]
    %v1018 = vld [vmem:[#allocation11 + $0xad8] sm:$0xff]
    %v1019 = vld [vmem:[#allocation11 + $0xae0] sm:$0xff]
    %v1020 = vld [vmem:[#allocation11 + $0xae8] sm:$0xff]
    %v1021 = vld [vmem:[#allocation11 + $0xaf0] sm:$0xff]
    %v1022 = vld [vmem:[#allocation11 + $0xaf8] sm:$0xff]
    %v1023 = vld [vmem:[#allocation11 + $0xb00] sm:$0xff]
    %v1024 = vld [vmem:[#allocation11 + $0xb08] sm:$0xff]
    %v1025 = vld [vmem:[#allocation11 + $0xb10] sm:$0xff]
    %v1026 = vld [vmem:[#allocation11 + $0xb18] sm:$0xff]
    %v1027 = vld [vmem:[#allocation11 + $0xb20] sm:$0xff]
    %v1028 = vld [vmem:[#allocation11 + $0xb28] sm:$0xff]
    %v1029 = vld [vmem:[#allocation11 + $0xb30] sm:$0xff]
    %v1030 = vld [vmem:[#allocation11 + $0xb38] sm:$0xff]
    %v1031 = vld [vmem:[#allocation11 + $0xb40] sm:$0xff]
    %v1032 = vld [vmem:[#allocation11 + $0xb48] sm:$0xff]
    %v1033 = vld [vmem:[#allocation11 + $0xb50] sm:$0xff]
    %v1034 = vld [vmem:[#allocation11 + $0xb58] sm:$0xff]
    %v1035 = vld [vmem:[#allocation11 + $0xb60] sm:$0xff]
    %v1036 = vld [vmem:[#allocation11 + $0xb68] sm:$0xff]
    %v1037 = vld [vmem:[#allocation11 + $0xb70] sm:$0xff]
    %v1038 = vld [vmem:[#allocation11 + $0xb78] sm:$0xff]
    %v1039 = vld [vmem:[#allocation11 + $0xb80] sm:$0xff]
    %v1040 = vld [vmem:[#allocation11 + $0xb88] sm:$0xff]
    %v1041 = vld [vmem:[#allocation11 + $0xb90] sm:$0xff]
    %v1042 = vld [vmem:[#allocation11 + $0xb98] sm:$0xff]
    %v1043 = vld [vmem:[#allocation11 + $0xba0] sm:$0xff]
    %v1044 = vld [vmem:[#allocation11 + $0xba8] sm:$0xff]
    %v1045 = vld [vmem:[#allocation11 + $0xbb0] sm:$0xff]
    %v1046 = vld [vmem:[#allocation11 + $0xbb8] sm:$0xff]
    %v1047 = vld [vmem:[#allocation11 + $0xbc0] sm:$0xff]
    %v1048 = vld [vmem:[#allocation11 + $0xbc8] sm:$0xff]
    %v1049 = vld [vmem:[#allocation11 + $0xbd0] sm:$0xff]
    %v1050 = vld [vmem:[#allocation11 + $0xbd8] sm:$0xff]
    %v1051 = vld [vmem:[#allocation11 + $0xbe0] sm:$0xff]
    %v1052 = vld [vmem:[#allocation11 + $0xbe8] sm:$0xff]
    %v1053 = vld [vmem:[#allocation11 + $0xbf0] sm:$0xff]
    %v1054 = vld [vmem:[#allocation11 + $0xbf8] sm:$0xff]
    %v1055 = vld [vmem:[#allocation11 + $0xc00] sm:$0xff]
    %v1056 = vld [vmem:[#allocation11 + $0xc08] sm:$0xff]
    %v1057 = vld [vmem:[#allocation11 + $0xc10] sm:$0xff]
    %v1058 = vld [vmem:[#allocation11 + $0xc18] sm:$0xff]
    %v1059 = vld [vmem:[#allocation11 + $0xc20] sm:$0xff]
    %v1060 = vld [vmem:[#allocation11 + $0xc28] sm:$0xff]
    %v1061 = vld [vmem:[#allocation11 + $0xc30] sm:$0xff]
    %v1062 = vld [vmem:[#allocation11 + $0xc38] sm:$0xff]
    %v1063 = vld [vmem:[#allocation11 + $0xc40] sm:$0xff]
    %v1064 = vld [vmem:[#allocation11 + $0xc48] sm:$0xff]
    %v1065 = vld [vmem:[#allocation11 + $0xc50] sm:$0xff]
    %v1066 = vld [vmem:[#allocation11 + $0xc58] sm:$0xff]
    %v1067 = vld [vmem:[#allocation11 + $0xc60] sm:$0xff]
    %v1068 = vld [vmem:[#allocation11 + $0xc68] sm:$0xff]
    %v1069 = vld [vmem:[#allocation11 + $0xc70] sm:$0xff]
    %v1070 = vld [vmem:[#allocation11 + $0xc78] sm:$0xff]
    %v1071 = vld [vmem:[#allocation11 + $0xc80] sm:$0xff]
    %v1072 = vld [vmem:[#allocation11 + $0xc88] sm:$0xff]
    %v1073 = vld [vmem:[#allocation11 + $0xc90] sm:$0xff]
    %v1074 = vld [vmem:[#allocation11 + $0xc98] sm:$0xff]
    %v1075 = vld [vmem:[#allocation11 + $0xca0] sm:$0xff]
    %v1076 = vld [vmem:[#allocation11 + $0xca8] sm:$0xff]
    %v1077 = vld [vmem:[#allocation11 + $0xcb0] sm:$0xff]
    %v1078 = vld [vmem:[#allocation11 + $0xcb8] sm:$0xff]
    %v1079 = vld [vmem:[#allocation11 + $0xcc0] sm:$0xff]
    %v1080 = vld [vmem:[#allocation11 + $0xcc8] sm:$0xff]
    %v1081 = vld [vmem:[#allocation11 + $0xcd0] sm:$0xff]
    %v1082 = vld [vmem:[#allocation11 + $0xcd8] sm:$0xff]
    %v1083 = vld [vmem:[#allocation11 + $0xce0] sm:$0xff]
    %v1084 = vld [vmem:[#allocation11 + $0xce8] sm:$0xff]
    %v1085 = vld [vmem:[#allocation11 + $0xcf0] sm:$0xff]
    %v1086 = vld [vmem:[#allocation11 + $0xcf8] sm:$0xff]
    %v1087 = vld [vmem:[#allocation11 + $0xd00] sm:$0xff]
    %v1088 = vld [vmem:[#allocation11 + $0xd08] sm:$0xff]
    %v1089 = vld [vmem:[#allocation11 + $0xd10] sm:$0xff]
    %v1090 = vld [vmem:[#allocation11 + $0xd18] sm:$0xff]
    %v1091 = vld [vmem:[#allocation11 + $0xd20] sm:$0xff]
    %v1092 = vld [vmem:[#allocation11 + $0xd28] sm:$0xff]
    %v1093 = vld [vmem:[#allocation11 + $0xd30] sm:$0xff]
    %v1094 = vld [vmem:[#allocation11 + $0xd38] sm:$0xff]
    %v1095 = vld [vmem:[#allocation11 + $0xd40] sm:$0xff]
    %v1096 = vld [vmem:[#allocation11 + $0xd48] sm:$0xff]
    %v1097 = vld [vmem:[#allocation11 + $0xd50] sm:$0xff]
    %v1098 = vld [vmem:[#allocation11 + $0xd58] sm:$0xff]
    %v1099 = vld [vmem:[#allocation11 + $0xd60] sm:$0xff]
    %v1100 = vld [vmem:[#allocation11 + $0xd68] sm:$0xff]
    %v1101 = vld [vmem:[#allocation11 + $0xd70] sm:$0xff]
    %v1102 = vld [vmem:[#allocation11 + $0xd78] sm:$0xff]
    %v1103 = vld [vmem:[#allocation11 + $0xd80] sm:$0xff]
    %v1104 = vld [vmem:[#allocation11 + $0xd88] sm:$0xff]
    %v1105 = vld [vmem:[#allocation11 + $0xd90] sm:$0xff]
    %v1106 = vld [vmem:[#allocation11 + $0xd98] sm:$0xff]
    %v1107 = vld [vmem:[#allocation11 + $0xda0] sm:$0xff]
    %v1108 = vld [vmem:[#allocation11 + $0xda8] sm:$0xff]
    %v1109 = vld [vmem:[#allocation11 + $0xdb0] sm:$0xff]
    %v1110 = vld [vmem:[#allocation11 + $0xdb8] sm:$0xff]
    %v1111 = vld [vmem:[#allocation11 + $0xdc0] sm:$0xff]
    %v1112 = vld [vmem:[#allocation11 + $0xdc8] sm:$0xff]
    %v1113 = vld [vmem:[#allocation11 + $0xdd0] sm:$0xff]
    %v1114 = vld [vmem:[#allocation11 + $0xdd8] sm:$0xff]
    %v1115 = vld [vmem:[#allocation11 + $0xde0] sm:$0xff]
    %v1116 = vld [vmem:[#allocation11 + $0xde8] sm:$0xff]
    %v1117 = vld [vmem:[#allocation11 + $0xdf0] sm:$0xff]
    %v1118 = vld [vmem:[#allocation11 + $0xdf8] sm:$0xff]
    %v1119 = vld [vmem:[#allocation11 + $0xe00] sm:$0xff]
    %v1120 = vld [vmem:[#allocation11 + $0xe08] sm:$0xff]
    %v1121 = vld [vmem:[#allocation11 + $0xe10] sm:$0xff]
    %v1122 = vld [vmem:[#allocation11 + $0xe18] sm:$0xff]
    %v1123 = vld [vmem:[#allocation11 + $0xe20] sm:$0xff]
    %v1124 = vld [vmem:[#allocation11 + $0xe28] sm:$0xff]
    %v1125 = vld [vmem:[#allocation11 + $0xe30] sm:$0xff]
    %v1126 = vld [vmem:[#allocation11 + $0xe38] sm:$0xff]
    %v1127 = vld [vmem:[#allocation11 + $0xe40] sm:$0xff]
    %v1128 = vld [vmem:[#allocation11 + $0xe48] sm:$0xff]
    %v1129 = vld [vmem:[#allocation11 + $0xe50] sm:$0xff]
    %v1130 = vld [vmem:[#allocation11 + $0xe58] sm:$0xff]
    %v1131 = vld [vmem:[#allocation11 + $0xe60] sm:$0xff]
    %v1132 = vld [vmem:[#allocation11 + $0xe68] sm:$0xff]
    %v1133 = vld [vmem:[#allocation11 + $0xe70] sm:$0xff]
    %v1134 = vld [vmem:[#allocation11 + $0xe78] sm:$0xff]
    %v1135 = vld [vmem:[#allocation11 + $0xe80] sm:$0xff]
    %v1136 = vld [vmem:[#allocation11 + $0xe88] sm:$0xff]
    %v1137 = vld [vmem:[#allocation11 + $0xe90] sm:$0xff]
    %v1138 = vld [vmem:[#allocation11 + $0xe98] sm:$0xff]
    %v1139 = vld [vmem:[#allocation11 + $0xea0] sm:$0xff]
    %v1140 = vld [vmem:[#allocation11 + $0xea8] sm:$0xff]
    %v1141 = vld [vmem:[#allocation11 + $0xeb0] sm:$0xff]
    %v1142 = vld [vmem:[#allocation11 + $0xeb8] sm:$0xff]
    %v1143 = vld [vmem:[#allocation11 + $0xec0] sm:$0xff]
    %v1144 = vld [vmem:[#allocation11 + $0xec8] sm:$0xff]
    %v1145 = vld [vmem:[#allocation11 + $0xed0] sm:$0xff]
    %v1146 = vld [vmem:[#allocation11 + $0xed8] sm:$0xff]
    %v1147 = vld [vmem:[#allocation11 + $0xee0] sm:$0xff]
    %v1148 = vld [vmem:[#allocation11 + $0xee8] sm:$0xff]
    %v1149 = vld [vmem:[#allocation11 + $0xef0] sm:$0xff]
    %v1150 = vld [vmem:[#allocation11 + $0xef8] sm:$0xff]
    %v1151 = vld [vmem:[#allocation11 + $0xf00] sm:$0xff]
    %v1152 = vld [vmem:[#allocation11 + $0xf08] sm:$0xff]
    %v1153 = vld [vmem:[#allocation11 + $0xf10] sm:$0xff]
    %v1154 = vld [vmem:[#allocation11 + $0xf18] sm:$0xff]
    %v1155 = vld [vmem:[#allocation11 + $0xf20] sm:$0xff]
    %v1156 = vld [vmem:[#allocation11 + $0xf28] sm:$0xff]
    %v1157 = vld [vmem:[#allocation11 + $0xf30] sm:$0xff]
    %v1158 = vld [vmem:[#allocation11 + $0xf38] sm:$0xff]
    %v1159 = vld [vmem:[#allocation11 + $0xf40] sm:$0xff]
    %v1160 = vld [vmem:[#allocation11 + $0xf48] sm:$0xff]
    %v1161 = vld [vmem:[#allocation11 + $0xf50] sm:$0xff]
    %v1162 = vld [vmem:[#allocation11 + $0xf58] sm:$0xff]
    %v1163 = vld [vmem:[#allocation11 + $0xf60] sm:$0xff]
    %v1164 = vld [vmem:[#allocation11 + $0xf68] sm:$0xff]
    %v1165 = vld [vmem:[#allocation11 + $0xf70] sm:$0xff]
    %v1166 = vld [vmem:[#allocation11 + $0xf78] sm:$0xff]
    %v1167 = vld [vmem:[#allocation11 + $0xf80] sm:$0xff]
    %v1168 = vld [vmem:[#allocation11 + $0xf88] sm:$0xff]
    %v1169 = vld [vmem:[#allocation11 + $0xf90] sm:$0xff]
    %v1170 = vld [vmem:[#allocation11 + $0xf98] sm:$0xff]
    %v1171 = vld [vmem:[#allocation11 + $0xfa0] sm:$0xff]
    %v1172 = vld [vmem:[#allocation11 + $0xfa8] sm:$0xff]
    %v1173 = vld [vmem:[#allocation11 + $0xfb0] sm:$0xff]
    %v1174 = vld [vmem:[#allocation11 + $0xfb8] sm:$0xff]
    %v1175 = vld [vmem:[#allocation11 + $0xfc0] sm:$0xff]
    %v1176 = vld [vmem:[#allocation11 + $0xfc8] sm:$0xff]
    %v1177 = vld [vmem:[#allocation11 + $0xfd0] sm:$0xff]
    %v1178 = vld [vmem:[#allocation11 + $0xfd8] sm:$0xff]
    %v1179 = vld [vmem:[#allocation11 + $0xfe0] sm:$0xff]
    %v1180 = vld [vmem:[#allocation11 + $0xfe8] sm:$0xff]
    %v1181 = vld [vmem:[#allocation11 + $0xff0] sm:$0xff]
    %v1182 = vld [vmem:[#allocation11 + $0xff8] sm:$0xff]
    %v1183 = vld [vmem:[#allocation11 + $0x1000] sm:$0xff]
    %v1184 = vld [vmem:[#allocation11 + $0x1008] sm:$0xff]
    %v1185 = vld [vmem:[#allocation11 + $0x1010] sm:$0xff]
    %v1186 = vld [vmem:[#allocation11 + $0x1018] sm:$0xff]
    %v1187 = vld [vmem:[#allocation11 + $0x1020] sm:$0xff]
    %v1188 = vld [vmem:[#allocation11 + $0x1028] sm:$0xff]
    %v1189 = vld [vmem:[#allocation11 + $0x1030] sm:$0xff]
    %v1190 = vld [vmem:[#allocation11 + $0x1038] sm:$0xff]
    %v1191 = vld [vmem:[#allocation11 + $0x1040] sm:$0xff]
    %v1192 = vld [vmem:[#allocation11 + $0x1048] sm:$0xff]
    %v1193 = vld [vmem:[#allocation11 + $0x1050] sm:$0xff]
    %v1194 = vld [vmem:[#allocation11 + $0x1058] sm:$0xff]
    %v1195 = vld [vmem:[#allocation11 + $0x1060] sm:$0xff]
    %v1196 = vld [vmem:[#allocation11 + $0x1068] sm:$0xff]
    %v1197 = vld [vmem:[#allocation11 + $0x1070] sm:$0xff]
    %v1198 = vld [vmem:[#allocation11 + $0x1078] sm:$0xff]
    %v1199 = vld [vmem:[#allocation11 + $0x1080] sm:$0xff]
    %v1200 = vld [vmem:[#allocation11 + $0x1088] sm:$0xff]
    %v1201 = vld [vmem:[#allocation11 + $0x1090] sm:$0xff]
    %v1202 = vld [vmem:[#allocation11 + $0x1098] sm:$0xff]
    %v1203 = vld [vmem:[#allocation11 + $0x10a0] sm:$0xff]
    %v1204 = vld [vmem:[#allocation11 + $0x10a8] sm:$0xff]
    %v1205 = vld [vmem:[#allocation11 + $0x10b0] sm:$0xff]
    %v1206 = vld [vmem:[#allocation11 + $0x10b8] sm:$0xff]
    %v1207 = vld [vmem:[#allocation11 + $0x10c0] sm:$0xff]
    %v1208 = vld [vmem:[#allocation11 + $0x10c8] sm:$0xff]
    %v1209 = vld [vmem:[#allocation11 + $0x10d0] sm:$0xff]
    %v1210 = vld [vmem:[#allocation11 + $0x10d8] sm:$0xff]
    %v1211 = vld [vmem:[#allocation11 + $0x10e0] sm:$0xff]
    %v1212 = vld [vmem:[#allocation11 + $0x10e8] sm:$0xff]
    %v1213 = vld [vmem:[#allocation11 + $0x10f0] sm:$0xff]
    %v1214 = vld [vmem:[#allocation11 + $0x10f8] sm:$0xff]
    %v1215 = vld [vmem:[#allocation11 + $0x1100] sm:$0xff]
    %v1216 = vld [vmem:[#allocation11 + $0x1108] sm:$0xff]
    %v1217 = vld [vmem:[#allocation11 + $0x1110] sm:$0xff]
    %v1218 = vld [vmem:[#allocation11 + $0x1118] sm:$0xff]
    %v1219 = vld [vmem:[#allocation11 + $0x1120] sm:$0xff]
    %v1220 = vld [vmem:[#allocation11 + $0x1128] sm:$0xff]
    %v1221 = vld [vmem:[#allocation11 + $0x1130] sm:$0xff]
    %v1222 = vld [vmem:[#allocation11 + $0x1138] sm:$0xff]
    %v1223 = vld [vmem:[#allocation11 + $0x1140] sm:$0xff]
    %v1224 = vld [vmem:[#allocation11 + $0x1148] sm:$0xff]
    %v1225 = vld [vmem:[#allocation11 + $0x1150] sm:$0xff]
    %v1226 = vld [vmem:[#allocation11 + $0x1158] sm:$0xff]
    %v1227 = vld [vmem:[#allocation11 + $0x1160] sm:$0xff]
    %v1228 = vld [vmem:[#allocation11 + $0x1168] sm:$0xff]
    %v1229 = vld [vmem:[#allocation11 + $0x1170] sm:$0xff]
    %v1230 = vld [vmem:[#allocation11 + $0x1178] sm:$0xff]
    %v1231 = vld [vmem:[#allocation11 + $0x1180] sm:$0xff]
    %v1232 = vld [vmem:[#allocation11 + $0x1188] sm:$0xff]
    %v1233 = vld [vmem:[#allocation11 + $0x1190] sm:$0xff]
    %v1234 = vld [vmem:[#allocation11 + $0x1198] sm:$0xff]
    %v1235 = vld [vmem:[#allocation11 + $0x11a0] sm:$0xff]
    %v1236 = vld [vmem:[#allocation11 + $0x11a8] sm:$0xff]
    %v1237 = vld [vmem:[#allocation11 + $0x11b0] sm:$0xff]
    %v1238 = vld [vmem:[#allocation11 + $0x11b8] sm:$0xff]
    %v1239 = vld [vmem:[#allocation11 + $0x11c0] sm:$0xff]
    %v1240 = vld [vmem:[#allocation11 + $0x11c8] sm:$0xff]
    %v1241 = vld [vmem:[#allocation11 + $0x11d0] sm:$0xff]
    %v1242 = vld [vmem:[#allocation11 + $0x11d8] sm:$0xff]
    %v1243 = vld [vmem:[#allocation11 + $0x11e0] sm:$0xff]
    %v1244 = vld [vmem:[#allocation11 + $0x11e8] sm:$0xff]
    %v1245 = vld [vmem:[#allocation11 + $0x11f0] sm:$0xff]
    %v1246 = vld [vmem:[#allocation11 + $0x11f8] sm:$0xff]
    %v1247 = vld [vmem:[#allocation12] sm:$0x3f]
    %v1249 = vlaneseq
    %v1250 = vshrl.u32 %v1249, 7
    %v1251 = vsub.s32 0, %v1250
    %v1252 = vrot.slane %v1247, %v1251
    %v1253 = vlaneseq
    %v1254 = vshrl.u32 %v1253, 7
    %v1255 = vsub.s32 1, %v1254
    %v1256 = vrot.slane %v1247, %v1255
    %v1257 = vlaneseq
    %v1258 = vshrl.u32 %v1257, 7
    %v1259 = vsub.s32 2, %v1258
    %v1260 = vrot.slane %v1247, %v1259
    %v1261 = vlaneseq
    %v1262 = vshrl.u32 %v1261, 7
    %v1263 = vsub.s32 3, %v1262
    %v1264 = vrot.slane %v1247, %v1263
    %v1265 = vlaneseq
    %v1266 = vshrl.u32 %v1265, 7
    %v1267 = vsub.s32 4, %v1266
    %v1268 = vrot.slane %v1247, %v1267
    %v1269 = vlaneseq
    %v1270 = vshrl.u32 %v1269, 7
    %v1271 = vsub.s32 5, %v1270
    %v1272 = vrot.slane %v1247, %v1271
    %1279 = vmatprep.subr.mxu0 %v762
    %1280 = vmatpush1.msra.mxu0 %v761
    %1281 = vmatprep.subr.mxu0 %v756
    %1282 = vmatpush1.msra.mxu0 %v755
    %1283 = vmatprep.subr.mxu0 %v750
    %1284 = vmatpush1.msra.mxu0 %v749
    %1285 = vmatprep.subr.mxu0 %v744
    %1286 = vmatpush1.msra.mxu0 %v743
    %1287 = vmatprep.subr.mxu0 %v738
    %1288 = vmatpush1.msra.mxu0 %v737
    %1289 = vmatprep.subr.mxu0 %v732
    %1290 = vmatpush1.msra.mxu0 %v731
    %1291 = vmatprep.subr.mxu0 %v726
    %1292 = vmatpush1.msra.mxu0 %v725
    %1293 = vmatprep.subr.mxu0 %v720
    %1294 = vmatpush1.msra.mxu0 %v719
    %1295 = vmatprep.subr.mxu0 %v714
    %1296 = vmatpush1.msra.mxu0 %v713
    %1297 = vmatprep.subr.mxu0 %v708
    %1298 = vmatpush1.msra.mxu0 %v707
    %1299 = vmatprep.subr.mxu0 %v702
    %1300 = vmatpush1.msra.mxu0 %v701
    %1301 = vmatprep.subr.mxu0 %v696
    %1302 = vmatpush1.msra.mxu0 %v695
    %1303 = vmatprep.subr.mxu0 %v690
    %1304 = vmatpush1.msra.mxu0 %v689
    %1305 = vmatprep.subr.mxu0 %v684
    %1306 = vmatpush1.msra.mxu0 %v683
    %1307 = vmatprep.subr.mxu0 %v678
    %1308 = vmatpush1.msra.mxu0 %v677
    %1309 = vmatprep.subr.mxu0 %v672
    %1310 = vmatpush1.msra.mxu0 %v671
    %1311 = vmatprep.subr.mxu0 %v858
    %1312 = vmatpush2.msra.mxu0 %v857
    %1313 = vmatprep.subr.mxu0 %v852
    %1314 = vmatpush2.msra.mxu0 %v851
    %1315 = vmatprep.subr.mxu0 %v846
    %1316 = vmatpush2.msra.mxu0 %v845
    %1317 = vmatprep.subr.mxu0 %v840
    %1318 = vmatpush2.msra.mxu0 %v839
    %1319 = vmatprep.subr.mxu0 %v834
    %1320 = vmatpush2.msra.mxu0 %v833
    %1321 = vmatprep.subr.mxu0 %v828
    %1322 = vmatpush2.msra.mxu0 %v827
    %1323 = vmatprep.subr.mxu0 %v822
    %1324 = vmatpush2.msra.mxu0 %v821
    %1325 = vmatprep.subr.mxu0 %v816
    %1326 = vmatpush2.msra.mxu0 %v815
    %1327 = vmatprep.subr.mxu0 %v810
    %1328 = vmatpush2.msra.mxu0 %v809
    %1329 = vmatprep.subr.mxu0 %v804
    %1330 = vmatpush2.msra.mxu0 %v803
    %1331 = vmatprep.subr.mxu0 %v798
    %1332 = vmatpush2.msra.mxu0 %v797
    %1333 = vmatprep.subr.mxu0 %v792
    %1334 = vmatpush2.msra.mxu0 %v791
    %1335 = vmatprep.subr.mxu0 %v786
    %1336 = vmatpush2.msra.mxu0 %v785
    %1337 = vmatprep.subr.mxu0 %v780
    %1338 = vmatpush2.msra.mxu0 %v779
    %1339 = vmatprep.subr.mxu0 %v774
    %1340 = vmatpush2.msra.mxu0 %v773
    %1341 = vmatprep.subr.mxu0 %v768
    %1342 = vmatpush2.msra.mxu0 %v767
    %1343 = vmatprep.mubr.f32.mxu0 %v666
    %1344 = vmatmul.mubr.f32.gmra.mxu0 %v665
    %v1345 = vpop.f32.mrf.mxu0
    %v1346 = vadd.f32 %v1252, %v1345
    %v1347 = vpop.f32.mrf.mxu0
    %v1348 = vadd.f32 %v1256, %v1347
    %1349 = vdwg.mxu0
    %1350 = vmatprep.subr.mxu0 %v954
    %1351 = vmatpush1.msra.mxu0 %v953
    %1352 = vmatprep.subr.mxu0 %v948
    %1353 = vmatpush1.msra.mxu0 %v947
    %1354 = vmatprep.subr.mxu0 %v942
    %1355 = vmatpush1.msra.mxu0 %v941
    %1356 = vmatprep.subr.mxu0 %v936
    %1357 = vmatpush1.msra.mxu0 %v935
    %1358 = vmatprep.subr.mxu0 %v930
    %1359 = vmatpush1.msra.mxu0 %v929
    %1360 = vmatprep.subr.mxu0 %v924
    %1361 = vmatpush1.msra.mxu0 %v923
    %1362 = vmatprep.subr.mxu0 %v918
    %1363 = vmatpush1.msra.mxu0 %v917
    %1364 = vmatprep.subr.mxu0 %v912
    %1365 = vmatpush1.msra.mxu0 %v911
    %1366 = vmatprep.subr.mxu0 %v906
    %1367 = vmatpush1.msra.mxu0 %v905
    %1368 = vmatprep.subr.mxu0 %v900
    %1369 = vmatpush1.msra.mxu0 %v899
    %1370 = vmatprep.subr.mxu0 %v894
    %1371 = vmatpush1.msra.mxu0 %v893
    %1372 = vmatprep.subr.mxu0 %v888
    %1373 = vmatpush1.msra.mxu0 %v887
    %1374 = vmatprep.subr.mxu0 %v882
    %1375 = vmatpush1.msra.mxu0 %v881
    %1376 = vmatprep.subr.mxu0 %v876
    %1377 = vmatpush1.msra.mxu0 %v875
    %1378 = vmatprep.subr.mxu0 %v870
    %1379 = vmatpush1.msra.mxu0 %v869
    %1380 = vmatprep.subr.mxu0 %v864
    %1381 = vmatpush1.msra.mxu0 %v863
    %1382 = vmatprep.subr.mxu0 %v1050
    %1383 = vmatpush2.msra.mxu0 %v1049
    %1384 = vmatprep.subr.mxu0 %v1044
    %1385 = vmatpush2.msra.mxu0 %v1043
    %1386 = vmatprep.subr.mxu0 %v1038
    %1387 = vmatpush2.msra.mxu0 %v1037
    %1388 = vmatprep.subr.mxu0 %v1032
    %1389 = vmatpush2.msra.mxu0 %v1031
    %1390 = vmatprep.subr.mxu0 %v1026
    %1391 = vmatpush2.msra.mxu0 %v1025
    %1392 = vmatprep.subr.mxu0 %v1020
    %1393 = vmatpush2.msra.mxu0 %v1019
    %1394 = vmatprep.subr.mxu0 %v1014
    %1395 = vmatpush2.msra.mxu0 %v1013
    %1396 = vmatprep.subr.mxu0 %v1008
    %1397 = vmatpush2.msra.mxu0 %v1007
    %1398 = vmatprep.subr.mxu0 %v1002
    %1399 = vmatpush2.msra.mxu0 %v1001
    %1400 = vmatprep.subr.mxu0 %v996
    %1401 = vmatpush2.msra.mxu0 %v995
    %1402 = vmatprep.subr.mxu0 %v990
    %1403 = vmatpush2.msra.mxu0 %v989
    %1404 = vmatprep.subr.mxu0 %v984
    %1405 = vmatpush2.msra.mxu0 %v983
    %1406 = vmatprep.subr.mxu0 %v978
    %1407 = vmatpush2.msra.mxu0 %v977
    %1408 = vmatprep.subr.mxu0 %v972
    %1409 = vmatpush2.msra.mxu0 %v971
    %1410 = vmatprep.subr.mxu0 %v966
    %1411 = vmatpush2.msra.mxu0 %v965
    %1412 = vmatprep.subr.mxu0 %v960
    %1413 = vmatpush2.msra.mxu0 %v959
    %1414 = vmatprep.mubr.f32.mxu0 %v668
    %1415 = vmatmul.mubr.f32.gmra.mxu0 %v667
    %v1416 = vpop.f32.mrf.mxu0
    %v1417 = vadd.f32 %v1346, %v1416
    %v1418 = vpop.f32.mrf.mxu0
    %v1419 = vadd.f32 %v1348, %v1418
    %1420 = vdwg.mxu0
    %1421 = vmatprep.subr.mxu0 %v1146
    %1422 = vmatpush1.msra.mxu0 %v1145
    %1423 = vmatprep.subr.mxu0 %v1140
    %1424 = vmatpush1.msra.mxu0 %v1139
    %1425 = vmatprep.subr.mxu0 %v1134
    %1426 = vmatpush1.msra.mxu0 %v1133
    %1427 = vmatprep.subr.mxu0 %v1128
    %1428 = vmatpush1.msra.mxu0 %v1127
    %1429 = vmatprep.subr.mxu0 %v1122
    %1430 = vmatpush1.msra.mxu0 %v1121
    %1431 = vmatprep.subr.mxu0 %v1116
    %1432 = vmatpush1.msra.mxu0 %v1115
    %1433 = vmatprep.subr.mxu0 %v1110
    %1434 = vmatpush1.msra.mxu0 %v1109
    %1435 = vmatprep.subr.mxu0 %v1104
    %1436 = vmatpush1.msra.mxu0 %v1103
    %1437 = vmatprep.subr.mxu0 %v1098
    %1438 = vmatpush1.msra.mxu0 %v1097
    %1439 = vmatprep.subr.mxu0 %v1092
    %1440 = vmatpush1.msra.mxu0 %v1091
    %1441 = vmatprep.subr.mxu0 %v1086
    %1442 = vmatpush1.msra.mxu0 %v1085
    %1443 = vmatprep.subr.mxu0 %v1080
    %1444 = vmatpush1.msra.mxu0 %v1079
    %1445 = vmatprep.subr.mxu0 %v1074
    %1446 = vmatpush1.msra.mxu0 %v1073
    %1447 = vmatprep.subr.mxu0 %v1068
    %1448 = vmatpush1.msra.mxu0 %v1067
    %1449 = vmatprep.subr.mxu0 %v1062
    %1450 = vmatpush1.msra.mxu0 %v1061
    %1451 = vmatprep.subr.mxu0 %v1056
    %1452 = vmatpush1.msra.mxu0 %v1055
    %1453 = vmatprep.subr.mxu0 %v1242
    %1454 = vmatpush2.msra.mxu0 %v1241
    %1455 = vmatprep.subr.mxu0 %v1236
    %1456 = vmatpush2.msra.mxu0 %v1235
    %1457 = vmatprep.subr.mxu0 %v1230
    %1458 = vmatpush2.msra.mxu0 %v1229
    %1459 = vmatprep.subr.mxu0 %v1224
    %1460 = vmatpush2.msra.mxu0 %v1223
    %1461 = vmatprep.subr.mxu0 %v1218
    %1462 = vmatpush2.msra.mxu0 %v1217
    %1463 = vmatprep.subr.mxu0 %v1212
    %1464 = vmatpush2.msra.mxu0 %v1211
    %1465 = vmatprep.subr.mxu0 %v1206
    %1466 = vmatpush2.msra.mxu0 %v1205
    %1467 = vmatprep.subr.mxu0 %v1200
    %1468 = vmatpush2.msra.mxu0 %v1199
    %1469 = vmatprep.subr.mxu0 %v1194
    %1470 = vmatpush2.msra.mxu0 %v1193
    %1471 = vmatprep.subr.mxu0 %v1188
    %1472 = vmatpush2.msra.mxu0 %v1187
    %1473 = vmatprep.subr.mxu0 %v1182
    %1474 = vmatpush2.msra.mxu0 %v1181
    %1475 = vmatprep.subr.mxu0 %v1176
    %1476 = vmatpush2.msra.mxu0 %v1175
    %1477 = vmatprep.subr.mxu0 %v1170
    %1478 = vmatpush2.msra.mxu0 %v1169
    %1479 = vmatprep.subr.mxu0 %v1164
    %1480 = vmatpush2.msra.mxu0 %v1163
    %1481 = vmatprep.subr.mxu0 %v1158
    %1482 = vmatpush2.msra.mxu0 %v1157
    %1483 = vmatprep.subr.mxu0 %v1152
    %1484 = vmatpush2.msra.mxu0 %v1151
    %1485 = vmatprep.mubr.f32.mxu0 %v670
    %1486 = vmatmul.mubr.f32.gmra.mxu0 %v669
    %v1487 = vpop.f32.mrf.mxu0
    %v1488 = vadd.f32 %v1417, %v1487
    %v1489 = vpop.f32.mrf.mxu0
    %v1490 = vadd.f32 %v1419, %v1489
    %1491 = vdwg.mxu0
    %1492 = vmatprep.subr.mxu0 %v764
    %1493 = vmatpush1.msra.mxu0 %v763
    %1494 = vmatprep.subr.mxu0 %v758
    %1495 = vmatpush1.msra.mxu0 %v757
    %1496 = vmatprep.subr.mxu0 %v752
    %1497 = vmatpush1.msra.mxu0 %v751
    %1498 = vmatprep.subr.mxu0 %v746
    %1499 = vmatpush1.msra.mxu0 %v745
    %1500 = vmatprep.subr.mxu0 %v740
    %1501 = vmatpush1.msra.mxu0 %v739
    %1502 = vmatprep.subr.mxu0 %v734
    %1503 = vmatpush1.msra.mxu0 %v733
    %1504 = vmatprep.subr.mxu0 %v728
    %1505 = vmatpush1.msra.mxu0 %v727
    %1506 = vmatprep.subr.mxu0 %v722
    %1507 = vmatpush1.msra.mxu0 %v721
    %1508 = vmatprep.subr.mxu0 %v716
    %1509 = vmatpush1.msra.mxu0 %v715
    %1510 = vmatprep.subr.mxu0 %v710
    %1511 = vmatpush1.msra.mxu0 %v709
    %1512 = vmatprep.subr.mxu0 %v704
    %1513 = vmatpush1.msra.mxu0 %v703
    %1514 = vmatprep.subr.mxu0 %v698
    %1515 = vmatpush1.msra.mxu0 %v697
    %1516 = vmatprep.subr.mxu0 %v692
    %1517 = vmatpush1.msra.mxu0 %v691
    %1518 = vmatprep.subr.mxu0 %v686
    %1519 = vmatpush1.msra.mxu0 %v685
    %1520 = vmatprep.subr.mxu0 %v680
    %1521 = vmatpush1.msra.mxu0 %v679
    %1522 = vmatprep.subr.mxu0 %v674
    %1523 = vmatpush1.msra.mxu0 %v673
    %1524 = vmatprep.subr.mxu0 %v860
    %1525 = vmatpush2.msra.mxu0 %v859
    %1526 = vmatprep.subr.mxu0 %v854
    %1527 = vmatpush2.msra.mxu0 %v853
    %1528 = vmatprep.subr.mxu0 %v848
    %1529 = vmatpush2.msra.mxu0 %v847
    %1530 = vmatprep.subr.mxu0 %v842
    %1531 = vmatpush2.msra.mxu0 %v841
    %1532 = vmatprep.subr.mxu0 %v836
    %1533 = vmatpush2.msra.mxu0 %v835
    %1534 = vmatprep.subr.mxu0 %v830
    %1535 = vmatpush2.msra.mxu0 %v829
    %1536 = vmatprep.subr.mxu0 %v824
    %1537 = vmatpush2.msra.mxu0 %v823
    %1538 = vmatprep.subr.mxu0 %v818
    %1539 = vmatpush2.msra.mxu0 %v817
    %1540 = vmatprep.subr.mxu0 %v812
    %1541 = vmatpush2.msra.mxu0 %v811
    %1542 = vmatprep.subr.mxu0 %v806
    %1543 = vmatpush2.msra.mxu0 %v805
    %1544 = vmatprep.subr.mxu0 %v800
    %1545 = vmatpush2.msra.mxu0 %v799
    %1546 = vmatprep.subr.mxu0 %v794
    %1547 = vmatpush2.msra.mxu0 %v793
    %1548 = vmatprep.subr.mxu0 %v788
    %1549 = vmatpush2.msra.mxu0 %v787
    %1550 = vmatprep.subr.mxu0 %v782
    %1551 = vmatpush2.msra.mxu0 %v781
    %1552 = vmatprep.subr.mxu0 %v776
    %1553 = vmatpush2.msra.mxu0 %v775
    %1554 = vmatprep.subr.mxu0 %v770
    %1555 = vmatpush2.msra.mxu0 %v769
    %1556 = vmatprep.mubr.f32.mxu0 %v666
    %1557 = vmatmul.mubr.f32.gmra.mxu0 %v665
    %v1558 = vpop.f32.mrf.mxu0
    %v1559 = vadd.f32 %v1260, %v1558
    %v1560 = vpop.f32.mrf.mxu0
    %v1561 = vadd.f32 %v1264, %v1560
    %1562 = vdwg.mxu0
    %1563 = vmatprep.subr.mxu0 %v956
    %1564 = vmatpush1.msra.mxu0 %v955
    %1565 = vmatprep.subr.mxu0 %v950
    %1566 = vmatpush1.msra.mxu0 %v949
    %1567 = vmatprep.subr.mxu0 %v944
    %1568 = vmatpush1.msra.mxu0 %v943
    %1569 = vmatprep.subr.mxu0 %v938
    %1570 = vmatpush1.msra.mxu0 %v937
    %1571 = vmatprep.subr.mxu0 %v932
    %1572 = vmatpush1.msra.mxu0 %v931
    %1573 = vmatprep.subr.mxu0 %v926
    %1574 = vmatpush1.msra.mxu0 %v925
    %1575 = vmatprep.subr.mxu0 %v920
    %1576 = vmatpush1.msra.mxu0 %v919
    %1577 = vmatprep.subr.mxu0 %v914
    %1578 = vmatpush1.msra.mxu0 %v913
    %1579 = vmatprep.subr.mxu0 %v908
    %1580 = vmatpush1.msra.mxu0 %v907
    %1581 = vmatprep.subr.mxu0 %v902
    %1582 = vmatpush1.msra.mxu0 %v901
    %1583 = vmatprep.subr.mxu0 %v896
    %1584 = vmatpush1.msra.mxu0 %v895
    %1585 = vmatprep.subr.mxu0 %v890
    %1586 = vmatpush1.msra.mxu0 %v889
    %1587 = vmatprep.subr.mxu0 %v884
    %1588 = vmatpush1.msra.mxu0 %v883
    %1589 = vmatprep.subr.mxu0 %v878
    %1590 = vmatpush1.msra.mxu0 %v877
    %1591 = vmatprep.subr.mxu0 %v872
    %1592 = vmatpush1.msra.mxu0 %v871
    %1593 = vmatprep.subr.mxu0 %v866
    %1594 = vmatpush1.msra.mxu0 %v865
    %1595 = vmatprep.subr.mxu0 %v1052
    %1596 = vmatpush2.msra.mxu0 %v1051
    %1597 = vmatprep.subr.mxu0 %v1046
    %1598 = vmatpush2.msra.mxu0 %v1045
    %1599 = vmatprep.subr.mxu0 %v1040
    %1600 = vmatpush2.msra.mxu0 %v1039
    %1601 = vmatprep.subr.mxu0 %v1034
    %1602 = vmatpush2.msra.mxu0 %v1033
    %1603 = vmatprep.subr.mxu0 %v1028
    %1604 = vmatpush2.msra.mxu0 %v1027
    %1605 = vmatprep.subr.mxu0 %v1022
    %1606 = vmatpush2.msra.mxu0 %v1021
    %1607 = vmatprep.subr.mxu0 %v1016
    %1608 = vmatpush2.msra.mxu0 %v1015
    %1609 = vmatprep.subr.mxu0 %v1010
    %1610 = vmatpush2.msra.mxu0 %v1009
    %1611 = vmatprep.subr.mxu0 %v1004
    %1612 = vmatpush2.msra.mxu0 %v1003
    %1613 = vmatprep.subr.mxu0 %v998
    %1614 = vmatpush2.msra.mxu0 %v997
    %1615 = vmatprep.subr.mxu0 %v992
    %1616 = vmatpush2.msra.mxu0 %v991
    %1617 = vmatprep.subr.mxu0 %v986
    %1618 = vmatpush2.msra.mxu0 %v985
    %1619 = vmatprep.subr.mxu0 %v980
    %1620 = vmatpush2.msra.mxu0 %v979
    %1621 = vmatprep.subr.mxu0 %v974
    %1622 = vmatpush2.msra.mxu0 %v973
    %1623 = vmatprep.subr.mxu0 %v968
    %1624 = vmatpush2.msra.mxu0 %v967
    %1625 = vmatprep.subr.mxu0 %v962
    %1626 = vmatpush2.msra.mxu0 %v961
    %1627 = vmatprep.mubr.f32.mxu0 %v668
    %1628 = vmatmul.mubr.f32.gmra.mxu0 %v667
    %v1629 = vpop.f32.mrf.mxu0
    %v1630 = vadd.f32 %v1559, %v1629
    %v1631 = vpop.f32.mrf.mxu0
    %v1632 = vadd.f32 %v1561, %v1631
    %1633 = vdwg.mxu0
    %1634 = vmatprep.subr.mxu0 %v1148
    %1635 = vmatpush1.msra.mxu0 %v1147
    %1636 = vmatprep.subr.mxu0 %v1142
    %1637 = vmatpush1.msra.mxu0 %v1141
    %1638 = vmatprep.subr.mxu0 %v1136
    %1639 = vmatpush1.msra.mxu0 %v1135
    %1640 = vmatprep.subr.mxu0 %v1130
    %1641 = vmatpush1.msra.mxu0 %v1129
    %1642 = vmatprep.subr.mxu0 %v1124
    %1643 = vmatpush1.msra.mxu0 %v1123
    %1644 = vmatprep.subr.mxu0 %v1118
    %1645 = vmatpush1.msra.mxu0 %v1117
    %1646 = vmatprep.subr.mxu0 %v1112
    %1647 = vmatpush1.msra.mxu0 %v1111
    %1648 = vmatprep.subr.mxu0 %v1106
    %1649 = vmatpush1.msra.mxu0 %v1105
    %1650 = vmatprep.subr.mxu0 %v1100
    %1651 = vmatpush1.msra.mxu0 %v1099
    %1652 = vmatprep.subr.mxu0 %v1094
    %1653 = vmatpush1.msra.mxu0 %v1093
    %1654 = vmatprep.subr.mxu0 %v1088
    %1655 = vmatpush1.msra.mxu0 %v1087
    %1656 = vmatprep.subr.mxu0 %v1082
    %1657 = vmatpush1.msra.mxu0 %v1081
    %1658 = vmatprep.subr.mxu0 %v1076
    %1659 = vmatpush1.msra.mxu0 %v1075
    %1660 = vmatprep.subr.mxu0 %v1070
    %1661 = vmatpush1.msra.mxu0 %v1069
    %1662 = vmatprep.subr.mxu0 %v1064
    %1663 = vmatpush1.msra.mxu0 %v1063
    %1664 = vmatprep.subr.mxu0 %v1058
    %1665 = vmatpush1.msra.mxu0 %v1057
    %1666 = vmatprep.subr.mxu0 %v1244
    %1667 = vmatpush2.msra.mxu0 %v1243
    %1668 = vmatprep.subr.mxu0 %v1238
    %1669 = vmatpush2.msra.mxu0 %v1237
    %1670 = vmatprep.subr.mxu0 %v1232
    %1671 = vmatpush2.msra.mxu0 %v1231
    %1672 = vmatprep.subr.mxu0 %v1226
    %1673 = vmatpush2.msra.mxu0 %v1225
    %1674 = vmatprep.subr.mxu0 %v1220
    %1675 = vmatpush2.msra.mxu0 %v1219
    %1676 = vmatprep.subr.mxu0 %v1214
    %1677 = vmatpush2.msra.mxu0 %v1213
    %1678 = vmatprep.subr.mxu0 %v1208
    %1679 = vmatpush2.msra.mxu0 %v1207
    %1680 = vmatprep.subr.mxu0 %v1202
    %1681 = vmatpush2.msra.mxu0 %v1201
    %1682 = vmatprep.subr.mxu0 %v1196
    %1683 = vmatpush2.msra.mxu0 %v1195
    %1684 = vmatprep.subr.mxu0 %v1190
    %1685 = vmatpush2.msra.mxu0 %v1189
    %1686 = vmatprep.subr.mxu0 %v1184
    %1687 = vmatpush2.msra.mxu0 %v1183
    %1688 = vmatprep.subr.mxu0 %v1178
    %1689 = vmatpush2.msra.mxu0 %v1177
    %1690 = vmatprep.subr.mxu0 %v1172
    %1691 = vmatpush2.msra.mxu0 %v1171
    %1692 = vmatprep.subr.mxu0 %v1166
    %1693 = vmatpush2.msra.mxu0 %v1165
    %1694 = vmatprep.subr.mxu0 %v1160
    %1695 = vmatpush2.msra.mxu0 %v1159
    %1696 = vmatprep.subr.mxu0 %v1154
    %1697 = vmatpush2.msra.mxu0 %v1153
    %1698 = vmatprep.mubr.f32.mxu0 %v670
    %1699 = vmatmul.mubr.f32.gmra.mxu0 %v669
    %v1700 = vpop.f32.mrf.mxu0
    %v1701 = vadd.f32 %v1630, %v1700
    %v1702 = vpop.f32.mrf.mxu0
    %v1703 = vadd.f32 %v1632, %v1702
    %1704 = vdwg.mxu0
    %1705 = vmatprep.subr.mxu0 %v766
    %1706 = vmatpush1.msra.mxu0 %v765
    %1707 = vmatprep.subr.mxu0 %v760
    %1708 = vmatpush1.msra.mxu0 %v759
    %1709 = vmatprep.subr.mxu0 %v754
    %1710 = vmatpush1.msra.mxu0 %v753
    %1711 = vmatprep.subr.mxu0 %v748
    %1712 = vmatpush1.msra.mxu0 %v747
    %1713 = vmatprep.subr.mxu0 %v742
    %1714 = vmatpush1.msra.mxu0 %v741
    %1715 = vmatprep.subr.mxu0 %v736
    %1716 = vmatpush1.msra.mxu0 %v735
    %1717 = vmatprep.subr.mxu0 %v730
    %1718 = vmatpush1.msra.mxu0 %v729
    %1719 = vmatprep.subr.mxu0 %v724
    %1720 = vmatpush1.msra.mxu0 %v723
    %1721 = vmatprep.subr.mxu0 %v718
    %1722 = vmatpush1.msra.mxu0 %v717
    %1723 = vmatprep.subr.mxu0 %v712
    %1724 = vmatpush1.msra.mxu0 %v711
    %1725 = vmatprep.subr.mxu0 %v706
    %1726 = vmatpush1.msra.mxu0 %v705
    %1727 = vmatprep.subr.mxu0 %v700
    %1728 = vmatpush1.msra.mxu0 %v699
    %1729 = vmatprep.subr.mxu0 %v694
    %1730 = vmatpush1.msra.mxu0 %v693
    %1731 = vmatprep.subr.mxu0 %v688
    %1732 = vmatpush1.msra.mxu0 %v687
    %1733 = vmatprep.subr.mxu0 %v682
    %1734 = vmatpush1.msra.mxu0 %v681
    %1735 = vmatprep.subr.mxu0 %v676
    %1736 = vmatpush1.msra.mxu0 %v675
    %1737 = vmatprep.subr.mxu0 %v862
    %1738 = vmatpush2.msra.mxu0 %v861
    %1739 = vmatprep.subr.mxu0 %v856
    %1740 = vmatpush2.msra.mxu0 %v855
    %1741 = vmatprep.subr.mxu0 %v850
    %1742 = vmatpush2.msra.mxu0 %v849
    %1743 = vmatprep.subr.mxu0 %v844
    %1744 = vmatpush2.msra.mxu0 %v843
    %1745 = vmatprep.subr.mxu0 %v838
    %1746 = vmatpush2.msra.mxu0 %v837
    %1747 = vmatprep.subr.mxu0 %v832
    %1748 = vmatpush2.msra.mxu0 %v831
    %1749 = vmatprep.subr.mxu0 %v826
    %1750 = vmatpush2.msra.mxu0 %v825
    %1751 = vmatprep.subr.mxu0 %v820
    %1752 = vmatpush2.msra.mxu0 %v819
    %1753 = vmatprep.subr.mxu0 %v814
    %1754 = vmatpush2.msra.mxu0 %v813
    %1755 = vmatprep.subr.mxu0 %v808
    %1756 = vmatpush2.msra.mxu0 %v807
    %1757 = vmatprep.subr.mxu0 %v802
    %1758 = vmatpush2.msra.mxu0 %v801
    %1759 = vmatprep.subr.mxu0 %v796
    %1760 = vmatpush2.msra.mxu0 %v795
    %1761 = vmatprep.subr.mxu0 %v790
    %1762 = vmatpush2.msra.mxu0 %v789
    %1763 = vmatprep.subr.mxu0 %v784
    %1764 = vmatpush2.msra.mxu0 %v783
    %1765 = vmatprep.subr.mxu0 %v778
    %1766 = vmatpush2.msra.mxu0 %v777
    %1767 = vmatprep.subr.mxu0 %v772
    %1768 = vmatpush2.msra.mxu0 %v771
    %1769 = vmatprep.mubr.f32.mxu0 %v666
    %1770 = vmatmul.mubr.f32.gmra.mxu0 %v665
    %v1771 = vpop.f32.mrf.mxu0
    %v1772 = vadd.f32 %v1268, %v1771
    %v1773 = vpop.f32.mrf.mxu0
    %v1774 = vadd.f32 %v1272, %v1773
    %1775 = vdwg.mxu0
    %1776 = vmatprep.subr.mxu0 %v958
    %1777 = vmatpush1.msra.mxu0 %v957
    %1778 = vmatprep.subr.mxu0 %v952
    %1779 = vmatpush1.msra.mxu0 %v951
    %1780 = vmatprep.subr.mxu0 %v946
    %1781 = vmatpush1.msra.mxu0 %v945
    %1782 = vmatprep.subr.mxu0 %v940
    %1783 = vmatpush1.msra.mxu0 %v939
    %1784 = vmatprep.subr.mxu0 %v934
    %1785 = vmatpush1.msra.mxu0 %v933
    %1786 = vmatprep.subr.mxu0 %v928
    %1787 = vmatpush1.msra.mxu0 %v927
    %1788 = vmatprep.subr.mxu0 %v922
    %1789 = vmatpush1.msra.mxu0 %v921
    %1790 = vmatprep.subr.mxu0 %v916
    %1791 = vmatpush1.msra.mxu0 %v915
    %1792 = vmatprep.subr.mxu0 %v910
    %1793 = vmatpush1.msra.mxu0 %v909
    %1794 = vmatprep.subr.mxu0 %v904
    %1795 = vmatpush1.msra.mxu0 %v903
    %1796 = vmatprep.subr.mxu0 %v898
    %1797 = vmatpush1.msra.mxu0 %v897
    %1798 = vmatprep.subr.mxu0 %v892
    %1799 = vmatpush1.msra.mxu0 %v891
    %1800 = vmatprep.subr.mxu0 %v886
    %1801 = vmatpush1.msra.mxu0 %v885
    %1802 = vmatprep.subr.mxu0 %v880
    %1803 = vmatpush1.msra.mxu0 %v879
    %1804 = vmatprep.subr.mxu0 %v874
    %1805 = vmatpush1.msra.mxu0 %v873
    %1806 = vmatprep.subr.mxu0 %v868
    %1807 = vmatpush1.msra.mxu0 %v867
    %1808 = vmatprep.subr.mxu0 %v1054
    %1809 = vmatpush2.msra.mxu0 %v1053
    %1810 = vmatprep.subr.mxu0 %v1048
    %1811 = vmatpush2.msra.mxu0 %v1047
    %1812 = vmatprep.subr.mxu0 %v1042
    %1813 = vmatpush2.msra.mxu0 %v1041
    %1814 = vmatprep.subr.mxu0 %v1036
    %1815 = vmatpush2.msra.mxu0 %v1035
    %1816 = vmatprep.subr.mxu0 %v1030
    %1817 = vmatpush2.msra.mxu0 %v1029
    %1818 = vmatprep.subr.mxu0 %v1024
    %1819 = vmatpush2.msra.mxu0 %v1023
    %1820 = vmatprep.subr.mxu0 %v1018
    %1821 = vmatpush2.msra.mxu0 %v1017
    %1822 = vmatprep.subr.mxu0 %v1012
    %1823 = vmatpush2.msra.mxu0 %v1011
    %1824 = vmatprep.subr.mxu0 %v1006
    %1825 = vmatpush2.msra.mxu0 %v1005
    %1826 = vmatprep.subr.mxu0 %v1000
    %1827 = vmatpush2.msra.mxu0 %v999
    %1828 = vmatprep.subr.mxu0 %v994
    %1829 = vmatpush2.msra.mxu0 %v993
    %1830 = vmatprep.subr.mxu0 %v988
    %1831 = vmatpush2.msra.mxu0 %v987
    %1832 = vmatprep.subr.mxu0 %v982
    %1833 = vmatpush2.msra.mxu0 %v981
    %1834 = vmatprep.subr.mxu0 %v976
    %1835 = vmatpush2.msra.mxu0 %v975
    %1836 = vmatprep.subr.mxu0 %v970
    %1837 = vmatpush2.msra.mxu0 %v969
    %1838 = vmatprep.subr.mxu0 %v964
    %1839 = vmatpush2.msra.mxu0 %v963
    %1840 = vmatprep.mubr.f32.mxu0 %v668
    %1841 = vmatmul.mubr.f32.gmra.mxu0 %v667
    %v1842 = vpop.f32.mrf.mxu0
    %v1843 = vadd.f32 %v1772, %v1842
    %v1844 = vpop.f32.mrf.mxu0
    %v1845 = vadd.f32 %v1774, %v1844
    %1846 = vdwg.mxu0
    %1847 = vmatprep.subr.mxu0 %v1150
    %1848 = vmatpush1.msra.mxu0 %v1149
    %1849 = vmatprep.subr.mxu0 %v1144
    %1850 = vmatpush1.msra.mxu0 %v1143
    %1851 = vmatprep.subr.mxu0 %v1138
    %1852 = vmatpush1.msra.mxu0 %v1137
    %1853 = vmatprep.subr.mxu0 %v1132
    %1854 = vmatpush1.msra.mxu0 %v1131
    %1855 = vmatprep.subr.mxu0 %v1126
    %1856 = vmatpush1.msra.mxu0 %v1125
    %1857 = vmatprep.subr.mxu0 %v1120
    %1858 = vmatpush1.msra.mxu0 %v1119
    %1859 = vmatprep.subr.mxu0 %v1114
    %1860 = vmatpush1.msra.mxu0 %v1113
    %1861 = vmatprep.subr.mxu0 %v1108
    %1862 = vmatpush1.msra.mxu0 %v1107
    %1863 = vmatprep.subr.mxu0 %v1102
    %1864 = vmatpush1.msra.mxu0 %v1101
    %1865 = vmatprep.subr.mxu0 %v1096
    %1866 = vmatpush1.msra.mxu0 %v1095
    %1867 = vmatprep.subr.mxu0 %v1090
    %1868 = vmatpush1.msra.mxu0 %v1089
    %1869 = vmatprep.subr.mxu0 %v1084
    %1870 = vmatpush1.msra.mxu0 %v1083
    %1871 = vmatprep.subr.mxu0 %v1078
    %1872 = vmatpush1.msra.mxu0 %v1077
    %1873 = vmatprep.subr.mxu0 %v1072
    %1874 = vmatpush1.msra.mxu0 %v1071
    %1875 = vmatprep.subr.mxu0 %v1066
    %1876 = vmatpush1.msra.mxu0 %v1065
    %1877 = vmatprep.subr.mxu0 %v1060
    %1878 = vmatpush1.msra.mxu0 %v1059
    %1879 = vmatprep.subr.mxu0 %v1246
    %1880 = vmatpush2.msra.mxu0 %v1245
    %1881 = vmatprep.subr.mxu0 %v1240
    %1882 = vmatpush2.msra.mxu0 %v1239
    %1883 = vmatprep.subr.mxu0 %v1234
    %1884 = vmatpush2.msra.mxu0 %v1233
    %1885 = vmatprep.subr.mxu0 %v1228
    %1886 = vmatpush2.msra.mxu0 %v1227
    %1887 = vmatprep.subr.mxu0 %v1222
    %1888 = vmatpush2.msra.mxu0 %v1221
    %1889 = vmatprep.subr.mxu0 %v1216
    %1890 = vmatpush2.msra.mxu0 %v1215
    %1891 = vmatprep.subr.mxu0 %v1210
    %1892 = vmatpush2.msra.mxu0 %v1209
    %1893 = vmatprep.subr.mxu0 %v1204
    %1894 = vmatpush2.msra.mxu0 %v1203
    %1895 = vmatprep.subr.mxu0 %v1198
    %1896 = vmatpush2.msra.mxu0 %v1197
    %1897 = vmatprep.subr.mxu0 %v1192
    %1898 = vmatpush2.msra.mxu0 %v1191
    %1899 = vmatprep.subr.mxu0 %v1186
    %1900 = vmatpush2.msra.mxu0 %v1185
    %1901 = vmatprep.subr.mxu0 %v1180
    %1902 = vmatpush2.msra.mxu0 %v1179
    %1903 = vmatprep.subr.mxu0 %v1174
    %1904 = vmatpush2.msra.mxu0 %v1173
    %1905 = vmatprep.subr.mxu0 %v1168
    %1906 = vmatpush2.msra.mxu0 %v1167
    %1907 = vmatprep.subr.mxu0 %v1162
    %1908 = vmatpush2.msra.mxu0 %v1161
    %1909 = vmatprep.subr.mxu0 %v1156
    %1910 = vmatpush2.msra.mxu0 %v1155
    %1911 = vmatprep.mubr.f32.mxu0 %v670
    %1912 = vmatmul.mubr.f32.gmra.mxu0 %v669
    %v1913 = vpop.f32.mrf.mxu0
    %v1914 = vadd.f32 %v1843, %v1913
    %v1915 = vpop.f32.mrf.mxu0
    %v1916 = vadd.f32 %v1845, %v1915
    %1917 = vdwg.mxu0
    %v1918 = vmax.f32 %v1488, 0.0
    %v1919 = vmax.f32 %v1490, 0.0
    %v1920 = vmax.f32 %v1701, 0.0
    %v1921 = vmax.f32 %v1703, 0.0
    %v1922 = vmax.f32 %v1914, 0.0
    %v1923 = vmax.f32 %v1916, 0.0
    %v1924 = vld [vmem:[#allocation14] sm:$0xff]
    %v1925 = vld [vmem:[#allocation14 + $0x8] sm:$0xff]
    %v1926 = vld [vmem:[#allocation14 + $0x10] sm:$0xff]
    %v1927 = vld [vmem:[#allocation14 + $0x18] sm:$0xff]
    %v1928 = vld [vmem:[#allocation14 + $0x20] sm:$0xff]
    %v1929 = vld [vmem:[#allocation14 + $0x28] sm:$0xff]
    %v1930 = vld [vmem:[#allocation14 + $0x30] sm:$0xff]
    %v1931 = vld [vmem:[#allocation14 + $0x38] sm:$0xff]
    %v1932 = vld [vmem:[#allocation14 + $0x40] sm:$0xff]
    %v1933 = vld [vmem:[#allocation14 + $0x48] sm:$0xff]
    %v1934 = vld [vmem:[#allocation14 + $0x50] sm:$0xff]
    %v1935 = vld [vmem:[#allocation14 + $0x58] sm:$0xff]
    %v1936 = vld [vmem:[#allocation14 + $0x60] sm:$0xff]
    %v1937 = vld [vmem:[#allocation14 + $0x68] sm:$0xff]
    %v1938 = vld [vmem:[#allocation14 + $0x70] sm:$0xff]
    %v1939 = vld [vmem:[#allocation14 + $0x78] sm:$0xff]
    %v1940 = vld [vmem:[#allocation14 + $0x80] sm:$0xff]
    %v1941 = vld [vmem:[#allocation14 + $0x88] sm:$0xff]
    %v1942 = vld [vmem:[#allocation14 + $0x90] sm:$0xff]
    %v1943 = vld [vmem:[#allocation14 + $0x98] sm:$0xff]
    %v1944 = vld [vmem:[#allocation14 + $0xa0] sm:$0xff]
    %v1945 = vld [vmem:[#allocation14 + $0xa8] sm:$0xff]
    %v1946 = vld [vmem:[#allocation14 + $0xb0] sm:$0xff]
    %v1947 = vld [vmem:[#allocation14 + $0xb8] sm:$0xff]
    %v1948 = vld [vmem:[#allocation14 + $0xc0] sm:$0xff]
    %v1949 = vld [vmem:[#allocation14 + $0xc8] sm:$0xff]
    %v1950 = vld [vmem:[#allocation14 + $0xd0] sm:$0xff]
    %v1951 = vld [vmem:[#allocation14 + $0xd8] sm:$0xff]
    %v1952 = vld [vmem:[#allocation14 + $0xe0] sm:$0xff]
    %v1953 = vld [vmem:[#allocation14 + $0xe8] sm:$0xff]
    %v1954 = vld [vmem:[#allocation14 + $0xf0] sm:$0xff]
    %v1955 = vld [vmem:[#allocation14 + $0xf8] sm:$0xff]
    %v1956 = vld [vmem:[#allocation14 + $0x100] sm:$0xff]
    %v1957 = vld [vmem:[#allocation14 + $0x108] sm:$0xff]
    %v1958 = vld [vmem:[#allocation14 + $0x110] sm:$0xff]
    %v1959 = vld [vmem:[#allocation14 + $0x118] sm:$0xff]
    %v1960 = vld [vmem:[#allocation14 + $0x120] sm:$0xff]
    %v1961 = vld [vmem:[#allocation14 + $0x128] sm:$0xff]
    %v1962 = vld [vmem:[#allocation14 + $0x130] sm:$0xff]
    %v1963 = vld [vmem:[#allocation14 + $0x138] sm:$0xff]
    %v1964 = vld [vmem:[#allocation14 + $0x140] sm:$0xff]
    %v1965 = vld [vmem:[#allocation14 + $0x148] sm:$0xff]
    %v1966 = vld [vmem:[#allocation14 + $0x150] sm:$0xff]
    %v1967 = vld [vmem:[#allocation14 + $0x158] sm:$0xff]
    %v1968 = vld [vmem:[#allocation14 + $0x160] sm:$0xff]
    %v1969 = vld [vmem:[#allocation14 + $0x168] sm:$0xff]
    %v1970 = vld [vmem:[#allocation14 + $0x170] sm:$0xff]
    %v1971 = vld [vmem:[#allocation14 + $0x178] sm:$0xff]
    %v1972 = vld [vmem:[#allocation14 + $0x180] sm:$0xff]
    %v1973 = vld [vmem:[#allocation14 + $0x188] sm:$0xff]
    %v1974 = vld [vmem:[#allocation14 + $0x190] sm:$0xff]
    %v1975 = vld [vmem:[#allocation14 + $0x198] sm:$0xff]
    %v1976 = vld [vmem:[#allocation14 + $0x1a0] sm:$0xff]
    %v1977 = vld [vmem:[#allocation14 + $0x1a8] sm:$0xff]
    %v1978 = vld [vmem:[#allocation14 + $0x1b0] sm:$0xff]
    %v1979 = vld [vmem:[#allocation14 + $0x1b8] sm:$0xff]
    %v1980 = vld [vmem:[#allocation14 + $0x1c0] sm:$0xff]
    %v1981 = vld [vmem:[#allocation14 + $0x1c8] sm:$0xff]
    %v1982 = vld [vmem:[#allocation14 + $0x1d0] sm:$0xff]
    %v1983 = vld [vmem:[#allocation14 + $0x1d8] sm:$0xff]
    %v1984 = vld [vmem:[#allocation14 + $0x1e0] sm:$0xff]
    %v1985 = vld [vmem:[#allocation14 + $0x1e8] sm:$0xff]
    %v1986 = vld [vmem:[#allocation14 + $0x1f0] sm:$0xff]
    %v1987 = vld [vmem:[#allocation14 + $0x1f8] sm:$0xff]
    %v1988 = vld [vmem:[#allocation14 + $0x200] sm:$0xff]
    %v1989 = vld [vmem:[#allocation14 + $0x208] sm:$0xff]
    %v1990 = vld [vmem:[#allocation14 + $0x210] sm:$0xff]
    %v1991 = vld [vmem:[#allocation14 + $0x218] sm:$0xff]
    %v1992 = vld [vmem:[#allocation14 + $0x220] sm:$0xff]
    %v1993 = vld [vmem:[#allocation14 + $0x228] sm:$0xff]
    %v1994 = vld [vmem:[#allocation14 + $0x230] sm:$0xff]
    %v1995 = vld [vmem:[#allocation14 + $0x238] sm:$0xff]
    %v1996 = vld [vmem:[#allocation14 + $0x240] sm:$0xff]
    %v1997 = vld [vmem:[#allocation14 + $0x248] sm:$0xff]
    %v1998 = vld [vmem:[#allocation14 + $0x250] sm:$0xff]
    %v1999 = vld [vmem:[#allocation14 + $0x258] sm:$0xff]
    %v2000 = vld [vmem:[#allocation14 + $0x260] sm:$0xff]
    %v2001 = vld [vmem:[#allocation14 + $0x268] sm:$0xff]
    %v2002 = vld [vmem:[#allocation14 + $0x270] sm:$0xff]
    %v2003 = vld [vmem:[#allocation14 + $0x278] sm:$0xff]
    %v2004 = vld [vmem:[#allocation14 + $0x280] sm:$0xff]
    %v2005 = vld [vmem:[#allocation14 + $0x288] sm:$0xff]
    %v2006 = vld [vmem:[#allocation14 + $0x290] sm:$0xff]
    %v2007 = vld [vmem:[#allocation14 + $0x298] sm:$0xff]
    %v2008 = vld [vmem:[#allocation14 + $0x2a0] sm:$0xff]
    %v2009 = vld [vmem:[#allocation14 + $0x2a8] sm:$0xff]
    %v2010 = vld [vmem:[#allocation14 + $0x2b0] sm:$0xff]
    %v2011 = vld [vmem:[#allocation14 + $0x2b8] sm:$0xff]
    %v2012 = vld [vmem:[#allocation14 + $0x2c0] sm:$0xff]
    %v2013 = vld [vmem:[#allocation14 + $0x2c8] sm:$0xff]
    %v2014 = vld [vmem:[#allocation14 + $0x2d0] sm:$0xff]
    %v2015 = vld [vmem:[#allocation14 + $0x2d8] sm:$0xff]
    %v2016 = vld [vmem:[#allocation14 + $0x2e0] sm:$0xff]
    %v2017 = vld [vmem:[#allocation14 + $0x2e8] sm:$0xff]
    %v2018 = vld [vmem:[#allocation14 + $0x2f0] sm:$0xff]
    %v2019 = vld [vmem:[#allocation14 + $0x2f8] sm:$0xff]
    %v2020 = vld [vmem:[#allocation14 + $0x300] sm:$0xff]
    %v2021 = vld [vmem:[#allocation14 + $0x308] sm:$0xff]
    %v2022 = vld [vmem:[#allocation14 + $0x310] sm:$0xff]
    %v2023 = vld [vmem:[#allocation14 + $0x318] sm:$0xff]
    %v2024 = vld [vmem:[#allocation14 + $0x320] sm:$0xff]
    %v2025 = vld [vmem:[#allocation14 + $0x328] sm:$0xff]
    %v2026 = vld [vmem:[#allocation14 + $0x330] sm:$0xff]
    %v2027 = vld [vmem:[#allocation14 + $0x338] sm:$0xff]
    %v2028 = vld [vmem:[#allocation14 + $0x340] sm:$0xff]
    %v2029 = vld [vmem:[#allocation14 + $0x348] sm:$0xff]
    %v2030 = vld [vmem:[#allocation14 + $0x350] sm:$0xff]
    %v2031 = vld [vmem:[#allocation14 + $0x358] sm:$0xff]
    %v2032 = vld [vmem:[#allocation14 + $0x360] sm:$0xff]
    %v2033 = vld [vmem:[#allocation14 + $0x368] sm:$0xff]
    %v2034 = vld [vmem:[#allocation14 + $0x370] sm:$0xff]
    %v2035 = vld [vmem:[#allocation14 + $0x378] sm:$0xff]
    %v2036 = vld [vmem:[#allocation14 + $0x380] sm:$0xff]
    %v2037 = vld [vmem:[#allocation14 + $0x388] sm:$0xff]
    %v2038 = vld [vmem:[#allocation14 + $0x390] sm:$0xff]
    %v2039 = vld [vmem:[#allocation14 + $0x398] sm:$0xff]
    %v2040 = vld [vmem:[#allocation14 + $0x3a0] sm:$0xff]
    %v2041 = vld [vmem:[#allocation14 + $0x3a8] sm:$0xff]
    %v2042 = vld [vmem:[#allocation14 + $0x3b0] sm:$0xff]
    %v2043 = vld [vmem:[#allocation14 + $0x3b8] sm:$0xff]
    %v2044 = vld [vmem:[#allocation14 + $0x3c0] sm:$0xff]
    %v2045 = vld [vmem:[#allocation14 + $0x3c8] sm:$0xff]
    %v2046 = vld [vmem:[#allocation14 + $0x3d0] sm:$0xff]
    %v2047 = vld [vmem:[#allocation14 + $0x3d8] sm:$0xff]
    %v2048 = vld [vmem:[#allocation14 + $0x3e0] sm:$0xff]
    %v2049 = vld [vmem:[#allocation14 + $0x3e8] sm:$0xff]
    %v2050 = vld [vmem:[#allocation14 + $0x3f0] sm:$0xff]
    %v2051 = vld [vmem:[#allocation14 + $0x3f8] sm:$0xff]
    %v2052 = vld [vmem:[#allocation14 + $0x400] sm:$0xff]
    %v2053 = vld [vmem:[#allocation14 + $0x408] sm:$0xff]
    %v2054 = vld [vmem:[#allocation14 + $0x410] sm:$0xff]
    %v2055 = vld [vmem:[#allocation14 + $0x418] sm:$0xff]
    %v2056 = vld [vmem:[#allocation14 + $0x420] sm:$0xff]
    %v2057 = vld [vmem:[#allocation14 + $0x428] sm:$0xff]
    %v2058 = vld [vmem:[#allocation14 + $0x430] sm:$0xff]
    %v2059 = vld [vmem:[#allocation14 + $0x438] sm:$0xff]
    %v2060 = vld [vmem:[#allocation14 + $0x440] sm:$0xff]
    %v2061 = vld [vmem:[#allocation14 + $0x448] sm:$0xff]
    %v2062 = vld [vmem:[#allocation14 + $0x450] sm:$0xff]
    %v2063 = vld [vmem:[#allocation14 + $0x458] sm:$0xff]
    %v2064 = vld [vmem:[#allocation14 + $0x460] sm:$0xff]
    %v2065 = vld [vmem:[#allocation14 + $0x468] sm:$0xff]
    %v2066 = vld [vmem:[#allocation14 + $0x470] sm:$0xff]
    %v2067 = vld [vmem:[#allocation14 + $0x478] sm:$0xff]
    %v2068 = vld [vmem:[#allocation14 + $0x480] sm:$0xff]
    %v2069 = vld [vmem:[#allocation14 + $0x488] sm:$0xff]
    %v2070 = vld [vmem:[#allocation14 + $0x490] sm:$0xff]
    %v2071 = vld [vmem:[#allocation14 + $0x498] sm:$0xff]
    %v2072 = vld [vmem:[#allocation14 + $0x4a0] sm:$0xff]
    %v2073 = vld [vmem:[#allocation14 + $0x4a8] sm:$0xff]
    %v2074 = vld [vmem:[#allocation14 + $0x4b0] sm:$0xff]
    %v2075 = vld [vmem:[#allocation14 + $0x4b8] sm:$0xff]
    %v2076 = vld [vmem:[#allocation14 + $0x4c0] sm:$0xff]
    %v2077 = vld [vmem:[#allocation14 + $0x4c8] sm:$0xff]
    %v2078 = vld [vmem:[#allocation14 + $0x4d0] sm:$0xff]
    %v2079 = vld [vmem:[#allocation14 + $0x4d8] sm:$0xff]
    %v2080 = vld [vmem:[#allocation14 + $0x4e0] sm:$0xff]
    %v2081 = vld [vmem:[#allocation14 + $0x4e8] sm:$0xff]
    %v2082 = vld [vmem:[#allocation14 + $0x4f0] sm:$0xff]
    %v2083 = vld [vmem:[#allocation14 + $0x4f8] sm:$0xff]
    %v2084 = vld [vmem:[#allocation14 + $0x500] sm:$0xff]
    %v2085 = vld [vmem:[#allocation14 + $0x508] sm:$0xff]
    %v2086 = vld [vmem:[#allocation14 + $0x510] sm:$0xff]
    %v2087 = vld [vmem:[#allocation14 + $0x518] sm:$0xff]
    %v2088 = vld [vmem:[#allocation14 + $0x520] sm:$0xff]
    %v2089 = vld [vmem:[#allocation14 + $0x528] sm:$0xff]
    %v2090 = vld [vmem:[#allocation14 + $0x530] sm:$0xff]
    %v2091 = vld [vmem:[#allocation14 + $0x538] sm:$0xff]
    %v2092 = vld [vmem:[#allocation14 + $0x540] sm:$0xff]
    %v2093 = vld [vmem:[#allocation14 + $0x548] sm:$0xff]
    %v2094 = vld [vmem:[#allocation14 + $0x550] sm:$0xff]
    %v2095 = vld [vmem:[#allocation14 + $0x558] sm:$0xff]
    %v2096 = vld [vmem:[#allocation14 + $0x560] sm:$0xff]
    %v2097 = vld [vmem:[#allocation14 + $0x568] sm:$0xff]
    %v2098 = vld [vmem:[#allocation14 + $0x570] sm:$0xff]
    %v2099 = vld [vmem:[#allocation14 + $0x578] sm:$0xff]
    %v2100 = vld [vmem:[#allocation14 + $0x580] sm:$0xff]
    %v2101 = vld [vmem:[#allocation14 + $0x588] sm:$0xff]
    %v2102 = vld [vmem:[#allocation14 + $0x590] sm:$0xff]
    %v2103 = vld [vmem:[#allocation14 + $0x598] sm:$0xff]
    %v2104 = vld [vmem:[#allocation14 + $0x5a0] sm:$0xff]
    %v2105 = vld [vmem:[#allocation14 + $0x5a8] sm:$0xff]
    %v2106 = vld [vmem:[#allocation14 + $0x5b0] sm:$0xff]
    %v2107 = vld [vmem:[#allocation14 + $0x5b8] sm:$0xff]
    %v2108 = vld [vmem:[#allocation14 + $0x5c0] sm:$0xff]
    %v2109 = vld [vmem:[#allocation14 + $0x5c8] sm:$0xff]
    %v2110 = vld [vmem:[#allocation14 + $0x5d0] sm:$0xff]
    %v2111 = vld [vmem:[#allocation14 + $0x5d8] sm:$0xff]
    %v2112 = vld [vmem:[#allocation14 + $0x5e0] sm:$0xff]
    %v2113 = vld [vmem:[#allocation14 + $0x5e8] sm:$0xff]
    %v2114 = vld [vmem:[#allocation14 + $0x5f0] sm:$0xff]
    %v2115 = vld [vmem:[#allocation14 + $0x5f8] sm:$0xff]
    %v2116 = vld [vmem:[#allocation15] sm:$0x3]
    %v2118 = vlaneseq
    %v2119 = vshrl.u32 %v2118, 7
    %v2120 = vsub.s32 0, %v2119
    %v2121 = vrot.slane %v2116, %v2120
    %v2122 = vlaneseq
    %v2123 = vshrl.u32 %v2122, 7
    %v2124 = vsub.s32 1, %v2123
    %v2125 = vrot.slane %v2116, %v2124
    %2128 = vmatprep.subr.mxu0 %v1955
    %2129 = vmatpush1.msra.mxu0 %v1954
    %2130 = vmatprep.subr.mxu0 %v1953
    %2131 = vmatpush1.msra.mxu0 %v1952
    %2132 = vmatprep.subr.mxu0 %v1951
    %2133 = vmatpush1.msra.mxu0 %v1950
    %2134 = vmatprep.subr.mxu0 %v1949
    %2135 = vmatpush1.msra.mxu0 %v1948
    %2136 = vmatprep.subr.mxu0 %v1947
    %2137 = vmatpush1.msra.mxu0 %v1946
    %2138 = vmatprep.subr.mxu0 %v1945
    %2139 = vmatpush1.msra.mxu0 %v1944
    %2140 = vmatprep.subr.mxu0 %v1943
    %2141 = vmatpush1.msra.mxu0 %v1942
    %2142 = vmatprep.subr.mxu0 %v1941
    %2143 = vmatpush1.msra.mxu0 %v1940
    %2144 = vmatprep.subr.mxu0 %v1939
    %2145 = vmatpush1.msra.mxu0 %v1938
    %2146 = vmatprep.subr.mxu0 %v1937
    %2147 = vmatpush1.msra.mxu0 %v1936
    %2148 = vmatprep.subr.mxu0 %v1935
    %2149 = vmatpush1.msra.mxu0 %v1934
    %2150 = vmatprep.subr.mxu0 %v1933
    %2151 = vmatpush1.msra.mxu0 %v1932
    %2152 = vmatprep.subr.mxu0 %v1931
    %2153 = vmatpush1.msra.mxu0 %v1930
    %2154 = vmatprep.subr.mxu0 %v1929
    %2155 = vmatpush1.msra.mxu0 %v1928
    %2156 = vmatprep.subr.mxu0 %v1927
    %2157 = vmatpush1.msra.mxu0 %v1926
    %2158 = vmatprep.subr.mxu0 %v1925
    %2159 = vmatpush1.msra.mxu0 %v1924
    %2160 = vmatprep.subr.mxu0 %v1987
    %2161 = vmatpush2.msra.mxu0 %v1986
    %2162 = vmatprep.subr.mxu0 %v1985
    %2163 = vmatpush2.msra.mxu0 %v1984
    %2164 = vmatprep.subr.mxu0 %v1983
    %2165 = vmatpush2.msra.mxu0 %v1982
    %2166 = vmatprep.subr.mxu0 %v1981
    %2167 = vmatpush2.msra.mxu0 %v1980
    %2168 = vmatprep.subr.mxu0 %v1979
    %2169 = vmatpush2.msra.mxu0 %v1978
    %2170 = vmatprep.subr.mxu0 %v1977
    %2171 = vmatpush2.msra.mxu0 %v1976
    %2172 = vmatprep.subr.mxu0 %v1975
    %2173 = vmatpush2.msra.mxu0 %v1974
    %2174 = vmatprep.subr.mxu0 %v1973
    %2175 = vmatpush2.msra.mxu0 %v1972
    %2176 = vmatprep.subr.mxu0 %v1971
    %2177 = vmatpush2.msra.mxu0 %v1970
    %2178 = vmatprep.subr.mxu0 %v1969
    %2179 = vmatpush2.msra.mxu0 %v1968
    %2180 = vmatprep.subr.mxu0 %v1967
    %2181 = vmatpush2.msra.mxu0 %v1966
    %2182 = vmatprep.subr.mxu0 %v1965
    %2183 = vmatpush2.msra.mxu0 %v1964
    %2184 = vmatprep.subr.mxu0 %v1963
    %2185 = vmatpush2.msra.mxu0 %v1962
    %2186 = vmatprep.subr.mxu0 %v1961
    %2187 = vmatpush2.msra.mxu0 %v1960
    %2188 = vmatprep.subr.mxu0 %v1959
    %2189 = vmatpush2.msra.mxu0 %v1958
    %2190 = vmatprep.subr.mxu0 %v1957
    %2191 = vmatpush2.msra.mxu0 %v1956
    %2192 = vmatprep.mubr.f32.mxu0 %v1919
    %2193 = vmatmul.mubr.f32.gmra.mxu0 %v1918
    %v2194 = vpop.f32.mrf.mxu0
    %v2195 = vadd.f32 %v2121, %v2194
    %v2196 = vpop.f32.mrf.mxu0
    %v2197 = vadd.f32 %v2125, %v2196
    %2198 = vdwg.mxu0
    %2199 = vmatprep.subr.mxu0 %v2019
    %2200 = vmatpush1.msra.mxu0 %v2018
    %2201 = vmatprep.subr.mxu0 %v2017
    %2202 = vmatpush1.msra.mxu0 %v2016
    %2203 = vmatprep.subr.mxu0 %v2015
    %2204 = vmatpush1.msra.mxu0 %v2014
    %2205 = vmatprep.subr.mxu0 %v2013
    %2206 = vmatpush1.msra.mxu0 %v2012
    %2207 = vmatprep.subr.mxu0 %v2011
    %2208 = vmatpush1.msra.mxu0 %v2010
    %2209 = vmatprep.subr.mxu0 %v2009
    %2210 = vmatpush1.msra.mxu0 %v2008
    %2211 = vmatprep.subr.mxu0 %v2007
    %2212 = vmatpush1.msra.mxu0 %v2006
    %2213 = vmatprep.subr.mxu0 %v2005
    %2214 = vmatpush1.msra.mxu0 %v2004
    %2215 = vmatprep.subr.mxu0 %v2003
    %2216 = vmatpush1.msra.mxu0 %v2002
    %2217 = vmatprep.subr.mxu0 %v2001
    %2218 = vmatpush1.msra.mxu0 %v2000
    %2219 = vmatprep.subr.mxu0 %v1999
    %2220 = vmatpush1.msra.mxu0 %v1998
    %2221 = vmatprep.subr.mxu0 %v1997
    %2222 = vmatpush1.msra.mxu0 %v1996
    %2223 = vmatprep.subr.mxu0 %v1995
    %2224 = vmatpush1.msra.mxu0 %v1994
    %2225 = vmatprep.subr.mxu0 %v1993
    %2226 = vmatpush1.msra.mxu0 %v1992
    %2227 = vmatprep.subr.mxu0 %v1991
    %2228 = vmatpush1.msra.mxu0 %v1990
    %2229 = vmatprep.subr.mxu0 %v1989
    %2230 = vmatpush1.msra.mxu0 %v1988
    %2231 = vmatprep.subr.mxu0 %v2051
    %2232 = vmatpush2.msra.mxu0 %v2050
    %2233 = vmatprep.subr.mxu0 %v2049
    %2234 = vmatpush2.msra.mxu0 %v2048
    %2235 = vmatprep.subr.mxu0 %v2047
    %2236 = vmatpush2.msra.mxu0 %v2046
    %2237 = vmatprep.subr.mxu0 %v2045
    %2238 = vmatpush2.msra.mxu0 %v2044
    %2239 = vmatprep.subr.mxu0 %v2043
    %2240 = vmatpush2.msra.mxu0 %v2042
    %2241 = vmatprep.subr.mxu0 %v2041
    %2242 = vmatpush2.msra.mxu0 %v2040
    %2243 = vmatprep.subr.mxu0 %v2039
    %2244 = vmatpush2.msra.mxu0 %v2038
    %2245 = vmatprep.subr.mxu0 %v2037
    %2246 = vmatpush2.msra.mxu0 %v2036
    %2247 = vmatprep.subr.mxu0 %v2035
    %2248 = vmatpush2.msra.mxu0 %v2034
    %2249 = vmatprep.subr.mxu0 %v2033
    %2250 = vmatpush2.msra.mxu0 %v2032
    %2251 = vmatprep.subr.mxu0 %v2031
    %2252 = vmatpush2.msra.mxu0 %v2030
    %2253 = vmatprep.subr.mxu0 %v2029
    %2254 = vmatpush2.msra.mxu0 %v2028
    %2255 = vmatprep.subr.mxu0 %v2027
    %2256 = vmatpush2.msra.mxu0 %v2026
    %2257 = vmatprep.subr.mxu0 %v2025
    %2258 = vmatpush2.msra.mxu0 %v2024
    %2259 = vmatprep.subr.mxu0 %v2023
    %2260 = vmatpush2.msra.mxu0 %v2022
    %2261 = vmatprep.subr.mxu0 %v2021
    %2262 = vmatpush2.msra.mxu0 %v2020
    %2263 = vmatprep.mubr.f32.mxu0 %v1921
    %2264 = vmatmul.mubr.f32.gmra.mxu0 %v1920
    %v2265 = vpop.f32.mrf.mxu0
    %v2266 = vadd.f32 %v2195, %v2265
    %v2267 = vpop.f32.mrf.mxu0
    %v2268 = vadd.f32 %v2197, %v2267
    %2269 = vdwg.mxu0
    %2270 = vmatprep.subr.mxu0 %v2083
    %2271 = vmatpush1.msra.mxu0 %v2082
    %2272 = vmatprep.subr.mxu0 %v2081
    %2273 = vmatpush1.msra.mxu0 %v2080
    %2274 = vmatprep.subr.mxu0 %v2079
    %2275 = vmatpush1.msra.mxu0 %v2078
    %2276 = vmatprep.subr.mxu0 %v2077
    %2277 = vmatpush1.msra.mxu0 %v2076
    %2278 = vmatprep.subr.mxu0 %v2075
    %2279 = vmatpush1.msra.mxu0 %v2074
    %2280 = vmatprep.subr.mxu0 %v2073
    %2281 = vmatpush1.msra.mxu0 %v2072
    %2282 = vmatprep.subr.mxu0 %v2071
    %2283 = vmatpush1.msra.mxu0 %v2070
    %2284 = vmatprep.subr.mxu0 %v2069
    %2285 = vmatpush1.msra.mxu0 %v2068
    %2286 = vmatprep.subr.mxu0 %v2067
    %2287 = vmatpush1.msra.mxu0 %v2066
    %2288 = vmatprep.subr.mxu0 %v2065
    %2289 = vmatpush1.msra.mxu0 %v2064
    %2290 = vmatprep.subr.mxu0 %v2063
    %2291 = vmatpush1.msra.mxu0 %v2062
    %2292 = vmatprep.subr.mxu0 %v2061
    %2293 = vmatpush1.msra.mxu0 %v2060
    %2294 = vmatprep.subr.mxu0 %v2059
    %2295 = vmatpush1.msra.mxu0 %v2058
    %2296 = vmatprep.subr.mxu0 %v2057
    %2297 = vmatpush1.msra.mxu0 %v2056
    %2298 = vmatprep.subr.mxu0 %v2055
    %2299 = vmatpush1.msra.mxu0 %v2054
    %2300 = vmatprep.subr.mxu0 %v2053
    %2301 = vmatpush1.msra.mxu0 %v2052
    %2302 = vmatprep.subr.mxu0 %v2115
    %2303 = vmatpush2.msra.mxu0 %v2114
    %2304 = vmatprep.subr.mxu0 %v2113
    %2305 = vmatpush2.msra.mxu0 %v2112
    %2306 = vmatprep.subr.mxu0 %v2111
    %2307 = vmatpush2.msra.mxu0 %v2110
    %2308 = vmatprep.subr.mxu0 %v2109
    %2309 = vmatpush2.msra.mxu0 %v2108
    %2310 = vmatprep.subr.mxu0 %v2107
    %2311 = vmatpush2.msra.mxu0 %v2106
    %2312 = vmatprep.subr.mxu0 %v2105
    %2313 = vmatpush2.msra.mxu0 %v2104
    %2314 = vmatprep.subr.mxu0 %v2103
    %2315 = vmatpush2.msra.mxu0 %v2102
    %2316 = vmatprep.subr.mxu0 %v2101
    %2317 = vmatpush2.msra.mxu0 %v2100
    %2318 = vmatprep.subr.mxu0 %v2099
    %2319 = vmatpush2.msra.mxu0 %v2098
    %2320 = vmatprep.subr.mxu0 %v2097
    %2321 = vmatpush2.msra.mxu0 %v2096
    %2322 = vmatprep.subr.mxu0 %v2095
    %2323 = vmatpush2.msra.mxu0 %v2094
    %2324 = vmatprep.subr.mxu0 %v2093
    %2325 = vmatpush2.msra.mxu0 %v2092
    %2326 = vmatprep.subr.mxu0 %v2091
    %2327 = vmatpush2.msra.mxu0 %v2090
    %2328 = vmatprep.subr.mxu0 %v2089
    %2329 = vmatpush2.msra.mxu0 %v2088
    %2330 = vmatprep.subr.mxu0 %v2087
    %2331 = vmatpush2.msra.mxu0 %v2086
    %2332 = vmatprep.subr.mxu0 %v2085
    %2333 = vmatpush2.msra.mxu0 %v2084
    %2334 = vmatprep.mubr.f32.mxu0 %v1923
    %2335 = vmatmul.mubr.f32.gmra.mxu0 %v1922
    %v2336 = vpop.f32.mrf.mxu0
    %v2337 = vadd.f32 %v2266, %v2336
    %v2338 = vpop.f32.mrf.mxu0
    %v2339 = vadd.f32 %v2268, %v2338
    %2340 = vdwg.mxu0
    %v2341 = vmax.f32 %v2339, -4.0
    %v2342 = vmin.f32 %v2341, 15.0
    %v2343 = vmul.f32 %v2342, 1.442695
    %v2344 = vpow.pop %v2343
    %v2345 = vld [vmem:[#allocation6] sm:$0xff]
    %v2346 = vmul.f32 %v2344, %v2345
    %v2347 = vadd.f32 %v2337, %v2346
    %2348 = vst [vmem:[#allocation2] sm:$0xff] %v226
    %2349 = vst [vmem:[#allocation2 + $0x8] sm:$0xff] %v2347
    %v2350 = vld [vmem:[#allocation2] sm:$0xff]
    %v2351 = vld [vmem:[#allocation2 + $0x8] sm:$0xff]
    %v2352 = vld [vmem:[#allocation17] sm:$0xff]
    %v2353 = vld [vmem:[#allocation17 + $0x8] sm:$0xff]
    %v2354 = vld [vmem:[#allocation17 + $0x10] sm:$0xff]
    %v2355 = vld [vmem:[#allocation17 + $0x18] sm:$0xff]
    %v2356 = vld [vmem:[#allocation17 + $0x20] sm:$0xff]
    %v2357 = vld [vmem:[#allocation17 + $0x28] sm:$0xff]
    %v2358 = vld [vmem:[#allocation17 + $0x30] sm:$0xff]
    %v2359 = vld [vmem:[#allocation17 + $0x38] sm:$0xff]
    %v2360 = vld [vmem:[#allocation17 + $0x40] sm:$0xff]
    %v2361 = vld [vmem:[#allocation17 + $0x48] sm:$0xff]
    %v2362 = vld [vmem:[#allocation17 + $0x50] sm:$0xff]
    %v2363 = vld [vmem:[#allocation17 + $0x58] sm:$0xff]
    %v2364 = vld [vmem:[#allocation17 + $0x60] sm:$0xff]
    %v2365 = vld [vmem:[#allocation17 + $0x68] sm:$0xff]
    %v2366 = vld [vmem:[#allocation17 + $0x70] sm:$0xff]
    %v2367 = vld [vmem:[#allocation17 + $0x78] sm:$0xff]
    %v2368 = vld [vmem:[#allocation17 + $0x80] sm:$0xff]
    %v2369 = vld [vmem:[#allocation17 + $0x88] sm:$0xff]
    %v2370 = vld [vmem:[#allocation17 + $0x90] sm:$0xff]
    %v2371 = vld [vmem:[#allocation17 + $0x98] sm:$0xff]
    %v2372 = vld [vmem:[#allocation17 + $0xa0] sm:$0xff]
    %v2373 = vld [vmem:[#allocation17 + $0xa8] sm:$0xff]
    %v2374 = vld [vmem:[#allocation17 + $0xb0] sm:$0xff]
    %v2375 = vld [vmem:[#allocation17 + $0xb8] sm:$0xff]
    %v2376 = vld [vmem:[#allocation17 + $0xc0] sm:$0xff]
    %v2377 = vld [vmem:[#allocation17 + $0xc8] sm:$0xff]
    %v2378 = vld [vmem:[#allocation17 + $0xd0] sm:$0xff]
    %v2379 = vld [vmem:[#allocation17 + $0xd8] sm:$0xff]
    %v2380 = vld [vmem:[#allocation17 + $0xe0] sm:$0xff]
    %v2381 = vld [vmem:[#allocation17 + $0xe8] sm:$0xff]
    %v2382 = vld [vmem:[#allocation17 + $0xf0] sm:$0xff]
    %v2383 = vld [vmem:[#allocation17 + $0xf8] sm:$0xff]
    %v2384 = vld [vmem:[#allocation17 + $0x100] sm:$0xff]
    %v2385 = vld [vmem:[#allocation17 + $0x108] sm:$0xff]
    %v2386 = vld [vmem:[#allocation17 + $0x110] sm:$0xff]
    %v2387 = vld [vmem:[#allocation17 + $0x118] sm:$0xff]
    %v2388 = vld [vmem:[#allocation17 + $0x120] sm:$0xff]
    %v2389 = vld [vmem:[#allocation17 + $0x128] sm:$0xff]
    %v2390 = vld [vmem:[#allocation17 + $0x130] sm:$0xff]
    %v2391 = vld [vmem:[#allocation17 + $0x138] sm:$0xff]
    %v2392 = vld [vmem:[#allocation17 + $0x140] sm:$0xff]
    %v2393 = vld [vmem:[#allocation17 + $0x148] sm:$0xff]
    %v2394 = vld [vmem:[#allocation17 + $0x150] sm:$0xff]
    %v2395 = vld [vmem:[#allocation17 + $0x158] sm:$0xff]
    %v2396 = vld [vmem:[#allocation17 + $0x160] sm:$0xff]
    %v2397 = vld [vmem:[#allocation17 + $0x168] sm:$0xff]
    %v2398 = vld [vmem:[#allocation17 + $0x170] sm:$0xff]
    %v2399 = vld [vmem:[#allocation17 + $0x178] sm:$0xff]
    %v2400 = vld [vmem:[#allocation17 + $0x180] sm:$0xff]
    %v2401 = vld [vmem:[#allocation17 + $0x188] sm:$0xff]
    %v2402 = vld [vmem:[#allocation17 + $0x190] sm:$0xff]
    %v2403 = vld [vmem:[#allocation17 + $0x198] sm:$0xff]
    %v2404 = vld [vmem:[#allocation17 + $0x1a0] sm:$0xff]
    %v2405 = vld [vmem:[#allocation17 + $0x1a8] sm:$0xff]
    %v2406 = vld [vmem:[#allocation17 + $0x1b0] sm:$0xff]
    %v2407 = vld [vmem:[#allocation17 + $0x1b8] sm:$0xff]
    %v2408 = vld [vmem:[#allocation17 + $0x1c0] sm:$0xff]
    %v2409 = vld [vmem:[#allocation17 + $0x1c8] sm:$0xff]
    %v2410 = vld [vmem:[#allocation17 + $0x1d0] sm:$0xff]
    %v2411 = vld [vmem:[#allocation17 + $0x1d8] sm:$0xff]
    %v2412 = vld [vmem:[#allocation17 + $0x1e0] sm:$0xff]
    %v2413 = vld [vmem:[#allocation17 + $0x1e8] sm:$0xff]
    %v2414 = vld [vmem:[#allocation17 + $0x1f0] sm:$0xff]
    %v2415 = vld [vmem:[#allocation17 + $0x1f8] sm:$0xff]
    %v2416 = vld [vmem:[#allocation17 + $0x200] sm:$0xff]
    %v2417 = vld [vmem:[#allocation17 + $0x208] sm:$0xff]
    %v2418 = vld [vmem:[#allocation17 + $0x210] sm:$0xff]
    %v2419 = vld [vmem:[#allocation17 + $0x218] sm:$0xff]
    %v2420 = vld [vmem:[#allocation17 + $0x220] sm:$0xff]
    %v2421 = vld [vmem:[#allocation17 + $0x228] sm:$0xff]
    %v2422 = vld [vmem:[#allocation17 + $0x230] sm:$0xff]
    %v2423 = vld [vmem:[#allocation17 + $0x238] sm:$0xff]
    %v2424 = vld [vmem:[#allocation17 + $0x240] sm:$0xff]
    %v2425 = vld [vmem:[#allocation17 + $0x248] sm:$0xff]
    %v2426 = vld [vmem:[#allocation17 + $0x250] sm:$0xff]
    %v2427 = vld [vmem:[#allocation17 + $0x258] sm:$0xff]
    %v2428 = vld [vmem:[#allocation17 + $0x260] sm:$0xff]
    %v2429 = vld [vmem:[#allocation17 + $0x268] sm:$0xff]
    %v2430 = vld [vmem:[#allocation17 + $0x270] sm:$0xff]
    %v2431 = vld [vmem:[#allocation17 + $0x278] sm:$0xff]
    %v2432 = vld [vmem:[#allocation17 + $0x280] sm:$0xff]
    %v2433 = vld [vmem:[#allocation17 + $0x288] sm:$0xff]
    %v2434 = vld [vmem:[#allocation17 + $0x290] sm:$0xff]
    %v2435 = vld [vmem:[#allocation17 + $0x298] sm:$0xff]
    %v2436 = vld [vmem:[#allocation17 + $0x2a0] sm:$0xff]
    %v2437 = vld [vmem:[#allocation17 + $0x2a8] sm:$0xff]
    %v2438 = vld [vmem:[#allocation17 + $0x2b0] sm:$0xff]
    %v2439 = vld [vmem:[#allocation17 + $0x2b8] sm:$0xff]
    %v2440 = vld [vmem:[#allocation17 + $0x2c0] sm:$0xff]
    %v2441 = vld [vmem:[#allocation17 + $0x2c8] sm:$0xff]
    %v2442 = vld [vmem:[#allocation17 + $0x2d0] sm:$0xff]
    %v2443 = vld [vmem:[#allocation17 + $0x2d8] sm:$0xff]
    %v2444 = vld [vmem:[#allocation17 + $0x2e0] sm:$0xff]
    %v2445 = vld [vmem:[#allocation17 + $0x2e8] sm:$0xff]
    %v2446 = vld [vmem:[#allocation17 + $0x2f0] sm:$0xff]
    %v2447 = vld [vmem:[#allocation17 + $0x2f8] sm:$0xff]
    %v2448 = vld [vmem:[#allocation17 + $0x300] sm:$0xff]
    %v2449 = vld [vmem:[#allocation17 + $0x308] sm:$0xff]
    %v2450 = vld [vmem:[#allocation17 + $0x310] sm:$0xff]
    %v2451 = vld [vmem:[#allocation17 + $0x318] sm:$0xff]
    %v2452 = vld [vmem:[#allocation17 + $0x320] sm:$0xff]
    %v2453 = vld [vmem:[#allocation17 + $0x328] sm:$0xff]
    %v2454 = vld [vmem:[#allocation17 + $0x330] sm:$0xff]
    %v2455 = vld [vmem:[#allocation17 + $0x338] sm:$0xff]
    %v2456 = vld [vmem:[#allocation17 + $0x340] sm:$0xff]
    %v2457 = vld [vmem:[#allocation17 + $0x348] sm:$0xff]
    %v2458 = vld [vmem:[#allocation17 + $0x350] sm:$0xff]
    %v2459 = vld [vmem:[#allocation17 + $0x358] sm:$0xff]
    %v2460 = vld [vmem:[#allocation17 + $0x360] sm:$0xff]
    %v2461 = vld [vmem:[#allocation17 + $0x368] sm:$0xff]
    %v2462 = vld [vmem:[#allocation17 + $0x370] sm:$0xff]
    %v2463 = vld [vmem:[#allocation17 + $0x378] sm:$0xff]
    %v2464 = vld [vmem:[#allocation17 + $0x380] sm:$0xff]
    %v2465 = vld [vmem:[#allocation17 + $0x388] sm:$0xff]
    %v2466 = vld [vmem:[#allocation17 + $0x390] sm:$0xff]
    %v2467 = vld [vmem:[#allocation17 + $0x398] sm:$0xff]
    %v2468 = vld [vmem:[#allocation17 + $0x3a0] sm:$0xff]
    %v2469 = vld [vmem:[#allocation17 + $0x3a8] sm:$0xff]
    %v2470 = vld [vmem:[#allocation17 + $0x3b0] sm:$0xff]
    %v2471 = vld [vmem:[#allocation17 + $0x3b8] sm:$0xff]
    %v2472 = vld [vmem:[#allocation17 + $0x3c0] sm:$0xff]
    %v2473 = vld [vmem:[#allocation17 + $0x3c8] sm:$0xff]
    %v2474 = vld [vmem:[#allocation17 + $0x3d0] sm:$0xff]
    %v2475 = vld [vmem:[#allocation17 + $0x3d8] sm:$0xff]
    %v2476 = vld [vmem:[#allocation17 + $0x3e0] sm:$0xff]
    %v2477 = vld [vmem:[#allocation17 + $0x3e8] sm:$0xff]
    %v2478 = vld [vmem:[#allocation17 + $0x3f0] sm:$0xff]
    %v2479 = vld [vmem:[#allocation17 + $0x3f8] sm:$0xff]
    %v2480 = vld [vmem:[#allocation17 + $0x400] sm:$0xff]
    %v2481 = vld [vmem:[#allocation17 + $0x408] sm:$0xff]
    %v2482 = vld [vmem:[#allocation17 + $0x410] sm:$0xff]
    %v2483 = vld [vmem:[#allocation17 + $0x418] sm:$0xff]
    %v2484 = vld [vmem:[#allocation17 + $0x420] sm:$0xff]
    %v2485 = vld [vmem:[#allocation17 + $0x428] sm:$0xff]
    %v2486 = vld [vmem:[#allocation17 + $0x430] sm:$0xff]
    %v2487 = vld [vmem:[#allocation17 + $0x438] sm:$0xff]
    %v2488 = vld [vmem:[#allocation17 + $0x440] sm:$0xff]
    %v2489 = vld [vmem:[#allocation17 + $0x448] sm:$0xff]
    %v2490 = vld [vmem:[#allocation17 + $0x450] sm:$0xff]
    %v2491 = vld [vmem:[#allocation17 + $0x458] sm:$0xff]
    %v2492 = vld [vmem:[#allocation17 + $0x460] sm:$0xff]
    %v2493 = vld [vmem:[#allocation17 + $0x468] sm:$0xff]
    %v2494 = vld [vmem:[#allocation17 + $0x470] sm:$0xff]
    %v2495 = vld [vmem:[#allocation17 + $0x478] sm:$0xff]
    %v2496 = vld [vmem:[#allocation17 + $0x480] sm:$0xff]
    %v2497 = vld [vmem:[#allocation17 + $0x488] sm:$0xff]
    %v2498 = vld [vmem:[#allocation17 + $0x490] sm:$0xff]
    %v2499 = vld [vmem:[#allocation17 + $0x498] sm:$0xff]
    %v2500 = vld [vmem:[#allocation17 + $0x4a0] sm:$0xff]
    %v2501 = vld [vmem:[#allocation17 + $0x4a8] sm:$0xff]
    %v2502 = vld [vmem:[#allocation17 + $0x4b0] sm:$0xff]
    %v2503 = vld [vmem:[#allocation17 + $0x4b8] sm:$0xff]
    %v2504 = vld [vmem:[#allocation17 + $0x4c0] sm:$0xff]
    %v2505 = vld [vmem:[#allocation17 + $0x4c8] sm:$0xff]
    %v2506 = vld [vmem:[#allocation17 + $0x4d0] sm:$0xff]
    %v2507 = vld [vmem:[#allocation17 + $0x4d8] sm:$0xff]
    %v2508 = vld [vmem:[#allocation17 + $0x4e0] sm:$0xff]
    %v2509 = vld [vmem:[#allocation17 + $0x4e8] sm:$0xff]
    %v2510 = vld [vmem:[#allocation17 + $0x4f0] sm:$0xff]
    %v2511 = vld [vmem:[#allocation17 + $0x4f8] sm:$0xff]
    %v2512 = vld [vmem:[#allocation17 + $0x500] sm:$0xff]
    %v2513 = vld [vmem:[#allocation17 + $0x508] sm:$0xff]
    %v2514 = vld [vmem:[#allocation17 + $0x510] sm:$0xff]
    %v2515 = vld [vmem:[#allocation17 + $0x518] sm:$0xff]
    %v2516 = vld [vmem:[#allocation17 + $0x520] sm:$0xff]
    %v2517 = vld [vmem:[#allocation17 + $0x528] sm:$0xff]
    %v2518 = vld [vmem:[#allocation17 + $0x530] sm:$0xff]
    %v2519 = vld [vmem:[#allocation17 + $0x538] sm:$0xff]
    %v2520 = vld [vmem:[#allocation17 + $0x540] sm:$0xff]
    %v2521 = vld [vmem:[#allocation17 + $0x548] sm:$0xff]
    %v2522 = vld [vmem:[#allocation17 + $0x550] sm:$0xff]
    %v2523 = vld [vmem:[#allocation17 + $0x558] sm:$0xff]
    %v2524 = vld [vmem:[#allocation17 + $0x560] sm:$0xff]
    %v2525 = vld [vmem:[#allocation17 + $0x568] sm:$0xff]
    %v2526 = vld [vmem:[#allocation17 + $0x570] sm:$0xff]
    %v2527 = vld [vmem:[#allocation17 + $0x578] sm:$0xff]
    %v2528 = vld [vmem:[#allocation17 + $0x580] sm:$0xff]
    %v2529 = vld [vmem:[#allocation17 + $0x588] sm:$0xff]
    %v2530 = vld [vmem:[#allocation17 + $0x590] sm:$0xff]
    %v2531 = vld [vmem:[#allocation17 + $0x598] sm:$0xff]
    %v2532 = vld [vmem:[#allocation17 + $0x5a0] sm:$0xff]
    %v2533 = vld [vmem:[#allocation17 + $0x5a8] sm:$0xff]
    %v2534 = vld [vmem:[#allocation17 + $0x5b0] sm:$0xff]
    %v2535 = vld [vmem:[#allocation17 + $0x5b8] sm:$0xff]
    %v2536 = vld [vmem:[#allocation17 + $0x5c0] sm:$0xff]
    %v2537 = vld [vmem:[#allocation17 + $0x5c8] sm:$0xff]
    %v2538 = vld [vmem:[#allocation17 + $0x5d0] sm:$0xff]
    %v2539 = vld [vmem:[#allocation17 + $0x5d8] sm:$0xff]
    %v2540 = vld [vmem:[#allocation17 + $0x5e0] sm:$0xff]
    %v2541 = vld [vmem:[#allocation17 + $0x5e8] sm:$0xff]
    %v2542 = vld [vmem:[#allocation17 + $0x5f0] sm:$0xff]
    %v2543 = vld [vmem:[#allocation17 + $0x5f8] sm:$0xff]
    %v2544 = vld [vmem:[#allocation18] sm:$0x3f]
    %v2546 = vlaneseq
    %v2547 = vshrl.u32 %v2546, 7
    %v2548 = vsub.s32 0, %v2547
    %v2549 = vrot.slane %v2544, %v2548
    %v2550 = vlaneseq
    %v2551 = vshrl.u32 %v2550, 7
    %v2552 = vsub.s32 1, %v2551
    %v2553 = vrot.slane %v2544, %v2552
    %v2554 = vlaneseq
    %v2555 = vshrl.u32 %v2554, 7
    %v2556 = vsub.s32 2, %v2555
    %v2557 = vrot.slane %v2544, %v2556
    %v2558 = vlaneseq
    %v2559 = vshrl.u32 %v2558, 7
    %v2560 = vsub.s32 3, %v2559
    %v2561 = vrot.slane %v2544, %v2560
    %v2562 = vlaneseq
    %v2563 = vshrl.u32 %v2562, 7
    %v2564 = vsub.s32 4, %v2563
    %v2565 = vrot.slane %v2544, %v2564
    %v2566 = vlaneseq
    %v2567 = vshrl.u32 %v2566, 7
    %v2568 = vsub.s32 5, %v2567
    %v2569 = vrot.slane %v2544, %v2568
    %2576 = vmatprep.subr.mxu0 %v2443
    %2577 = vmatpush1.msra.mxu0 %v2442
    %2578 = vmatprep.subr.mxu0 %v2437
    %2579 = vmatpush1.msra.mxu0 %v2436
    %2580 = vmatprep.subr.mxu0 %v2431
    %2581 = vmatpush1.msra.mxu0 %v2430
    %2582 = vmatprep.subr.mxu0 %v2425
    %2583 = vmatpush1.msra.mxu0 %v2424
    %2584 = vmatprep.subr.mxu0 %v2419
    %2585 = vmatpush1.msra.mxu0 %v2418
    %2586 = vmatprep.subr.mxu0 %v2413
    %2587 = vmatpush1.msra.mxu0 %v2412
    %2588 = vmatprep.subr.mxu0 %v2407
    %2589 = vmatpush1.msra.mxu0 %v2406
    %2590 = vmatprep.subr.mxu0 %v2401
    %2591 = vmatpush1.msra.mxu0 %v2400
    %2592 = vmatprep.subr.mxu0 %v2395
    %2593 = vmatpush1.msra.mxu0 %v2394
    %2594 = vmatprep.subr.mxu0 %v2389
    %2595 = vmatpush1.msra.mxu0 %v2388
    %2596 = vmatprep.subr.mxu0 %v2383
    %2597 = vmatpush1.msra.mxu0 %v2382
    %2598 = vmatprep.subr.mxu0 %v2377
    %2599 = vmatpush1.msra.mxu0 %v2376
    %2600 = vmatprep.subr.mxu0 %v2371
    %2601 = vmatpush1.msra.mxu0 %v2370
    %2602 = vmatprep.subr.mxu0 %v2365
    %2603 = vmatpush1.msra.mxu0 %v2364
    %2604 = vmatprep.subr.mxu0 %v2359
    %2605 = vmatpush1.msra.mxu0 %v2358
    %2606 = vmatprep.subr.mxu0 %v2353
    %2607 = vmatpush1.msra.mxu0 %v2352
    %2608 = vmatprep.subr.mxu0 %v2539
    %2609 = vmatpush2.msra.mxu0 %v2538
    %2610 = vmatprep.subr.mxu0 %v2533
    %2611 = vmatpush2.msra.mxu0 %v2532
    %2612 = vmatprep.subr.mxu0 %v2527
    %2613 = vmatpush2.msra.mxu0 %v2526
    %2614 = vmatprep.subr.mxu0 %v2521
    %2615 = vmatpush2.msra.mxu0 %v2520
    %2616 = vmatprep.subr.mxu0 %v2515
    %2617 = vmatpush2.msra.mxu0 %v2514
    %2618 = vmatprep.subr.mxu0 %v2509
    %2619 = vmatpush2.msra.mxu0 %v2508
    %2620 = vmatprep.subr.mxu0 %v2503
    %2621 = vmatpush2.msra.mxu0 %v2502
    %2622 = vmatprep.subr.mxu0 %v2497
    %2623 = vmatpush2.msra.mxu0 %v2496
    %2624 = vmatprep.subr.mxu0 %v2491
    %2625 = vmatpush2.msra.mxu0 %v2490
    %2626 = vmatprep.subr.mxu0 %v2485
    %2627 = vmatpush2.msra.mxu0 %v2484
    %2628 = vmatprep.subr.mxu0 %v2479
    %2629 = vmatpush2.msra.mxu0 %v2478
    %2630 = vmatprep.subr.mxu0 %v2473
    %2631 = vmatpush2.msra.mxu0 %v2472
    %2632 = vmatprep.subr.mxu0 %v2467
    %2633 = vmatpush2.msra.mxu0 %v2466
    %2634 = vmatprep.subr.mxu0 %v2461
    %2635 = vmatpush2.msra.mxu0 %v2460
    %2636 = vmatprep.subr.mxu0 %v2455
    %2637 = vmatpush2.msra.mxu0 %v2454
    %2638 = vmatprep.subr.mxu0 %v2449
    %2639 = vmatpush2.msra.mxu0 %v2448
    %2640 = vmatprep.mubr.f32.mxu0 %v2351
    %2641 = vmatmul.mubr.f32.gmra.mxu0 %v2350
    %v2642 = vpop.f32.mrf.mxu0
    %v2643 = vadd.f32 %v2549, %v2642
    %v2644 = vpop.f32.mrf.mxu0
    %v2645 = vadd.f32 %v2553, %v2644
    %2646 = vdwg.mxu0
    %2647 = vmatprep.subr.mxu0 %v2445
    %2648 = vmatpush1.msra.mxu0 %v2444
    %2649 = vmatprep.subr.mxu0 %v2439
    %2650 = vmatpush1.msra.mxu0 %v2438
    %2651 = vmatprep.subr.mxu0 %v2433
    %2652 = vmatpush1.msra.mxu0 %v2432
    %2653 = vmatprep.subr.mxu0 %v2427
    %2654 = vmatpush1.msra.mxu0 %v2426
    %2655 = vmatprep.subr.mxu0 %v2421
    %2656 = vmatpush1.msra.mxu0 %v2420
    %2657 = vmatprep.subr.mxu0 %v2415
    %2658 = vmatpush1.msra.mxu0 %v2414
    %2659 = vmatprep.subr.mxu0 %v2409
    %2660 = vmatpush1.msra.mxu0 %v2408
    %2661 = vmatprep.subr.mxu0 %v2403
    %2662 = vmatpush1.msra.mxu0 %v2402
    %2663 = vmatprep.subr.mxu0 %v2397
    %2664 = vmatpush1.msra.mxu0 %v2396
    %2665 = vmatprep.subr.mxu0 %v2391
    %2666 = vmatpush1.msra.mxu0 %v2390
    %2667 = vmatprep.subr.mxu0 %v2385
    %2668 = vmatpush1.msra.mxu0 %v2384
    %2669 = vmatprep.subr.mxu0 %v2379
    %2670 = vmatpush1.msra.mxu0 %v2378
    %2671 = vmatprep.subr.mxu0 %v2373
    %2672 = vmatpush1.msra.mxu0 %v2372
    %2673 = vmatprep.subr.mxu0 %v2367
    %2674 = vmatpush1.msra.mxu0 %v2366
    %2675 = vmatprep.subr.mxu0 %v2361
    %2676 = vmatpush1.msra.mxu0 %v2360
    %2677 = vmatprep.subr.mxu0 %v2355
    %2678 = vmatpush1.msra.mxu0 %v2354
    %2679 = vmatprep.subr.mxu0 %v2541
    %2680 = vmatpush2.msra.mxu0 %v2540
    %2681 = vmatprep.subr.mxu0 %v2535
    %2682 = vmatpush2.msra.mxu0 %v2534
    %2683 = vmatprep.subr.mxu0 %v2529
    %2684 = vmatpush2.msra.mxu0 %v2528
    %2685 = vmatprep.subr.mxu0 %v2523
    %2686 = vmatpush2.msra.mxu0 %v2522
    %2687 = vmatprep.subr.mxu0 %v2517
    %2688 = vmatpush2.msra.mxu0 %v2516
    %2689 = vmatprep.subr.mxu0 %v2511
    %2690 = vmatpush2.msra.mxu0 %v2510
    %2691 = vmatprep.subr.mxu0 %v2505
    %2692 = vmatpush2.msra.mxu0 %v2504
    %2693 = vmatprep.subr.mxu0 %v2499
    %2694 = vmatpush2.msra.mxu0 %v2498
    %2695 = vmatprep.subr.mxu0 %v2493
    %2696 = vmatpush2.msra.mxu0 %v2492
    %2697 = vmatprep.subr.mxu0 %v2487
    %2698 = vmatpush2.msra.mxu0 %v2486
    %2699 = vmatprep.subr.mxu0 %v2481
    %2700 = vmatpush2.msra.mxu0 %v2480
    %2701 = vmatprep.subr.mxu0 %v2475
    %2702 = vmatpush2.msra.mxu0 %v2474
    %2703 = vmatprep.subr.mxu0 %v2469
    %2704 = vmatpush2.msra.mxu0 %v2468
    %2705 = vmatprep.subr.mxu0 %v2463
    %2706 = vmatpush2.msra.mxu0 %v2462
    %2707 = vmatprep.subr.mxu0 %v2457
    %2708 = vmatpush2.msra.mxu0 %v2456
    %2709 = vmatprep.subr.mxu0 %v2451
    %2710 = vmatpush2.msra.mxu0 %v2450
    %2711 = vmatprep.mubr.f32.mxu0 %v2351
    %2712 = vmatmul.mubr.f32.gmra.mxu0 %v2350
    %v2713 = vpop.f32.mrf.mxu0
    %v2714 = vadd.f32 %v2557, %v2713
    %v2715 = vpop.f32.mrf.mxu0
    %v2716 = vadd.f32 %v2561, %v2715
    %2717 = vdwg.mxu0
    %2718 = vmatprep.subr.mxu0 %v2447
    %2719 = vmatpush1.msra.mxu0 %v2446
    %2720 = vmatprep.subr.mxu0 %v2441
    %2721 = vmatpush1.msra.mxu0 %v2440
    %2722 = vmatprep.subr.mxu0 %v2435
    %2723 = vmatpush1.msra.mxu0 %v2434
    %2724 = vmatprep.subr.mxu0 %v2429
    %2725 = vmatpush1.msra.mxu0 %v2428
    %2726 = vmatprep.subr.mxu0 %v2423
    %2727 = vmatpush1.msra.mxu0 %v2422
    %2728 = vmatprep.subr.mxu0 %v2417
    %2729 = vmatpush1.msra.mxu0 %v2416
    %2730 = vmatprep.subr.mxu0 %v2411
    %2731 = vmatpush1.msra.mxu0 %v2410
    %2732 = vmatprep.subr.mxu0 %v2405
    %2733 = vmatpush1.msra.mxu0 %v2404
    %2734 = vmatprep.subr.mxu0 %v2399
    %2735 = vmatpush1.msra.mxu0 %v2398
    %2736 = vmatprep.subr.mxu0 %v2393
    %2737 = vmatpush1.msra.mxu0 %v2392
    %2738 = vmatprep.subr.mxu0 %v2387
    %2739 = vmatpush1.msra.mxu0 %v2386
    %2740 = vmatprep.subr.mxu0 %v2381
    %2741 = vmatpush1.msra.mxu0 %v2380
    %2742 = vmatprep.subr.mxu0 %v2375
    %2743 = vmatpush1.msra.mxu0 %v2374
    %2744 = vmatprep.subr.mxu0 %v2369
    %2745 = vmatpush1.msra.mxu0 %v2368
    %2746 = vmatprep.subr.mxu0 %v2363
    %2747 = vmatpush1.msra.mxu0 %v2362
    %2748 = vmatprep.subr.mxu0 %v2357
    %2749 = vmatpush1.msra.mxu0 %v2356
    %2750 = vmatprep.subr.mxu0 %v2543
    %2751 = vmatpush2.msra.mxu0 %v2542
    %2752 = vmatprep.subr.mxu0 %v2537
    %2753 = vmatpush2.msra.mxu0 %v2536
    %2754 = vmatprep.subr.mxu0 %v2531
    %2755 = vmatpush2.msra.mxu0 %v2530
    %2756 = vmatprep.subr.mxu0 %v2525
    %2757 = vmatpush2.msra.mxu0 %v2524
    %2758 = vmatprep.subr.mxu0 %v2519
    %2759 = vmatpush2.msra.mxu0 %v2518
    %2760 = vmatprep.subr.mxu0 %v2513
    %2761 = vmatpush2.msra.mxu0 %v2512
    %2762 = vmatprep.subr.mxu0 %v2507
    %2763 = vmatpush2.msra.mxu0 %v2506
    %2764 = vmatprep.subr.mxu0 %v2501
    %2765 = vmatpush2.msra.mxu0 %v2500
    %2766 = vmatprep.subr.mxu0 %v2495
    %2767 = vmatpush2.msra.mxu0 %v2494
    %2768 = vmatprep.subr.mxu0 %v2489
    %2769 = vmatpush2.msra.mxu0 %v2488
    %2770 = vmatprep.subr.mxu0 %v2483
    %2771 = vmatpush2.msra.mxu0 %v2482
    %2772 = vmatprep.subr.mxu0 %v2477
    %2773 = vmatpush2.msra.mxu0 %v2476
    %2774 = vmatprep.subr.mxu0 %v2471
    %2775 = vmatpush2.msra.mxu0 %v2470
    %2776 = vmatprep.subr.mxu0 %v2465
    %2777 = vmatpush2.msra.mxu0 %v2464
    %2778 = vmatprep.subr.mxu0 %v2459
    %2779 = vmatpush2.msra.mxu0 %v2458
    %2780 = vmatprep.subr.mxu0 %v2453
    %2781 = vmatpush2.msra.mxu0 %v2452
    %2782 = vmatprep.mubr.f32.mxu0 %v2351
    %2783 = vmatmul.mubr.f32.gmra.mxu0 %v2350
    %v2784 = vpop.f32.mrf.mxu0
    %v2785 = vadd.f32 %v2565, %v2784
    %v2786 = vpop.f32.mrf.mxu0
    %v2787 = vadd.f32 %v2569, %v2786
    %2788 = vdwg.mxu0
    %v2789 = vmax.f32 %v2643, 0.0
    %v2790 = vmax.f32 %v2645, 0.0
    %v2791 = vmax.f32 %v2714, 0.0
    %v2792 = vmax.f32 %v2716, 0.0
    %v2793 = vmax.f32 %v2785, 0.0
    %v2794 = vmax.f32 %v2787, 0.0
    %v2795 = vld [vmem:[#allocation20] sm:$0xff]
    %v2796 = vld [vmem:[#allocation20 + $0x8] sm:$0xff]
    %v2797 = vld [vmem:[#allocation20 + $0x10] sm:$0xff]
    %v2798 = vld [vmem:[#allocation20 + $0x18] sm:$0xff]
    %v2799 = vld [vmem:[#allocation20 + $0x20] sm:$0xff]
    %v2800 = vld [vmem:[#allocation20 + $0x28] sm:$0xff]
    %v2801 = vld [vmem:[#allocation20 + $0x30] sm:$0xff]
    %v2802 = vld [vmem:[#allocation20 + $0x38] sm:$0xff]
    %v2803 = vld [vmem:[#allocation20 + $0x40] sm:$0xff]
    %v2804 = vld [vmem:[#allocation20 + $0x48] sm:$0xff]
    %v2805 = vld [vmem:[#allocation20 + $0x50] sm:$0xff]
    %v2806 = vld [vmem:[#allocation20 + $0x58] sm:$0xff]
    %v2807 = vld [vmem:[#allocation20 + $0x60] sm:$0xff]
    %v2808 = vld [vmem:[#allocation20 + $0x68] sm:$0xff]
    %v2809 = vld [vmem:[#allocation20 + $0x70] sm:$0xff]
    %v2810 = vld [vmem:[#allocation20 + $0x78] sm:$0xff]
    %v2811 = vld [vmem:[#allocation20 + $0x80] sm:$0xff]
    %v2812 = vld [vmem:[#allocation20 + $0x88] sm:$0xff]
    %v2813 = vld [vmem:[#allocation20 + $0x90] sm:$0xff]
    %v2814 = vld [vmem:[#allocation20 + $0x98] sm:$0xff]
    %v2815 = vld [vmem:[#allocation20 + $0xa0] sm:$0xff]
    %v2816 = vld [vmem:[#allocation20 + $0xa8] sm:$0xff]
    %v2817 = vld [vmem:[#allocation20 + $0xb0] sm:$0xff]
    %v2818 = vld [vmem:[#allocation20 + $0xb8] sm:$0xff]
    %v2819 = vld [vmem:[#allocation20 + $0xc0] sm:$0xff]
    %v2820 = vld [vmem:[#allocation20 + $0xc8] sm:$0xff]
    %v2821 = vld [vmem:[#allocation20 + $0xd0] sm:$0xff]
    %v2822 = vld [vmem:[#allocation20 + $0xd8] sm:$0xff]
    %v2823 = vld [vmem:[#allocation20 + $0xe0] sm:$0xff]
    %v2824 = vld [vmem:[#allocation20 + $0xe8] sm:$0xff]
    %v2825 = vld [vmem:[#allocation20 + $0xf0] sm:$0xff]
    %v2826 = vld [vmem:[#allocation20 + $0xf8] sm:$0xff]
    %v2827 = vld [vmem:[#allocation20 + $0x100] sm:$0xff]
    %v2828 = vld [vmem:[#allocation20 + $0x108] sm:$0xff]
    %v2829 = vld [vmem:[#allocation20 + $0x110] sm:$0xff]
    %v2830 = vld [vmem:[#allocation20 + $0x118] sm:$0xff]
    %v2831 = vld [vmem:[#allocation20 + $0x120] sm:$0xff]
    %v2832 = vld [vmem:[#allocation20 + $0x128] sm:$0xff]
    %v2833 = vld [vmem:[#allocation20 + $0x130] sm:$0xff]
    %v2834 = vld [vmem:[#allocation20 + $0x138] sm:$0xff]
    %v2835 = vld [vmem:[#allocation20 + $0x140] sm:$0xff]
    %v2836 = vld [vmem:[#allocation20 + $0x148] sm:$0xff]
    %v2837 = vld [vmem:[#allocation20 + $0x150] sm:$0xff]
    %v2838 = vld [vmem:[#allocation20 + $0x158] sm:$0xff]
    %v2839 = vld [vmem:[#allocation20 + $0x160] sm:$0xff]
    %v2840 = vld [vmem:[#allocation20 + $0x168] sm:$0xff]
    %v2841 = vld [vmem:[#allocation20 + $0x170] sm:$0xff]
    %v2842 = vld [vmem:[#allocation20 + $0x178] sm:$0xff]
    %v2843 = vld [vmem:[#allocation20 + $0x180] sm:$0xff]
    %v2844 = vld [vmem:[#allocation20 + $0x188] sm:$0xff]
    %v2845 = vld [vmem:[#allocation20 + $0x190] sm:$0xff]
    %v2846 = vld [vmem:[#allocation20 + $0x198] sm:$0xff]
    %v2847 = vld [vmem:[#allocation20 + $0x1a0] sm:$0xff]
    %v2848 = vld [vmem:[#allocation20 + $0x1a8] sm:$0xff]
    %v2849 = vld [vmem:[#allocation20 + $0x1b0] sm:$0xff]
    %v2850 = vld [vmem:[#allocation20 + $0x1b8] sm:$0xff]
    %v2851 = vld [vmem:[#allocation20 + $0x1c0] sm:$0xff]
    %v2852 = vld [vmem:[#allocation20 + $0x1c8] sm:$0xff]
    %v2853 = vld [vmem:[#allocation20 + $0x1d0] sm:$0xff]
    %v2854 = vld [vmem:[#allocation20 + $0x1d8] sm:$0xff]
    %v2855 = vld [vmem:[#allocation20 + $0x1e0] sm:$0xff]
    %v2856 = vld [vmem:[#allocation20 + $0x1e8] sm:$0xff]
    %v2857 = vld [vmem:[#allocation20 + $0x1f0] sm:$0xff]
    %v2858 = vld [vmem:[#allocation20 + $0x1f8] sm:$0xff]
    %v2859 = vld [vmem:[#allocation20 + $0x200] sm:$0xff]
    %v2860 = vld [vmem:[#allocation20 + $0x208] sm:$0xff]
    %v2861 = vld [vmem:[#allocation20 + $0x210] sm:$0xff]
    %v2862 = vld [vmem:[#allocation20 + $0x218] sm:$0xff]
    %v2863 = vld [vmem:[#allocation20 + $0x220] sm:$0xff]
    %v2864 = vld [vmem:[#allocation20 + $0x228] sm:$0xff]
    %v2865 = vld [vmem:[#allocation20 + $0x230] sm:$0xff]
    %v2866 = vld [vmem:[#allocation20 + $0x238] sm:$0xff]
    %v2867 = vld [vmem:[#allocation20 + $0x240] sm:$0xff]
    %v2868 = vld [vmem:[#allocation20 + $0x248] sm:$0xff]
    %v2869 = vld [vmem:[#allocation20 + $0x250] sm:$0xff]
    %v2870 = vld [vmem:[#allocation20 + $0x258] sm:$0xff]
    %v2871 = vld [vmem:[#allocation20 + $0x260] sm:$0xff]
    %v2872 = vld [vmem:[#allocation20 + $0x268] sm:$0xff]
    %v2873 = vld [vmem:[#allocation20 + $0x270] sm:$0xff]
    %v2874 = vld [vmem:[#allocation20 + $0x278] sm:$0xff]
    %v2875 = vld [vmem:[#allocation20 + $0x280] sm:$0xff]
    %v2876 = vld [vmem:[#allocation20 + $0x288] sm:$0xff]
    %v2877 = vld [vmem:[#allocation20 + $0x290] sm:$0xff]
    %v2878 = vld [vmem:[#allocation20 + $0x298] sm:$0xff]
    %v2879 = vld [vmem:[#allocation20 + $0x2a0] sm:$0xff]
    %v2880 = vld [vmem:[#allocation20 + $0x2a8] sm:$0xff]
    %v2881 = vld [vmem:[#allocation20 + $0x2b0] sm:$0xff]
    %v2882 = vld [vmem:[#allocation20 + $0x2b8] sm:$0xff]
    %v2883 = vld [vmem:[#allocation20 + $0x2c0] sm:$0xff]
    %v2884 = vld [vmem:[#allocation20 + $0x2c8] sm:$0xff]
    %v2885 = vld [vmem:[#allocation20 + $0x2d0] sm:$0xff]
    %v2886 = vld [vmem:[#allocation20 + $0x2d8] sm:$0xff]
    %v2887 = vld [vmem:[#allocation20 + $0x2e0] sm:$0xff]
    %v2888 = vld [vmem:[#allocation20 + $0x2e8] sm:$0xff]
    %v2889 = vld [vmem:[#allocation20 + $0x2f0] sm:$0xff]
    %v2890 = vld [vmem:[#allocation20 + $0x2f8] sm:$0xff]
    %v2891 = vld [vmem:[#allocation20 + $0x300] sm:$0xff]
    %v2892 = vld [vmem:[#allocation20 + $0x308] sm:$0xff]
    %v2893 = vld [vmem:[#allocation20 + $0x310] sm:$0xff]
    %v2894 = vld [vmem:[#allocation20 + $0x318] sm:$0xff]
    %v2895 = vld [vmem:[#allocation20 + $0x320] sm:$0xff]
    %v2896 = vld [vmem:[#allocation20 + $0x328] sm:$0xff]
    %v2897 = vld [vmem:[#allocation20 + $0x330] sm:$0xff]
    %v2898 = vld [vmem:[#allocation20 + $0x338] sm:$0xff]
    %v2899 = vld [vmem:[#allocation20 + $0x340] sm:$0xff]
    %v2900 = vld [vmem:[#allocation20 + $0x348] sm:$0xff]
    %v2901 = vld [vmem:[#allocation20 + $0x350] sm:$0xff]
    %v2902 = vld [vmem:[#allocation20 + $0x358] sm:$0xff]
    %v2903 = vld [vmem:[#allocation20 + $0x360] sm:$0xff]
    %v2904 = vld [vmem:[#allocation20 + $0x368] sm:$0xff]
    %v2905 = vld [vmem:[#allocation20 + $0x370] sm:$0xff]
    %v2906 = vld [vmem:[#allocation20 + $0x378] sm:$0xff]
    %v2907 = vld [vmem:[#allocation20 + $0x380] sm:$0xff]
    %v2908 = vld [vmem:[#allocation20 + $0x388] sm:$0xff]
    %v2909 = vld [vmem:[#allocation20 + $0x390] sm:$0xff]
    %v2910 = vld [vmem:[#allocation20 + $0x398] sm:$0xff]
    %v2911 = vld [vmem:[#allocation20 + $0x3a0] sm:$0xff]
    %v2912 = vld [vmem:[#allocation20 + $0x3a8] sm:$0xff]
    %v2913 = vld [vmem:[#allocation20 + $0x3b0] sm:$0xff]
    %v2914 = vld [vmem:[#allocation20 + $0x3b8] sm:$0xff]
    %v2915 = vld [vmem:[#allocation20 + $0x3c0] sm:$0xff]
    %v2916 = vld [vmem:[#allocation20 + $0x3c8] sm:$0xff]
    %v2917 = vld [vmem:[#allocation20 + $0x3d0] sm:$0xff]
    %v2918 = vld [vmem:[#allocation20 + $0x3d8] sm:$0xff]
    %v2919 = vld [vmem:[#allocation20 + $0x3e0] sm:$0xff]
    %v2920 = vld [vmem:[#allocation20 + $0x3e8] sm:$0xff]
    %v2921 = vld [vmem:[#allocation20 + $0x3f0] sm:$0xff]
    %v2922 = vld [vmem:[#allocation20 + $0x3f8] sm:$0xff]
    %v2923 = vld [vmem:[#allocation20 + $0x400] sm:$0xff]
    %v2924 = vld [vmem:[#allocation20 + $0x408] sm:$0xff]
    %v2925 = vld [vmem:[#allocation20 + $0x410] sm:$0xff]
    %v2926 = vld [vmem:[#allocation20 + $0x418] sm:$0xff]
    %v2927 = vld [vmem:[#allocation20 + $0x420] sm:$0xff]
    %v2928 = vld [vmem:[#allocation20 + $0x428] sm:$0xff]
    %v2929 = vld [vmem:[#allocation20 + $0x430] sm:$0xff]
    %v2930 = vld [vmem:[#allocation20 + $0x438] sm:$0xff]
    %v2931 = vld [vmem:[#allocation20 + $0x440] sm:$0xff]
    %v2932 = vld [vmem:[#allocation20 + $0x448] sm:$0xff]
    %v2933 = vld [vmem:[#allocation20 + $0x450] sm:$0xff]
    %v2934 = vld [vmem:[#allocation20 + $0x458] sm:$0xff]
    %v2935 = vld [vmem:[#allocation20 + $0x460] sm:$0xff]
    %v2936 = vld [vmem:[#allocation20 + $0x468] sm:$0xff]
    %v2937 = vld [vmem:[#allocation20 + $0x470] sm:$0xff]
    %v2938 = vld [vmem:[#allocation20 + $0x478] sm:$0xff]
    %v2939 = vld [vmem:[#allocation20 + $0x480] sm:$0xff]
    %v2940 = vld [vmem:[#allocation20 + $0x488] sm:$0xff]
    %v2941 = vld [vmem:[#allocation20 + $0x490] sm:$0xff]
    %v2942 = vld [vmem:[#allocation20 + $0x498] sm:$0xff]
    %v2943 = vld [vmem:[#allocation20 + $0x4a0] sm:$0xff]
    %v2944 = vld [vmem:[#allocation20 + $0x4a8] sm:$0xff]
    %v2945 = vld [vmem:[#allocation20 + $0x4b0] sm:$0xff]
    %v2946 = vld [vmem:[#allocation20 + $0x4b8] sm:$0xff]
    %v2947 = vld [vmem:[#allocation20 + $0x4c0] sm:$0xff]
    %v2948 = vld [vmem:[#allocation20 + $0x4c8] sm:$0xff]
    %v2949 = vld [vmem:[#allocation20 + $0x4d0] sm:$0xff]
    %v2950 = vld [vmem:[#allocation20 + $0x4d8] sm:$0xff]
    %v2951 = vld [vmem:[#allocation20 + $0x4e0] sm:$0xff]
    %v2952 = vld [vmem:[#allocation20 + $0x4e8] sm:$0xff]
    %v2953 = vld [vmem:[#allocation20 + $0x4f0] sm:$0xff]
    %v2954 = vld [vmem:[#allocation20 + $0x4f8] sm:$0xff]
    %v2955 = vld [vmem:[#allocation20 + $0x500] sm:$0xff]
    %v2956 = vld [vmem:[#allocation20 + $0x508] sm:$0xff]
    %v2957 = vld [vmem:[#allocation20 + $0x510] sm:$0xff]
    %v2958 = vld [vmem:[#allocation20 + $0x518] sm:$0xff]
    %v2959 = vld [vmem:[#allocation20 + $0x520] sm:$0xff]
    %v2960 = vld [vmem:[#allocation20 + $0x528] sm:$0xff]
    %v2961 = vld [vmem:[#allocation20 + $0x530] sm:$0xff]
    %v2962 = vld [vmem:[#allocation20 + $0x538] sm:$0xff]
    %v2963 = vld [vmem:[#allocation20 + $0x540] sm:$0xff]
    %v2964 = vld [vmem:[#allocation20 + $0x548] sm:$0xff]
    %v2965 = vld [vmem:[#allocation20 + $0x550] sm:$0xff]
    %v2966 = vld [vmem:[#allocation20 + $0x558] sm:$0xff]
    %v2967 = vld [vmem:[#allocation20 + $0x560] sm:$0xff]
    %v2968 = vld [vmem:[#allocation20 + $0x568] sm:$0xff]
    %v2969 = vld [vmem:[#allocation20 + $0x570] sm:$0xff]
    %v2970 = vld [vmem:[#allocation20 + $0x578] sm:$0xff]
    %v2971 = vld [vmem:[#allocation20 + $0x580] sm:$0xff]
    %v2972 = vld [vmem:[#allocation20 + $0x588] sm:$0xff]
    %v2973 = vld [vmem:[#allocation20 + $0x590] sm:$0xff]
    %v2974 = vld [vmem:[#allocation20 + $0x598] sm:$0xff]
    %v2975 = vld [vmem:[#allocation20 + $0x5a0] sm:$0xff]
    %v2976 = vld [vmem:[#allocation20 + $0x5a8] sm:$0xff]
    %v2977 = vld [vmem:[#allocation20 + $0x5b0] sm:$0xff]
    %v2978 = vld [vmem:[#allocation20 + $0x5b8] sm:$0xff]
    %v2979 = vld [vmem:[#allocation20 + $0x5c0] sm:$0xff]
    %v2980 = vld [vmem:[#allocation20 + $0x5c8] sm:$0xff]
    %v2981 = vld [vmem:[#allocation20 + $0x5d0] sm:$0xff]
    %v2982 = vld [vmem:[#allocation20 + $0x5d8] sm:$0xff]
    %v2983 = vld [vmem:[#allocation20 + $0x5e0] sm:$0xff]
    %v2984 = vld [vmem:[#allocation20 + $0x5e8] sm:$0xff]
    %v2985 = vld [vmem:[#allocation20 + $0x5f0] sm:$0xff]
    %v2986 = vld [vmem:[#allocation20 + $0x5f8] sm:$0xff]
    %v2987 = vld [vmem:[#allocation20 + $0x600] sm:$0xff]
    %v2988 = vld [vmem:[#allocation20 + $0x608] sm:$0xff]
    %v2989 = vld [vmem:[#allocation20 + $0x610] sm:$0xff]
    %v2990 = vld [vmem:[#allocation20 + $0x618] sm:$0xff]
    %v2991 = vld [vmem:[#allocation20 + $0x620] sm:$0xff]
    %v2992 = vld [vmem:[#allocation20 + $0x628] sm:$0xff]
    %v2993 = vld [vmem:[#allocation20 + $0x630] sm:$0xff]
    %v2994 = vld [vmem:[#allocation20 + $0x638] sm:$0xff]
    %v2995 = vld [vmem:[#allocation20 + $0x640] sm:$0xff]
    %v2996 = vld [vmem:[#allocation20 + $0x648] sm:$0xff]
    %v2997 = vld [vmem:[#allocation20 + $0x650] sm:$0xff]
    %v2998 = vld [vmem:[#allocation20 + $0x658] sm:$0xff]
    %v2999 = vld [vmem:[#allocation20 + $0x660] sm:$0xff]
    %v3000 = vld [vmem:[#allocation20 + $0x668] sm:$0xff]
    %v3001 = vld [vmem:[#allocation20 + $0x670] sm:$0xff]
    %v3002 = vld [vmem:[#allocation20 + $0x678] sm:$0xff]
    %v3003 = vld [vmem:[#allocation20 + $0x680] sm:$0xff]
    %v3004 = vld [vmem:[#allocation20 + $0x688] sm:$0xff]
    %v3005 = vld [vmem:[#allocation20 + $0x690] sm:$0xff]
    %v3006 = vld [vmem:[#allocation20 + $0x698] sm:$0xff]
    %v3007 = vld [vmem:[#allocation20 + $0x6a0] sm:$0xff]
    %v3008 = vld [vmem:[#allocation20 + $0x6a8] sm:$0xff]
    %v3009 = vld [vmem:[#allocation20 + $0x6b0] sm:$0xff]
    %v3010 = vld [vmem:[#allocation20 + $0x6b8] sm:$0xff]
    %v3011 = vld [vmem:[#allocation20 + $0x6c0] sm:$0xff]
    %v3012 = vld [vmem:[#allocation20 + $0x6c8] sm:$0xff]
    %v3013 = vld [vmem:[#allocation20 + $0x6d0] sm:$0xff]
    %v3014 = vld [vmem:[#allocation20 + $0x6d8] sm:$0xff]
    %v3015 = vld [vmem:[#allocation20 + $0x6e0] sm:$0xff]
    %v3016 = vld [vmem:[#allocation20 + $0x6e8] sm:$0xff]
    %v3017 = vld [vmem:[#allocation20 + $0x6f0] sm:$0xff]
    %v3018 = vld [vmem:[#allocation20 + $0x6f8] sm:$0xff]
    %v3019 = vld [vmem:[#allocation20 + $0x700] sm:$0xff]
    %v3020 = vld [vmem:[#allocation20 + $0x708] sm:$0xff]
    %v3021 = vld [vmem:[#allocation20 + $0x710] sm:$0xff]
    %v3022 = vld [vmem:[#allocation20 + $0x718] sm:$0xff]
    %v3023 = vld [vmem:[#allocation20 + $0x720] sm:$0xff]
    %v3024 = vld [vmem:[#allocation20 + $0x728] sm:$0xff]
    %v3025 = vld [vmem:[#allocation20 + $0x730] sm:$0xff]
    %v3026 = vld [vmem:[#allocation20 + $0x738] sm:$0xff]
    %v3027 = vld [vmem:[#allocation20 + $0x740] sm:$0xff]
    %v3028 = vld [vmem:[#allocation20 + $0x748] sm:$0xff]
    %v3029 = vld [vmem:[#allocation20 + $0x750] sm:$0xff]
    %v3030 = vld [vmem:[#allocation20 + $0x758] sm:$0xff]
    %v3031 = vld [vmem:[#allocation20 + $0x760] sm:$0xff]
    %v3032 = vld [vmem:[#allocation20 + $0x768] sm:$0xff]
    %v3033 = vld [vmem:[#allocation20 + $0x770] sm:$0xff]
    %v3034 = vld [vmem:[#allocation20 + $0x778] sm:$0xff]
    %v3035 = vld [vmem:[#allocation20 + $0x780] sm:$0xff]
    %v3036 = vld [vmem:[#allocation20 + $0x788] sm:$0xff]
    %v3037 = vld [vmem:[#allocation20 + $0x790] sm:$0xff]
    %v3038 = vld [vmem:[#allocation20 + $0x798] sm:$0xff]
    %v3039 = vld [vmem:[#allocation20 + $0x7a0] sm:$0xff]
    %v3040 = vld [vmem:[#allocation20 + $0x7a8] sm:$0xff]
    %v3041 = vld [vmem:[#allocation20 + $0x7b0] sm:$0xff]
    %v3042 = vld [vmem:[#allocation20 + $0x7b8] sm:$0xff]
    %v3043 = vld [vmem:[#allocation20 + $0x7c0] sm:$0xff]
    %v3044 = vld [vmem:[#allocation20 + $0x7c8] sm:$0xff]
    %v3045 = vld [vmem:[#allocation20 + $0x7d0] sm:$0xff]
    %v3046 = vld [vmem:[#allocation20 + $0x7d8] sm:$0xff]
    %v3047 = vld [vmem:[#allocation20 + $0x7e0] sm:$0xff]
    %v3048 = vld [vmem:[#allocation20 + $0x7e8] sm:$0xff]
    %v3049 = vld [vmem:[#allocation20 + $0x7f0] sm:$0xff]
    %v3050 = vld [vmem:[#allocation20 + $0x7f8] sm:$0xff]
    %v3051 = vld [vmem:[#allocation20 + $0x800] sm:$0xff]
    %v3052 = vld [vmem:[#allocation20 + $0x808] sm:$0xff]
    %v3053 = vld [vmem:[#allocation20 + $0x810] sm:$0xff]
    %v3054 = vld [vmem:[#allocation20 + $0x818] sm:$0xff]
    %v3055 = vld [vmem:[#allocation20 + $0x820] sm:$0xff]
    %v3056 = vld [vmem:[#allocation20 + $0x828] sm:$0xff]
    %v3057 = vld [vmem:[#allocation20 + $0x830] sm:$0xff]
    %v3058 = vld [vmem:[#allocation20 + $0x838] sm:$0xff]
    %v3059 = vld [vmem:[#allocation20 + $0x840] sm:$0xff]
    %v3060 = vld [vmem:[#allocation20 + $0x848] sm:$0xff]
    %v3061 = vld [vmem:[#allocation20 + $0x850] sm:$0xff]
    %v3062 = vld [vmem:[#allocation20 + $0x858] sm:$0xff]
    %v3063 = vld [vmem:[#allocation20 + $0x860] sm:$0xff]
    %v3064 = vld [vmem:[#allocation20 + $0x868] sm:$0xff]
    %v3065 = vld [vmem:[#allocation20 + $0x870] sm:$0xff]
    %v3066 = vld [vmem:[#allocation20 + $0x878] sm:$0xff]
    %v3067 = vld [vmem:[#allocation20 + $0x880] sm:$0xff]
    %v3068 = vld [vmem:[#allocation20 + $0x888] sm:$0xff]
    %v3069 = vld [vmem:[#allocation20 + $0x890] sm:$0xff]
    %v3070 = vld [vmem:[#allocation20 + $0x898] sm:$0xff]
    %v3071 = vld [vmem:[#allocation20 + $0x8a0] sm:$0xff]
    %v3072 = vld [vmem:[#allocation20 + $0x8a8] sm:$0xff]
    %v3073 = vld [vmem:[#allocation20 + $0x8b0] sm:$0xff]
    %v3074 = vld [vmem:[#allocation20 + $0x8b8] sm:$0xff]
    %v3075 = vld [vmem:[#allocation20 + $0x8c0] sm:$0xff]
    %v3076 = vld [vmem:[#allocation20 + $0x8c8] sm:$0xff]
    %v3077 = vld [vmem:[#allocation20 + $0x8d0] sm:$0xff]
    %v3078 = vld [vmem:[#allocation20 + $0x8d8] sm:$0xff]
    %v3079 = vld [vmem:[#allocation20 + $0x8e0] sm:$0xff]
    %v3080 = vld [vmem:[#allocation20 + $0x8e8] sm:$0xff]
    %v3081 = vld [vmem:[#allocation20 + $0x8f0] sm:$0xff]
    %v3082 = vld [vmem:[#allocation20 + $0x8f8] sm:$0xff]
    %v3083 = vld [vmem:[#allocation20 + $0x900] sm:$0xff]
    %v3084 = vld [vmem:[#allocation20 + $0x908] sm:$0xff]
    %v3085 = vld [vmem:[#allocation20 + $0x910] sm:$0xff]
    %v3086 = vld [vmem:[#allocation20 + $0x918] sm:$0xff]
    %v3087 = vld [vmem:[#allocation20 + $0x920] sm:$0xff]
    %v3088 = vld [vmem:[#allocation20 + $0x928] sm:$0xff]
    %v3089 = vld [vmem:[#allocation20 + $0x930] sm:$0xff]
    %v3090 = vld [vmem:[#allocation20 + $0x938] sm:$0xff]
    %v3091 = vld [vmem:[#allocation20 + $0x940] sm:$0xff]
    %v3092 = vld [vmem:[#allocation20 + $0x948] sm:$0xff]
    %v3093 = vld [vmem:[#allocation20 + $0x950] sm:$0xff]
    %v3094 = vld [vmem:[#allocation20 + $0x958] sm:$0xff]
    %v3095 = vld [vmem:[#allocation20 + $0x960] sm:$0xff]
    %v3096 = vld [vmem:[#allocation20 + $0x968] sm:$0xff]
    %v3097 = vld [vmem:[#allocation20 + $0x970] sm:$0xff]
    %v3098 = vld [vmem:[#allocation20 + $0x978] sm:$0xff]
    %v3099 = vld [vmem:[#allocation20 + $0x980] sm:$0xff]
    %v3100 = vld [vmem:[#allocation20 + $0x988] sm:$0xff]
    %v3101 = vld [vmem:[#allocation20 + $0x990] sm:$0xff]
    %v3102 = vld [vmem:[#allocation20 + $0x998] sm:$0xff]
    %v3103 = vld [vmem:[#allocation20 + $0x9a0] sm:$0xff]
    %v3104 = vld [vmem:[#allocation20 + $0x9a8] sm:$0xff]
    %v3105 = vld [vmem:[#allocation20 + $0x9b0] sm:$0xff]
    %v3106 = vld [vmem:[#allocation20 + $0x9b8] sm:$0xff]
    %v3107 = vld [vmem:[#allocation20 + $0x9c0] sm:$0xff]
    %v3108 = vld [vmem:[#allocation20 + $0x9c8] sm:$0xff]
    %v3109 = vld [vmem:[#allocation20 + $0x9d0] sm:$0xff]
    %v3110 = vld [vmem:[#allocation20 + $0x9d8] sm:$0xff]
    %v3111 = vld [vmem:[#allocation20 + $0x9e0] sm:$0xff]
    %v3112 = vld [vmem:[#allocation20 + $0x9e8] sm:$0xff]
    %v3113 = vld [vmem:[#allocation20 + $0x9f0] sm:$0xff]
    %v3114 = vld [vmem:[#allocation20 + $0x9f8] sm:$0xff]
    %v3115 = vld [vmem:[#allocation20 + $0xa00] sm:$0xff]
    %v3116 = vld [vmem:[#allocation20 + $0xa08] sm:$0xff]
    %v3117 = vld [vmem:[#allocation20 + $0xa10] sm:$0xff]
    %v3118 = vld [vmem:[#allocation20 + $0xa18] sm:$0xff]
    %v3119 = vld [vmem:[#allocation20 + $0xa20] sm:$0xff]
    %v3120 = vld [vmem:[#allocation20 + $0xa28] sm:$0xff]
    %v3121 = vld [vmem:[#allocation20 + $0xa30] sm:$0xff]
    %v3122 = vld [vmem:[#allocation20 + $0xa38] sm:$0xff]
    %v3123 = vld [vmem:[#allocation20 + $0xa40] sm:$0xff]
    %v3124 = vld [vmem:[#allocation20 + $0xa48] sm:$0xff]
    %v3125 = vld [vmem:[#allocation20 + $0xa50] sm:$0xff]
    %v3126 = vld [vmem:[#allocation20 + $0xa58] sm:$0xff]
    %v3127 = vld [vmem:[#allocation20 + $0xa60] sm:$0xff]
    %v3128 = vld [vmem:[#allocation20 + $0xa68] sm:$0xff]
    %v3129 = vld [vmem:[#allocation20 + $0xa70] sm:$0xff]
    %v3130 = vld [vmem:[#allocation20 + $0xa78] sm:$0xff]
    %v3131 = vld [vmem:[#allocation20 + $0xa80] sm:$0xff]
    %v3132 = vld [vmem:[#allocation20 + $0xa88] sm:$0xff]
    %v3133 = vld [vmem:[#allocation20 + $0xa90] sm:$0xff]
    %v3134 = vld [vmem:[#allocation20 + $0xa98] sm:$0xff]
    %v3135 = vld [vmem:[#allocation20 + $0xaa0] sm:$0xff]
    %v3136 = vld [vmem:[#allocation20 + $0xaa8] sm:$0xff]
    %v3137 = vld [vmem:[#allocation20 + $0xab0] sm:$0xff]
    %v3138 = vld [vmem:[#allocation20 + $0xab8] sm:$0xff]
    %v3139 = vld [vmem:[#allocation20 + $0xac0] sm:$0xff]
    %v3140 = vld [vmem:[#allocation20 + $0xac8] sm:$0xff]
    %v3141 = vld [vmem:[#allocation20 + $0xad0] sm:$0xff]
    %v3142 = vld [vmem:[#allocation20 + $0xad8] sm:$0xff]
    %v3143 = vld [vmem:[#allocation20 + $0xae0] sm:$0xff]
    %v3144 = vld [vmem:[#allocation20 + $0xae8] sm:$0xff]
    %v3145 = vld [vmem:[#allocation20 + $0xaf0] sm:$0xff]
    %v3146 = vld [vmem:[#allocation20 + $0xaf8] sm:$0xff]
    %v3147 = vld [vmem:[#allocation20 + $0xb00] sm:$0xff]
    %v3148 = vld [vmem:[#allocation20 + $0xb08] sm:$0xff]
    %v3149 = vld [vmem:[#allocation20 + $0xb10] sm:$0xff]
    %v3150 = vld [vmem:[#allocation20 + $0xb18] sm:$0xff]
    %v3151 = vld [vmem:[#allocation20 + $0xb20] sm:$0xff]
    %v3152 = vld [vmem:[#allocation20 + $0xb28] sm:$0xff]
    %v3153 = vld [vmem:[#allocation20 + $0xb30] sm:$0xff]
    %v3154 = vld [vmem:[#allocation20 + $0xb38] sm:$0xff]
    %v3155 = vld [vmem:[#allocation20 + $0xb40] sm:$0xff]
    %v3156 = vld [vmem:[#allocation20 + $0xb48] sm:$0xff]
    %v3157 = vld [vmem:[#allocation20 + $0xb50] sm:$0xff]
    %v3158 = vld [vmem:[#allocation20 + $0xb58] sm:$0xff]
    %v3159 = vld [vmem:[#allocation20 + $0xb60] sm:$0xff]
    %v3160 = vld [vmem:[#allocation20 + $0xb68] sm:$0xff]
    %v3161 = vld [vmem:[#allocation20 + $0xb70] sm:$0xff]
    %v3162 = vld [vmem:[#allocation20 + $0xb78] sm:$0xff]
    %v3163 = vld [vmem:[#allocation20 + $0xb80] sm:$0xff]
    %v3164 = vld [vmem:[#allocation20 + $0xb88] sm:$0xff]
    %v3165 = vld [vmem:[#allocation20 + $0xb90] sm:$0xff]
    %v3166 = vld [vmem:[#allocation20 + $0xb98] sm:$0xff]
    %v3167 = vld [vmem:[#allocation20 + $0xba0] sm:$0xff]
    %v3168 = vld [vmem:[#allocation20 + $0xba8] sm:$0xff]
    %v3169 = vld [vmem:[#allocation20 + $0xbb0] sm:$0xff]
    %v3170 = vld [vmem:[#allocation20 + $0xbb8] sm:$0xff]
    %v3171 = vld [vmem:[#allocation20 + $0xbc0] sm:$0xff]
    %v3172 = vld [vmem:[#allocation20 + $0xbc8] sm:$0xff]
    %v3173 = vld [vmem:[#allocation20 + $0xbd0] sm:$0xff]
    %v3174 = vld [vmem:[#allocation20 + $0xbd8] sm:$0xff]
    %v3175 = vld [vmem:[#allocation20 + $0xbe0] sm:$0xff]
    %v3176 = vld [vmem:[#allocation20 + $0xbe8] sm:$0xff]
    %v3177 = vld [vmem:[#allocation20 + $0xbf0] sm:$0xff]
    %v3178 = vld [vmem:[#allocation20 + $0xbf8] sm:$0xff]
    %v3179 = vld [vmem:[#allocation20 + $0xc00] sm:$0xff]
    %v3180 = vld [vmem:[#allocation20 + $0xc08] sm:$0xff]
    %v3181 = vld [vmem:[#allocation20 + $0xc10] sm:$0xff]
    %v3182 = vld [vmem:[#allocation20 + $0xc18] sm:$0xff]
    %v3183 = vld [vmem:[#allocation20 + $0xc20] sm:$0xff]
    %v3184 = vld [vmem:[#allocation20 + $0xc28] sm:$0xff]
    %v3185 = vld [vmem:[#allocation20 + $0xc30] sm:$0xff]
    %v3186 = vld [vmem:[#allocation20 + $0xc38] sm:$0xff]
    %v3187 = vld [vmem:[#allocation20 + $0xc40] sm:$0xff]
    %v3188 = vld [vmem:[#allocation20 + $0xc48] sm:$0xff]
    %v3189 = vld [vmem:[#allocation20 + $0xc50] sm:$0xff]
    %v3190 = vld [vmem:[#allocation20 + $0xc58] sm:$0xff]
    %v3191 = vld [vmem:[#allocation20 + $0xc60] sm:$0xff]
    %v3192 = vld [vmem:[#allocation20 + $0xc68] sm:$0xff]
    %v3193 = vld [vmem:[#allocation20 + $0xc70] sm:$0xff]
    %v3194 = vld [vmem:[#allocation20 + $0xc78] sm:$0xff]
    %v3195 = vld [vmem:[#allocation20 + $0xc80] sm:$0xff]
    %v3196 = vld [vmem:[#allocation20 + $0xc88] sm:$0xff]
    %v3197 = vld [vmem:[#allocation20 + $0xc90] sm:$0xff]
    %v3198 = vld [vmem:[#allocation20 + $0xc98] sm:$0xff]
    %v3199 = vld [vmem:[#allocation20 + $0xca0] sm:$0xff]
    %v3200 = vld [vmem:[#allocation20 + $0xca8] sm:$0xff]
    %v3201 = vld [vmem:[#allocation20 + $0xcb0] sm:$0xff]
    %v3202 = vld [vmem:[#allocation20 + $0xcb8] sm:$0xff]
    %v3203 = vld [vmem:[#allocation20 + $0xcc0] sm:$0xff]
    %v3204 = vld [vmem:[#allocation20 + $0xcc8] sm:$0xff]
    %v3205 = vld [vmem:[#allocation20 + $0xcd0] sm:$0xff]
    %v3206 = vld [vmem:[#allocation20 + $0xcd8] sm:$0xff]
    %v3207 = vld [vmem:[#allocation20 + $0xce0] sm:$0xff]
    %v3208 = vld [vmem:[#allocation20 + $0xce8] sm:$0xff]
    %v3209 = vld [vmem:[#allocation20 + $0xcf0] sm:$0xff]
    %v3210 = vld [vmem:[#allocation20 + $0xcf8] sm:$0xff]
    %v3211 = vld [vmem:[#allocation20 + $0xd00] sm:$0xff]
    %v3212 = vld [vmem:[#allocation20 + $0xd08] sm:$0xff]
    %v3213 = vld [vmem:[#allocation20 + $0xd10] sm:$0xff]
    %v3214 = vld [vmem:[#allocation20 + $0xd18] sm:$0xff]
    %v3215 = vld [vmem:[#allocation20 + $0xd20] sm:$0xff]
    %v3216 = vld [vmem:[#allocation20 + $0xd28] sm:$0xff]
    %v3217 = vld [vmem:[#allocation20 + $0xd30] sm:$0xff]
    %v3218 = vld [vmem:[#allocation20 + $0xd38] sm:$0xff]
    %v3219 = vld [vmem:[#allocation20 + $0xd40] sm:$0xff]
    %v3220 = vld [vmem:[#allocation20 + $0xd48] sm:$0xff]
    %v3221 = vld [vmem:[#allocation20 + $0xd50] sm:$0xff]
    %v3222 = vld [vmem:[#allocation20 + $0xd58] sm:$0xff]
    %v3223 = vld [vmem:[#allocation20 + $0xd60] sm:$0xff]
    %v3224 = vld [vmem:[#allocation20 + $0xd68] sm:$0xff]
    %v3225 = vld [vmem:[#allocation20 + $0xd70] sm:$0xff]
    %v3226 = vld [vmem:[#allocation20 + $0xd78] sm:$0xff]
    %v3227 = vld [vmem:[#allocation20 + $0xd80] sm:$0xff]
    %v3228 = vld [vmem:[#allocation20 + $0xd88] sm:$0xff]
    %v3229 = vld [vmem:[#allocation20 + $0xd90] sm:$0xff]
    %v3230 = vld [vmem:[#allocation20 + $0xd98] sm:$0xff]
    %v3231 = vld [vmem:[#allocation20 + $0xda0] sm:$0xff]
    %v3232 = vld [vmem:[#allocation20 + $0xda8] sm:$0xff]
    %v3233 = vld [vmem:[#allocation20 + $0xdb0] sm:$0xff]
    %v3234 = vld [vmem:[#allocation20 + $0xdb8] sm:$0xff]
    %v3235 = vld [vmem:[#allocation20 + $0xdc0] sm:$0xff]
    %v3236 = vld [vmem:[#allocation20 + $0xdc8] sm:$0xff]
    %v3237 = vld [vmem:[#allocation20 + $0xdd0] sm:$0xff]
    %v3238 = vld [vmem:[#allocation20 + $0xdd8] sm:$0xff]
    %v3239 = vld [vmem:[#allocation20 + $0xde0] sm:$0xff]
    %v3240 = vld [vmem:[#allocation20 + $0xde8] sm:$0xff]
    %v3241 = vld [vmem:[#allocation20 + $0xdf0] sm:$0xff]
    %v3242 = vld [vmem:[#allocation20 + $0xdf8] sm:$0xff]
    %v3243 = vld [vmem:[#allocation20 + $0xe00] sm:$0xff]
    %v3244 = vld [vmem:[#allocation20 + $0xe08] sm:$0xff]
    %v3245 = vld [vmem:[#allocation20 + $0xe10] sm:$0xff]
    %v3246 = vld [vmem:[#allocation20 + $0xe18] sm:$0xff]
    %v3247 = vld [vmem:[#allocation20 + $0xe20] sm:$0xff]
    %v3248 = vld [vmem:[#allocation20 + $0xe28] sm:$0xff]
    %v3249 = vld [vmem:[#allocation20 + $0xe30] sm:$0xff]
    %v3250 = vld [vmem:[#allocation20 + $0xe38] sm:$0xff]
    %v3251 = vld [vmem:[#allocation20 + $0xe40] sm:$0xff]
    %v3252 = vld [vmem:[#allocation20 + $0xe48] sm:$0xff]
    %v3253 = vld [vmem:[#allocation20 + $0xe50] sm:$0xff]
    %v3254 = vld [vmem:[#allocation20 + $0xe58] sm:$0xff]
    %v3255 = vld [vmem:[#allocation20 + $0xe60] sm:$0xff]
    %v3256 = vld [vmem:[#allocation20 + $0xe68] sm:$0xff]
    %v3257 = vld [vmem:[#allocation20 + $0xe70] sm:$0xff]
    %v3258 = vld [vmem:[#allocation20 + $0xe78] sm:$0xff]
    %v3259 = vld [vmem:[#allocation20 + $0xe80] sm:$0xff]
    %v3260 = vld [vmem:[#allocation20 + $0xe88] sm:$0xff]
    %v3261 = vld [vmem:[#allocation20 + $0xe90] sm:$0xff]
    %v3262 = vld [vmem:[#allocation20 + $0xe98] sm:$0xff]
    %v3263 = vld [vmem:[#allocation20 + $0xea0] sm:$0xff]
    %v3264 = vld [vmem:[#allocation20 + $0xea8] sm:$0xff]
    %v3265 = vld [vmem:[#allocation20 + $0xeb0] sm:$0xff]
    %v3266 = vld [vmem:[#allocation20 + $0xeb8] sm:$0xff]
    %v3267 = vld [vmem:[#allocation20 + $0xec0] sm:$0xff]
    %v3268 = vld [vmem:[#allocation20 + $0xec8] sm:$0xff]
    %v3269 = vld [vmem:[#allocation20 + $0xed0] sm:$0xff]
    %v3270 = vld [vmem:[#allocation20 + $0xed8] sm:$0xff]
    %v3271 = vld [vmem:[#allocation20 + $0xee0] sm:$0xff]
    %v3272 = vld [vmem:[#allocation20 + $0xee8] sm:$0xff]
    %v3273 = vld [vmem:[#allocation20 + $0xef0] sm:$0xff]
    %v3274 = vld [vmem:[#allocation20 + $0xef8] sm:$0xff]
    %v3275 = vld [vmem:[#allocation20 + $0xf00] sm:$0xff]
    %v3276 = vld [vmem:[#allocation20 + $0xf08] sm:$0xff]
    %v3277 = vld [vmem:[#allocation20 + $0xf10] sm:$0xff]
    %v3278 = vld [vmem:[#allocation20 + $0xf18] sm:$0xff]
    %v3279 = vld [vmem:[#allocation20 + $0xf20] sm:$0xff]
    %v3280 = vld [vmem:[#allocation20 + $0xf28] sm:$0xff]
    %v3281 = vld [vmem:[#allocation20 + $0xf30] sm:$0xff]
    %v3282 = vld [vmem:[#allocation20 + $0xf38] sm:$0xff]
    %v3283 = vld [vmem:[#allocation20 + $0xf40] sm:$0xff]
    %v3284 = vld [vmem:[#allocation20 + $0xf48] sm:$0xff]
    %v3285 = vld [vmem:[#allocation20 + $0xf50] sm:$0xff]
    %v3286 = vld [vmem:[#allocation20 + $0xf58] sm:$0xff]
    %v3287 = vld [vmem:[#allocation20 + $0xf60] sm:$0xff]
    %v3288 = vld [vmem:[#allocation20 + $0xf68] sm:$0xff]
    %v3289 = vld [vmem:[#allocation20 + $0xf70] sm:$0xff]
    %v3290 = vld [vmem:[#allocation20 + $0xf78] sm:$0xff]
    %v3291 = vld [vmem:[#allocation20 + $0xf80] sm:$0xff]
    %v3292 = vld [vmem:[#allocation20 + $0xf88] sm:$0xff]
    %v3293 = vld [vmem:[#allocation20 + $0xf90] sm:$0xff]
    %v3294 = vld [vmem:[#allocation20 + $0xf98] sm:$0xff]
    %v3295 = vld [vmem:[#allocation20 + $0xfa0] sm:$0xff]
    %v3296 = vld [vmem:[#allocation20 + $0xfa8] sm:$0xff]
    %v3297 = vld [vmem:[#allocation20 + $0xfb0] sm:$0xff]
    %v3298 = vld [vmem:[#allocation20 + $0xfb8] sm:$0xff]
    %v3299 = vld [vmem:[#allocation20 + $0xfc0] sm:$0xff]
    %v3300 = vld [vmem:[#allocation20 + $0xfc8] sm:$0xff]
    %v3301 = vld [vmem:[#allocation20 + $0xfd0] sm:$0xff]
    %v3302 = vld [vmem:[#allocation20 + $0xfd8] sm:$0xff]
    %v3303 = vld [vmem:[#allocation20 + $0xfe0] sm:$0xff]
    %v3304 = vld [vmem:[#allocation20 + $0xfe8] sm:$0xff]
    %v3305 = vld [vmem:[#allocation20 + $0xff0] sm:$0xff]
    %v3306 = vld [vmem:[#allocation20 + $0xff8] sm:$0xff]
    %v3307 = vld [vmem:[#allocation20 + $0x1000] sm:$0xff]
    %v3308 = vld [vmem:[#allocation20 + $0x1008] sm:$0xff]
    %v3309 = vld [vmem:[#allocation20 + $0x1010] sm:$0xff]
    %v3310 = vld [vmem:[#allocation20 + $0x1018] sm:$0xff]
    %v3311 = vld [vmem:[#allocation20 + $0x1020] sm:$0xff]
    %v3312 = vld [vmem:[#allocation20 + $0x1028] sm:$0xff]
    %v3313 = vld [vmem:[#allocation20 + $0x1030] sm:$0xff]
    %v3314 = vld [vmem:[#allocation20 + $0x1038] sm:$0xff]
    %v3315 = vld [vmem:[#allocation20 + $0x1040] sm:$0xff]
    %v3316 = vld [vmem:[#allocation20 + $0x1048] sm:$0xff]
    %v3317 = vld [vmem:[#allocation20 + $0x1050] sm:$0xff]
    %v3318 = vld [vmem:[#allocation20 + $0x1058] sm:$0xff]
    %v3319 = vld [vmem:[#allocation20 + $0x1060] sm:$0xff]
    %v3320 = vld [vmem:[#allocation20 + $0x1068] sm:$0xff]
    %v3321 = vld [vmem:[#allocation20 + $0x1070] sm:$0xff]
    %v3322 = vld [vmem:[#allocation20 + $0x1078] sm:$0xff]
    %v3323 = vld [vmem:[#allocation20 + $0x1080] sm:$0xff]
    %v3324 = vld [vmem:[#allocation20 + $0x1088] sm:$0xff]
    %v3325 = vld [vmem:[#allocation20 + $0x1090] sm:$0xff]
    %v3326 = vld [vmem:[#allocation20 + $0x1098] sm:$0xff]
    %v3327 = vld [vmem:[#allocation20 + $0x10a0] sm:$0xff]
    %v3328 = vld [vmem:[#allocation20 + $0x10a8] sm:$0xff]
    %v3329 = vld [vmem:[#allocation20 + $0x10b0] sm:$0xff]
    %v3330 = vld [vmem:[#allocation20 + $0x10b8] sm:$0xff]
    %v3331 = vld [vmem:[#allocation20 + $0x10c0] sm:$0xff]
    %v3332 = vld [vmem:[#allocation20 + $0x10c8] sm:$0xff]
    %v3333 = vld [vmem:[#allocation20 + $0x10d0] sm:$0xff]
    %v3334 = vld [vmem:[#allocation20 + $0x10d8] sm:$0xff]
    %v3335 = vld [vmem:[#allocation20 + $0x10e0] sm:$0xff]
    %v3336 = vld [vmem:[#allocation20 + $0x10e8] sm:$0xff]
    %v3337 = vld [vmem:[#allocation20 + $0x10f0] sm:$0xff]
    %v3338 = vld [vmem:[#allocation20 + $0x10f8] sm:$0xff]
    %v3339 = vld [vmem:[#allocation20 + $0x1100] sm:$0xff]
    %v3340 = vld [vmem:[#allocation20 + $0x1108] sm:$0xff]
    %v3341 = vld [vmem:[#allocation20 + $0x1110] sm:$0xff]
    %v3342 = vld [vmem:[#allocation20 + $0x1118] sm:$0xff]
    %v3343 = vld [vmem:[#allocation20 + $0x1120] sm:$0xff]
    %v3344 = vld [vmem:[#allocation20 + $0x1128] sm:$0xff]
    %v3345 = vld [vmem:[#allocation20 + $0x1130] sm:$0xff]
    %v3346 = vld [vmem:[#allocation20 + $0x1138] sm:$0xff]
    %v3347 = vld [vmem:[#allocation20 + $0x1140] sm:$0xff]
    %v3348 = vld [vmem:[#allocation20 + $0x1148] sm:$0xff]
    %v3349 = vld [vmem:[#allocation20 + $0x1150] sm:$0xff]
    %v3350 = vld [vmem:[#allocation20 + $0x1158] sm:$0xff]
    %v3351 = vld [vmem:[#allocation20 + $0x1160] sm:$0xff]
    %v3352 = vld [vmem:[#allocation20 + $0x1168] sm:$0xff]
    %v3353 = vld [vmem:[#allocation20 + $0x1170] sm:$0xff]
    %v3354 = vld [vmem:[#allocation20 + $0x1178] sm:$0xff]
    %v3355 = vld [vmem:[#allocation20 + $0x1180] sm:$0xff]
    %v3356 = vld [vmem:[#allocation20 + $0x1188] sm:$0xff]
    %v3357 = vld [vmem:[#allocation20 + $0x1190] sm:$0xff]
    %v3358 = vld [vmem:[#allocation20 + $0x1198] sm:$0xff]
    %v3359 = vld [vmem:[#allocation20 + $0x11a0] sm:$0xff]
    %v3360 = vld [vmem:[#allocation20 + $0x11a8] sm:$0xff]
    %v3361 = vld [vmem:[#allocation20 + $0x11b0] sm:$0xff]
    %v3362 = vld [vmem:[#allocation20 + $0x11b8] sm:$0xff]
    %v3363 = vld [vmem:[#allocation20 + $0x11c0] sm:$0xff]
    %v3364 = vld [vmem:[#allocation20 + $0x11c8] sm:$0xff]
    %v3365 = vld [vmem:[#allocation20 + $0x11d0] sm:$0xff]
    %v3366 = vld [vmem:[#allocation20 + $0x11d8] sm:$0xff]
    %v3367 = vld [vmem:[#allocation20 + $0x11e0] sm:$0xff]
    %v3368 = vld [vmem:[#allocation20 + $0x11e8] sm:$0xff]
    %v3369 = vld [vmem:[#allocation20 + $0x11f0] sm:$0xff]
    %v3370 = vld [vmem:[#allocation20 + $0x11f8] sm:$0xff]
    %v3371 = vld [vmem:[#allocation21] sm:$0x3f]
    %v3373 = vlaneseq
    %v3374 = vshrl.u32 %v3373, 7
    %v3375 = vsub.s32 0, %v3374
    %v3376 = vrot.slane %v3371, %v3375
    %v3377 = vlaneseq
    %v3378 = vshrl.u32 %v3377, 7
    %v3379 = vsub.s32 1, %v3378
    %v3380 = vrot.slane %v3371, %v3379
    %v3381 = vlaneseq
    %v3382 = vshrl.u32 %v3381, 7
    %v3383 = vsub.s32 2, %v3382
    %v3384 = vrot.slane %v3371, %v3383
    %v3385 = vlaneseq
    %v3386 = vshrl.u32 %v3385, 7
    %v3387 = vsub.s32 3, %v3386
    %v3388 = vrot.slane %v3371, %v3387
    %v3389 = vlaneseq
    %v3390 = vshrl.u32 %v3389, 7
    %v3391 = vsub.s32 4, %v3390
    %v3392 = vrot.slane %v3371, %v3391
    %v3393 = vlaneseq
    %v3394 = vshrl.u32 %v3393, 7
    %v3395 = vsub.s32 5, %v3394
    %v3396 = vrot.slane %v3371, %v3395
    %3403 = vmatprep.subr.mxu0 %v2886
    %3404 = vmatpush1.msra.mxu0 %v2885
    %3405 = vmatprep.subr.mxu0 %v2880
    %3406 = vmatpush1.msra.mxu0 %v2879
    %3407 = vmatprep.subr.mxu0 %v2874
    %3408 = vmatpush1.msra.mxu0 %v2873
    %3409 = vmatprep.subr.mxu0 %v2868
    %3410 = vmatpush1.msra.mxu0 %v2867
    %3411 = vmatprep.subr.mxu0 %v2862
    %3412 = vmatpush1.msra.mxu0 %v2861
    %3413 = vmatprep.subr.mxu0 %v2856
    %3414 = vmatpush1.msra.mxu0 %v2855
    %3415 = vmatprep.subr.mxu0 %v2850
    %3416 = vmatpush1.msra.mxu0 %v2849
    %3417 = vmatprep.subr.mxu0 %v2844
    %3418 = vmatpush1.msra.mxu0 %v2843
    %3419 = vmatprep.subr.mxu0 %v2838
    %3420 = vmatpush1.msra.mxu0 %v2837
    %3421 = vmatprep.subr.mxu0 %v2832
    %3422 = vmatpush1.msra.mxu0 %v2831
    %3423 = vmatprep.subr.mxu0 %v2826
    %3424 = vmatpush1.msra.mxu0 %v2825
    %3425 = vmatprep.subr.mxu0 %v2820
    %3426 = vmatpush1.msra.mxu0 %v2819
    %3427 = vmatprep.subr.mxu0 %v2814
    %3428 = vmatpush1.msra.mxu0 %v2813
    %3429 = vmatprep.subr.mxu0 %v2808
    %3430 = vmatpush1.msra.mxu0 %v2807
    %3431 = vmatprep.subr.mxu0 %v2802
    %3432 = vmatpush1.msra.mxu0 %v2801
    %3433 = vmatprep.subr.mxu0 %v2796
    %3434 = vmatpush1.msra.mxu0 %v2795
    %3435 = vmatprep.subr.mxu0 %v2982
    %3436 = vmatpush2.msra.mxu0 %v2981
    %3437 = vmatprep.subr.mxu0 %v2976
    %3438 = vmatpush2.msra.mxu0 %v2975
    %3439 = vmatprep.subr.mxu0 %v2970
    %3440 = vmatpush2.msra.mxu0 %v2969
    %3441 = vmatprep.subr.mxu0 %v2964
    %3442 = vmatpush2.msra.mxu0 %v2963
    %3443 = vmatprep.subr.mxu0 %v2958
    %3444 = vmatpush2.msra.mxu0 %v2957
    %3445 = vmatprep.subr.mxu0 %v2952
    %3446 = vmatpush2.msra.mxu0 %v2951
    %3447 = vmatprep.subr.mxu0 %v2946
    %3448 = vmatpush2.msra.mxu0 %v2945
    %3449 = vmatprep.subr.mxu0 %v2940
    %3450 = vmatpush2.msra.mxu0 %v2939
    %3451 = vmatprep.subr.mxu0 %v2934
    %3452 = vmatpush2.msra.mxu0 %v2933
    %3453 = vmatprep.subr.mxu0 %v2928
    %3454 = vmatpush2.msra.mxu0 %v2927
    %3455 = vmatprep.subr.mxu0 %v2922
    %3456 = vmatpush2.msra.mxu0 %v2921
    %3457 = vmatprep.subr.mxu0 %v2916
    %3458 = vmatpush2.msra.mxu0 %v2915
    %3459 = vmatprep.subr.mxu0 %v2910
    %3460 = vmatpush2.msra.mxu0 %v2909
    %3461 = vmatprep.subr.mxu0 %v2904
    %3462 = vmatpush2.msra.mxu0 %v2903
    %3463 = vmatprep.subr.mxu0 %v2898
    %3464 = vmatpush2.msra.mxu0 %v2897
    %3465 = vmatprep.subr.mxu0 %v2892
    %3466 = vmatpush2.msra.mxu0 %v2891
    %3467 = vmatprep.mubr.f32.mxu0 %v2790
    %3468 = vmatmul.mubr.f32.gmra.mxu0 %v2789
    %v3469 = vpop.f32.mrf.mxu0
    %v3470 = vadd.f32 %v3376, %v3469
    %v3471 = vpop.f32.mrf.mxu0
    %v3472 = vadd.f32 %v3380, %v3471
    %3473 = vdwg.mxu0
    %3474 = vmatprep.subr.mxu0 %v3078
    %3475 = vmatpush1.msra.mxu0 %v3077
    %3476 = vmatprep.subr.mxu0 %v3072
    %3477 = vmatpush1.msra.mxu0 %v3071
    %3478 = vmatprep.subr.mxu0 %v3066
    %3479 = vmatpush1.msra.mxu0 %v3065
    %3480 = vmatprep.subr.mxu0 %v3060
    %3481 = vmatpush1.msra.mxu0 %v3059
    %3482 = vmatprep.subr.mxu0 %v3054
    %3483 = vmatpush1.msra.mxu0 %v3053
    %3484 = vmatprep.subr.mxu0 %v3048
    %3485 = vmatpush1.msra.mxu0 %v3047
    %3486 = vmatprep.subr.mxu0 %v3042
    %3487 = vmatpush1.msra.mxu0 %v3041
    %3488 = vmatprep.subr.mxu0 %v3036
    %3489 = vmatpush1.msra.mxu0 %v3035
    %3490 = vmatprep.subr.mxu0 %v3030
    %3491 = vmatpush1.msra.mxu0 %v3029
    %3492 = vmatprep.subr.mxu0 %v3024
    %3493 = vmatpush1.msra.mxu0 %v3023
    %3494 = vmatprep.subr.mxu0 %v3018
    %3495 = vmatpush1.msra.mxu0 %v3017
    %3496 = vmatprep.subr.mxu0 %v3012
    %3497 = vmatpush1.msra.mxu0 %v3011
    %3498 = vmatprep.subr.mxu0 %v3006
    %3499 = vmatpush1.msra.mxu0 %v3005
    %3500 = vmatprep.subr.mxu0 %v3000
    %3501 = vmatpush1.msra.mxu0 %v2999
    %3502 = vmatprep.subr.mxu0 %v2994
    %3503 = vmatpush1.msra.mxu0 %v2993
    %3504 = vmatprep.subr.mxu0 %v2988
    %3505 = vmatpush1.msra.mxu0 %v2987
    %3506 = vmatprep.subr.mxu0 %v3174
    %3507 = vmatpush2.msra.mxu0 %v3173
    %3508 = vmatprep.subr.mxu0 %v3168
    %3509 = vmatpush2.msra.mxu0 %v3167
    %3510 = vmatprep.subr.mxu0 %v3162
    %3511 = vmatpush2.msra.mxu0 %v3161
    %3512 = vmatprep.subr.mxu0 %v3156
    %3513 = vmatpush2.msra.mxu0 %v3155
    %3514 = vmatprep.subr.mxu0 %v3150
    %3515 = vmatpush2.msra.mxu0 %v3149
    %3516 = vmatprep.subr.mxu0 %v3144
    %3517 = vmatpush2.msra.mxu0 %v3143
    %3518 = vmatprep.subr.mxu0 %v3138
    %3519 = vmatpush2.msra.mxu0 %v3137
    %3520 = vmatprep.subr.mxu0 %v3132
    %3521 = vmatpush2.msra.mxu0 %v3131
    %3522 = vmatprep.subr.mxu0 %v3126
    %3523 = vmatpush2.msra.mxu0 %v3125
    %3524 = vmatprep.subr.mxu0 %v3120
    %3525 = vmatpush2.msra.mxu0 %v3119
    %3526 = vmatprep.subr.mxu0 %v3114
    %3527 = vmatpush2.msra.mxu0 %v3113
    %3528 = vmatprep.subr.mxu0 %v3108
    %3529 = vmatpush2.msra.mxu0 %v3107
    %3530 = vmatprep.subr.mxu0 %v3102
    %3531 = vmatpush2.msra.mxu0 %v3101
    %3532 = vmatprep.subr.mxu0 %v3096
    %3533 = vmatpush2.msra.mxu0 %v3095
    %3534 = vmatprep.subr.mxu0 %v3090
    %3535 = vmatpush2.msra.mxu0 %v3089
    %3536 = vmatprep.subr.mxu0 %v3084
    %3537 = vmatpush2.msra.mxu0 %v3083
    %3538 = vmatprep.mubr.f32.mxu0 %v2792
    %3539 = vmatmul.mubr.f32.gmra.mxu0 %v2791
    %v3540 = vpop.f32.mrf.mxu0
    %v3541 = vadd.f32 %v3470, %v3540
    %v3542 = vpop.f32.mrf.mxu0
    %v3543 = vadd.f32 %v3472, %v3542
    %3544 = vdwg.mxu0
    %3545 = vmatprep.subr.mxu0 %v3270
    %3546 = vmatpush1.msra.mxu0 %v3269
    %3547 = vmatprep.subr.mxu0 %v3264
    %3548 = vmatpush1.msra.mxu0 %v3263
    %3549 = vmatprep.subr.mxu0 %v3258
    %3550 = vmatpush1.msra.mxu0 %v3257
    %3551 = vmatprep.subr.mxu0 %v3252
    %3552 = vmatpush1.msra.mxu0 %v3251
    %3553 = vmatprep.subr.mxu0 %v3246
    %3554 = vmatpush1.msra.mxu0 %v3245
    %3555 = vmatprep.subr.mxu0 %v3240
    %3556 = vmatpush1.msra.mxu0 %v3239
    %3557 = vmatprep.subr.mxu0 %v3234
    %3558 = vmatpush1.msra.mxu0 %v3233
    %3559 = vmatprep.subr.mxu0 %v3228
    %3560 = vmatpush1.msra.mxu0 %v3227
    %3561 = vmatprep.subr.mxu0 %v3222
    %3562 = vmatpush1.msra.mxu0 %v3221
    %3563 = vmatprep.subr.mxu0 %v3216
    %3564 = vmatpush1.msra.mxu0 %v3215
    %3565 = vmatprep.subr.mxu0 %v3210
    %3566 = vmatpush1.msra.mxu0 %v3209
    %3567 = vmatprep.subr.mxu0 %v3204
    %3568 = vmatpush1.msra.mxu0 %v3203
    %3569 = vmatprep.subr.mxu0 %v3198
    %3570 = vmatpush1.msra.mxu0 %v3197
    %3571 = vmatprep.subr.mxu0 %v3192
    %3572 = vmatpush1.msra.mxu0 %v3191
    %3573 = vmatprep.subr.mxu0 %v3186
    %3574 = vmatpush1.msra.mxu0 %v3185
    %3575 = vmatprep.subr.mxu0 %v3180
    %3576 = vmatpush1.msra.mxu0 %v3179
    %3577 = vmatprep.subr.mxu0 %v3366
    %3578 = vmatpush2.msra.mxu0 %v3365
    %3579 = vmatprep.subr.mxu0 %v3360
    %3580 = vmatpush2.msra.mxu0 %v3359
    %3581 = vmatprep.subr.mxu0 %v3354
    %3582 = vmatpush2.msra.mxu0 %v3353
    %3583 = vmatprep.subr.mxu0 %v3348
    %3584 = vmatpush2.msra.mxu0 %v3347
    %3585 = vmatprep.subr.mxu0 %v3342
    %3586 = vmatpush2.msra.mxu0 %v3341
    %3587 = vmatprep.subr.mxu0 %v3336
    %3588 = vmatpush2.msra.mxu0 %v3335
    %3589 = vmatprep.subr.mxu0 %v3330
    %3590 = vmatpush2.msra.mxu0 %v3329
    %3591 = vmatprep.subr.mxu0 %v3324
    %3592 = vmatpush2.msra.mxu0 %v3323
    %3593 = vmatprep.subr.mxu0 %v3318
    %3594 = vmatpush2.msra.mxu0 %v3317
    %3595 = vmatprep.subr.mxu0 %v3312
    %3596 = vmatpush2.msra.mxu0 %v3311
    %3597 = vmatprep.subr.mxu0 %v3306
    %3598 = vmatpush2.msra.mxu0 %v3305
    %3599 = vmatprep.subr.mxu0 %v3300
    %3600 = vmatpush2.msra.mxu0 %v3299
    %3601 = vmatprep.subr.mxu0 %v3294
    %3602 = vmatpush2.msra.mxu0 %v3293
    %3603 = vmatprep.subr.mxu0 %v3288
    %3604 = vmatpush2.msra.mxu0 %v3287
    %3605 = vmatprep.subr.mxu0 %v3282
    %3606 = vmatpush2.msra.mxu0 %v3281
    %3607 = vmatprep.subr.mxu0 %v3276
    %3608 = vmatpush2.msra.mxu0 %v3275
    %3609 = vmatprep.mubr.f32.mxu0 %v2794
    %3610 = vmatmul.mubr.f32.gmra.mxu0 %v2793
    %v3611 = vpop.f32.mrf.mxu0
    %v3612 = vadd.f32 %v3541, %v3611
    %v3613 = vpop.f32.mrf.mxu0
    %v3614 = vadd.f32 %v3543, %v3613
    %3615 = vdwg.mxu0
    %3616 = vmatprep.subr.mxu0 %v2888
    %3617 = vmatpush1.msra.mxu0 %v2887
    %3618 = vmatprep.subr.mxu0 %v2882
    %3619 = vmatpush1.msra.mxu0 %v2881
    %3620 = vmatprep.subr.mxu0 %v2876
    %3621 = vmatpush1.msra.mxu0 %v2875
    %3622 = vmatprep.subr.mxu0 %v2870
    %3623 = vmatpush1.msra.mxu0 %v2869
    %3624 = vmatprep.subr.mxu0 %v2864
    %3625 = vmatpush1.msra.mxu0 %v2863
    %3626 = vmatprep.subr.mxu0 %v2858
    %3627 = vmatpush1.msra.mxu0 %v2857
    %3628 = vmatprep.subr.mxu0 %v2852
    %3629 = vmatpush1.msra.mxu0 %v2851
    %3630 = vmatprep.subr.mxu0 %v2846
    %3631 = vmatpush1.msra.mxu0 %v2845
    %3632 = vmatprep.subr.mxu0 %v2840
    %3633 = vmatpush1.msra.mxu0 %v2839
    %3634 = vmatprep.subr.mxu0 %v2834
    %3635 = vmatpush1.msra.mxu0 %v2833
    %3636 = vmatprep.subr.mxu0 %v2828
    %3637 = vmatpush1.msra.mxu0 %v2827
    %3638 = vmatprep.subr.mxu0 %v2822
    %3639 = vmatpush1.msra.mxu0 %v2821
    %3640 = vmatprep.subr.mxu0 %v2816
    %3641 = vmatpush1.msra.mxu0 %v2815
    %3642 = vmatprep.subr.mxu0 %v2810
    %3643 = vmatpush1.msra.mxu0 %v2809
    %3644 = vmatprep.subr.mxu0 %v2804
    %3645 = vmatpush1.msra.mxu0 %v2803
    %3646 = vmatprep.subr.mxu0 %v2798
    %3647 = vmatpush1.msra.mxu0 %v2797
    %3648 = vmatprep.subr.mxu0 %v2984
    %3649 = vmatpush2.msra.mxu0 %v2983
    %3650 = vmatprep.subr.mxu0 %v2978
    %3651 = vmatpush2.msra.mxu0 %v2977
    %3652 = vmatprep.subr.mxu0 %v2972
    %3653 = vmatpush2.msra.mxu0 %v2971
    %3654 = vmatprep.subr.mxu0 %v2966
    %3655 = vmatpush2.msra.mxu0 %v2965
    %3656 = vmatprep.subr.mxu0 %v2960
    %3657 = vmatpush2.msra.mxu0 %v2959
    %3658 = vmatprep.subr.mxu0 %v2954
    %3659 = vmatpush2.msra.mxu0 %v2953
    %3660 = vmatprep.subr.mxu0 %v2948
    %3661 = vmatpush2.msra.mxu0 %v2947
    %3662 = vmatprep.subr.mxu0 %v2942
    %3663 = vmatpush2.msra.mxu0 %v2941
    %3664 = vmatprep.subr.mxu0 %v2936
    %3665 = vmatpush2.msra.mxu0 %v2935
    %3666 = vmatprep.subr.mxu0 %v2930
    %3667 = vmatpush2.msra.mxu0 %v2929
    %3668 = vmatprep.subr.mxu0 %v2924
    %3669 = vmatpush2.msra.mxu0 %v2923
    %3670 = vmatprep.subr.mxu0 %v2918
    %3671 = vmatpush2.msra.mxu0 %v2917
    %3672 = vmatprep.subr.mxu0 %v2912
    %3673 = vmatpush2.msra.mxu0 %v2911
    %3674 = vmatprep.subr.mxu0 %v2906
    %3675 = vmatpush2.msra.mxu0 %v2905
    %3676 = vmatprep.subr.mxu0 %v2900
    %3677 = vmatpush2.msra.mxu0 %v2899
    %3678 = vmatprep.subr.mxu0 %v2894
    %3679 = vmatpush2.msra.mxu0 %v2893
    %3680 = vmatprep.mubr.f32.mxu0 %v2790
    %3681 = vmatmul.mubr.f32.gmra.mxu0 %v2789
    %v3682 = vpop.f32.mrf.mxu0
    %v3683 = vadd.f32 %v3384, %v3682
    %v3684 = vpop.f32.mrf.mxu0
    %v3685 = vadd.f32 %v3388, %v3684
    %3686 = vdwg.mxu0
    %3687 = vmatprep.subr.mxu0 %v3080
    %3688 = vmatpush1.msra.mxu0 %v3079
    %3689 = vmatprep.subr.mxu0 %v3074
    %3690 = vmatpush1.msra.mxu0 %v3073
    %3691 = vmatprep.subr.mxu0 %v3068
    %3692 = vmatpush1.msra.mxu0 %v3067
    %3693 = vmatprep.subr.mxu0 %v3062
    %3694 = vmatpush1.msra.mxu0 %v3061
    %3695 = vmatprep.subr.mxu0 %v3056
    %3696 = vmatpush1.msra.mxu0 %v3055
    %3697 = vmatprep.subr.mxu0 %v3050
    %3698 = vmatpush1.msra.mxu0 %v3049
    %3699 = vmatprep.subr.mxu0 %v3044
    %3700 = vmatpush1.msra.mxu0 %v3043
    %3701 = vmatprep.subr.mxu0 %v3038
    %3702 = vmatpush1.msra.mxu0 %v3037
    %3703 = vmatprep.subr.mxu0 %v3032
    %3704 = vmatpush1.msra.mxu0 %v3031
    %3705 = vmatprep.subr.mxu0 %v3026
    %3706 = vmatpush1.msra.mxu0 %v3025
    %3707 = vmatprep.subr.mxu0 %v3020
    %3708 = vmatpush1.msra.mxu0 %v3019
    %3709 = vmatprep.subr.mxu0 %v3014
    %3710 = vmatpush1.msra.mxu0 %v3013
    %3711 = vmatprep.subr.mxu0 %v3008
    %3712 = vmatpush1.msra.mxu0 %v3007
    %3713 = vmatprep.subr.mxu0 %v3002
    %3714 = vmatpush1.msra.mxu0 %v3001
    %3715 = vmatprep.subr.mxu0 %v2996
    %3716 = vmatpush1.msra.mxu0 %v2995
    %3717 = vmatprep.subr.mxu0 %v2990
    %3718 = vmatpush1.msra.mxu0 %v2989
    %3719 = vmatprep.subr.mxu0 %v3176
    %3720 = vmatpush2.msra.mxu0 %v3175
    %3721 = vmatprep.subr.mxu0 %v3170
    %3722 = vmatpush2.msra.mxu0 %v3169
    %3723 = vmatprep.subr.mxu0 %v3164
    %3724 = vmatpush2.msra.mxu0 %v3163
    %3725 = vmatprep.subr.mxu0 %v3158
    %3726 = vmatpush2.msra.mxu0 %v3157
    %3727 = vmatprep.subr.mxu0 %v3152
    %3728 = vmatpush2.msra.mxu0 %v3151
    %3729 = vmatprep.subr.mxu0 %v3146
    %3730 = vmatpush2.msra.mxu0 %v3145
    %3731 = vmatprep.subr.mxu0 %v3140
    %3732 = vmatpush2.msra.mxu0 %v3139
    %3733 = vmatprep.subr.mxu0 %v3134
    %3734 = vmatpush2.msra.mxu0 %v3133
    %3735 = vmatprep.subr.mxu0 %v3128
    %3736 = vmatpush2.msra.mxu0 %v3127
    %3737 = vmatprep.subr.mxu0 %v3122
    %3738 = vmatpush2.msra.mxu0 %v3121
    %3739 = vmatprep.subr.mxu0 %v3116
    %3740 = vmatpush2.msra.mxu0 %v3115
    %3741 = vmatprep.subr.mxu0 %v3110
    %3742 = vmatpush2.msra.mxu0 %v3109
    %3743 = vmatprep.subr.mxu0 %v3104
    %3744 = vmatpush2.msra.mxu0 %v3103
    %3745 = vmatprep.subr.mxu0 %v3098
    %3746 = vmatpush2.msra.mxu0 %v3097
    %3747 = vmatprep.subr.mxu0 %v3092
    %3748 = vmatpush2.msra.mxu0 %v3091
    %3749 = vmatprep.subr.mxu0 %v3086
    %3750 = vmatpush2.msra.mxu0 %v3085
    %3751 = vmatprep.mubr.f32.mxu0 %v2792
    %3752 = vmatmul.mubr.f32.gmra.mxu0 %v2791
    %v3753 = vpop.f32.mrf.mxu0
    %v3754 = vadd.f32 %v3683, %v3753
    %v3755 = vpop.f32.mrf.mxu0
    %v3756 = vadd.f32 %v3685, %v3755
    %3757 = vdwg.mxu0
    %3758 = vmatprep.subr.mxu0 %v3272
    %3759 = vmatpush1.msra.mxu0 %v3271
    %3760 = vmatprep.subr.mxu0 %v3266
    %3761 = vmatpush1.msra.mxu0 %v3265
    %3762 = vmatprep.subr.mxu0 %v3260
    %3763 = vmatpush1.msra.mxu0 %v3259
    %3764 = vmatprep.subr.mxu0 %v3254
    %3765 = vmatpush1.msra.mxu0 %v3253
    %3766 = vmatprep.subr.mxu0 %v3248
    %3767 = vmatpush1.msra.mxu0 %v3247
    %3768 = vmatprep.subr.mxu0 %v3242
    %3769 = vmatpush1.msra.mxu0 %v3241
    %3770 = vmatprep.subr.mxu0 %v3236
    %3771 = vmatpush1.msra.mxu0 %v3235
    %3772 = vmatprep.subr.mxu0 %v3230
    %3773 = vmatpush1.msra.mxu0 %v3229
    %3774 = vmatprep.subr.mxu0 %v3224
    %3775 = vmatpush1.msra.mxu0 %v3223
    %3776 = vmatprep.subr.mxu0 %v3218
    %3777 = vmatpush1.msra.mxu0 %v3217
    %3778 = vmatprep.subr.mxu0 %v3212
    %3779 = vmatpush1.msra.mxu0 %v3211
    %3780 = vmatprep.subr.mxu0 %v3206
    %3781 = vmatpush1.msra.mxu0 %v3205
    %3782 = vmatprep.subr.mxu0 %v3200
    %3783 = vmatpush1.msra.mxu0 %v3199
    %3784 = vmatprep.subr.mxu0 %v3194
    %3785 = vmatpush1.msra.mxu0 %v3193
    %3786 = vmatprep.subr.mxu0 %v3188
    %3787 = vmatpush1.msra.mxu0 %v3187
    %3788 = vmatprep.subr.mxu0 %v3182
    %3789 = vmatpush1.msra.mxu0 %v3181
    %3790 = vmatprep.subr.mxu0 %v3368
    %3791 = vmatpush2.msra.mxu0 %v3367
    %3792 = vmatprep.subr.mxu0 %v3362
    %3793 = vmatpush2.msra.mxu0 %v3361
    %3794 = vmatprep.subr.mxu0 %v3356
    %3795 = vmatpush2.msra.mxu0 %v3355
    %3796 = vmatprep.subr.mxu0 %v3350
    %3797 = vmatpush2.msra.mxu0 %v3349
    %3798 = vmatprep.subr.mxu0 %v3344
    %3799 = vmatpush2.msra.mxu0 %v3343
    %3800 = vmatprep.subr.mxu0 %v3338
    %3801 = vmatpush2.msra.mxu0 %v3337
    %3802 = vmatprep.subr.mxu0 %v3332
    %3803 = vmatpush2.msra.mxu0 %v3331
    %3804 = vmatprep.subr.mxu0 %v3326
    %3805 = vmatpush2.msra.mxu0 %v3325
    %3806 = vmatprep.subr.mxu0 %v3320
    %3807 = vmatpush2.msra.mxu0 %v3319
    %3808 = vmatprep.subr.mxu0 %v3314
    %3809 = vmatpush2.msra.mxu0 %v3313
    %3810 = vmatprep.subr.mxu0 %v3308
    %3811 = vmatpush2.msra.mxu0 %v3307
    %3812 = vmatprep.subr.mxu0 %v3302
    %3813 = vmatpush2.msra.mxu0 %v3301
    %3814 = vmatprep.subr.mxu0 %v3296
    %3815 = vmatpush2.msra.mxu0 %v3295
    %3816 = vmatprep.subr.mxu0 %v3290
    %3817 = vmatpush2.msra.mxu0 %v3289
    %3818 = vmatprep.subr.mxu0 %v3284
    %3819 = vmatpush2.msra.mxu0 %v3283
    %3820 = vmatprep.subr.mxu0 %v3278
    %3821 = vmatpush2.msra.mxu0 %v3277
    %3822 = vmatprep.mubr.f32.mxu0 %v2794
    %3823 = vmatmul.mubr.f32.gmra.mxu0 %v2793
    %v3824 = vpop.f32.mrf.mxu0
    %v3825 = vadd.f32 %v3754, %v3824
    %v3826 = vpop.f32.mrf.mxu0
    %v3827 = vadd.f32 %v3756, %v3826
    %3828 = vdwg.mxu0
    %3829 = vmatprep.subr.mxu0 %v2890
    %3830 = vmatpush1.msra.mxu0 %v2889
    %3831 = vmatprep.subr.mxu0 %v2884
    %3832 = vmatpush1.msra.mxu0 %v2883
    %3833 = vmatprep.subr.mxu0 %v2878
    %3834 = vmatpush1.msra.mxu0 %v2877
    %3835 = vmatprep.subr.mxu0 %v2872
    %3836 = vmatpush1.msra.mxu0 %v2871
    %3837 = vmatprep.subr.mxu0 %v2866
    %3838 = vmatpush1.msra.mxu0 %v2865
    %3839 = vmatprep.subr.mxu0 %v2860
    %3840 = vmatpush1.msra.mxu0 %v2859
    %3841 = vmatprep.subr.mxu0 %v2854
    %3842 = vmatpush1.msra.mxu0 %v2853
    %3843 = vmatprep.subr.mxu0 %v2848
    %3844 = vmatpush1.msra.mxu0 %v2847
    %3845 = vmatprep.subr.mxu0 %v2842
    %3846 = vmatpush1.msra.mxu0 %v2841
    %3847 = vmatprep.subr.mxu0 %v2836
    %3848 = vmatpush1.msra.mxu0 %v2835
    %3849 = vmatprep.subr.mxu0 %v2830
    %3850 = vmatpush1.msra.mxu0 %v2829
    %3851 = vmatprep.subr.mxu0 %v2824
    %3852 = vmatpush1.msra.mxu0 %v2823
    %3853 = vmatprep.subr.mxu0 %v2818
    %3854 = vmatpush1.msra.mxu0 %v2817
    %3855 = vmatprep.subr.mxu0 %v2812
    %3856 = vmatpush1.msra.mxu0 %v2811
    %3857 = vmatprep.subr.mxu0 %v2806
    %3858 = vmatpush1.msra.mxu0 %v2805
    %3859 = vmatprep.subr.mxu0 %v2800
    %3860 = vmatpush1.msra.mxu0 %v2799
    %3861 = vmatprep.subr.mxu0 %v2986
    %3862 = vmatpush2.msra.mxu0 %v2985
    %3863 = vmatprep.subr.mxu0 %v2980
    %3864 = vmatpush2.msra.mxu0 %v2979
    %3865 = vmatprep.subr.mxu0 %v2974
    %3866 = vmatpush2.msra.mxu0 %v2973
    %3867 = vmatprep.subr.mxu0 %v2968
    %3868 = vmatpush2.msra.mxu0 %v2967
    %3869 = vmatprep.subr.mxu0 %v2962
    %3870 = vmatpush2.msra.mxu0 %v2961
    %3871 = vmatprep.subr.mxu0 %v2956
    %3872 = vmatpush2.msra.mxu0 %v2955
    %3873 = vmatprep.subr.mxu0 %v2950
    %3874 = vmatpush2.msra.mxu0 %v2949
    %3875 = vmatprep.subr.mxu0 %v2944
    %3876 = vmatpush2.msra.mxu0 %v2943
    %3877 = vmatprep.subr.mxu0 %v2938
    %3878 = vmatpush2.msra.mxu0 %v2937
    %3879 = vmatprep.subr.mxu0 %v2932
    %3880 = vmatpush2.msra.mxu0 %v2931
    %3881 = vmatprep.subr.mxu0 %v2926
    %3882 = vmatpush2.msra.mxu0 %v2925
    %3883 = vmatprep.subr.mxu0 %v2920
    %3884 = vmatpush2.msra.mxu0 %v2919
    %3885 = vmatprep.subr.mxu0 %v2914
    %3886 = vmatpush2.msra.mxu0 %v2913
    %3887 = vmatprep.subr.mxu0 %v2908
    %3888 = vmatpush2.msra.mxu0 %v2907
    %3889 = vmatprep.subr.mxu0 %v2902
    %3890 = vmatpush2.msra.mxu0 %v2901
    %3891 = vmatprep.subr.mxu0 %v2896
    %3892 = vmatpush2.msra.mxu0 %v2895
    %3893 = vmatprep.mubr.f32.mxu0 %v2790
    %3894 = vmatmul.mubr.f32.gmra.mxu0 %v2789
    %v3895 = vpop.f32.mrf.mxu0
    %v3896 = vadd.f32 %v3392, %v3895
    %v3897 = vpop.f32.mrf.mxu0
    %v3898 = vadd.f32 %v3396, %v3897
    %3899 = vdwg.mxu0
    %3900 = vmatprep.subr.mxu0 %v3082
    %3901 = vmatpush1.msra.mxu0 %v3081
    %3902 = vmatprep.subr.mxu0 %v3076
    %3903 = vmatpush1.msra.mxu0 %v3075
    %3904 = vmatprep.subr.mxu0 %v3070
    %3905 = vmatpush1.msra.mxu0 %v3069
    %3906 = vmatprep.subr.mxu0 %v3064
    %3907 = vmatpush1.msra.mxu0 %v3063
    %3908 = vmatprep.subr.mxu0 %v3058
    %3909 = vmatpush1.msra.mxu0 %v3057
    %3910 = vmatprep.subr.mxu0 %v3052
    %3911 = vmatpush1.msra.mxu0 %v3051
    %3912 = vmatprep.subr.mxu0 %v3046
    %3913 = vmatpush1.msra.mxu0 %v3045
    %3914 = vmatprep.subr.mxu0 %v3040
    %3915 = vmatpush1.msra.mxu0 %v3039
    %3916 = vmatprep.subr.mxu0 %v3034
    %3917 = vmatpush1.msra.mxu0 %v3033
    %3918 = vmatprep.subr.mxu0 %v3028
    %3919 = vmatpush1.msra.mxu0 %v3027
    %3920 = vmatprep.subr.mxu0 %v3022
    %3921 = vmatpush1.msra.mxu0 %v3021
    %3922 = vmatprep.subr.mxu0 %v3016
    %3923 = vmatpush1.msra.mxu0 %v3015
    %3924 = vmatprep.subr.mxu0 %v3010
    %3925 = vmatpush1.msra.mxu0 %v3009
    %3926 = vmatprep.subr.mxu0 %v3004
    %3927 = vmatpush1.msra.mxu0 %v3003
    %3928 = vmatprep.subr.mxu0 %v2998
    %3929 = vmatpush1.msra.mxu0 %v2997
    %3930 = vmatprep.subr.mxu0 %v2992
    %3931 = vmatpush1.msra.mxu0 %v2991
    %3932 = vmatprep.subr.mxu0 %v3178
    %3933 = vmatpush2.msra.mxu0 %v3177
    %3934 = vmatprep.subr.mxu0 %v3172
    %3935 = vmatpush2.msra.mxu0 %v3171
    %3936 = vmatprep.subr.mxu0 %v3166
    %3937 = vmatpush2.msra.mxu0 %v3165
    %3938 = vmatprep.subr.mxu0 %v3160
    %3939 = vmatpush2.msra.mxu0 %v3159
    %3940 = vmatprep.subr.mxu0 %v3154
    %3941 = vmatpush2.msra.mxu0 %v3153
    %3942 = vmatprep.subr.mxu0 %v3148
    %3943 = vmatpush2.msra.mxu0 %v3147
    %3944 = vmatprep.subr.mxu0 %v3142
    %3945 = vmatpush2.msra.mxu0 %v3141
    %3946 = vmatprep.subr.mxu0 %v3136
    %3947 = vmatpush2.msra.mxu0 %v3135
    %3948 = vmatprep.subr.mxu0 %v3130
    %3949 = vmatpush2.msra.mxu0 %v3129
    %3950 = vmatprep.subr.mxu0 %v3124
    %3951 = vmatpush2.msra.mxu0 %v3123
    %3952 = vmatprep.subr.mxu0 %v3118
    %3953 = vmatpush2.msra.mxu0 %v3117
    %3954 = vmatprep.subr.mxu0 %v3112
    %3955 = vmatpush2.msra.mxu0 %v3111
    %3956 = vmatprep.subr.mxu0 %v3106
    %3957 = vmatpush2.msra.mxu0 %v3105
    %3958 = vmatprep.subr.mxu0 %v3100
    %3959 = vmatpush2.msra.mxu0 %v3099
    %3960 = vmatprep.subr.mxu0 %v3094
    %3961 = vmatpush2.msra.mxu0 %v3093
    %3962 = vmatprep.subr.mxu0 %v3088
    %3963 = vmatpush2.msra.mxu0 %v3087
    %3964 = vmatprep.mubr.f32.mxu0 %v2792
    %3965 = vmatmul.mubr.f32.gmra.mxu0 %v2791
    %v3966 = vpop.f32.mrf.mxu0
    %v3967 = vadd.f32 %v3896, %v3966
    %v3968 = vpop.f32.mrf.mxu0
    %v3969 = vadd.f32 %v3898, %v3968
    %3970 = vdwg.mxu0
    %3971 = vmatprep.subr.mxu0 %v3274
    %3972 = vmatpush1.msra.mxu0 %v3273
    %3973 = vmatprep.subr.mxu0 %v3268
    %3974 = vmatpush1.msra.mxu0 %v3267
    %3975 = vmatprep.subr.mxu0 %v3262
    %3976 = vmatpush1.msra.mxu0 %v3261
    %3977 = vmatprep.subr.mxu0 %v3256
    %3978 = vmatpush1.msra.mxu0 %v3255
    %3979 = vmatprep.subr.mxu0 %v3250
    %3980 = vmatpush1.msra.mxu0 %v3249
    %3981 = vmatprep.subr.mxu0 %v3244
    %3982 = vmatpush1.msra.mxu0 %v3243
    %3983 = vmatprep.subr.mxu0 %v3238
    %3984 = vmatpush1.msra.mxu0 %v3237
    %3985 = vmatprep.subr.mxu0 %v3232
    %3986 = vmatpush1.msra.mxu0 %v3231
    %3987 = vmatprep.subr.mxu0 %v3226
    %3988 = vmatpush1.msra.mxu0 %v3225
    %3989 = vmatprep.subr.mxu0 %v3220
    %3990 = vmatpush1.msra.mxu0 %v3219
    %3991 = vmatprep.subr.mxu0 %v3214
    %3992 = vmatpush1.msra.mxu0 %v3213
    %3993 = vmatprep.subr.mxu0 %v3208
    %3994 = vmatpush1.msra.mxu0 %v3207
    %3995 = vmatprep.subr.mxu0 %v3202
    %3996 = vmatpush1.msra.mxu0 %v3201
    %3997 = vmatprep.subr.mxu0 %v3196
    %3998 = vmatpush1.msra.mxu0 %v3195
    %3999 = vmatprep.subr.mxu0 %v3190
    %4000 = vmatpush1.msra.mxu0 %v3189
    %4001 = vmatprep.subr.mxu0 %v3184
    %4002 = vmatpush1.msra.mxu0 %v3183
    %4003 = vmatprep.subr.mxu0 %v3370
    %4004 = vmatpush2.msra.mxu0 %v3369
    %4005 = vmatprep.subr.mxu0 %v3364
    %4006 = vmatpush2.msra.mxu0 %v3363
    %4007 = vmatprep.subr.mxu0 %v3358
    %4008 = vmatpush2.msra.mxu0 %v3357
    %4009 = vmatprep.subr.mxu0 %v3352
    %4010 = vmatpush2.msra.mxu0 %v3351
    %4011 = vmatprep.subr.mxu0 %v3346
    %4012 = vmatpush2.msra.mxu0 %v3345
    %4013 = vmatprep.subr.mxu0 %v3340
    %4014 = vmatpush2.msra.mxu0 %v3339
    %4015 = vmatprep.subr.mxu0 %v3334
    %4016 = vmatpush2.msra.mxu0 %v3333
    %4017 = vmatprep.subr.mxu0 %v3328
    %4018 = vmatpush2.msra.mxu0 %v3327
    %4019 = vmatprep.subr.mxu0 %v3322
    %4020 = vmatpush2.msra.mxu0 %v3321
    %4021 = vmatprep.subr.mxu0 %v3316
    %4022 = vmatpush2.msra.mxu0 %v3315
    %4023 = vmatprep.subr.mxu0 %v3310
    %4024 = vmatpush2.msra.mxu0 %v3309
    %4025 = vmatprep.subr.mxu0 %v3304
    %4026 = vmatpush2.msra.mxu0 %v3303
    %4027 = vmatprep.subr.mxu0 %v3298
    %4028 = vmatpush2.msra.mxu0 %v3297
    %4029 = vmatprep.subr.mxu0 %v3292
    %4030 = vmatpush2.msra.mxu0 %v3291
    %4031 = vmatprep.subr.mxu0 %v3286
    %4032 = vmatpush2.msra.mxu0 %v3285
    %4033 = vmatprep.subr.mxu0 %v3280
    %4034 = vmatpush2.msra.mxu0 %v3279
    %4035 = vmatprep.mubr.f32.mxu0 %v2794
    %4036 = vmatmul.mubr.f32.gmra.mxu0 %v2793
    %v4037 = vpop.f32.mrf.mxu0
    %v4038 = vadd.f32 %v3967, %v4037
    %v4039 = vpop.f32.mrf.mxu0
    %v4040 = vadd.f32 %v3969, %v4039
    %4041 = vdwg.mxu0
    %v4042 = vmax.f32 %v3612, 0.0
    %v4043 = vmax.f32 %v3614, 0.0
    %v4044 = vmax.f32 %v3825, 0.0
    %v4045 = vmax.f32 %v3827, 0.0
    %v4046 = vmax.f32 %v4038, 0.0
    %v4047 = vmax.f32 %v4040, 0.0
    %v4048 = vld [vmem:[#allocation23] sm:$0xff]
    %v4049 = vld [vmem:[#allocation23 + $0x8] sm:$0xff]
    %v4050 = vld [vmem:[#allocation23 + $0x10] sm:$0xff]
    %v4051 = vld [vmem:[#allocation23 + $0x18] sm:$0xff]
    %v4052 = vld [vmem:[#allocation23 + $0x20] sm:$0xff]
    %v4053 = vld [vmem:[#allocation23 + $0x28] sm:$0xff]
    %v4054 = vld [vmem:[#allocation23 + $0x30] sm:$0xff]
    %v4055 = vld [vmem:[#allocation23 + $0x38] sm:$0xff]
    %v4056 = vld [vmem:[#allocation23 + $0x40] sm:$0xff]
    %v4057 = vld [vmem:[#allocation23 + $0x48] sm:$0xff]
    %v4058 = vld [vmem:[#allocation23 + $0x50] sm:$0xff]
    %v4059 = vld [vmem:[#allocation23 + $0x58] sm:$0xff]
    %v4060 = vld [vmem:[#allocation23 + $0x60] sm:$0xff]
    %v4061 = vld [vmem:[#allocation23 + $0x68] sm:$0xff]
    %v4062 = vld [vmem:[#allocation23 + $0x70] sm:$0xff]
    %v4063 = vld [vmem:[#allocation23 + $0x78] sm:$0xff]
    %v4064 = vld [vmem:[#allocation23 + $0x80] sm:$0xff]
    %v4065 = vld [vmem:[#allocation23 + $0x88] sm:$0xff]
    %v4066 = vld [vmem:[#allocation23 + $0x90] sm:$0xff]
    %v4067 = vld [vmem:[#allocation23 + $0x98] sm:$0xff]
    %v4068 = vld [vmem:[#allocation23 + $0xa0] sm:$0xff]
    %v4069 = vld [vmem:[#allocation23 + $0xa8] sm:$0xff]
    %v4070 = vld [vmem:[#allocation23 + $0xb0] sm:$0xff]
    %v4071 = vld [vmem:[#allocation23 + $0xb8] sm:$0xff]
    %v4072 = vld [vmem:[#allocation23 + $0xc0] sm:$0xff]
    %v4073 = vld [vmem:[#allocation23 + $0xc8] sm:$0xff]
    %v4074 = vld [vmem:[#allocation23 + $0xd0] sm:$0xff]
    %v4075 = vld [vmem:[#allocation23 + $0xd8] sm:$0xff]
    %v4076 = vld [vmem:[#allocation23 + $0xe0] sm:$0xff]
    %v4077 = vld [vmem:[#allocation23 + $0xe8] sm:$0xff]
    %v4078 = vld [vmem:[#allocation23 + $0xf0] sm:$0xff]
    %v4079 = vld [vmem:[#allocation23 + $0xf8] sm:$0xff]
    %v4080 = vld [vmem:[#allocation23 + $0x100] sm:$0xff]
    %v4081 = vld [vmem:[#allocation23 + $0x108] sm:$0xff]
    %v4082 = vld [vmem:[#allocation23 + $0x110] sm:$0xff]
    %v4083 = vld [vmem:[#allocation23 + $0x118] sm:$0xff]
    %v4084 = vld [vmem:[#allocation23 + $0x120] sm:$0xff]
    %v4085 = vld [vmem:[#allocation23 + $0x128] sm:$0xff]
    %v4086 = vld [vmem:[#allocation23 + $0x130] sm:$0xff]
    %v4087 = vld [vmem:[#allocation23 + $0x138] sm:$0xff]
    %v4088 = vld [vmem:[#allocation23 + $0x140] sm:$0xff]
    %v4089 = vld [vmem:[#allocation23 + $0x148] sm:$0xff]
    %v4090 = vld [vmem:[#allocation23 + $0x150] sm:$0xff]
    %v4091 = vld [vmem:[#allocation23 + $0x158] sm:$0xff]
    %v4092 = vld [vmem:[#allocation23 + $0x160] sm:$0xff]
    %v4093 = vld [vmem:[#allocation23 + $0x168] sm:$0xff]
    %v4094 = vld [vmem:[#allocation23 + $0x170] sm:$0xff]
    %v4095 = vld [vmem:[#allocation23 + $0x178] sm:$0xff]
    %v4096 = vld [vmem:[#allocation23 + $0x180] sm:$0xff]
    %v4097 = vld [vmem:[#allocation23 + $0x188] sm:$0xff]
    %v4098 = vld [vmem:[#allocation23 + $0x190] sm:$0xff]
    %v4099 = vld [vmem:[#allocation23 + $0x198] sm:$0xff]
    %v4100 = vld [vmem:[#allocation23 + $0x1a0] sm:$0xff]
    %v4101 = vld [vmem:[#allocation23 + $0x1a8] sm:$0xff]
    %v4102 = vld [vmem:[#allocation23 + $0x1b0] sm:$0xff]
    %v4103 = vld [vmem:[#allocation23 + $0x1b8] sm:$0xff]
    %v4104 = vld [vmem:[#allocation23 + $0x1c0] sm:$0xff]
    %v4105 = vld [vmem:[#allocation23 + $0x1c8] sm:$0xff]
    %v4106 = vld [vmem:[#allocation23 + $0x1d0] sm:$0xff]
    %v4107 = vld [vmem:[#allocation23 + $0x1d8] sm:$0xff]
    %v4108 = vld [vmem:[#allocation23 + $0x1e0] sm:$0xff]
    %v4109 = vld [vmem:[#allocation23 + $0x1e8] sm:$0xff]
    %v4110 = vld [vmem:[#allocation23 + $0x1f0] sm:$0xff]
    %v4111 = vld [vmem:[#allocation23 + $0x1f8] sm:$0xff]
    %v4112 = vld [vmem:[#allocation23 + $0x200] sm:$0xff]
    %v4113 = vld [vmem:[#allocation23 + $0x208] sm:$0xff]
    %v4114 = vld [vmem:[#allocation23 + $0x210] sm:$0xff]
    %v4115 = vld [vmem:[#allocation23 + $0x218] sm:$0xff]
    %v4116 = vld [vmem:[#allocation23 + $0x220] sm:$0xff]
    %v4117 = vld [vmem:[#allocation23 + $0x228] sm:$0xff]
    %v4118 = vld [vmem:[#allocation23 + $0x230] sm:$0xff]
    %v4119 = vld [vmem:[#allocation23 + $0x238] sm:$0xff]
    %v4120 = vld [vmem:[#allocation23 + $0x240] sm:$0xff]
    %v4121 = vld [vmem:[#allocation23 + $0x248] sm:$0xff]
    %v4122 = vld [vmem:[#allocation23 + $0x250] sm:$0xff]
    %v4123 = vld [vmem:[#allocation23 + $0x258] sm:$0xff]
    %v4124 = vld [vmem:[#allocation23 + $0x260] sm:$0xff]
    %v4125 = vld [vmem:[#allocation23 + $0x268] sm:$0xff]
    %v4126 = vld [vmem:[#allocation23 + $0x270] sm:$0xff]
    %v4127 = vld [vmem:[#allocation23 + $0x278] sm:$0xff]
    %v4128 = vld [vmem:[#allocation23 + $0x280] sm:$0xff]
    %v4129 = vld [vmem:[#allocation23 + $0x288] sm:$0xff]
    %v4130 = vld [vmem:[#allocation23 + $0x290] sm:$0xff]
    %v4131 = vld [vmem:[#allocation23 + $0x298] sm:$0xff]
    %v4132 = vld [vmem:[#allocation23 + $0x2a0] sm:$0xff]
    %v4133 = vld [vmem:[#allocation23 + $0x2a8] sm:$0xff]
    %v4134 = vld [vmem:[#allocation23 + $0x2b0] sm:$0xff]
    %v4135 = vld [vmem:[#allocation23 + $0x2b8] sm:$0xff]
    %v4136 = vld [vmem:[#allocation23 + $0x2c0] sm:$0xff]
    %v4137 = vld [vmem:[#allocation23 + $0x2c8] sm:$0xff]
    %v4138 = vld [vmem:[#allocation23 + $0x2d0] sm:$0xff]
    %v4139 = vld [vmem:[#allocation23 + $0x2d8] sm:$0xff]
    %v4140 = vld [vmem:[#allocation23 + $0x2e0] sm:$0xff]
    %v4141 = vld [vmem:[#allocation23 + $0x2e8] sm:$0xff]
    %v4142 = vld [vmem:[#allocation23 + $0x2f0] sm:$0xff]
    %v4143 = vld [vmem:[#allocation23 + $0x2f8] sm:$0xff]
    %v4144 = vld [vmem:[#allocation24] sm:$0x1]
    %v4146 = vlaneseq
    %v4147 = vshrl.u32 %v4146, 7
    %v4148 = vsub.s32 0, %v4147
    %v4149 = vrot.slane %v4144, %v4148
    %4151 = vmatprep.subr.mxu0 0.0
    %4152 = vmatpush1.msra.mxu0 %v4063
    %4153 = vmatprep.subr.mxu0 0.0
    %4154 = vmatpush1.msra.mxu0 %v4062
    %4155 = vmatprep.subr.mxu0 0.0
    %4156 = vmatpush1.msra.mxu0 %v4061
    %4157 = vmatprep.subr.mxu0 0.0
    %4158 = vmatpush1.msra.mxu0 %v4060
    %4159 = vmatprep.subr.mxu0 0.0
    %4160 = vmatpush1.msra.mxu0 %v4059
    %4161 = vmatprep.subr.mxu0 0.0
    %4162 = vmatpush1.msra.mxu0 %v4058
    %4163 = vmatprep.subr.mxu0 0.0
    %4164 = vmatpush1.msra.mxu0 %v4057
    %4165 = vmatprep.subr.mxu0 0.0
    %4166 = vmatpush1.msra.mxu0 %v4056
    %4167 = vmatprep.subr.mxu0 0.0
    %4168 = vmatpush1.msra.mxu0 %v4055
    %4169 = vmatprep.subr.mxu0 0.0
    %4170 = vmatpush1.msra.mxu0 %v4054
    %4171 = vmatprep.subr.mxu0 0.0
    %4172 = vmatpush1.msra.mxu0 %v4053
    %4173 = vmatprep.subr.mxu0 0.0
    %4174 = vmatpush1.msra.mxu0 %v4052
    %4175 = vmatprep.subr.mxu0 0.0
    %4176 = vmatpush1.msra.mxu0 %v4051
    %4177 = vmatprep.subr.mxu0 0.0
    %4178 = vmatpush1.msra.mxu0 %v4050
    %4179 = vmatprep.subr.mxu0 0.0
    %4180 = vmatpush1.msra.mxu0 %v4049
    %4181 = vmatprep.subr.mxu0 0.0
    %4182 = vmatpush1.msra.mxu0 %v4048
    %4183 = vmatprep.subr.mxu0 0.0
    %4184 = vmatpush2.msra.mxu0 %v4079
    %4185 = vmatprep.subr.mxu0 0.0
    %4186 = vmatpush2.msra.mxu0 %v4078
    %4187 = vmatprep.subr.mxu0 0.0
    %4188 = vmatpush2.msra.mxu0 %v4077
    %4189 = vmatprep.subr.mxu0 0.0
    %4190 = vmatpush2.msra.mxu0 %v4076
    %4191 = vmatprep.subr.mxu0 0.0
    %4192 = vmatpush2.msra.mxu0 %v4075
    %4193 = vmatprep.subr.mxu0 0.0
    %4194 = vmatpush2.msra.mxu0 %v4074
    %4195 = vmatprep.subr.mxu0 0.0
    %4196 = vmatpush2.msra.mxu0 %v4073
    %4197 = vmatprep.subr.mxu0 0.0
    %4198 = vmatpush2.msra.mxu0 %v4072
    %4199 = vmatprep.subr.mxu0 0.0
    %4200 = vmatpush2.msra.mxu0 %v4071
    %4201 = vmatprep.subr.mxu0 0.0
    %4202 = vmatpush2.msra.mxu0 %v4070
    %4203 = vmatprep.subr.mxu0 0.0
    %4204 = vmatpush2.msra.mxu0 %v4069
    %4205 = vmatprep.subr.mxu0 0.0
    %4206 = vmatpush2.msra.mxu0 %v4068
    %4207 = vmatprep.subr.mxu0 0.0
    %4208 = vmatpush2.msra.mxu0 %v4067
    %4209 = vmatprep.subr.mxu0 0.0
    %4210 = vmatpush2.msra.mxu0 %v4066
    %4211 = vmatprep.subr.mxu0 0.0
    %4212 = vmatpush2.msra.mxu0 %v4065
    %4213 = vmatprep.subr.mxu0 0.0
    %4214 = vmatpush2.msra.mxu0 %v4064
    %4215 = vmatprep.mubr.f32.mxu0 %v4043
    %4216 = vmatmul.mubr.f32.gmra.mxu0 %v4042
    %v4217 = vpop.f32.mrf.mxu0
    %v4218 = vadd.f32 %v4149, %v4217
    %v4219 = vpop.f32.mrf.mxu0
    %4220 = vdwg.mxu0
    %4221 = vmatprep.subr.mxu0 0.0
    %4222 = vmatpush1.msra.mxu0 %v4095
    %4223 = vmatprep.subr.mxu0 0.0
    %4224 = vmatpush1.msra.mxu0 %v4094
    %4225 = vmatprep.subr.mxu0 0.0
    %4226 = vmatpush1.msra.mxu0 %v4093
    %4227 = vmatprep.subr.mxu0 0.0
    %4228 = vmatpush1.msra.mxu0 %v4092
    %4229 = vmatprep.subr.mxu0 0.0
    %4230 = vmatpush1.msra.mxu0 %v4091
    %4231 = vmatprep.subr.mxu0 0.0
    %4232 = vmatpush1.msra.mxu0 %v4090
    %4233 = vmatprep.subr.mxu0 0.0
    %4234 = vmatpush1.msra.mxu0 %v4089
    %4235 = vmatprep.subr.mxu0 0.0
    %4236 = vmatpush1.msra.mxu0 %v4088
    %4237 = vmatprep.subr.mxu0 0.0
    %4238 = vmatpush1.msra.mxu0 %v4087
    %4239 = vmatprep.subr.mxu0 0.0
    %4240 = vmatpush1.msra.mxu0 %v4086
    %4241 = vmatprep.subr.mxu0 0.0
    %4242 = vmatpush1.msra.mxu0 %v4085
    %4243 = vmatprep.subr.mxu0 0.0
    %4244 = vmatpush1.msra.mxu0 %v4084
    %4245 = vmatprep.subr.mxu0 0.0
    %4246 = vmatpush1.msra.mxu0 %v4083
    %4247 = vmatprep.subr.mxu0 0.0
    %4248 = vmatpush1.msra.mxu0 %v4082
    %4249 = vmatprep.subr.mxu0 0.0
    %4250 = vmatpush1.msra.mxu0 %v4081
    %4251 = vmatprep.subr.mxu0 0.0
    %4252 = vmatpush1.msra.mxu0 %v4080
    %4253 = vmatprep.subr.mxu0 0.0
    %4254 = vmatpush2.msra.mxu0 %v4111
    %4255 = vmatprep.subr.mxu0 0.0
    %4256 = vmatpush2.msra.mxu0 %v4110
    %4257 = vmatprep.subr.mxu0 0.0
    %4258 = vmatpush2.msra.mxu0 %v4109
    %4259 = vmatprep.subr.mxu0 0.0
    %4260 = vmatpush2.msra.mxu0 %v4108
    %4261 = vmatprep.subr.mxu0 0.0
    %4262 = vmatpush2.msra.mxu0 %v4107
    %4263 = vmatprep.subr.mxu0 0.0
    %4264 = vmatpush2.msra.mxu0 %v4106
    %4265 = vmatprep.subr.mxu0 0.0
    %4266 = vmatpush2.msra.mxu0 %v4105
    %4267 = vmatprep.subr.mxu0 0.0
    %4268 = vmatpush2.msra.mxu0 %v4104
    %4269 = vmatprep.subr.mxu0 0.0
    %4270 = vmatpush2.msra.mxu0 %v4103
    %4271 = vmatprep.subr.mxu0 0.0
    %4272 = vmatpush2.msra.mxu0 %v4102
    %4273 = vmatprep.subr.mxu0 0.0
    %4274 = vmatpush2.msra.mxu0 %v4101
    %4275 = vmatprep.subr.mxu0 0.0
    %4276 = vmatpush2.msra.mxu0 %v4100
    %4277 = vmatprep.subr.mxu0 0.0
    %4278 = vmatpush2.msra.mxu0 %v4099
    %4279 = vmatprep.subr.mxu0 0.0
    %4280 = vmatpush2.msra.mxu0 %v4098
    %4281 = vmatprep.subr.mxu0 0.0
    %4282 = vmatpush2.msra.mxu0 %v4097
    %4283 = vmatprep.subr.mxu0 0.0
    %4284 = vmatpush2.msra.mxu0 %v4096
    %4285 = vmatprep.mubr.f32.mxu0 %v4045
    %4286 = vmatmul.mubr.f32.gmra.mxu0 %v4044
    %v4287 = vpop.f32.mrf.mxu0
    %v4288 = vadd.f32 %v4218, %v4287
    %v4289 = vpop.f32.mrf.mxu0
    %4290 = vdwg.mxu0
    %4291 = vmatprep.subr.mxu0 0.0
    %4292 = vmatpush1.msra.mxu0 %v4127
    %4293 = vmatprep.subr.mxu0 0.0
    %4294 = vmatpush1.msra.mxu0 %v4126
    %4295 = vmatprep.subr.mxu0 0.0
    %4296 = vmatpush1.msra.mxu0 %v4125
    %4297 = vmatprep.subr.mxu0 0.0
    %4298 = vmatpush1.msra.mxu0 %v4124
    %4299 = vmatprep.subr.mxu0 0.0
    %4300 = vmatpush1.msra.mxu0 %v4123
    %4301 = vmatprep.subr.mxu0 0.0
    %4302 = vmatpush1.msra.mxu0 %v4122
    %4303 = vmatprep.subr.mxu0 0.0
    %4304 = vmatpush1.msra.mxu0 %v4121
    %4305 = vmatprep.subr.mxu0 0.0
    %4306 = vmatpush1.msra.mxu0 %v4120
    %4307 = vmatprep.subr.mxu0 0.0
    %4308 = vmatpush1.msra.mxu0 %v4119
    %4309 = vmatprep.subr.mxu0 0.0
    %4310 = vmatpush1.msra.mxu0 %v4118
    %4311 = vmatprep.subr.mxu0 0.0
    %4312 = vmatpush1.msra.mxu0 %v4117
    %4313 = vmatprep.subr.mxu0 0.0
    %4314 = vmatpush1.msra.mxu0 %v4116
    %4315 = vmatprep.subr.mxu0 0.0
    %4316 = vmatpush1.msra.mxu0 %v4115
    %4317 = vmatprep.subr.mxu0 0.0
    %4318 = vmatpush1.msra.mxu0 %v4114
    %4319 = vmatprep.subr.mxu0 0.0
    %4320 = vmatpush1.msra.mxu0 %v4113
    %4321 = vmatprep.subr.mxu0 0.0
    %4322 = vmatpush1.msra.mxu0 %v4112
    %4323 = vmatprep.subr.mxu0 0.0
    %4324 = vmatpush2.msra.mxu0 %v4143
    %4325 = vmatprep.subr.mxu0 0.0
    %4326 = vmatpush2.msra.mxu0 %v4142
    %4327 = vmatprep.subr.mxu0 0.0
    %4328 = vmatpush2.msra.mxu0 %v4141
    %4329 = vmatprep.subr.mxu0 0.0
    %4330 = vmatpush2.msra.mxu0 %v4140
    %4331 = vmatprep.subr.mxu0 0.0
    %4332 = vmatpush2.msra.mxu0 %v4139
    %4333 = vmatprep.subr.mxu0 0.0
    %4334 = vmatpush2.msra.mxu0 %v4138
    %4335 = vmatprep.subr.mxu0 0.0
    %4336 = vmatpush2.msra.mxu0 %v4137
    %4337 = vmatprep.subr.mxu0 0.0
    %4338 = vmatpush2.msra.mxu0 %v4136
    %4339 = vmatprep.subr.mxu0 0.0
    %4340 = vmatpush2.msra.mxu0 %v4135
    %4341 = vmatprep.subr.mxu0 0.0
    %4342 = vmatpush2.msra.mxu0 %v4134
    %4343 = vmatprep.subr.mxu0 0.0
    %4344 = vmatpush2.msra.mxu0 %v4133
    %4345 = vmatprep.subr.mxu0 0.0
    %4346 = vmatpush2.msra.mxu0 %v4132
    %4347 = vmatprep.subr.mxu0 0.0
    %4348 = vmatpush2.msra.mxu0 %v4131
    %4349 = vmatprep.subr.mxu0 0.0
    %4350 = vmatpush2.msra.mxu0 %v4130
    %4351 = vmatprep.subr.mxu0 0.0
    %4352 = vmatpush2.msra.mxu0 %v4129
    %4353 = vmatprep.subr.mxu0 0.0
    %4354 = vmatpush2.msra.mxu0 %v4128
    %4355 = vmatprep.mubr.f32.mxu0 %v4047
    %4356 = vmatmul.mubr.f32.gmra.mxu0 %v4046
    %v4357 = vpop.f32.mrf.mxu0
    %v4358 = vadd.f32 %v4288, %v4357
    %v4359 = vpop.f32.mrf.mxu0
    %4360 = vdwg.mxu0
    %v4361 = vtanh.pop %v4358
    %4362 = vst [vmem:[#allocation26] sm:$0xff] %v4361
    %4363 = vst [vmem:[#allocation27] sm:$0xff] %v2337
    %4364 = vst [vmem:[#allocation29] sm:$0xff] %v2344
    // Predicated region
    $region114: #{tpu_custom_call.1} parent=1 // pred_check
      _
    $region115: #{tpu_custom_call.1} parent=1 // pred_check_branch
      %4366 = sbr.rel (0) target = $region117
    $region116: #{tpu_custom_call.1} parent=1 // pred_region
      %s4368 = ssub.s32 128, 128
      %4369 = vsyncadd [#allocation5], %s4368
      %s4371 = sshll.u32 [#allocation26], 4
      %s4372 = int_to_ptr.vmem [resolvable:$true] %s4371
      %4374 = dma.vmem_to_hbm [thread:$0]  %s4372, 128, %s14, [#allocation5]
    $region117: #{tpu_custom_call.1} parent=1 // pred_fallthru
      _
    // Predicated region
    $region118: #{tpu_custom_call.1} parent=1 // pred_check
      _
    $region119: #{tpu_custom_call.1} parent=1 // pred_check_branch
      %4376 = sbr.rel (0) target = $region121
    $region120: #{tpu_custom_call.1} parent=1 // pred_region
      %s4378 = ssub.s32 128, 128
      %4379 = vsyncadd [#allocation28], %s4378
      %s4381 = sshll.u32 [#allocation27], 4
      %s4382 = int_to_ptr.vmem [resolvable:$true] %s4381
      %4384 = dma.vmem_to_hbm [thread:$0]  %s4382, 128, %s15, [#allocation28]
    $region121: #{tpu_custom_call.1} parent=1 // pred_fallthru
      _
    // Predicated region
    $region122: #{tpu_custom_call.1} parent=1 // pred_check
      _
    $region123: #{tpu_custom_call.1} parent=1 // pred_check_branch
      %4386 = sbr.rel (0) target = $region125
    $region124: #{tpu_custom_call.1} parent=1 // pred_region
      %s4388 = ssub.s32 128, 128
      %4389 = vsyncadd [#allocation28], %s4388
      %s4391 = sshll.u32 [#allocation29], 4
      %s4392 = int_to_ptr.vmem [resolvable:$true] %s4391
      %4394 = dma.vmem_to_hbm [thread:$0]  %s4392, 128, %s16, [#allocation28]
    $region125: #{tpu_custom_call.1} parent=1 // pred_fallthru
      _
    // Predicated region
    $region126: #{tpu_custom_call.1} parent=1 // pred_check
      _
    $region127: #{tpu_custom_call.1} parent=1 // pred_check_branch
      %4396 = sbr.rel (0) target = $region129
    $region128: #{tpu_custom_call.1} parent=1 // pred_region
      %4397 = dma.done [#allocation5], 128
    $region129: #{tpu_custom_call.1} parent=1 // pred_fallthru
      _
    // Predicated region
    $region130: #{tpu_custom_call.1} parent=1 // pred_check
      _
    $region131: #{tpu_custom_call.1} parent=1 // pred_check_branch
      %4399 = sbr.rel (0) target = $region133
    $region132: #{tpu_custom_call.1} parent=1 // pred_region
      %4400 = dma.done [#allocation28], 128
    $region133: #{tpu_custom_call.1} parent=1 // pred_fallthru
      _
    // Predicated region
    $region134: #{tpu_custom_call.1} parent=1 // pred_check
      _
    $region135: #{tpu_custom_call.1} parent=1 // pred_check_branch
      %4402 = sbr.rel (0) target = $region137
    $region136: #{tpu_custom_call.1} parent=1 // pred_region
      %4403 = dma.done [#allocation28], 128
    $region137: #{tpu_custom_call.1} parent=1 // pred_fallthru
      _
    %4404 = vsyncpa [#allocation4], 1
    %4405 = vsyncpa [#allocation7], 1
    %4406 = vsyncpa [#allocation10], 1
    %4407 = vsyncpa [#allocation13], 1
    %4408 = vsyncpa [#allocation16], 1
    %4409 = vsyncpa [#allocation19], 1
    %4410 = vsyncpa [#allocation22], 1
    %4411 = vsyncpa [#allocation25], 1
    %4412 = vsyncpa [#allocation5], 1
    %4413 = vsyncpa [#allocation28], 1

// kernel: tpu_custom_call.1
$region0: #{tpu_custom_call.1}
  #allocation0 [shape = 'u32[]', space=smem, size = 0x4, offset = 0x4, fixed_abs, tag = 'smem constant byte address 0x4 - core index']
  #allocation1 [shape = 'u32[144,128]{1,0:T(1,128)}', space=vmem, size = 0x12000, scoped, tag = 'internal scratch']
  #allocation2 [shape = 'f32[8,256]{1,0:T(8,128)}', space=vmem, size = 0x2000, scoped, tag = 'scratch operand']
  %s0 = inlined_call_operand.hbm [shape: f32[8,256], index: 0, kind: input, shape index: {}]
  %s1 = inlined_call_operand.hbm [shape: f32[8,128], index: 1, kind: input, shape index: {}]
  %s2 = inlined_call_operand.hbm [shape: f32[256,768], index: 2, kind: input, shape index: {}]
  %s3 = inlined_call_operand.hbm [shape: f32[1,768], index: 3, kind: input, shape index: {}]
  %s4 = inlined_call_operand.hbm [shape: f32[768,768], index: 4, kind: input, shape index: {}]
  %s5 = inlined_call_operand.hbm [shape: f32[1,768], index: 5, kind: input, shape index: {}]
  %s6 = inlined_call_operand.hbm [shape: f32[768,256], index: 6, kind: input, shape index: {}]
  %s7 = inlined_call_operand.hbm [shape: f32[1,256], index: 7, kind: input, shape index: {}]
  %s8 = inlined_call_operand.hbm [shape: f32[256,768], index: 8, kind: input, shape index: {}]
  %s9 = inlined_call_operand.hbm [shape: f32[1,768], index: 9, kind: input, shape index: {}]
  %s10 = inlined_call_operand.hbm [shape: f32[768,768], index: 10, kind: input, shape index: {}]
  %s11 = inlined_call_operand.hbm [shape: f32[1,768], index: 11, kind: input, shape index: {}]
  %s12 = inlined_call_operand.hbm [shape: f32[768,128], index: 12, kind: input, shape index: {}]
  %s13 = inlined_call_operand.hbm [shape: f32[1,128], index: 13, kind: input, shape index: {}]
  %s14 = inlined_call_operand.hbm [shape: f32[8,128], index: 14, kind: output, shape index: {0}]
  %s15 = inlined_call_operand.hbm [shape: f32[8,128], index: 15, kind: output, shape index: {1}]
  %s16 = inlined_call_operand.hbm [shape: f32[8,128], index: 16, kind: output, shape index: {2}]
  %17 = xla_tuple %s14, %s15, %s16
  %s18 = sld [smem:[#allocation0]]
  $region138: #{tpu_custom_call.1} parent=0
    _
  %s20 = ssub.s32 1, %s18
  %s21 = scalar_select 0, %s20, %s18
  $region1: #{tpu_custom_call.1} parent=0
    #allocation3 [shape = 'u8[8192]{0}', space=vmem, size = 0x2000, scoped, tag = 'input window, operand 0, single buffered']
    #allocation4 [shape = 's32[1]{0}', space=sflag, size = 0x4, scoped, tag = 'scoped memory for tpu_custom_call.1']
    #allocation5 [shape = 's32[1]{0}', space=sflag, size = 0x4, scoped, tag = 'scoped memory for tpu_custom_call.1']
    #allocation6 [shape = 'u8[4096]{0}', space=vmem, size = 0x1000, scoped, tag = 'input window, operand 1, single buffered']
    #allocation7 [shape = 's32[1]{0}', space=sflag, size = 0x4, scoped, tag = 'scoped memory for tpu_custom_call.1']
    #allocation8 [shape = 'u8[786432]{0}', space=vmem, size = 0xc0000, scoped, tag = 'input window, operand 2, single buffered']
    #allocation9 [shape = 'u8[3072]{0}', space=vmem, size = 0xc00, scoped, tag = 'input window, operand 3, single buffered']
    #allocation10 [shape = 's32[1]{0}', space=sflag, size = 0x4, scoped, tag = 'scoped memory for tpu_custom_call.1']
    #allocation11 [shape = 'u8[2359296]{0}', space=vmem, size = 0x240000, scoped, tag = 'input window, operand 4, single buffered']
    #allocation12 [shape = 'u8[3072]{0}', space=vmem, size = 0xc00, scoped, tag = 'input window, operand 5, single buffered']
    #allocation13 [shape = 's32[1]{0}', space=sflag, size = 0x4, scoped, tag = 'scoped memory for tpu_custom_call.1']
    #allocation14 [shape = 'u8[786432]{0}', space=vmem, size = 0xc0000, scoped, tag = 'input window, operand 6, single buffered']
    #allocation15 [shape = 'u8[1024]{0}', space=vmem, size = 0x400, scoped, tag = 'input window, operand 7, single buffered']
    #allocation16 [shape = 's32[1]{0}', space=sflag, size = 0x4, scoped, tag = 'scoped memory for tpu_custom_call.1']
    #allocation17 [shape = 'u8[786432]{0}', space=vmem, size = 0xc0000, scoped, tag = 'input window, operand 8, single buffered']
    #allocation18 [shape = 'u8[3072]{0}', space=vmem, size = 0xc00, scoped, tag = 'input window, operand 9, single buffered']
    #allocation19 [shape = 's32[1]{0}', space=sflag, size = 0x4, scoped, tag = 'scoped memory for tpu_custom_call.1']
    #allocation20 [shape = 'u8[2359296]{0}', space=vmem, size = 0x240000, scoped, tag = 'input window, operand 10, single buffered']
    #allocation21 [shape = 'u8[3072]{0}', space=vmem, size = 0xc00, scoped, tag = 'input window, operand 11, single buffered']
    #allocation22 [shape = 's32[1]{0}', space=sflag, size = 0x4, scoped, tag = 'scoped memory for tpu_custom_call.1']
    #allocation23 [shape = 'u8[393216]{0}', space=vmem, size = 0x60000, scoped, tag = 'input window, operand 12, single buffered']
    #allocation24 [shape = 'u8[512]{0}', space=vmem, size = 0x400, scoped, tag = 'input window, operand 13, single buffered']
    #allocation25 [shape = 's32[1]{0}', space=sflag, size = 0x4, scoped, tag = 'scoped memory for tpu_custom_call.1']
    #allocation26 [shape = 'u8[4096]{0}', space=vmem, size = 0x1000, scoped, tag = 'output window, operand 0, single buffered']
    #allocation27 [shape = 'u8[4096]{0}', space=vmem, size = 0x1000, scoped, tag = 'output window, operand 1, single buffered']
    #allocation28 [shape = 's32[1]{0}', space=sflag, size = 0x4, scoped, tag = 'scoped memory for tpu_custom_call.1']
    #allocation29 [shape = 'u8[4096]{0}', space=vmem, size = 0x1000, scoped, tag = 'output window, operand 2, single buffered']
    %22 = vsyncpa [#allocation4], 0
    %23 = vsyncpa [#allocation7], 0
    %24 = vsyncpa [#allocation10], 0
    %25 = vsyncpa [#allocation13], 0
    %26 = vsyncpa [#allocation16], 0
    %27 = vsyncpa [#allocation19], 0
    %28 = vsyncpa [#allocation22], 0
    %29 = vsyncpa [#allocation25], 0
    %30 = vsyncpa [#allocation5], 0
    %31 = vsyncpa [#allocation28], 0
    // Predicated region
    $region2: #{tpu_custom_call.1} parent=1 // pred_check
      _
    $region3: #{tpu_custom_call.1} parent=1 // pred_check_branch
      %33 = sbr.rel (0) target = $region5
    $region4: #{tpu_custom_call.1} parent=1 // pred_region
      %s35 = ssub.s32 256, 256
      %36 = vsyncadd [#allocation4], %s35
      %s38 = sshll.u32 [#allocation3], 4
      %s39 = int_to_ptr.vmem [resolvable:$true] %s38
      %41 = dma.hbm_to_vmem [thread:$0]  %s0, 256, %s39, [#allocation4]
    $region5: #{tpu_custom_call.1} parent=1 // pred_fallthru
      _
    // Predicated region
    $region6: #{tpu_custom_call.1} parent=1 // pred_check
      _
    $region7: #{tpu_custom_call.1} parent=1 // pred_check_branch
      %43 = sbr.rel (0) target = $region9
    $region8: #{tpu_custom_call.1} parent=1 // pred_region
      %s45 = ssub.s32 128, 128
      %46 = vsyncadd [#allocation7], %s45
      %s48 = sshll.u32 [#allocation6], 4
      %s49 = int_to_ptr.vmem [resolvable:$true] %s48
      %51 = dma.hbm_to_vmem [thread:$0]  %s1, 128, %s49, [#allocation7]
    $region9: #{tpu_custom_call.1} parent=1 // pred_fallthru
      _
    // Predicated region
    $region10: #{tpu_custom_call.1} parent=1 // pred_check
      _
    $region11: #{tpu_custom_call.1} parent=1 // pred_check_branch
      %53 = sbr.rel (0) target = $region13
    $region12: #{tpu_custom_call.1} parent=1 // pred_region
      %s55 = ssub.s32 24576, 24576
      %56 = vsyncadd [#allocation7], %s55
      %s57 = sshll.u32 [#allocation8], 4
      %s58 = int_to_ptr.vmem [resolvable:$true] %s57
      %63 = dma.hbm_to_vmem [thread:$0]  %s2, 24576, %s58, [#allocation7], 768, 768, 48
    $region13: #{tpu_custom_call.1} parent=1 // pred_fallthru
      _
    // Predicated region
    $region14: #{tpu_custom_call.1} parent=1 // pred_check
      _
    $region15: #{tpu_custom_call.1} parent=1 // pred_check_branch
      %65 = sbr.rel (0) target = $region17
    $region16: #{tpu_custom_call.1} parent=1 // pred_region
      %s67 = ssub.s32 96, 96
      %68 = vsyncadd [#allocation10], %s67
      %s70 = sshll.u32 [#allocation9], 4
      %s71 = int_to_ptr.vmem [resolvable:$true] %s70
      %73 = dma.hbm_to_vmem [thread:$0]  %s3, 96, %s71, [#allocation10]
    $region17: #{tpu_custom_call.1} parent=1 // pred_fallthru
      _
    // Predicated region
    $region18: #{tpu_custom_call.1} parent=1 // pred_check
      _
    $region19: #{tpu_custom_call.1} parent=1 // pred_check_branch
      %75 = sbr.rel (0) target = $region21
    $region20: #{tpu_custom_call.1} parent=1 // pred_region
      %s77 = ssub.s32 73728, 73728
      %78 = vsyncadd [#allocation10], %s77
      %s79 = sshll.u32 [#allocation11], 4
      %s80 = int_to_ptr.vmem [resolvable:$true] %s79
      %85 = dma.hbm_to_vmem [thread:$0]  %s4, 73728, %s80, [#allocation10], 768, 768, 48
    $region21: #{tpu_custom_call.1} parent=1 // pred_fallthru
      _
    // Predicated region
    $region22: #{tpu_custom_call.1} parent=1 // pred_check
      _
    $region23: #{tpu_custom_call.1} parent=1 // pred_check_branch
      %87 = sbr.rel (0) target = $region25
    $region24: #{tpu_custom_call.1} parent=1 // pred_region
      %s89 = ssub.s32 96, 96
      %90 = vsyncadd [#allocation13], %s89
      %s92 = sshll.u32 [#allocation12], 4
      %s93 = int_to_ptr.vmem [resolvable:$true] %s92
      %95 = dma.hbm_to_vmem [thread:$0]  %s5, 96, %s93, [#allocation13]
    $region25: #{tpu_custom_call.1} parent=1 // pred_fallthru
      _
    // Predicated region
    $region26: #{tpu_custom_call.1} parent=1 // pred_check
      _
    $region27: #{tpu_custom_call.1} parent=1 // pred_check_branch
      %97 = sbr.rel (0) target = $region29
    $region28: #{tpu_custom_call.1} parent=1 // pred_region
      %s99 = ssub.s32 24576, 24576
      %100 = vsyncadd [#allocation13], %s99
      %s101 = sshll.u32 [#allocation14], 4
      %s102 = int_to_ptr.vmem [resolvable:$true] %s101
      %107 = dma.hbm_to_vmem [thread:$0]  %s6, 24576, %s102, [#allocation13], 256, 256, 16
    $region29: #{tpu_custom_call.1} parent=1 // pred_fallthru
      _
    // Predicated region
    $region30: #{tpu_custom_call.1} parent=1 // pred_check
      _
    $region31: #{tpu_custom_call.1} parent=1 // pred_check_branch
      %109 = sbr.rel (0) target = $region33
    $region32: #{tpu_custom_call.1} parent=1 // pred_region
      %s111 = ssub.s32 32, 32
      %112 = vsyncadd [#allocation16], %s111
      %s114 = sshll.u32 [#allocation15], 4
      %s115 = int_to_ptr.vmem [resolvable:$true] %s114
      %117 = dma.hbm_to_vmem [thread:$0]  %s7, 32, %s115, [#allocation16]
    $region33: #{tpu_custom_call.1} parent=1 // pred_fallthru
      _
    // Predicated region
    $region34: #{tpu_custom_call.1} parent=1 // pred_check
      _
    $region35: #{tpu_custom_call.1} parent=1 // pred_check_branch
      %119 = sbr.rel (0) target = $region37
    $region36: #{tpu_custom_call.1} parent=1 // pred_region
      %s121 = ssub.s32 24576, 24576
      %122 = vsyncadd [#allocation16], %s121
      %s123 = sshll.u32 [#allocation17], 4
      %s124 = int_to_ptr.vmem [resolvable:$true] %s123
      %129 = dma.hbm_to_vmem [thread:$0]  %s8, 24576, %s124, [#allocation16], 768, 768, 48
    $region37: #{tpu_custom_call.1} parent=1 // pred_fallthru
      _
    // Predicated region
    $region38: #{tpu_custom_call.1} parent=1 // pred_check
      _
    $region39: #{tpu_custom_call.1} parent=1 // pred_check_branch
      %131 = sbr.rel (0) target = $region41
    $region40: #{tpu_custom_call.1} parent=1 // pred_region
      %s133 = ssub.s32 96, 96
      %134 = vsyncadd [#allocation19], %s133
      %s136 = sshll.u32 [#allocation18], 4
      %s137 = int_to_ptr.vmem [resolvable:$true] %s136
      %139 = dma.hbm_to_vmem [thread:$0]  %s9, 96, %s137, [#allocation19]
    $region41: #{tpu_custom_call.1} parent=1 // pred_fallthru
      _
    // Predicated region
    $region42: #{tpu_custom_call.1} parent=1 // pred_check
      _
    $region43: #{tpu_custom_call.1} parent=1 // pred_check_branch
      %141 = sbr.rel (0) target = $region45
    $region44: #{tpu_custom_call.1} parent=1 // pred_region
      %s143 = ssub.s32 73728, 73728
      %144 = vsyncadd [#allocation19], %s143
      %s145 = sshll.u32 [#allocation20], 4
      %s146 = int_to_ptr.vmem [resolvable:$true] %s145
      %151 = dma.hbm_to_vmem [thread:$0]  %s10, 73728, %s146, [#allocation19], 768, 768, 48
    $region45: #{tpu_custom_call.1} parent=1 // pred_fallthru
      _
    // Predicated region
    $region46: #{tpu_custom_call.1} parent=1 // pred_check
      _
    $region47: #{tpu_custom_call.1} parent=1 // pred_check_branch
      %153 = sbr.rel (0) target = $region49
    $region48: #{tpu_custom_call.1} parent=1 // pred_region
      %s155 = ssub.s32 96, 96
      %156 = vsyncadd [#allocation22], %s155
      %s158 = sshll.u32 [#allocation21], 4
      %s159 = int_to_ptr.vmem [resolvable:$true] %s158
      %161 = dma.hbm_to_vmem [thread:$0]  %s11, 96, %s159, [#allocation22]
    $region49: #{tpu_custom_call.1} parent=1 // pred_fallthru
      _
    // Predicated region
    $region50: #{tpu_custom_call.1} parent=1 // pred_check
      _
    $region51: #{tpu_custom_call.1} parent=1 // pred_check_branch
      %163 = sbr.rel (0) target = $region53
    $region52: #{tpu_custom_call.1} parent=1 // pred_region
      %s165 = ssub.s32 12288, 12288
      %166 = vsyncadd [#allocation22], %s165
      %s167 = sshll.u32 [#allocation23], 4
      %s168 = int_to_ptr.vmem [resolvable:$true] %s167
      %173 = dma.hbm_to_vmem [thread:$0]  %s12, 12288, %s168, [#allocation22], 128, 128, 8
    $region53: #{tpu_custom_call.1} parent=1 // pred_fallthru
      _
    // Predicated region
    $region54: #{tpu_custom_call.1} parent=1 // pred_check
      _
    $region55: #{tpu_custom_call.1} parent=1 // pred_check_branch
      %175 = sbr.rel (0) target = $region57
    $region56: #{tpu_custom_call.1} parent=1 // pred_region
      %s177 = ssub.s32 16, 16
      %178 = vsyncadd [#allocation25], %s177
      %s180 = sshll.u32 [#allocation24], 4
      %s181 = int_to_ptr.vmem [resolvable:$true] %s180
      %183 = dma.hbm_to_vmem [thread:$0]  %s13, 16, %s181, [#allocation25]
    $region57: #{tpu_custom_call.1} parent=1 // pred_fallthru
      _
    // Predicated region
    $region58: #{tpu_custom_call.1} parent=1 // pred_check
      _
    $region59: #{tpu_custom_call.1} parent=1 // pred_check_branch
      %185 = sbr.rel (0) target = $region61
    $region60: #{tpu_custom_call.1} parent=1 // pred_region
      %186 = dma.done [#allocation4], 256
    $region61: #{tpu_custom_call.1} parent=1 // pred_fallthru
      _
    // Predicated region
    $region62: #{tpu_custom_call.1} parent=1 // pred_check
      _
    $region63: #{tpu_custom_call.1} parent=1 // pred_check_branch
      %188 = sbr.rel (0) target = $region65
    $region64: #{tpu_custom_call.1} parent=1 // pred_region
      %189 = dma.done [#allocation7], 128
    $region65: #{tpu_custom_call.1} parent=1 // pred_fallthru
      _
    // Predicated region
    $region66: #{tpu_custom_call.1} parent=1 // pred_check
      _
    $region67: #{tpu_custom_call.1} parent=1 // pred_check_branch
      %191 = sbr.rel (0) target = $region69
    $region68: #{tpu_custom_call.1} parent=1 // pred_region
      %192 = dma.done [#allocation7], 24576
    $region69: #{tpu_custom_call.1} parent=1 // pred_fallthru
      _
    // Predicated region
    $region70: #{tpu_custom_call.1} parent=1 // pred_check
      _
    $region71: #{tpu_custom_call.1} parent=1 // pred_check_branch
      %194 = sbr.rel (0) target = $region73
    $region72: #{tpu_custom_call.1} parent=1 // pred_region
      %195 = dma.done [#allocation10], 96
    $region73: #{tpu_custom_call.1} parent=1 // pred_fallthru
      _
    // Predicated region
    $region74: #{tpu_custom_call.1} parent=1 // pred_check
      _
    $region75: #{tpu_custom_call.1} parent=1 // pred_check_branch
      %197 = sbr.rel (0) target = $region77
    $region76: #{tpu_custom_call.1} parent=1 // pred_region
      %198 = dma.done [#allocation10], 73728
    $region77: #{tpu_custom_call.1} parent=1 // pred_fallthru
      _
    // Predicated region
    $region78: #{tpu_custom_call.1} parent=1 // pred_check
      _
    $region79: #{tpu_custom_call.1} parent=1 // pred_check_branch
      %200 = sbr.rel (0) target = $region81
    $region80: #{tpu_custom_call.1} parent=1 // pred_region
      %201 = dma.done [#allocation13], 96
    $region81: #{tpu_custom_call.1} parent=1 // pred_fallthru
      _
    // Predicated region
    $region82: #{tpu_custom_call.1} parent=1 // pred_check
      _
    $region83: #{tpu_custom_call.1} parent=1 // pred_check_branch
      %203 = sbr.rel (0) target = $region85
    $region84: #{tpu_custom_call.1} parent=1 // pred_region
      %204 = dma.done [#allocation13], 24576
    $region85: #{tpu_custom_call.1} parent=1 // pred_fallthru
      _
    // Predicated region
    $region86: #{tpu_custom_call.1} parent=1 // pred_check
      _
    $region87: #{tpu_custom_call.1} parent=1 // pred_check_branch
      %206 = sbr.rel (0) target = $region89
    $region88: #{tpu_custom_call.1} parent=1 // pred_region
      %207 = dma.done [#allocation16], 32
    $region89: #{tpu_custom_call.1} parent=1 // pred_fallthru
      _
    // Predicated region
    $region90: #{tpu_custom_call.1} parent=1 // pred_check
      _
    $region91: #{tpu_custom_call.1} parent=1 // pred_check_branch
      %209 = sbr.rel (0) target = $region93
    $region92: #{tpu_custom_call.1} parent=1 // pred_region
      %210 = dma.done [#allocation16], 24576
    $region93: #{tpu_custom_call.1} parent=1 // pred_fallthru
      _
    // Predicated region
    $region94: #{tpu_custom_call.1} parent=1 // pred_check
      _
    $region95: #{tpu_custom_call.1} parent=1 // pred_check_branch
      %212 = sbr.rel (0) target = $region97
    $region96: #{tpu_custom_call.1} parent=1 // pred_region
      %213 = dma.done [#allocation19], 96
    $region97: #{tpu_custom_call.1} parent=1 // pred_fallthru
      _
    // Predicated region
    $region98: #{tpu_custom_call.1} parent=1 // pred_check
      _
    $region99: #{tpu_custom_call.1} parent=1 // pred_check_branch
      %215 = sbr.rel (0) target = $region101
    $region100: #{tpu_custom_call.1} parent=1 // pred_region
      %216 = dma.done [#allocation19], 73728
    $region101: #{tpu_custom_call.1} parent=1 // pred_fallthru
      _
    // Predicated region
    $region102: #{tpu_custom_call.1} parent=1 // pred_check
      _
    $region103: #{tpu_custom_call.1} parent=1 // pred_check_branch
      %218 = sbr.rel (0) target = $region105
    $region104: #{tpu_custom_call.1} parent=1 // pred_region
      %219 = dma.done [#allocation22], 96
    $region105: #{tpu_custom_call.1} parent=1 // pred_fallthru
      _
    // Predicated region
    $region106: #{tpu_custom_call.1} parent=1 // pred_check
      _
    $region107: #{tpu_custom_call.1} parent=1 // pred_check_branch
      %221 = sbr.rel (0) target = $region109
    $region108: #{tpu_custom_call.1} parent=1 // pred_region
      %222 = dma.done [#allocation22], 12288
    $region109: #{tpu_custom_call.1} parent=1 // pred_fallthru
      _
    // Predicated region
    $region110: #{tpu_custom_call.1} parent=1 // pred_check
      _
    $region111: #{tpu_custom_call.1} parent=1 // pred_check_branch
      %224 = sbr.rel (0) target = $region113
    $region112: #{tpu_custom_call.1} parent=1 // pred_region
      %225 = dma.done [#allocation25], 16
    $region113: #{tpu_custom_call.1} parent=1 // pred_fallthru
      _
    %v226 = vld [vmem:[#allocation3] sm:$0xff]
    %v227 = vld [vmem:[#allocation3 + $0x8] sm:$0xff]
    %v228 = vld [vmem:[#allocation8] sm:$0xff]
    %v229 = vld [vmem:[#allocation8 + $0x8] sm:$0xff]
    %v230 = vld [vmem:[#allocation8 + $0x10] sm:$0xff]
    %v231 = vld [vmem:[#allocation8 + $0x18] sm:$0xff]
    %v232 = vld [vmem:[#allocation8 + $0x20] sm:$0xff]
    %v233 = vld [vmem:[#allocation8 + $0x28] sm:$0xff]
    %v234 = vld [vmem:[#allocation8 + $0x30] sm:$0xff]
    %v235 = vld [vmem:[#allocation8 + $0x38] sm:$0xff]
    %v236 = vld [vmem:[#allocation8 + $0x40] sm:$0xff]
    %v237 = vld [vmem:[#allocation8 + $0x48] sm:$0xff]
    %v238 = vld [vmem:[#allocation8 + $0x50] sm:$0xff]
    %v239 = vld [vmem:[#allocation8 + $0x58] sm:$0xff]
    %v240 = vld [vmem:[#allocation8 + $0x60] sm:$0xff]
    %v241 = vld [vmem:[#allocation8 + $0x68] sm:$0xff]
    %v242 = vld [vmem:[#allocation8 + $0x70] sm:$0xff]
    %v243 = vld [vmem:[#allocation8 + $0x78] sm:$0xff]
    %v244 = vld [vmem:[#allocation8 + $0x80] sm:$0xff]
    %v245 = vld [vmem:[#allocation8 + $0x88] sm:$0xff]
    %v246 = vld [vmem:[#allocation8 + $0x90] sm:$0xff]
    %v247 = vld [vmem:[#allocation8 + $0x98] sm:$0xff]
    %v248 = vld [vmem:[#allocation8 + $0xa0] sm:$0xff]
    %v249 = vld [vmem:[#allocation8 + $0xa8] sm:$0xff]
    %v250 = vld [vmem:[#allocation8 + $0xb0] sm:$0xff]
    %v251 = vld [vmem:[#allocation8 + $0xb8] sm:$0xff]
    %v252 = vld [vmem:[#allocation8 + $0xc0] sm:$0xff]
    %v253 = vld [vmem:[#allocation8 + $0xc8] sm:$0xff]
    %v254 = vld [vmem:[#allocation8 + $0xd0] sm:$0xff]
    %v255 = vld [vmem:[#allocation8 + $0xd8] sm:$0xff]
    %v256 = vld [vmem:[#allocation8 + $0xe0] sm:$0xff]
    %v257 = vld [vmem:[#allocation8 + $0xe8] sm:$0xff]
    %v258 = vld [vmem:[#allocation8 + $0xf0] sm:$0xff]
    %v259 = vld [vmem:[#allocation8 + $0xf8] sm:$0xff]
    %v260 = vld [vmem:[#allocation8 + $0x100] sm:$0xff]
    %v261 = vld [vmem:[#allocation8 + $0x108] sm:$0xff]
    %v262 = vld [vmem:[#allocation8 + $0x110] sm:$0xff]
    %v263 = vld [vmem:[#allocation8 + $0x118] sm:$0xff]
    %v264 = vld [vmem:[#allocation8 + $0x120] sm:$0xff]
    %v265 = vld [vmem:[#allocation8 + $0x128] sm:$0xff]
    %v266 = vld [vmem:[#allocation8 + $0x130] sm:$0xff]
    %v267 = vld [vmem:[#allocation8 + $0x138] sm:$0xff]
    %v268 = vld [vmem:[#allocation8 + $0x140] sm:$0xff]
    %v269 = vld [vmem:[#allocation8 + $0x148] sm:$0xff]
    %v270 = vld [vmem:[#allocation8 + $0x150] sm:$0xff]
    %v271 = vld [vmem:[#allocation8 + $0x158] sm:$0xff]
    %v272 = vld [vmem:[#allocation8 + $0x160] sm:$0xff]
    %v273 = vld [vmem:[#allocation8 + $0x168] sm:$0xff]
    %v274 = vld [vmem:[#allocation8 + $0x170] sm:$0xff]
    %v275 = vld [vmem:[#allocation8 + $0x178] sm:$0xff]
    %v276 = vld [vmem:[#allocation8 + $0x180] sm:$0xff]
    %v277 = vld [vmem:[#allocation8 + $0x188] sm:$0xff]
    %v278 = vld [vmem:[#allocation8 + $0x190] sm:$0xff]
    %v279 = vld [vmem:[#allocation8 + $0x198] sm:$0xff]
    %v280 = vld [vmem:[#allocation8 + $0x1a0] sm:$0xff]
    %v281 = vld [vmem:[#allocation8 + $0x1a8] sm:$0xff]
    %v282 = vld [vmem:[#allocation8 + $0x1b0] sm:$0xff]
    %v283 = vld [vmem:[#allocation8 + $0x1b8] sm:$0xff]
    %v284 = vld [vmem:[#allocation8 + $0x1c0] sm:$0xff]
    %v285 = vld [vmem:[#allocation8 + $0x1c8] sm:$0xff]
    %v286 = vld [vmem:[#allocation8 + $0x1d0] sm:$0xff]
    %v287 = vld [vmem:[#allocation8 + $0x1d8] sm:$0xff]
    %v288 = vld [vmem:[#allocation8 + $0x1e0] sm:$0xff]
    %v289 = vld [vmem:[#allocation8 + $0x1e8] sm:$0xff]
    %v290 = vld [vmem:[#allocation8 + $0x1f0] sm:$0xff]
    %v291 = vld [vmem:[#allocation8 + $0x1f8] sm:$0xff]
    %v292 = vld [vmem:[#allocation8 + $0x200] sm:$0xff]
    %v293 = vld [vmem:[#allocation8 + $0x208] sm:$0xff]
    %v294 = vld [vmem:[#allocation8 + $0x210] sm:$0xff]
    %v295 = vld [vmem:[#allocation8 + $0x218] sm:$0xff]
    %v296 = vld [vmem:[#allocation8 + $0x220] sm:$0xff]
    %v297 = vld [vmem:[#allocation8 + $0x228] sm:$0xff]
    %v298 = vld [vmem:[#allocation8 + $0x230] sm:$0xff]
    %v299 = vld [vmem:[#allocation8 + $0x238] sm:$0xff]
    %v300 = vld [vmem:[#allocation8 + $0x240] sm:$0xff]
    %v301 = vld [vmem:[#allocation8 + $0x248] sm:$0xff]
    %v302 = vld [vmem:[#allocation8 + $0x250] sm:$0xff]
    %v303 = vld [vmem:[#allocation8 + $0x258] sm:$0xff]
    %v304 = vld [vmem:[#allocation8 + $0x260] sm:$0xff]
    %v305 = vld [vmem:[#allocation8 + $0x268] sm:$0xff]
    %v306 = vld [vmem:[#allocation8 + $0x270] sm:$0xff]
    %v307 = vld [vmem:[#allocation8 + $0x278] sm:$0xff]
    %v308 = vld [vmem:[#allocation8 + $0x280] sm:$0xff]
    %v309 = vld [vmem:[#allocation8 + $0x288] sm:$0xff]
    %v310 = vld [vmem:[#allocation8 + $0x290] sm:$0xff]
    %v311 = vld [vmem:[#allocation8 + $0x298] sm:$0xff]
    %v312 = vld [vmem:[#allocation8 + $0x2a0] sm:$0xff]
    %v313 = vld [vmem:[#allocation8 + $0x2a8] sm:$0xff]
    %v314 = vld [vmem:[#allocation8 + $0x2b0] sm:$0xff]
    %v315 = vld [vmem:[#allocation8 + $0x2b8] sm:$0xff]
    %v316 = vld [vmem:[#allocation8 + $0x2c0] sm:$0xff]
    %v317 = vld [vmem:[#allocation8 + $0x2c8] sm:$0xff]
    %v318 = vld [vmem:[#allocation8 + $0x2d0] sm:$0xff]
    %v319 = vld [vmem:[#allocation8 + $0x2d8] sm:$0xff]
    %v320 = vld [vmem:[#allocation8 + $0x2e0] sm:$0xff]
    %v321 = vld [vmem:[#allocation8 + $0x2e8] sm:$0xff]
    %v322 = vld [vmem:[#allocation8 + $0x2f0] sm:$0xff]
    %v323 = vld [vmem:[#allocation8 + $0x2f8] sm:$0xff]
    %v324 = vld [vmem:[#allocation8 + $0x300] sm:$0xff]
    %v325 = vld [vmem:[#allocation8 + $0x308] sm:$0xff]
    %v326 = vld [vmem:[#allocation8 + $0x310] sm:$0xff]
    %v327 = vld [vmem:[#allocation8 + $0x318] sm:$0xff]
    %v328 = vld [vmem:[#allocation8 + $0x320] sm:$0xff]
    %v329 = vld [vmem:[#allocation8 + $0x328] sm:$0xff]
    %v330 = vld [vmem:[#allocation8 + $0x330] sm:$0xff]
    %v331 = vld [vmem:[#allocation8 + $0x338] sm:$0xff]
    %v332 = vld [vmem:[#allocation8 + $0x340] sm:$0xff]
    %v333 = vld [vmem:[#allocation8 + $0x348] sm:$0xff]
    %v334 = vld [vmem:[#allocation8 + $0x350] sm:$0xff]
    %v335 = vld [vmem:[#allocation8 + $0x358] sm:$0xff]
    %v336 = vld [vmem:[#allocation8 + $0x360] sm:$0xff]
    %v337 = vld [vmem:[#allocation8 + $0x368] sm:$0xff]
    %v338 = vld [vmem:[#allocation8 + $0x370] sm:$0xff]
    %v339 = vld [vmem:[#allocation8 + $0x378] sm:$0xff]
    %v340 = vld [vmem:[#allocation8 + $0x380] sm:$0xff]
    %v341 = vld [vmem:[#allocation8 + $0x388] sm:$0xff]
    %v342 = vld [vmem:[#allocation8 + $0x390] sm:$0xff]
    %v343 = vld [vmem:[#allocation8 + $0x398] sm:$0xff]
    %v344 = vld [vmem:[#allocation8 + $0x3a0] sm:$0xff]
    %v345 = vld [vmem:[#allocation8 + $0x3a8] sm:$0xff]
    %v346 = vld [vmem:[#allocation8 + $0x3b0] sm:$0xff]
    %v347 = vld [vmem:[#allocation8 + $0x3b8] sm:$0xff]
    %v348 = vld [vmem:[#allocation8 + $0x3c0] sm:$0xff]
    %v349 = vld [vmem:[#allocation8 + $0x3c8] sm:$0xff]
    %v350 = vld [vmem:[#allocation8 + $0x3d0] sm:$0xff]
    %v351 = vld [vmem:[#allocation8 + $0x3d8] sm:$0xff]
    %v352 = vld [vmem:[#allocation8 + $0x3e0] sm:$0xff]
    %v353 = vld [vmem:[#allocation8 + $0x3e8] sm:$0xff]
    %v354 = vld [vmem:[#allocation8 + $0x3f0] sm:$0xff]
    %v355 = vld [vmem:[#allocation8 + $0x3f8] sm:$0xff]
    %v356 = vld [vmem:[#allocation8 + $0x400] sm:$0xff]
    %v357 = vld [vmem:[#allocation8 + $0x408] sm:$0xff]
    %v358 = vld [vmem:[#allocation8 + $0x410] sm:$0xff]
    %v359 = vld [vmem:[#allocation8 + $0x418] sm:$0xff]
    %v360 = vld [vmem:[#allocation8 + $0x420] sm:$0xff]
    %v361 = vld [vmem:[#allocation8 + $0x428] sm:$0xff]
    %v362 = vld [vmem:[#allocation8 + $0x430] sm:$0xff]
    %v363 = vld [vmem:[#allocation8 + $0x438] sm:$0xff]
    %v364 = vld [vmem:[#allocation8 + $0x440] sm:$0xff]
    %v365 = vld [vmem:[#allocation8 + $0x448] sm:$0xff]
    %v366 = vld [vmem:[#allocation8 + $0x450] sm:$0xff]
    %v367 = vld [vmem:[#allocation8 + $0x458] sm:$0xff]
    %v368 = vld [vmem:[#allocation8 + $0x460] sm:$0xff]
    %v369 = vld [vmem:[#allocation8 + $0x468] sm:$0xff]
    %v370 = vld [vmem:[#allocation8 + $0x470] sm:$0xff]
    %v371 = vld [vmem:[#allocation8 + $0x478] sm:$0xff]
    %v372 = vld [vmem:[#allocation8 + $0x480] sm:$0xff]
    %v373 = vld [vmem:[#allocation8 + $0x488] sm:$0xff]
    %v374 = vld [vmem:[#allocation8 + $0x490] sm:$0xff]
    %v375 = vld [vmem:[#allocation8 + $0x498] sm:$0xff]
    %v376 = vld [vmem:[#allocation8 + $0x4a0] sm:$0xff]
    %v377 = vld [vmem:[#allocation8 + $0x4a8] sm:$0xff]
    %v378 = vld [vmem:[#allocation8 + $0x4b0] sm:$0xff]
    %v379 = vld [vmem:[#allocation8 + $0x4b8] sm:$0xff]
    %v380 = vld [vmem:[#allocation8 + $0x4c0] sm:$0xff]
    %v381 = vld [vmem:[#allocation8 + $0x4c8] sm:$0xff]
    %v382 = vld [vmem:[#allocation8 + $0x4d0] sm:$0xff]
    %v383 = vld [vmem:[#allocation8 + $0x4d8] sm:$0xff]
    %v384 = vld [vmem:[#allocation8 + $0x4e0] sm:$0xff]
    %v385 = vld [vmem:[#allocation8 + $0x4e8] sm:$0xff]
    %v386 = vld [vmem:[#allocation8 + $0x4f0] sm:$0xff]
    %v387 = vld [vmem:[#allocation8 + $0x4f8] sm:$0xff]
    %v388 = vld [vmem:[#allocation8 + $0x500] sm:$0xff]
    %v389 = vld [vmem:[#allocation8 + $0x508] sm:$0xff]
    %v390 = vld [vmem:[#allocation8 + $0x510] sm:$0xff]
    %v391 = vld [vmem:[#allocation8 + $0x518] sm:$0xff]
    %v392 = vld [vmem:[#allocation8 + $0x520] sm:$0xff]
    %v393 = vld [vmem:[#allocation8 + $0x528] sm:$0xff]
    %v394 = vld [vmem:[#allocation8 + $0x530] sm:$0xff]
    %v395 = vld [vmem:[#allocation8 + $0x538] sm:$0xff]
    %v396 = vld [vmem:[#allocation8 + $0x540] sm:$0xff]
    %v397 = vld [vmem:[#allocation8 + $0x548] sm:$0xff]
    %v398 = vld [vmem:[#allocation8 + $0x550] sm:$0xff]
    %v399 = vld [vmem:[#allocation8 + $0x558] sm:$0xff]
    %v400 = vld [vmem:[#allocation8 + $0x560] sm:$0xff]
    %v401 = vld [vmem:[#allocation8 + $0x568] sm:$0xff]
    %v402 = vld [vmem:[#allocation8 + $0x570] sm:$0xff]
    %v403 = vld [vmem:[#allocation8 + $0x578] sm:$0xff]
    %v404 = vld [vmem:[#allocation8 + $0x580] sm:$0xff]
    %v405 = vld [vmem:[#allocation8 + $0x588] sm:$0xff]
    %v406 = vld [vmem:[#allocation8 + $0x590] sm:$0xff]
    %v407 = vld [vmem:[#allocation8 + $0x598] sm:$0xff]
    %v408 = vld [vmem:[#allocation8 + $0x5a0] sm:$0xff]
    %v409 = vld [vmem:[#allocation8 + $0x5a8] sm:$0xff]
    %v410 = vld [vmem:[#allocation8 + $0x5b0] sm:$0xff]
    %v411 = vld [vmem:[#allocation8 + $0x5b8] sm:$0xff]
    %v412 = vld [vmem:[#allocation8 + $0x5c0] sm:$0xff]
    %v413 = vld [vmem:[#allocation8 + $0x5c8] sm:$0xff]
    %v414 = vld [vmem:[#allocation8 + $0x5d0] sm:$0xff]
    %v415 = vld [vmem:[#allocation8 + $0x5d8] sm:$0xff]
    %v416 = vld [vmem:[#allocation8 + $0x5e0] sm:$0xff]
    %v417 = vld [vmem:[#allocation8 + $0x5e8] sm:$0xff]
    %v418 = vld [vmem:[#allocation8 + $0x5f0] sm:$0xff]
    %v419 = vld [vmem:[#allocation8 + $0x5f8] sm:$0xff]
    %v420 = vld [vmem:[#allocation9] sm:$0x3f]
    %v422 = vlaneseq
    %v423 = vshrl.u32 %v422, 7
    %v424 = vsub.s32 0, %v423
    %v425 = vrot.slane %v420, %v424
    %v426 = vlaneseq
    %v427 = vshrl.u32 %v426, 7
    %v428 = vsub.s32 1, %v427
    %v429 = vrot.slane %v420, %v428
    %v430 = vlaneseq
    %v431 = vshrl.u32 %v430, 7
    %v432 = vsub.s32 2, %v431
    %v433 = vrot.slane %v420, %v432
    %v434 = vlaneseq
    %v435 = vshrl.u32 %v434, 7
    %v436 = vsub.s32 3, %v435
    %v437 = vrot.slane %v420, %v436
    %v438 = vlaneseq
    %v439 = vshrl.u32 %v438, 7
    %v440 = vsub.s32 4, %v439
    %v441 = vrot.slane %v420, %v440
    %v442 = vlaneseq
    %v443 = vshrl.u32 %v442, 7
    %v444 = vsub.s32 5, %v443
    %v445 = vrot.slane %v420, %v444
    %452 = vmatprep.subr.mxu0 %v319
    %453 = vmatpush1.msra.mxu0 %v318
    %454 = vmatprep.subr.mxu0 %v313
    %455 = vmatpush1.msra.mxu0 %v312
    %456 = vmatprep.subr.mxu0 %v307
    %457 = vmatpush1.msra.mxu0 %v306
    %458 = vmatprep.subr.mxu0 %v301
    %459 = vmatpush1.msra.mxu0 %v300
    %460 = vmatprep.subr.mxu0 %v295
    %461 = vmatpush1.msra.mxu0 %v294
    %462 = vmatprep.subr.mxu0 %v289
    %463 = vmatpush1.msra.mxu0 %v288
    %464 = vmatprep.subr.mxu0 %v283
    %465 = vmatpush1.msra.mxu0 %v282
    %466 = vmatprep.subr.mxu0 %v277
    %467 = vmatpush1.msra.mxu0 %v276
    %468 = vmatprep.subr.mxu0 %v271
    %469 = vmatpush1.msra.mxu0 %v270
    %470 = vmatprep.subr.mxu0 %v265
    %471 = vmatpush1.msra.mxu0 %v264
    %472 = vmatprep.subr.mxu0 %v259
    %473 = vmatpush1.msra.mxu0 %v258
    %474 = vmatprep.subr.mxu0 %v253
    %475 = vmatpush1.msra.mxu0 %v252
    %476 = vmatprep.subr.mxu0 %v247
    %477 = vmatpush1.msra.mxu0 %v246
    %478 = vmatprep.subr.mxu0 %v241
    %479 = vmatpush1.msra.mxu0 %v240
    %480 = vmatprep.subr.mxu0 %v235
    %481 = vmatpush1.msra.mxu0 %v234
    %482 = vmatprep.subr.mxu0 %v229
    %483 = vmatpush1.msra.mxu0 %v228
    %484 = vmatprep.subr.mxu0 %v415
    %485 = vmatpush2.msra.mxu0 %v414
    %486 = vmatprep.subr.mxu0 %v409
    %487 = vmatpush2.msra.mxu0 %v408
    %488 = vmatprep.subr.mxu0 %v403
    %489 = vmatpush2.msra.mxu0 %v402
    %490 = vmatprep.subr.mxu0 %v397
    %491 = vmatpush2.msra.mxu0 %v396
    %492 = vmatprep.subr.mxu0 %v391
    %493 = vmatpush2.msra.mxu0 %v390
    %494 = vmatprep.subr.mxu0 %v385
    %495 = vmatpush2.msra.mxu0 %v384
    %496 = vmatprep.subr.mxu0 %v379
    %497 = vmatpush2.msra.mxu0 %v378
    %498 = vmatprep.subr.mxu0 %v373
    %499 = vmatpush2.msra.mxu0 %v372
    %500 = vmatprep.subr.mxu0 %v367
    %501 = vmatpush2.msra.mxu0 %v366
    %502 = vmatprep.subr.mxu0 %v361
    %503 = vmatpush2.msra.mxu0 %v360
    %504 = vmatprep.subr.mxu0 %v355
    %505 = vmatpush2.msra.mxu0 %v354
    %506 = vmatprep.subr.mxu0 %v349
    %507 = vmatpush2.msra.mxu0 %v348
    %508 = vmatprep.subr.mxu0 %v343
    %509 = vmatpush2.msra.mxu0 %v342
    %510 = vmatprep.subr.mxu0 %v337
    %511 = vmatpush2.msra.mxu0 %v336
    %512 = vmatprep.subr.mxu0 %v331
    %513 = vmatpush2.msra.mxu0 %v330
    %514 = vmatprep.subr.mxu0 %v325
    %515 = vmatpush2.msra.mxu0 %v324
    %516 = vmatprep.mubr.f32.mxu0 %v227
    %517 = vmatmul.mubr.f32.gmra.mxu0 %v226
    %v518 = vpop.f32.mrf.mxu0
    %v519 = vadd.f32 %v425, %v518
    %v520 = vpop.f32.mrf.mxu0
    %v521 = vadd.f32 %v429, %v520
    %522 = vdwg.mxu0
    %523 = vmatprep.subr.mxu0 %v321
    %524 = vmatpush1.msra.mxu0 %v320
    %525 = vmatprep.subr.mxu0 %v315
    %526 = vmatpush1.msra.mxu0 %v314
    %527 = vmatprep.subr.mxu0 %v309
    %528 = vmatpush1.msra.mxu0 %v308
    %529 = vmatprep.subr.mxu0 %v303
    %530 = vmatpush1.msra.mxu0 %v302
    %531 = vmatprep.subr.mxu0 %v297
    %532 = vmatpush1.msra.mxu0 %v296
    %533 = vmatprep.subr.mxu0 %v291
    %534 = vmatpush1.msra.mxu0 %v290
    %535 = vmatprep.subr.mxu0 %v285
    %536 = vmatpush1.msra.mxu0 %v284
    %537 = vmatprep.subr.mxu0 %v279
    %538 = vmatpush1.msra.mxu0 %v278
    %539 = vmatprep.subr.mxu0 %v273
    %540 = vmatpush1.msra.mxu0 %v272
    %541 = vmatprep.subr.mxu0 %v267
    %542 = vmatpush1.msra.mxu0 %v266
    %543 = vmatprep.subr.mxu0 %v261
    %544 = vmatpush1.msra.mxu0 %v260
    %545 = vmatprep.subr.mxu0 %v255
    %546 = vmatpush1.msra.mxu0 %v254
    %547 = vmatprep.subr.mxu0 %v249
    %548 = vmatpush1.msra.mxu0 %v248
    %549 = vmatprep.subr.mxu0 %v243
    %550 = vmatpush1.msra.mxu0 %v242
    %551 = vmatprep.subr.mxu0 %v237
    %552 = vmatpush1.msra.mxu0 %v236
    %553 = vmatprep.subr.mxu0 %v231
    %554 = vmatpush1.msra.mxu0 %v230
    %555 = vmatprep.subr.mxu0 %v417
    %556 = vmatpush2.msra.mxu0 %v416
    %557 = vmatprep.subr.mxu0 %v411
    %558 = vmatpush2.msra.mxu0 %v410
    %559 = vmatprep.subr.mxu0 %v405
    %560 = vmatpush2.msra.mxu0 %v404
    %561 = vmatprep.subr.mxu0 %v399
    %562 = vmatpush2.msra.mxu0 %v398
    %563 = vmatprep.subr.mxu0 %v393
    %564 = vmatpush2.msra.mxu0 %v392
    %565 = vmatprep.subr.mxu0 %v387
    %566 = vmatpush2.msra.mxu0 %v386
    %567 = vmatprep.subr.mxu0 %v381
    %568 = vmatpush2.msra.mxu0 %v380
    %569 = vmatprep.subr.mxu0 %v375
    %570 = vmatpush2.msra.mxu0 %v374
    %571 = vmatprep.subr.mxu0 %v369
    %572 = vmatpush2.msra.mxu0 %v368
    %573 = vmatprep.subr.mxu0 %v363
    %574 = vmatpush2.msra.mxu0 %v362
    %575 = vmatprep.subr.mxu0 %v357
    %576 = vmatpush2.msra.mxu0 %v356
    %577 = vmatprep.subr.mxu0 %v351
    %578 = vmatpush2.msra.mxu0 %v350
    %579 = vmatprep.subr.mxu0 %v345
    %580 = vmatpush2.msra.mxu0 %v344
    %581 = vmatprep.subr.mxu0 %v339
    %582 = vmatpush2.msra.mxu0 %v338
    %583 = vmatprep.subr.mxu0 %v333
    %584 = vmatpush2.msra.mxu0 %v332
    %585 = vmatprep.subr.mxu0 %v327
    %586 = vmatpush2.msra.mxu0 %v326
    %587 = vmatprep.mubr.f32.mxu0 %v227
    %588 = vmatmul.mubr.f32.gmra.mxu0 %v226
    %v589 = vpop.f32.mrf.mxu0
    %v590 = vadd.f32 %v433, %v589
    %v591 = vpop.f32.mrf.mxu0
    %v592 = vadd.f32 %v437, %v591
    %593 = vdwg.mxu0
    %594 = vmatprep.subr.mxu0 %v323
    %595 = vmatpush1.msra.mxu0 %v322
    %596 = vmatprep.subr.mxu0 %v317
    %597 = vmatpush1.msra.mxu0 %v316
    %598 = vmatprep.subr.mxu0 %v311
    %599 = vmatpush1.msra.mxu0 %v310
    %600 = vmatprep.subr.mxu0 %v305
    %601 = vmatpush1.msra.mxu0 %v304
    %602 = vmatprep.subr.mxu0 %v299
    %603 = vmatpush1.msra.mxu0 %v298
    %604 = vmatprep.subr.mxu0 %v293
    %605 = vmatpush1.msra.mxu0 %v292
    %606 = vmatprep.subr.mxu0 %v287
    %607 = vmatpush1.msra.mxu0 %v286
    %608 = vmatprep.subr.mxu0 %v281
    %609 = vmatpush1.msra.mxu0 %v280
    %610 = vmatprep.subr.mxu0 %v275
    %611 = vmatpush1.msra.mxu0 %v274
    %612 = vmatprep.subr.mxu0 %v269
    %613 = vmatpush1.msra.mxu0 %v268
    %614 = vmatprep.subr.mxu0 %v263
    %615 = vmatpush1.msra.mxu0 %v262
    %616 = vmatprep.subr.mxu0 %v257
    %617 = vmatpush1.msra.mxu0 %v256
    %618 = vmatprep.subr.mxu0 %v251
    %619 = vmatpush1.msra.mxu0 %v250
    %620 = vmatprep.subr.mxu0 %v245
    %621 = vmatpush1.msra.mxu0 %v244
    %622 = vmatprep.subr.mxu0 %v239
    %623 = vmatpush1.msra.mxu0 %v238
    %624 = vmatprep.subr.mxu0 %v233
    %625 = vmatpush1.msra.mxu0 %v232
    %626 = vmatprep.subr.mxu0 %v419
    %627 = vmatpush2.msra.mxu0 %v418
    %628 = vmatprep.subr.mxu0 %v413
    %629 = vmatpush2.msra.mxu0 %v412
    %630 = vmatprep.subr.mxu0 %v407
    %631 = vmatpush2.msra.mxu0 %v406
    %632 = vmatprep.subr.mxu0 %v401
    %633 = vmatpush2.msra.mxu0 %v400
    %634 = vmatprep.subr.mxu0 %v395
    %635 = vmatpush2.msra.mxu0 %v394
    %636 = vmatprep.subr.mxu0 %v389
    %637 = vmatpush2.msra.mxu0 %v388
    %638 = vmatprep.subr.mxu0 %v383
    %639 = vmatpush2.msra.mxu0 %v382
    %640 = vmatprep.subr.mxu0 %v377
    %641 = vmatpush2.msra.mxu0 %v376
    %642 = vmatprep.subr.mxu0 %v371
    %643 = vmatpush2.msra.mxu0 %v370
    %644 = vmatprep.subr.mxu0 %v365
    %645 = vmatpush2.msra.mxu0 %v364
    %646 = vmatprep.subr.mxu0 %v359
    %647 = vmatpush2.msra.mxu0 %v358
    %648 = vmatprep.subr.mxu0 %v353
    %649 = vmatpush2.msra.mxu0 %v352
    %650 = vmatprep.subr.mxu0 %v347
    %651 = vmatpush2.msra.mxu0 %v346
    %652 = vmatprep.subr.mxu0 %v341
    %653 = vmatpush2.msra.mxu0 %v340
    %654 = vmatprep.subr.mxu0 %v335
    %655 = vmatpush2.msra.mxu0 %v334
    %656 = vmatprep.subr.mxu0 %v329
    %657 = vmatpush2.msra.mxu0 %v328
    %658 = vmatprep.mubr.f32.mxu0 %v227
    %659 = vmatmul.mubr.f32.gmra.mxu0 %v226
    %v660 = vpop.f32.mrf.mxu0
    %v661 = vadd.f32 %v441, %v660
    %v662 = vpop.f32.mrf.mxu0
    %v663 = vadd.f32 %v445, %v662
    %664 = vdwg.mxu0
    %v665 = vmax.f32 %v519, 0.0
    %v666 = vmax.f32 %v521, 0.0
    %v667 = vmax.f32 %v590, 0.0
    %v668 = vmax.f32 %v592, 0.0
    %v669 = vmax.f32 %v661, 0.0
    %v670 = vmax.f32 %v663, 0.0
    %v671 = vld [vmem:[#allocation11] sm:$0xff]
    %v672 = vld [vmem:[#allocation11 + $0x8] sm:$0xff]
    %v673 = vld [vmem:[#allocation11 + $0x10] sm:$0xff]
    %v674 = vld [vmem:[#allocation11 + $0x18] sm:$0xff]
    %v675 = vld [vmem:[#allocation11 + $0x20] sm:$0xff]
    %v676 = vld [vmem:[#allocation11 + $0x28] sm:$0xff]
    %v677 = vld [vmem:[#allocation11 + $0x30] sm:$0xff]
    %v678 = vld [vmem:[#allocation11 + $0x38] sm:$0xff]
    %v679 = vld [vmem:[#allocation11 + $0x40] sm:$0xff]
    %v680 = vld [vmem:[#allocation11 + $0x48] sm:$0xff]
    %v681 = vld [vmem:[#allocation11 + $0x50] sm:$0xff]
    %v682 = vld [vmem:[#allocation11 + $0x58] sm:$0xff]
    %v683 = vld [vmem:[#allocation11 + $0x60] sm:$0xff]
    %v684 = vld [vmem:[#allocation11 + $0x68] sm:$0xff]
    %v685 = vld [vmem:[#allocation11 + $0x70] sm:$0xff]
    %v686 = vld [vmem:[#allocation11 + $0x78] sm:$0xff]
    %v687 = vld [vmem:[#allocation11 + $0x80] sm:$0xff]
    %v688 = vld [vmem:[#allocation11 + $0x88] sm:$0xff]
    %v689 = vld [vmem:[#allocation11 + $0x90] sm:$0xff]
    %v690 = vld [vmem:[#allocation11 + $0x98] sm:$0xff]
    %v691 = vld [vmem:[#allocation11 + $0xa0] sm:$0xff]
    %v692 = vld [vmem:[#allocation11 + $0xa8] sm:$0xff]
    %v693 = vld [vmem:[#allocation11 + $0xb0] sm:$0xff]
    %v694 = vld [vmem:[#allocation11 + $0xb8] sm:$0xff]
    %v695 = vld [vmem:[#allocation11 + $0xc0] sm:$0xff]
    %v696 = vld [vmem:[#allocation11 + $0xc8] sm:$0xff]
    %v697 = vld [vmem:[#allocation11 + $0xd0] sm:$0xff]
    %v698 = vld [vmem:[#allocation11 + $0xd8] sm:$0xff]
    %v699 = vld [vmem:[#allocation11 + $0xe0] sm:$0xff]
    %v700 = vld [vmem:[#allocation11 + $0xe8] sm:$0xff]
    %v701 = vld [vmem:[#allocation11 + $0xf0] sm:$0xff]
    %v702 = vld [vmem:[#allocation11 + $0xf8] sm:$0xff]
    %v703 = vld [vmem:[#allocation11 + $0x100] sm:$0xff]
    %v704 = vld [vmem:[#allocation11 + $0x108] sm:$0xff]
    %v705 = vld [vmem:[#allocation11 + $0x110] sm:$0xff]
    %v706 = vld [vmem:[#allocation11 + $0x118] sm:$0xff]
    %v707 = vld [vmem:[#allocation11 + $0x120] sm:$0xff]
    %v708 = vld [vmem:[#allocation11 + $0x128] sm:$0xff]
    %v709 = vld [vmem:[#allocation11 + $0x130] sm:$0xff]
    %v710 = vld [vmem:[#allocation11 + $0x138] sm:$0xff]
    %v711 = vld [vmem:[#allocation11 + $0x140] sm:$0xff]
    %v712 = vld [vmem:[#allocation11 + $0x148] sm:$0xff]
    %v713 = vld [vmem:[#allocation11 + $0x150] sm:$0xff]
    %v714 = vld [vmem:[#allocation11 + $0x158] sm:$0xff]
    %v715 = vld [vmem:[#allocation11 + $0x160] sm:$0xff]
    %v716 = vld [vmem:[#allocation11 + $0x168] sm:$0xff]
    %v717 = vld [vmem:[#allocation11 + $0x170] sm:$0xff]
    %v718 = vld [vmem:[#allocation11 + $0x178] sm:$0xff]
    %v719 = vld [vmem:[#allocation11 + $0x180] sm:$0xff]
    %v720 = vld [vmem:[#allocation11 + $0x188] sm:$0xff]
    %v721 = vld [vmem:[#allocation11 + $0x190] sm:$0xff]
    %v722 = vld [vmem:[#allocation11 + $0x198] sm:$0xff]
    %v723 = vld [vmem:[#allocation11 + $0x1a0] sm:$0xff]
    %v724 = vld [vmem:[#allocation11 + $0x1a8] sm:$0xff]
    %v725 = vld [vmem:[#allocation11 + $0x1b0] sm:$0xff]
    %v726 = vld [vmem:[#allocation11 + $0x1b8] sm:$0xff]
    %v727 = vld [vmem:[#allocation11 + $0x1c0] sm:$0xff]
    %v728 = vld [vmem:[#allocation11 + $0x1c8] sm:$0xff]
    %v729 = vld [vmem:[#allocation11 + $0x1d0] sm:$0xff]
    %v730 = vld [vmem:[#allocation11 + $0x1d8] sm:$0xff]
    %v731 = vld [vmem:[#allocation11 + $0x1e0] sm:$0xff]
    %v732 = vld [vmem:[#allocation11 + $0x1e8] sm:$0xff]
    %v733 = vld [vmem:[#allocation11 + $0x1f0] sm:$0xff]
    %v734 = vld [vmem:[#allocation11 + $0x1f8] sm:$0xff]
    %v735 = vld [vmem:[#allocation11 + $0x200] sm:$0xff]
    %v736 = vld [vmem:[#allocation11 + $0x208] sm:$0xff]
    %v737 = vld [vmem:[#allocation11 + $0x210] sm:$0xff]
    %v738 = vld [vmem:[#allocation11 + $0x218] sm:$0xff]
    %v739 = vld [vmem:[#allocation11 + $0x220] sm:$0xff]
    %v740 = vld [vmem:[#allocation11 + $0x228] sm:$0xff]
    %v741 = vld [vmem:[#allocation11 + $0x230] sm:$0xff]
    %v742 = vld [vmem:[#allocation11 + $0x238] sm:$0xff]
    %v743 = vld [vmem:[#allocation11 + $0x240] sm:$0xff]
    %v744 = vld [vmem:[#allocation11 + $0x248] sm:$0xff]
    %v745 = vld [vmem:[#allocation11 + $0x250] sm:$0xff]
    %v746 = vld [vmem:[#allocation11 + $0x258] sm:$0xff]
    %v747 = vld [vmem:[#allocation11 + $0x260] sm:$0xff]
    %v748 = vld [vmem:[#allocation11 + $0x268] sm:$0xff]
    %v749 = vld [vmem:[#allocation11 + $0x270] sm:$0xff]
    %v750 = vld [vmem:[#allocation11 + $0x278] sm:$0xff]
    %v751 = vld [vmem:[#allocation11 + $0x280] sm:$0xff]
    %v752 = vld [vmem:[#allocation11 + $0x288] sm:$0xff]
    %v753 = vld [vmem:[#allocation11 + $0x290] sm:$0xff]
    %v754 = vld [vmem:[#allocation11 + $0x298] sm:$0xff]
    %v755 = vld [vmem:[#allocation11 + $0x2a0] sm:$0xff]
    %v756 = vld [vmem:[#allocation11 + $0x2a8] sm:$0xff]
    %v757 = vld [vmem:[#allocation11 + $0x2b0] sm:$0xff]
    %v758 = vld [vmem:[#allocation11 + $0x2b8] sm:$0xff]
    %v759 = vld [vmem:[#allocation11 + $0x2c0] sm:$0xff]
    %v760 = vld [vmem:[#allocation11 + $0x2c8] sm:$0xff]
    %v761 = vld [vmem:[#allocation11 + $0x2d0] sm:$0xff]
    %v762 = vld [vmem:[#allocation11 + $0x2d8] sm:$0xff]
    %v763 = vld [vmem:[#allocation11 + $0x2e0] sm:$0xff]
    %v764 = vld [vmem:[#allocation11 + $0x2e8] sm:$0xff]
    %v765 = vld [vmem:[#allocation11 + $0x2f0] sm:$0xff]
    %v766 = vld [vmem:[#allocation11 + $0x2f8] sm:$0xff]
    %v767 = vld [vmem:[#allocation11 + $0x300] sm:$0xff]
    %v768 = vld [vmem:[#allocation11 + $0x308] sm:$0xff]
    %v769 = vld [vmem:[#allocation11 + $0x310] sm:$0xff]
    %v770 = vld [vmem:[#allocation11 + $0x318] sm:$0xff]
    %v771 = vld [vmem:[#allocation11 + $0x320] sm:$0xff]
    %v772 = vld [vmem:[#allocation11 + $0x328] sm:$0xff]
    %v773 = vld [vmem:[#allocation11 + $0x330] sm:$0xff]
    %v774 = vld [vmem:[#allocation11 + $0x338] sm:$0xff]
    %v775 = vld [vmem:[#allocation11 + $0x340] sm:$0xff]
    %v776 = vld [vmem:[#allocation11 + $0x348] sm:$0xff]
    %v777 = vld [vmem:[#allocation11 + $0x350] sm:$0xff]
    %v778 = vld [vmem:[#allocation11 + $0x358] sm:$0xff]
    %v779 = vld [vmem:[#allocation11 + $0x360] sm:$0xff]
    %v780 = vld [vmem:[#allocation11 + $0x368] sm:$0xff]
    %v781 = vld [vmem:[#allocation11 + $0x370] sm:$0xff]
    %v782 = vld [vmem:[#allocation11 + $0x378] sm:$0xff]
    %v783 = vld [vmem:[#allocation11 + $0x380] sm:$0xff]
    %v784 = vld [vmem:[#allocation11 + $0x388] sm:$0xff]
    %v785 = vld [vmem:[#allocation11 + $0x390] sm:$0xff]
    %v786 = vld [vmem:[#allocation11 + $0x398] sm:$0xff]
    %v787 = vld [vmem:[#allocation11 + $0x3a0] sm:$0xff]
    %v788 = vld [vmem:[#allocation11 + $0x3a8] sm:$0xff]
    %v789 = vld [vmem:[#allocation11 + $0x3b0] sm:$0xff]
    %v790 = vld [vmem:[#allocation11 + $0x3b8] sm:$0xff]
    %v791 = vld [vmem:[#allocation11 + $0x3c0] sm:$0xff]
    %v792 = vld [vmem:[#allocation11 + $0x3c8] sm:$0xff]
    %v793 = vld [vmem:[#allocation11 + $0x3d0] sm:$0xff]
    %v794 = vld [vmem:[#allocation11 + $0x3d8] sm:$0xff]
    %v795 = vld [vmem:[#allocation11 + $0x3e0] sm:$0xff]
    %v796 = vld [vmem:[#allocation11 + $0x3e8] sm:$0xff]
    %v797 = vld [vmem:[#allocation11 + $0x3f0] sm:$0xff]
    %v798 = vld [vmem:[#allocation11 + $0x3f8] sm:$0xff]
    %v799 = vld [vmem:[#allocation11 + $0x400] sm:$0xff]
    %v800 = vld [vmem:[#allocation11 + $0x408] sm:$0xff]
    %v801 = vld [vmem:[#allocation11 + $0x410] sm:$0xff]
    %v802 = vld [vmem:[#allocation11 + $0x418] sm:$0xff]
    %v803 = vld [vmem:[#allocation11 + $0x420] sm:$0xff]
    %v804 = vld [vmem:[#allocation11 + $0x428] sm:$0xff]
    %v805 = vld [vmem:[#allocation11 + $0x430] sm:$0xff]
    %v806 = vld [vmem:[#allocation11 + $0x438] sm:$0xff]
    %v807 = vld [vmem:[#allocation11 + $0x440] sm:$0xff]
    %v808 = vld [vmem:[#allocation11 + $0x448] sm:$0xff]
    %v809 = vld [vmem:[#allocation11 + $0x450] sm:$0xff]
    %v810 = vld [vmem:[#allocation11 + $0x458] sm:$0xff]
    %v811 = vld [vmem:[#allocation11 + $0x460] sm:$0xff]
    %v812 = vld [vmem:[#allocation11 + $0x468] sm:$0xff]
    %v813 = vld [vmem:[#allocation11 + $0x470] sm:$0xff]
    %v814 = vld [vmem:[#allocation11 + $0x478] sm:$0xff]
    %v815 = vld [vmem:[#allocation11 + $0x480] sm:$0xff]
    %v816 = vld [vmem:[#allocation11 + $0x488] sm:$0xff]
    %v817 = vld [vmem:[#allocation11 + $0x490] sm:$0xff]
    %v818 = vld [vmem:[#allocation11 + $0x498] sm:$0xff]
    %v819 = vld [vmem:[#allocation11 + $0x4a0] sm:$0xff]
    %v820 = vld [vmem:[#allocation11 + $0x4a8] sm:$0xff]
    %v821 = vld [vmem:[#allocation11 + $0x4b0] sm:$0xff]
    %v822 = vld [vmem:[#allocation11 + $0x4b8] sm:$0xff]
    %v823 = vld [vmem:[#allocation11 + $0x4c0] sm:$0xff]
    %v824 = vld [vmem:[#allocation11 + $0x4c8] sm:$0xff]
    %v825 = vld [vmem:[#allocation11 + $0x4d0] sm:$0xff]
    %v826 = vld [vmem:[#allocation11 + $0x4d8] sm:$0xff]
    %v827 = vld [vmem:[#allocation11 + $0x4e0] sm:$0xff]
    %v828 = vld [vmem:[#allocation11 + $0x4e8] sm:$0xff]
    %v829 = vld [vmem:[#allocation11 + $0x4f0] sm:$0xff]
    %v830 = vld [vmem:[#allocation11 + $0x4f8] sm:$0xff]
    %v831 = vld [vmem:[#allocation11 + $0x500] sm:$0xff]
    %v832 = vld [vmem:[#allocation11 + $0x508] sm:$0xff]
    %v833 = vld [vmem:[#allocation11 + $0x510] sm:$0xff]
    %v834 = vld [vmem:[#allocation11 + $0x518] sm:$0xff]
    %v835 = vld [vmem:[#allocation11 + $0x520] sm:$0xff]
    %v836 = vld [vmem:[#allocation11 + $0x528] sm:$0xff]
    %v837 = vld [vmem:[#allocation11 + $0x530] sm:$0xff]
    %v838 = vld [vmem:[#allocation11 + $0x538] sm:$0xff]
    %v839 = vld [vmem:[#allocation11 + $0x540] sm:$0xff]
    %v840 = vld [vmem:[#allocation11 + $0x548] sm:$0xff]
    %v841 = vld [vmem:[#allocation11 + $0x550] sm:$0xff]
    %v842 = vld [vmem:[#allocation11 + $0x558] sm:$0xff]
    %v843 = vld [vmem:[#allocation11 + $0x560] sm:$0xff]
    %v844 = vld [vmem:[#allocation11 + $0x568] sm:$0xff]
    %v845 = vld [vmem:[#allocation11 + $0x570] sm:$0xff]
    %v846 = vld [vmem:[#allocation11 + $0x578] sm:$0xff]
    %v847 = vld [vmem:[#allocation11 + $0x580] sm:$0xff]
    %v848 = vld [vmem:[#allocation11 + $0x588] sm:$0xff]
    %v849 = vld [vmem:[#allocation11 + $0x590] sm:$0xff]
    %v850 = vld [vmem:[#allocation11 + $0x598] sm:$0xff]
    %v851 = vld [vmem:[#allocation11 + $0x5a0] sm:$0xff]
    %v852 = vld [vmem:[#allocation11 + $0x5a8] sm:$0xff]
    %v853 = vld [vmem:[#allocation11 + $0x5b0] sm:$0xff]
    %v854 = vld [vmem:[#allocation11 + $0x5b8] sm:$0xff]
    %v855 = vld [vmem:[#allocation11 + $0x5c0] sm:$0xff]
    %v856 = vld [vmem:[#allocation11 + $0x5c8] sm:$0xff]
    %v857 = vld [vmem:[#allocation11 + $0x5d0] sm:$0xff]
    %v858 = vld [vmem:[#allocation11 + $0x5d8] sm:$0xff]
    %v859 = vld [vmem:[#allocation11 + $0x5e0] sm:$0xff]
    %v860 = vld [vmem:[#allocation11 + $0x5e8] sm:$0xff]
    %v861 = vld [vmem:[#allocation11 + $0x5f0] sm:$0xff]
    %v862 = vld [vmem:[#allocation11 + $0x5f8] sm:$0xff]
    %v863 = vld [vmem:[#allocation11 + $0x600] sm:$0xff]
    %v864 = vld [vmem:[#allocation11 + $0x608] sm:$0xff]
    %v865 = vld [vmem:[#allocation11 + $0x610] sm:$0xff]
    %v866 = vld [vmem:[#allocation11 + $0x618] sm:$0xff]
    %v867 = vld [vmem:[#allocation11 + $0x620] sm:$0xff]
    %v868 = vld [vmem:[#allocation11 + $0x628] sm:$0xff]
    %v869 = vld [vmem:[#allocation11 + $0x630] sm:$0xff]
    %v870 = vld [vmem:[#allocation11 + $0x638] sm:$0xff]
    %v871 = vld [vmem:[#allocation11 + $0x640] sm:$0xff]
    %v872 = vld [vmem:[#allocation11 + $0x648] sm:$0xff]
    %v873 = vld [vmem:[#allocation11 + $0x650] sm:$0xff]
    %v874 = vld [vmem:[#allocation11 + $0x658] sm:$0xff]
    %v875 = vld [vmem:[#allocation11 + $0x660] sm:$0xff]
    %v876 = vld [vmem:[#allocation11 + $0x668] sm:$0xff]
    %v877 = vld [vmem:[#allocation11 + $0x670] sm:$0xff]
    %v878 = vld [vmem:[#allocation11 + $0x678] sm:$0xff]
    %v879 = vld [vmem:[#allocation11 + $0x680] sm:$0xff]
    %v880 = vld [vmem:[#allocation11 + $0x688] sm:$0xff]
    %v881 = vld [vmem:[#allocation11 + $0x690] sm:$0xff]
    %v882 = vld [vmem:[#allocation11 + $0x698] sm:$0xff]
    %v883 = vld [vmem:[#allocation11 + $0x6a0] sm:$0xff]
    %v884 = vld [vmem:[#allocation11 + $0x6a8] sm:$0xff]
    %v885 = vld [vmem:[#allocation11 + $0x6b0] sm:$0xff]
    %v886 = vld [vmem:[#allocation11 + $0x6b8] sm:$0xff]
    %v887 = vld [vmem:[#allocation11 + $0x6c0] sm:$0xff]
    %v888 = vld [vmem:[#allocation11 + $0x6c8] sm:$0xff]
    %v889 = vld [vmem:[#allocation11 + $0x6d0] sm:$0xff]
    %v890 = vld [vmem:[#allocation11 + $0x6d8] sm:$0xff]
    %v891 = vld [vmem:[#allocation11 + $0x6e0] sm:$0xff]
    %v892 = vld [vmem:[#allocation11 + $0x6e8] sm:$0xff]
    %v893 = vld [vmem:[#allocation11 + $0x6f0] sm:$0xff]
    %v894 = vld [vmem:[#allocation11 + $0x6f8] sm:$0xff]
    %v895 = vld [vmem:[#allocation11 + $0x700] sm:$0xff]
    %v896 = vld [vmem:[#allocation11 + $0x708] sm:$0xff]
    %v897 = vld [vmem:[#allocation11 + $0x710] sm:$0xff]
    %v898 = vld [vmem:[#allocation11 + $0x718] sm:$0xff]
    %v899 = vld [vmem:[#allocation11 + $0x720] sm:$0xff]
    %v900 = vld [vmem:[#allocation11 + $0x728] sm:$0xff]
    %v901 = vld [vmem:[#allocation11 + $0x730] sm:$0xff]
    %v902 = vld [vmem:[#allocation11 + $0x738] sm:$0xff]
    %v903 = vld [vmem:[#allocation11 + $0x740] sm:$0xff]
    %v904 = vld [vmem:[#allocation11 + $0x748] sm:$0xff]
    %v905 = vld [vmem:[#allocation11 + $0x750] sm:$0xff]
    %v906 = vld [vmem:[#allocation11 + $0x758] sm:$0xff]
    %v907 = vld [vmem:[#allocation11 + $0x760] sm:$0xff]
    %v908 = vld [vmem:[#allocation11 + $0x768] sm:$0xff]
    %v909 = vld [vmem:[#allocation11 + $0x770] sm:$0xff]
    %v910 = vld [vmem:[#allocation11 + $0x778] sm:$0xff]
    %v911 = vld [vmem:[#allocation11 + $0x780] sm:$0xff]
    %v912 = vld [vmem:[#allocation11 + $0x788] sm:$0xff]
    %v913 = vld [vmem:[#allocation11 + $0x790] sm:$0xff]
    %v914 = vld [vmem:[#allocation11 + $0x798] sm:$0xff]
    %v915 = vld [vmem:[#allocation11 + $0x7a0] sm:$0xff]
    %v916 = vld [vmem:[#allocation11 + $0x7a8] sm:$0xff]
    %v917 = vld [vmem:[#allocation11 + $0x7b0] sm:$0xff]
    %v918 = vld [vmem:[#allocation11 + $0x7b8] sm:$0xff]
    %v919 = vld [vmem:[#allocation11 + $0x7c0] sm:$0xff]
    %v920 = vld [vmem:[#allocation11 + $0x7c8] sm:$0xff]
    %v921 = vld [vmem:[#allocation11 + $0x7d0] sm:$0xff]
    %v922 = vld [vmem:[#allocation11 + $0x7d8] sm:$0xff]
    %v923 = vld [vmem:[#allocation11 + $0x7e0] sm:$0xff]
    %v924 = vld [vmem:[#allocation11 + $0x7e8] sm:$0xff]
    %v925 = vld [vmem:[#allocation11 + $0x7f0] sm:$0xff]
    %v926 = vld [vmem:[#allocation11 + $0x7f8] sm:$0xff]
    %v927 = vld [vmem:[#allocation11 + $0x800] sm:$0xff]
    %v928 = vld [vmem:[#allocation11 + $0x808] sm:$0xff]
    %v929 = vld [vmem:[#allocation11 + $0x810] sm:$0xff]
    %v930 = vld [vmem:[#allocation11 + $0x818] sm:$0xff]
    %v931 = vld [vmem:[#allocation11 + $0x820] sm:$0xff]
    %v932 = vld [vmem:[#allocation11 + $0x828] sm:$0xff]
    %v933 = vld [vmem:[#allocation11 + $0x830] sm:$0xff]
    %v934 = vld [vmem:[#allocation11 + $0x838] sm:$0xff]
    %v935 = vld [vmem:[#allocation11 + $0x840] sm:$0xff]
    %v936 = vld [vmem:[#allocation11 + $0x848] sm:$0xff]
    %v937 = vld [vmem:[#allocation11 + $0x850] sm:$0xff]
    %v938 = vld [vmem:[#allocation11 + $0x858] sm:$0xff]
    %v939 = vld [vmem:[#allocation11 + $0x860] sm:$0xff]
    %v940 = vld [vmem:[#allocation11 + $0x868] sm:$0xff]
    %v941 = vld [vmem:[#allocation11 + $0x870] sm:$0xff]
    %v942 = vld [vmem:[#allocation11 + $0x878] sm:$0xff]
    %v943 = vld [vmem:[#allocation11 + $0x880] sm:$0xff]
    %v944 = vld [vmem:[#allocation11 + $0x888] sm:$0xff]
    %v945 = vld [vmem:[#allocation11 + $0x890] sm:$0xff]
    %v946 = vld [vmem:[#allocation11 + $0x898] sm:$0xff]
    %v947 = vld [vmem:[#allocation11 + $0x8a0] sm:$0xff]
    %v948 = vld [vmem:[#allocation11 + $0x8a8] sm:$0xff]
    %v949 = vld [vmem:[#allocation11 + $0x8b0] sm:$0xff]
    %v950 = vld [vmem:[#allocation11 + $0x8b8] sm:$0xff]
    %v951 = vld [vmem:[#allocation11 + $0x8c0] sm:$0xff]
    %v952 = vld [vmem:[#allocation11 + $0x8c8] sm:$0xff]
    %v953 = vld [vmem:[#allocation11 + $0x8d0] sm:$0xff]
    %v954 = vld [vmem:[#allocation11 + $0x8d8] sm:$0xff]
    %v955 = vld [vmem:[#allocation11 + $0x8e0] sm:$0xff]
    %v956 = vld [vmem:[#allocation11 + $0x8e8] sm:$0xff]
    %v957 = vld [vmem:[#allocation11 + $0x8f0] sm:$0xff]
    %v958 = vld [vmem:[#allocation11 + $0x8f8] sm:$0xff]
    %v959 = vld [vmem:[#allocation11 + $0x900] sm:$0xff]
    %v960 = vld [vmem:[#allocation11 + $0x908] sm:$0xff]
    %v961 = vld [vmem:[#allocation11 + $0x910] sm:$0xff]
    %v962 = vld [vmem:[#allocation11 + $0x918] sm:$0xff]
    %v963 = vld [vmem:[#allocation11 + $0x920] sm:$0xff]
    %v964 = vld [vmem:[#allocation11 + $0x928] sm:$0xff]
    %v965 = vld [vmem:[#allocation11 + $0x930] sm:$0xff]
    %v966 = vld [vmem:[#allocation11 + $0x938] sm:$0xff]
    %v967 = vld [vmem:[#allocation11 + $0x940] sm:$0xff]
    %v968 = vld [vmem:[#allocation11 + $0x948] sm:$0xff]
    %v969 = vld [vmem:[#allocation11 + $0x950] sm:$0xff]
    %v970 = vld [vmem:[#allocation11 + $0x958] sm:$0xff]
    %v971 = vld [vmem:[#allocation11 + $0x960] sm:$0xff]
    %v972 = vld [vmem:[#allocation11 + $0x968] sm:$0xff]
    %v973 = vld [vmem:[#allocation11 + $0x970] sm:$0xff]
    %v974 = vld [vmem:[#allocation11 + $0x978] sm:$0xff]
    %v975 = vld [vmem:[#allocation11 + $0x980] sm:$0xff]
    %v976 = vld [vmem:[#allocation11 + $0x988] sm:$0xff]
    %v977 = vld [vmem:[#allocation11 + $0x990] sm:$0xff]
    %v978 = vld [vmem:[#allocation11 + $0x998] sm:$0xff]
    %v979 = vld [vmem:[#allocation11 + $0x9a0] sm:$0xff]
    %v980 = vld [vmem:[#allocation11 + $0x9a8] sm:$0xff]
    %v981 = vld [vmem:[#allocation11 + $0x9b0] sm:$0xff]
    %v982 = vld [vmem:[#allocation11 + $0x9b8] sm:$0xff]
    %v983 = vld [vmem:[#allocation11 + $0x9c0] sm:$0xff]
    %v984 = vld [vmem:[#allocation11 + $0x9c8] sm:$0xff]
    %v985 = vld [vmem:[#allocation11 + $0x9d0] sm:$0xff]
    %v986 = vld [vmem:[#allocation11 + $0x9d8] sm:$0xff]
    %v987 = vld [vmem:[#allocation11 + $0x9e0] sm:$0xff]
    %v988 = vld [vmem:[#allocation11 + $0x9e8] sm:$0xff]
    %v989 = vld [vmem:[#allocation11 + $0x9f0] sm:$0xff]
    %v990 = vld [vmem:[#allocation11 + $0x9f8] sm:$0xff]
    %v991 = vld [vmem:[#allocation11 + $0xa00] sm:$0xff]
    %v992 = vld [vmem:[#allocation11 + $0xa08] sm:$0xff]
    %v993 = vld [vmem:[#allocation11 + $0xa10] sm:$0xff]
    %v994 = vld [vmem:[#allocation11 + $0xa18] sm:$0xff]
    %v995 = vld [vmem:[#allocation11 + $0xa20] sm:$0xff]
    %v996 = vld [vmem:[#allocation11 + $0xa28] sm:$0xff]
    %v997 = vld [vmem:[#allocation11 + $0xa30] sm:$0xff]
    %v998 = vld [vmem:[#allocation11 + $0xa38] sm:$0xff]
    %v999 = vld [vmem:[#allocation11 + $0xa40] sm:$0xff]
    %v1000 = vld [vmem:[#allocation11 + $0xa48] sm:$0xff]
    %v1001 = vld [vmem:[#allocation11 + $0xa50] sm:$0xff]
    %v1002 = vld [vmem:[#allocation11 + $0xa58] sm:$0xff]
    %v1003 = vld [vmem:[#allocation11 + $0xa60] sm:$0xff]
    %v1004 = vld [vmem:[#allocation11 + $0xa68] sm:$0xff]
    %v1005 = vld [vmem:[#allocation11 + $0xa70] sm:$0xff]
    %v1006 = vld [vmem:[#allocation11 + $0xa78] sm:$0xff]
    %v1007 = vld [vmem:[#allocation11 + $0xa80] sm:$0xff]
    %v1008 = vld [vmem:[#allocation11 + $0xa88] sm:$0xff]
    %v1009 = vld [vmem:[#allocation11 + $0xa90] sm:$0xff]
    %v1010 = vld [vmem:[#allocation11 + $0xa98] sm:$0xff]
    %v1011 = vld [vmem:[#allocation11 + $0xaa0] sm:$0xff]
    %v1012 = vld [vmem:[#allocation11 + $0xaa8] sm:$0xff]
    %v1013 = vld [vmem:[#allocation11 + $0xab0] sm:$0xff]
    %v1014 = vld [vmem:[#allocation11 + $0xab8] sm:$0xff]
    %v1015 = vld [vmem:[#allocation11 + $0xac0] sm:$0xff]
    %v1016 = vld [vmem:[#allocation11 + $0xac8] sm:$0xff]
    %v1017 = vld [vmem:[#allocation11 + $0xad0] sm:$0xff]
    %v1018 = vld [vmem:[#allocation11 + $0xad8] sm:$0xff]
    %v1019 = vld [vmem:[#allocation11 + $0xae0] sm:$0xff]
    %v1020 = vld [vmem:[#allocation11 + $0xae8] sm:$0xff]
    %v1021 = vld [vmem:[#allocation11 + $0xaf0] sm:$0xff]
    %v1022 = vld [vmem:[#allocation11 + $0xaf8] sm:$0xff]
    %v1023 = vld [vmem:[#allocation11 + $0xb00] sm:$0xff]
    %v1024 = vld [vmem:[#allocation11 + $0xb08] sm:$0xff]
    %v1025 = vld [vmem:[#allocation11 + $0xb10] sm:$0xff]
    %v1026 = vld [vmem:[#allocation11 + $0xb18] sm:$0xff]
    %v1027 = vld [vmem:[#allocation11 + $0xb20] sm:$0xff]
    %v1028 = vld [vmem:[#allocation11 + $0xb28] sm:$0xff]
    %v1029 = vld [vmem:[#allocation11 + $0xb30] sm:$0xff]
    %v1030 = vld [vmem:[#allocation11 + $0xb38] sm:$0xff]
    %v1031 = vld [vmem:[#allocation11 + $0xb40] sm:$0xff]
    %v1032 = vld [vmem:[#allocation11 + $0xb48] sm:$0xff]
    %v1033 = vld [vmem:[#allocation11 + $0xb50] sm:$0xff]
    %v1034 = vld [vmem:[#allocation11 + $0xb58] sm:$0xff]
    %v1035 = vld [vmem:[#allocation11 + $0xb60] sm:$0xff]
    %v1036 = vld [vmem:[#allocation11 + $0xb68] sm:$0xff]
    %v1037 = vld [vmem:[#allocation11 + $0xb70] sm:$0xff]
    %v1038 = vld [vmem:[#allocation11 + $0xb78] sm:$0xff]
    %v1039 = vld [vmem:[#allocation11 + $0xb80] sm:$0xff]
    %v1040 = vld [vmem:[#allocation11 + $0xb88] sm:$0xff]
    %v1041 = vld [vmem:[#allocation11 + $0xb90] sm:$0xff]
    %v1042 = vld [vmem:[#allocation11 + $0xb98] sm:$0xff]
    %v1043 = vld [vmem:[#allocation11 + $0xba0] sm:$0xff]
    %v1044 = vld [vmem:[#allocation11 + $0xba8] sm:$0xff]
    %v1045 = vld [vmem:[#allocation11 + $0xbb0] sm:$0xff]
    %v1046 = vld [vmem:[#allocation11 + $0xbb8] sm:$0xff]
    %v1047 = vld [vmem:[#allocation11 + $0xbc0] sm:$0xff]
    %v1048 = vld [vmem:[#allocation11 + $0xbc8] sm:$0xff]
    %v1049 = vld [vmem:[#allocation11 + $0xbd0] sm:$0xff]
    %v1050 = vld [vmem:[#allocation11 + $0xbd8] sm:$0xff]
    %v1051 = vld [vmem:[#allocation11 + $0xbe0] sm:$0xff]
    %v1052 = vld [vmem:[#allocation11 + $0xbe8] sm:$0xff]
    %v1053 = vld [vmem:[#allocation11 + $0xbf0] sm:$0xff]
    %v1054 = vld [vmem:[#allocation11 + $0xbf8] sm:$0xff]
    %v1055 = vld [vmem:[#allocation11 + $0xc00] sm:$0xff]
    %v1056 = vld [vmem:[#allocation11 + $0xc08] sm:$0xff]
    %v1057 = vld [vmem:[#allocation11 + $0xc10] sm:$0xff]
    %v1058 = vld [vmem:[#allocation11 + $0xc18] sm:$0xff]
    %v1059 = vld [vmem:[#allocation11 + $0xc20] sm:$0xff]
    %v1060 = vld [vmem:[#allocation11 + $0xc28] sm:$0xff]
    %v1061 = vld [vmem:[#allocation11 + $0xc30] sm:$0xff]
    %v1062 = vld [vmem:[#allocation11 + $0xc38] sm:$0xff]
    %v1063 = vld [vmem:[#allocation11 + $0xc40] sm:$0xff]
    %v1064 = vld [vmem:[#allocation11 + $0xc48] sm:$0xff]
    %v1065 = vld [vmem:[#allocation11 + $0xc50] sm:$0xff]
    %v1066 = vld [vmem:[#allocation11 + $0xc58] sm:$0xff]
    %v1067 = vld [vmem:[#allocation11 + $0xc60] sm:$0xff]
    %v1068 = vld [vmem:[#allocation11 + $0xc68] sm:$0xff]
    %v1069 = vld [vmem:[#allocation11 + $0xc70] sm:$0xff]
    %v1070 = vld [vmem:[#allocation11 + $0xc78] sm:$0xff]
    %v1071 = vld [vmem:[#allocation11 + $0xc80] sm:$0xff]
    %v1072 = vld [vmem:[#allocation11 + $0xc88] sm:$0xff]
    %v1073 = vld [vmem:[#allocation11 + $0xc90] sm:$0xff]
    %v1074 = vld [vmem:[#allocation11 + $0xc98] sm:$0xff]
    %v1075 = vld [vmem:[#allocation11 + $0xca0] sm:$0xff]
    %v1076 = vld [vmem:[#allocation11 + $0xca8] sm:$0xff]
    %v1077 = vld [vmem:[#allocation11 + $0xcb0] sm:$0xff]
    %v1078 = vld [vmem:[#allocation11 + $0xcb8] sm:$0xff]
    %v1079 = vld [vmem:[#allocation11 + $0xcc0] sm:$0xff]
    %v1080 = vld [vmem:[#allocation11 + $0xcc8] sm:$0xff]
    %v1081 = vld [vmem:[#allocation11 + $0xcd0] sm:$0xff]
    %v1082 = vld [vmem:[#allocation11 + $0xcd8] sm:$0xff]
    %v1083 = vld [vmem:[#allocation11 + $0xce0] sm:$0xff]
    %v1084 = vld [vmem:[#allocation11 + $0xce8] sm:$0xff]
    %v1085 = vld [vmem:[#allocation11 + $0xcf0] sm:$0xff]
    %v1086 = vld [vmem:[#allocation11 + $0xcf8] sm:$0xff]
    %v1087 = vld [vmem:[#allocation11 + $0xd00] sm:$0xff]
    %v1088 = vld [vmem:[#allocation11 + $0xd08] sm:$0xff]
    %v1089 = vld [vmem:[#allocation11 + $0xd10] sm:$0xff]
    %v1090 = vld [vmem:[#allocation11 + $0xd18] sm:$0xff]
    %v1091 = vld [vmem:[#allocation11 + $0xd20] sm:$0xff]
    %v1092 = vld [vmem:[#allocation11 + $0xd28] sm:$0xff]
    %v1093 = vld [vmem:[#allocation11 + $0xd30] sm:$0xff]
    %v1094 = vld [vmem:[#allocation11 + $0xd38] sm:$0xff]
    %v1095 = vld [vmem:[#allocation11 + $0xd40] sm:$0xff]
    %v1096 = vld [vmem:[#allocation11 + $0xd48] sm:$0xff]
    %v1097 = vld [vmem:[#allocation11 + $0xd50] sm:$0xff]
    %v1098 = vld [vmem:[#allocation11 + $0xd58] sm:$0xff]
    %v1099 = vld [vmem:[#allocation11 + $0xd60] sm:$0xff]
    %v1100 = vld [vmem:[#allocation11 + $0xd68] sm:$0xff]
    %v1101 = vld [vmem:[#allocation11 + $0xd70] sm:$0xff]
    %v1102 = vld [vmem:[#allocation11 + $0xd78] sm:$0xff]
    %v1103 = vld [vmem:[#allocation11 + $0xd80] sm:$0xff]
    %v1104 = vld [vmem:[#allocation11 + $0xd88] sm:$0xff]
    %v1105 = vld [vmem:[#allocation11 + $0xd90] sm:$0xff]
    %v1106 = vld [vmem:[#allocation11 + $0xd98] sm:$0xff]
    %v1107 = vld [vmem:[#allocation11 + $0xda0] sm:$0xff]
    %v1108 = vld [vmem:[#allocation11 + $0xda8] sm:$0xff]
    %v1109 = vld [vmem:[#allocation11 + $0xdb0] sm:$0xff]
    %v1110 = vld [vmem:[#allocation11 + $0xdb8] sm:$0xff]
    %v1111 = vld [vmem:[#allocation11 + $0xdc0] sm:$0xff]
    %v1112 = vld [vmem:[#allocation11 + $0xdc8] sm:$0xff]
    %v1113 = vld [vmem:[#allocation11 + $0xdd0] sm:$0xff]
    %v1114 = vld [vmem:[#allocation11 + $0xdd8] sm:$0xff]
    %v1115 = vld [vmem:[#allocation11 + $0xde0] sm:$0xff]
    %v1116 = vld [vmem:[#allocation11 + $0xde8] sm:$0xff]
    %v1117 = vld [vmem:[#allocation11 + $0xdf0] sm:$0xff]
    %v1118 = vld [vmem:[#allocation11 + $0xdf8] sm:$0xff]
    %v1119 = vld [vmem:[#allocation11 + $0xe00] sm:$0xff]
    %v1120 = vld [vmem:[#allocation11 + $0xe08] sm:$0xff]
    %v1121 = vld [vmem:[#allocation11 + $0xe10] sm:$0xff]
    %v1122 = vld [vmem:[#allocation11 + $0xe18] sm:$0xff]
    %v1123 = vld [vmem:[#allocation11 + $0xe20] sm:$0xff]
    %v1124 = vld [vmem:[#allocation11 + $0xe28] sm:$0xff]
    %v1125 = vld [vmem:[#allocation11 + $0xe30] sm:$0xff]
    %v1126 = vld [vmem:[#allocation11 + $0xe38] sm:$0xff]
    %v1127 = vld [vmem:[#allocation11 + $0xe40] sm:$0xff]
    %v1128 = vld [vmem:[#allocation11 + $0xe48] sm:$0xff]
    %v1129 = vld [vmem:[#allocation11 + $0xe50] sm:$0xff]
    %v1130 = vld [vmem:[#allocation11 + $0xe58] sm:$0xff]
    %v1131 = vld [vmem:[#allocation11 + $0xe60] sm:$0xff]
    %v1132 = vld [vmem:[#allocation11 + $0xe68] sm:$0xff]
    %v1133 = vld [vmem:[#allocation11 + $0xe70] sm:$0xff]
    %v1134 = vld [vmem:[#allocation11 + $0xe78] sm:$0xff]
    %v1135 = vld [vmem:[#allocation11 + $0xe80] sm:$0xff]
    %v1136 = vld [vmem:[#allocation11 + $0xe88] sm:$0xff]
    %v1137 = vld [vmem:[#allocation11 + $0xe90] sm:$0xff]
    %v1138 = vld [vmem:[#allocation11 + $0xe98] sm:$0xff]
    %v1139 = vld [vmem:[#allocation11 + $0xea0] sm:$0xff]
    %v1140 = vld [vmem:[#allocation11 + $0xea8] sm:$0xff]
    %v1141 = vld [vmem:[#allocation11 + $0xeb0] sm:$0xff]
    %v1142 = vld [vmem:[#allocation11 + $0xeb8] sm:$0xff]
    %v1143 = vld [vmem:[#allocation11 + $0xec0] sm:$0xff]
    %v1144 = vld [vmem:[#allocation11 + $0xec8] sm:$0xff]
    %v1145 = vld [vmem:[#allocation11 + $0xed0] sm:$0xff]
    %v1146 = vld [vmem:[#allocation11 + $0xed8] sm:$0xff]
    %v1147 = vld [vmem:[#allocation11 + $0xee0] sm:$0xff]
    %v1148 = vld [vmem:[#allocation11 + $0xee8] sm:$0xff]
    %v1149 = vld [vmem:[#allocation11 + $0xef0] sm:$0xff]
    %v1150 = vld [vmem:[#allocation11 + $0xef8] sm:$0xff]
    %v1151 = vld [vmem:[#allocation11 + $0xf00] sm:$0xff]
    %v1152 = vld [vmem:[#allocation11 + $0xf08] sm:$0xff]
    %v1153 = vld [vmem:[#allocation11 + $0xf10] sm:$0xff]
    %v1154 = vld [vmem:[#allocation11 + $0xf18] sm:$0xff]
    %v1155 = vld [vmem:[#allocation11 + $0xf20] sm:$0xff]
    %v1156 = vld [vmem:[#allocation11 + $0xf28] sm:$0xff]
    %v1157 = vld [vmem:[#allocation11 + $0xf30] sm:$0xff]
    %v1158 = vld [vmem:[#allocation11 + $0xf38] sm:$0xff]
    %v1159 = vld [vmem:[#allocation11 + $0xf40] sm:$0xff]
    %v1160 = vld [vmem:[#allocation11 + $0xf48] sm:$0xff]
    %v1161 = vld [vmem:[#allocation11 + $0xf50] sm:$0xff]
    %v1162 = vld [vmem:[#allocation11 + $0xf58] sm:$0xff]
    %v1163 = vld [vmem:[#allocation11 + $0xf60] sm:$0xff]
    %v1164 = vld [vmem:[#allocation11 + $0xf68] sm:$0xff]
    %v1165 = vld [vmem:[#allocation11 + $0xf70] sm:$0xff]
    %v1166 = vld [vmem:[#allocation11 + $0xf78] sm:$0xff]
    %v1167 = vld [vmem:[#allocation11 + $0xf80] sm:$0xff]
    %v1168 = vld [vmem:[#allocation11 + $0xf88] sm:$0xff]
    %v1169 = vld [vmem:[#allocation11 + $0xf90] sm:$0xff]
    %v1170 = vld [vmem:[#allocation11 + $0xf98] sm:$0xff]
    %v1171 = vld [vmem:[#allocation11 + $0xfa0] sm:$0xff]
    %v1172 = vld [vmem:[#allocation11 + $0xfa8] sm:$0xff]
    %v1173 = vld [vmem:[#allocation11 + $0xfb0] sm:$0xff]
    %v1174 = vld [vmem:[#allocation11 + $0xfb8] sm:$0xff]
    %v1175 = vld [vmem:[#allocation11 + $0xfc0] sm:$0xff]
    %v1176 = vld [vmem:[#allocation11 + $0xfc8] sm:$0xff]
    %v1177 = vld [vmem:[#allocation11 + $0xfd0] sm:$0xff]
    %v1178 = vld [vmem:[#allocation11 + $0xfd8] sm:$0xff]
    %v1179 = vld [vmem:[#allocation11 + $0xfe0] sm:$0xff]
    %v1180 = vld [vmem:[#allocation11 + $0xfe8] sm:$0xff]
    %v1181 = vld [vmem:[#allocation11 + $0xff0] sm:$0xff]
    %v1182 = vld [vmem:[#allocation11 + $0xff8] sm:$0xff]
    %v1183 = vld [vmem:[#allocation11 + $0x1000] sm:$0xff]
    %v1184 = vld [vmem:[#allocation11 + $0x1008] sm:$0xff]
    %v1185 = vld [vmem:[#allocation11 + $0x1010] sm:$0xff]
    %v1186 = vld [vmem:[#allocation11 + $0x1018] sm:$0xff]
    %v1187 = vld [vmem:[#allocation11 + $0x1020] sm:$0xff]
    %v1188 = vld [vmem:[#allocation11 + $0x1028] sm:$0xff]
    %v1189 = vld [vmem:[#allocation11 + $0x1030] sm:$0xff]
    %v1190 = vld [vmem:[#allocation11 + $0x1038] sm:$0xff]
    %v1191 = vld [vmem:[#allocation11 + $0x1040] sm:$0xff]
    %v1192 = vld [vmem:[#allocation11 + $0x1048] sm:$0xff]
    %v1193 = vld [vmem:[#allocation11 + $0x1050] sm:$0xff]
    %v1194 = vld [vmem:[#allocation11 + $0x1058] sm:$0xff]
    %v1195 = vld [vmem:[#allocation11 + $0x1060] sm:$0xff]
    %v1196 = vld [vmem:[#allocation11 + $0x1068] sm:$0xff]
    %v1197 = vld [vmem:[#allocation11 + $0x1070] sm:$0xff]
    %v1198 = vld [vmem:[#allocation11 + $0x1078] sm:$0xff]
    %v1199 = vld [vmem:[#allocation11 + $0x1080] sm:$0xff]
    %v1200 = vld [vmem:[#allocation11 + $0x1088] sm:$0xff]
    %v1201 = vld [vmem:[#allocation11 + $0x1090] sm:$0xff]
    %v1202 = vld [vmem:[#allocation11 + $0x1098] sm:$0xff]
    %v1203 = vld [vmem:[#allocation11 + $0x10a0] sm:$0xff]
    %v1204 = vld [vmem:[#allocation11 + $0x10a8] sm:$0xff]
    %v1205 = vld [vmem:[#allocation11 + $0x10b0] sm:$0xff]
    %v1206 = vld [vmem:[#allocation11 + $0x10b8] sm:$0xff]
    %v1207 = vld [vmem:[#allocation11 + $0x10c0] sm:$0xff]
    %v1208 = vld [vmem:[#allocation11 + $0x10c8] sm:$0xff]
    %v1209 = vld [vmem:[#allocation11 + $0x10d0] sm:$0xff]
    %v1210 = vld [vmem:[#allocation11 + $0x10d8] sm:$0xff]
    %v1211 = vld [vmem:[#allocation11 + $0x10e0] sm:$0xff]
    %v1212 = vld [vmem:[#allocation11 + $0x10e8] sm:$0xff]
    %v1213 = vld [vmem:[#allocation11 + $0x10f0] sm:$0xff]
    %v1214 = vld [vmem:[#allocation11 + $0x10f8] sm:$0xff]
    %v1215 = vld [vmem:[#allocation11 + $0x1100] sm:$0xff]
    %v1216 = vld [vmem:[#allocation11 + $0x1108] sm:$0xff]
    %v1217 = vld [vmem:[#allocation11 + $0x1110] sm:$0xff]
    %v1218 = vld [vmem:[#allocation11 + $0x1118] sm:$0xff]
    %v1219 = vld [vmem:[#allocation11 + $0x1120] sm:$0xff]
    %v1220 = vld [vmem:[#allocation11 + $0x1128] sm:$0xff]
    %v1221 = vld [vmem:[#allocation11 + $0x1130] sm:$0xff]
    %v1222 = vld [vmem:[#allocation11 + $0x1138] sm:$0xff]
    %v1223 = vld [vmem:[#allocation11 + $0x1140] sm:$0xff]
    %v1224 = vld [vmem:[#allocation11 + $0x1148] sm:$0xff]
    %v1225 = vld [vmem:[#allocation11 + $0x1150] sm:$0xff]
    %v1226 = vld [vmem:[#allocation11 + $0x1158] sm:$0xff]
    %v1227 = vld [vmem:[#allocation11 + $0x1160] sm:$0xff]
    %v1228 = vld [vmem:[#allocation11 + $0x1168] sm:$0xff]
    %v1229 = vld [vmem:[#allocation11 + $0x1170] sm:$0xff]
    %v1230 = vld [vmem:[#allocation11 + $0x1178] sm:$0xff]
    %v1231 = vld [vmem:[#allocation11 + $0x1180] sm:$0xff]
    %v1232 = vld [vmem:[#allocation11 + $0x1188] sm:$0xff]
    %v1233 = vld [vmem:[#allocation11 + $0x1190] sm:$0xff]
    %v1234 = vld [vmem:[#allocation11 + $0x1198] sm:$0xff]
    %v1235 = vld [vmem:[#allocation11 + $0x11a0] sm:$0xff]
    %v1236 = vld [vmem:[#allocation11 + $0x11a8] sm:$0xff]
    %v1237 = vld [vmem:[#allocation11 + $0x11b0] sm:$0xff]
    %v1238 = vld [vmem:[#allocation11 + $0x11b8] sm:$0xff]
    %v1239 = vld [vmem:[#allocation11 + $0x11c0] sm:$0xff]
    %v1240 = vld [vmem:[#allocation11 + $0x11c8] sm:$0xff]
    %v1241 = vld [vmem:[#allocation11 + $0x11d0] sm:$0xff]
    %v1242 = vld [vmem:[#allocation11 + $0x11d8] sm:$0xff]
    %v1243 = vld [vmem:[#allocation11 + $0x11e0] sm:$0xff]
    %v1244 = vld [vmem:[#allocation11 + $0x11e8] sm:$0xff]
    %v1245 = vld [vmem:[#allocation11 + $0x11f0] sm:$0xff]
    %v1246 = vld [vmem:[#allocation11 + $0x11f8] sm:$0xff]
    %v1247 = vld [vmem:[#allocation12] sm:$0x3f]
    %v1249 = vlaneseq
    %v1250 = vshrl.u32 %v1249, 7
    %v1251 = vsub.s32 0, %v1250
    %v1252 = vrot.slane %v1247, %v1251
    %v1253 = vlaneseq
    %v1254 = vshrl.u32 %v1253, 7
    %v1255 = vsub.s32 1, %v1254
    %v1256 = vrot.slane %v1247, %v1255
    %v1257 = vlaneseq
    %v1258 = vshrl.u32 %v1257, 7
    %v1259 = vsub.s32 2, %v1258
    %v1260 = vrot.slane %v1247, %v1259
    %v1261 = vlaneseq
    %v1262 = vshrl.u32 %v1261, 7
    %v1263 = vsub.s32 3, %v1262
    %v1264 = vrot.slane %v1247, %v1263
    %v1265 = vlaneseq
    %v1266 = vshrl.u32 %v1265, 7
    %v1267 = vsub.s32 4, %v1266
    %v1268 = vrot.slane %v1247, %v1267
    %v1269 = vlaneseq
    %v1270 = vshrl.u32 %v1269, 7
    %v1271 = vsub.s32 5, %v1270
    %v1272 = vrot.slane %v1247, %v1271
    %1279 = vmatprep.subr.mxu0 %v762
    %1280 = vmatpush1.msra.mxu0 %v761
    %1281 = vmatprep.subr.mxu0 %v756
    %1282 = vmatpush1.msra.mxu0 %v755
    %1283 = vmatprep.subr.mxu0 %v750
    %1284 = vmatpush1.msra.mxu0 %v749
    %1285 = vmatprep.subr.mxu0 %v744
    %1286 = vmatpush1.msra.mxu0 %v743
    %1287 = vmatprep.subr.mxu0 %v738
    %1288 = vmatpush1.msra.mxu0 %v737
    %1289 = vmatprep.subr.mxu0 %v732
    %1290 = vmatpush1.msra.mxu0 %v731
    %1291 = vmatprep.subr.mxu0 %v726
    %1292 = vmatpush1.msra.mxu0 %v725
    %1293 = vmatprep.subr.mxu0 %v720
    %1294 = vmatpush1.msra.mxu0 %v719
    %1295 = vmatprep.subr.mxu0 %v714
    %1296 = vmatpush1.msra.mxu0 %v713
    %1297 = vmatprep.subr.mxu0 %v708
    %1298 = vmatpush1.msra.mxu0 %v707
    %1299 = vmatprep.subr.mxu0 %v702
    %1300 = vmatpush1.msra.mxu0 %v701
    %1301 = vmatprep.subr.mxu0 %v696
    %1302 = vmatpush1.msra.mxu0 %v695
    %1303 = vmatprep.subr.mxu0 %v690
    %1304 = vmatpush1.msra.mxu0 %v689
    %1305 = vmatprep.subr.mxu0 %v684
    %1306 = vmatpush1.msra.mxu0 %v683
    %1307 = vmatprep.subr.mxu0 %v678
    %1308 = vmatpush1.msra.mxu0 %v677
    %1309 = vmatprep.subr.mxu0 %v672
    %1310 = vmatpush1.msra.mxu0 %v671
    %1311 = vmatprep.subr.mxu0 %v858
    %1312 = vmatpush2.msra.mxu0 %v857
    %1313 = vmatprep.subr.mxu0 %v852
    %1314 = vmatpush2.msra.mxu0 %v851
    %1315 = vmatprep.subr.mxu0 %v846
    %1316 = vmatpush2.msra.mxu0 %v845
    %1317 = vmatprep.subr.mxu0 %v840
    %1318 = vmatpush2.msra.mxu0 %v839
    %1319 = vmatprep.subr.mxu0 %v834
    %1320 = vmatpush2.msra.mxu0 %v833
    %1321 = vmatprep.subr.mxu0 %v828
    %1322 = vmatpush2.msra.mxu0 %v827
    %1323 = vmatprep.subr.mxu0 %v822
    %1324 = vmatpush2.msra.mxu0 %v821
    %1325 = vmatprep.subr.mxu0 %v816
    %1326 = vmatpush2.msra.mxu0 %v815
    %1327 = vmatprep.subr.mxu0 %v810
    %1328 = vmatpush2.msra.mxu0 %v809
    %1329 = vmatprep.subr.mxu0 %v804
    %1330 = vmatpush2.msra.mxu0 %v803
    %1331 = vmatprep.subr.mxu0 %v798
    %1332 = vmatpush2.msra.mxu0 %v797
    %1333 = vmatprep.subr.mxu0 %v792
    %1334 = vmatpush2.msra.mxu0 %v791
    %1335 = vmatprep.subr.mxu0 %v786
    %1336 = vmatpush2.msra.mxu0 %v785
    %1337 = vmatprep.subr.mxu0 %v780
    %1338 = vmatpush2.msra.mxu0 %v779
    %1339 = vmatprep.subr.mxu0 %v774
    %1340 = vmatpush2.msra.mxu0 %v773
    %1341 = vmatprep.subr.mxu0 %v768
    %1342 = vmatpush2.msra.mxu0 %v767
    %1343 = vmatprep.mubr.f32.mxu0 %v666
    %1344 = vmatmul.mubr.f32.gmra.mxu0 %v665
    %v1345 = vpop.f32.mrf.mxu0
    %v1346 = vadd.f32 %v1252, %v1345
    %v1347 = vpop.f32.mrf.mxu0
    %v1348 = vadd.f32 %v1256, %v1347
    %1349 = vdwg.mxu0
    %1350 = vmatprep.subr.mxu0 %v954
    %1351 = vmatpush1.msra.mxu0 %v953
    %1352 = vmatprep.subr.mxu0 %v948
    %1353 = vmatpush1.msra.mxu0 %v947
    %1354 = vmatprep.subr.mxu0 %v942
    %1355 = vmatpush1.msra.mxu0 %v941
    %1356 = vmatprep.subr.mxu0 %v936
    %1357 = vmatpush1.msra.mxu0 %v935
    %1358 = vmatprep.subr.mxu0 %v930
    %1359 = vmatpush1.msra.mxu0 %v929
    %1360 = vmatprep.subr.mxu0 %v924
    %1361 = vmatpush1.msra.mxu0 %v923
    %1362 = vmatprep.subr.mxu0 %v918
    %1363 = vmatpush1.msra.mxu0 %v917
    %1364 = vmatprep.subr.mxu0 %v912
    %1365 = vmatpush1.msra.mxu0 %v911
    %1366 = vmatprep.subr.mxu0 %v906
    %1367 = vmatpush1.msra.mxu0 %v905
    %1368 = vmatprep.subr.mxu0 %v900
    %1369 = vmatpush1.msra.mxu0 %v899
    %1370 = vmatprep.subr.mxu0 %v894
    %1371 = vmatpush1.msra.mxu0 %v893
    %1372 = vmatprep.subr.mxu0 %v888
    %1373 = vmatpush1.msra.mxu0 %v887
    %1374 = vmatprep.subr.mxu0 %v882
    %1375 = vmatpush1.msra.mxu0 %v881
    %1376 = vmatprep.subr.mxu0 %v876
    %1377 = vmatpush1.msra.mxu0 %v875
    %1378 = vmatprep.subr.mxu0 %v870
    %1379 = vmatpush1.msra.mxu0 %v869
    %1380 = vmatprep.subr.mxu0 %v864
    %1381 = vmatpush1.msra.mxu0 %v863
    %1382 = vmatprep.subr.mxu0 %v1050
    %1383 = vmatpush2.msra.mxu0 %v1049
    %1384 = vmatprep.subr.mxu0 %v1044
    %1385 = vmatpush2.msra.mxu0 %v1043
    %1386 = vmatprep.subr.mxu0 %v1038
    %1387 = vmatpush2.msra.mxu0 %v1037
    %1388 = vmatprep.subr.mxu0 %v1032
    %1389 = vmatpush2.msra.mxu0 %v1031
    %1390 = vmatprep.subr.mxu0 %v1026
    %1391 = vmatpush2.msra.mxu0 %v1025
    %1392 = vmatprep.subr.mxu0 %v1020
    %1393 = vmatpush2.msra.mxu0 %v1019
    %1394 = vmatprep.subr.mxu0 %v1014
    %1395 = vmatpush2.msra.mxu0 %v1013
    %1396 = vmatprep.subr.mxu0 %v1008
    %1397 = vmatpush2.msra.mxu0 %v1007
    %1398 = vmatprep.subr.mxu0 %v1002
    %1399 = vmatpush2.msra.mxu0 %v1001
    %1400 = vmatprep.subr.mxu0 %v996
    %1401 = vmatpush2.msra.mxu0 %v995
    %1402 = vmatprep.subr.mxu0 %v990
    %1403 = vmatpush2.msra.mxu0 %v989
    %1404 = vmatprep.subr.mxu0 %v984
    %1405 = vmatpush2.msra.mxu0 %v983
    %1406 = vmatprep.subr.mxu0 %v978
    %1407 = vmatpush2.msra.mxu0 %v977
    %1408 = vmatprep.subr.mxu0 %v972
    %1409 = vmatpush2.msra.mxu0 %v971
    %1410 = vmatprep.subr.mxu0 %v966
    %1411 = vmatpush2.msra.mxu0 %v965
    %1412 = vmatprep.subr.mxu0 %v960
    %1413 = vmatpush2.msra.mxu0 %v959
    %1414 = vmatprep.mubr.f32.mxu0 %v668
    %1415 = vmatmul.mubr.f32.gmra.mxu0 %v667
    %v1416 = vpop.f32.mrf.mxu0
    %v1417 = vadd.f32 %v1346, %v1416
    %v1418 = vpop.f32.mrf.mxu0
    %v1419 = vadd.f32 %v1348, %v1418
    %1420 = vdwg.mxu0
    %1421 = vmatprep.subr.mxu0 %v1146
    %1422 = vmatpush1.msra.mxu0 %v1145
    %1423 = vmatprep.subr.mxu0 %v1140
    %1424 = vmatpush1.msra.mxu0 %v1139
    %1425 = vmatprep.subr.mxu0 %v1134
    %1426 = vmatpush1.msra.mxu0 %v1133
    %1427 = vmatprep.subr.mxu0 %v1128
    %1428 = vmatpush1.msra.mxu0 %v1127
    %1429 = vmatprep.subr.mxu0 %v1122
    %1430 = vmatpush1.msra.mxu0 %v1121
    %1431 = vmatprep.subr.mxu0 %v1116
    %1432 = vmatpush1.msra.mxu0 %v1115
    %1433 = vmatprep.subr.mxu0 %v1110
    %1434 = vmatpush1.msra.mxu0 %v1109
    %1435 = vmatprep.subr.mxu0 %v1104
    %1436 = vmatpush1.msra.mxu0 %v1103
    %1437 = vmatprep.subr.mxu0 %v1098
    %1438 = vmatpush1.msra.mxu0 %v1097
    %1439 = vmatprep.subr.mxu0 %v1092
    %1440 = vmatpush1.msra.mxu0 %v1091
    %1441 = vmatprep.subr.mxu0 %v1086
    %1442 = vmatpush1.msra.mxu0 %v1085
    %1443 = vmatprep.subr.mxu0 %v1080
    %1444 = vmatpush1.msra.mxu0 %v1079
    %1445 = vmatprep.subr.mxu0 %v1074
    %1446 = vmatpush1.msra.mxu0 %v1073
    %1447 = vmatprep.subr.mxu0 %v1068
    %1448 = vmatpush1.msra.mxu0 %v1067
    %1449 = vmatprep.subr.mxu0 %v1062
    %1450 = vmatpush1.msra.mxu0 %v1061
    %1451 = vmatprep.subr.mxu0 %v1056
    %1452 = vmatpush1.msra.mxu0 %v1055
    %1453 = vmatprep.subr.mxu0 %v1242
    %1454 = vmatpush2.msra.mxu0 %v1241
    %1455 = vmatprep.subr.mxu0 %v1236
    %1456 = vmatpush2.msra.mxu0 %v1235
    %1457 = vmatprep.subr.mxu0 %v1230
    %1458 = vmatpush2.msra.mxu0 %v1229
    %1459 = vmatprep.subr.mxu0 %v1224
    %1460 = vmatpush2.msra.mxu0 %v1223
    %1461 = vmatprep.subr.mxu0 %v1218
    %1462 = vmatpush2.msra.mxu0 %v1217
    %1463 = vmatprep.subr.mxu0 %v1212
    %1464 = vmatpush2.msra.mxu0 %v1211
    %1465 = vmatprep.subr.mxu0 %v1206
    %1466 = vmatpush2.msra.mxu0 %v1205
    %1467 = vmatprep.subr.mxu0 %v1200
    %1468 = vmatpush2.msra.mxu0 %v1199
    %1469 = vmatprep.subr.mxu0 %v1194
    %1470 = vmatpush2.msra.mxu0 %v1193
    %1471 = vmatprep.subr.mxu0 %v1188
    %1472 = vmatpush2.msra.mxu0 %v1187
    %1473 = vmatprep.subr.mxu0 %v1182
    %1474 = vmatpush2.msra.mxu0 %v1181
    %1475 = vmatprep.subr.mxu0 %v1176
    %1476 = vmatpush2.msra.mxu0 %v1175
    %1477 = vmatprep.subr.mxu0 %v1170
    %1478 = vmatpush2.msra.mxu0 %v1169
    %1479 = vmatprep.subr.mxu0 %v1164
    %1480 = vmatpush2.msra.mxu0 %v1163
    %1481 = vmatprep.subr.mxu0 %v1158
    %1482 = vmatpush2.msra.mxu0 %v1157
    %1483 = vmatprep.subr.mxu0 %v1152
    %1484 = vmatpush2.msra.mxu0 %v1151
    %1485 = vmatprep.mubr.f32.mxu0 %v670
    %1486 = vmatmul.mubr.f32.gmra.mxu0 %v669
    %v1487 = vpop.f32.mrf.mxu0
    %v1488 = vadd.f32 %v1417, %v1487
    %v1489 = vpop.f32.mrf.mxu0
    %v1490 = vadd.f32 %v1419, %v1489
    %1491 = vdwg.mxu0
    %1492 = vmatprep.subr.mxu0 %v764
    %1493 = vmatpush1.msra.mxu0 %v763
    %1494 = vmatprep.subr.mxu0 %v758
    %1495 = vmatpush1.msra.mxu0 %v757
    %1496 = vmatprep.subr.mxu0 %v752
    %1497 = vmatpush1.msra.mxu0 %v751
    %1498 = vmatprep.subr.mxu0 %v746
    %1499 = vmatpush1.msra.mxu0 %v745
    %1500 = vmatprep.subr.mxu0 %v740
    %1501 = vmatpush1.msra.mxu0 %v739
    %1502 = vmatprep.subr.mxu0 %v734
    %1503 = vmatpush1.msra.mxu0 %v733
    %1504 = vmatprep.subr.mxu0 %v728
    %1505 = vmatpush1.msra.mxu0 %v727
    %1506 = vmatprep.subr.mxu0 %v722
    %1507 = vmatpush1.msra.mxu0 %v721
    %1508 = vmatprep.subr.mxu0 %v716
    %1509 = vmatpush1.msra.mxu0 %v715
    %1510 = vmatprep.subr.mxu0 %v710
    %1511 = vmatpush1.msra.mxu0 %v709
    %1512 = vmatprep.subr.mxu0 %v704
    %1513 = vmatpush1.msra.mxu0 %v703
    %1514 = vmatprep.subr.mxu0 %v698
    %1515 = vmatpush1.msra.mxu0 %v697
    %1516 = vmatprep.subr.mxu0 %v692
    %1517 = vmatpush1.msra.mxu0 %v691
    %1518 = vmatprep.subr.mxu0 %v686
    %1519 = vmatpush1.msra.mxu0 %v685
    %1520 = vmatprep.subr.mxu0 %v680
    %1521 = vmatpush1.msra.mxu0 %v679
    %1522 = vmatprep.subr.mxu0 %v674
    %1523 = vmatpush1.msra.mxu0 %v673
    %1524 = vmatprep.subr.mxu0 %v860
    %1525 = vmatpush2.msra.mxu0 %v859
    %1526 = vmatprep.subr.mxu0 %v854
    %1527 = vmatpush2.msra.mxu0 %v853
    %1528 = vmatprep.subr.mxu0 %v848
    %1529 = vmatpush2.msra.mxu0 %v847
    %1530 = vmatprep.subr.mxu0 %v842
    %1531 = vmatpush2.msra.mxu0 %v841
    %1532 = vmatprep.subr.mxu0 %v836
    %1533 = vmatpush2.msra.mxu0 %v835
    %1534 = vmatprep.subr.mxu0 %v830
    %1535 = vmatpush2.msra.mxu0 %v829
    %1536 = vmatprep.subr.mxu0 %v824
    %1537 = vmatpush2.msra.mxu0 %v823
    %1538 = vmatprep.subr.mxu0 %v818
    %1539 = vmatpush2.msra.mxu0 %v817
    %1540 = vmatprep.subr.mxu0 %v812
    %1541 = vmatpush2.msra.mxu0 %v811
    %1542 = vmatprep.subr.mxu0 %v806
    %1543 = vmatpush2.msra.mxu0 %v805
    %1544 = vmatprep.subr.mxu0 %v800
    %1545 = vmatpush2.msra.mxu0 %v799
    %1546 = vmatprep.subr.mxu0 %v794
    %1547 = vmatpush2.msra.mxu0 %v793
    %1548 = vmatprep.subr.mxu0 %v788
    %1549 = vmatpush2.msra.mxu0 %v787
    %1550 = vmatprep.subr.mxu0 %v782
    %1551 = vmatpush2.msra.mxu0 %v781
    %1552 = vmatprep.subr.mxu0 %v776
    %1553 = vmatpush2.msra.mxu0 %v775
    %1554 = vmatprep.subr.mxu0 %v770
    %1555 = vmatpush2.msra.mxu0 %v769
    %1556 = vmatprep.mubr.f32.mxu0 %v666
    %1557 = vmatmul.mubr.f32.gmra.mxu0 %v665
    %v1558 = vpop.f32.mrf.mxu0
    %v1559 = vadd.f32 %v1260, %v1558
    %v1560 = vpop.f32.mrf.mxu0
    %v1561 = vadd.f32 %v1264, %v1560
    %1562 = vdwg.mxu0
    %1563 = vmatprep.subr.mxu0 %v956
    %1564 = vmatpush1.msra.mxu0 %v955
    %1565 = vmatprep.subr.mxu0 %v950
    %1566 = vmatpush1.msra.mxu0 %v949
    %1567 = vmatprep.subr.mxu0 %v944
    %1568 = vmatpush1.msra.mxu0 %v943
    %1569 = vmatprep.subr.mxu0 %v938
    %1570 = vmatpush1.msra.mxu0 %v937
    %1571 = vmatprep.subr.mxu0 %v932
    %1572 = vmatpush1.msra.mxu0 %v931
    %1573 = vmatprep.subr.mxu0 %v926
    %1574 = vmatpush1.msra.mxu0 %v925
    %1575 = vmatprep.subr.mxu0 %v920
    %1576 = vmatpush1.msra.mxu0 %v919
    %1577 = vmatprep.subr.mxu0 %v914
    %1578 = vmatpush1.msra.mxu0 %v913
    %1579 = vmatprep.subr.mxu0 %v908
    %1580 = vmatpush1.msra.mxu0 %v907
    %1581 = vmatprep.subr.mxu0 %v902
    %1582 = vmatpush1.msra.mxu0 %v901
    %1583 = vmatprep.subr.mxu0 %v896
    %1584 = vmatpush1.msra.mxu0 %v895
    %1585 = vmatprep.subr.mxu0 %v890
    %1586 = vmatpush1.msra.mxu0 %v889
    %1587 = vmatprep.subr.mxu0 %v884
    %1588 = vmatpush1.msra.mxu0 %v883
    %1589 = vmatprep.subr.mxu0 %v878
    %1590 = vmatpush1.msra.mxu0 %v877
    %1591 = vmatprep.subr.mxu0 %v872
    %1592 = vmatpush1.msra.mxu0 %v871
    %1593 = vmatprep.subr.mxu0 %v866
    %1594 = vmatpush1.msra.mxu0 %v865
    %1595 = vmatprep.subr.mxu0 %v1052
    %1596 = vmatpush2.msra.mxu0 %v1051
    %1597 = vmatprep.subr.mxu0 %v1046
    %1598 = vmatpush2.msra.mxu0 %v1045
    %1599 = vmatprep.subr.mxu0 %v1040
    %1600 = vmatpush2.msra.mxu0 %v1039
    %1601 = vmatprep.subr.mxu0 %v1034
    %1602 = vmatpush2.msra.mxu0 %v1033
    %1603 = vmatprep.subr.mxu0 %v1028
    %1604 = vmatpush2.msra.mxu0 %v1027
    %1605 = vmatprep.subr.mxu0 %v1022
    %1606 = vmatpush2.msra.mxu0 %v1021
    %1607 = vmatprep.subr.mxu0 %v1016
    %1608 = vmatpush2.msra.mxu0 %v1015
    %1609 = vmatprep.subr.mxu0 %v1010
    %1610 = vmatpush2.msra.mxu0 %v1009
    %1611 = vmatprep.subr.mxu0 %v1004
    %1612 = vmatpush2.msra.mxu0 %v1003
    %1613 = vmatprep.subr.mxu0 %v998
    %1614 = vmatpush2.msra.mxu0 %v997
    %1615 = vmatprep.subr.mxu0 %v992
    %1616 = vmatpush2.msra.mxu0 %v991
    %1617 = vmatprep.subr.mxu0 %v986
    %1618 = vmatpush2.msra.mxu0 %v985
    %1619 = vmatprep.subr.mxu0 %v980
    %1620 = vmatpush2.msra.mxu0 %v979
    %1621 = vmatprep.subr.mxu0 %v974
    %1622 = vmatpush2.msra.mxu0 %v973
    %1623 = vmatprep.subr.mxu0 %v968
    %1624 = vmatpush2.msra.mxu0 %v967
    %1625 = vmatprep.subr.mxu0 %v962
    %1626 = vmatpush2.msra.mxu0 %v961
    %1627 = vmatprep.mubr.f32.mxu0 %v668
    %1628 = vmatmul.mubr.f32.gmra.mxu0 %v667
    %v1629 = vpop.f32.mrf.mxu0
    %v1630 = vadd.f32 %v1559, %v1629
    %v1631 = vpop.f32.mrf.mxu0
    %v1632 = vadd.f32 %v1561, %v1631
    %1633 = vdwg.mxu0
    %1634 = vmatprep.subr.mxu0 %v1148
    %1635 = vmatpush1.msra.mxu0 %v1147
    %1636 = vmatprep.subr.mxu0 %v1142
    %1637 = vmatpush1.msra.mxu0 %v1141
    %1638 = vmatprep.subr.mxu0 %v1136
    %1639 = vmatpush1.msra.mxu0 %v1135
    %1640 = vmatprep.subr.mxu0 %v1130
    %1641 = vmatpush1.msra.mxu0 %v1129
    %1642 = vmatprep.subr.mxu0 %v1124
    %1643 = vmatpush1.msra.mxu0 %v1123
    %1644 = vmatprep.subr.mxu0 %v1118
    %1645 = vmatpush1.msra.mxu0 %v1117
    %1646 = vmatprep.subr.mxu0 %v1112
    %1647 = vmatpush1.msra.mxu0 %v1111
    %1648 = vmatprep.subr.mxu0 %v1106
    %1649 = vmatpush1.msra.mxu0 %v1105
    %1650 = vmatprep.subr.mxu0 %v1100
    %1651 = vmatpush1.msra.mxu0 %v1099
    %1652 = vmatprep.subr.mxu0 %v1094
    %1653 = vmatpush1.msra.mxu0 %v1093
    %1654 = vmatprep.subr.mxu0 %v1088
    %1655 = vmatpush1.msra.mxu0 %v1087
    %1656 = vmatprep.subr.mxu0 %v1082
    %1657 = vmatpush1.msra.mxu0 %v1081
    %1658 = vmatprep.subr.mxu0 %v1076
    %1659 = vmatpush1.msra.mxu0 %v1075
    %1660 = vmatprep.subr.mxu0 %v1070
    %1661 = vmatpush1.msra.mxu0 %v1069
    %1662 = vmatprep.subr.mxu0 %v1064
    %1663 = vmatpush1.msra.mxu0 %v1063
    %1664 = vmatprep.subr.mxu0 %v1058
    %1665 = vmatpush1.msra.mxu0 %v1057
    %1666 = vmatprep.subr.mxu0 %v1244
    %1667 = vmatpush2.msra.mxu0 %v1243
    %1668 = vmatprep.subr.mxu0 %v1238
    %1669 = vmatpush2.msra.mxu0 %v1237
    %1670 = vmatprep.subr.mxu0 %v1232
    %1671 = vmatpush2.msra.mxu0 %v1231
    %1672 = vmatprep.subr.mxu0 %v1226
    %1673 = vmatpush2.msra.mxu0 %v1225
    %1674 = vmatprep.subr.mxu0 %v1220
    %1675 = vmatpush2.msra.mxu0 %v1219
    %1676 = vmatprep.subr.mxu0 %v1214
    %1677 = vmatpush2.msra.mxu0 %v1213
    %1678 = vmatprep.subr.mxu0 %v1208
    %1679 = vmatpush2.msra.mxu0 %v1207
    %1680 = vmatprep.subr.mxu0 %v1202
    %1681 = vmatpush2.msra.mxu0 %v1201
    %1682 = vmatprep.subr.mxu0 %v1196
    %1683 = vmatpush2.msra.mxu0 %v1195
    %1684 = vmatprep.subr.mxu0 %v1190
    %1685 = vmatpush2.msra.mxu0 %v1189
    %1686 = vmatprep.subr.mxu0 %v1184
    %1687 = vmatpush2.msra.mxu0 %v1183
    %1688 = vmatprep.subr.mxu0 %v1178
    %1689 = vmatpush2.msra.mxu0 %v1177
    %1690 = vmatprep.subr.mxu0 %v1172
    %1691 = vmatpush2.msra.mxu0 %v1171
    %1692 = vmatprep.subr.mxu0 %v1166
    %1693 = vmatpush2.msra.mxu0 %v1165
    %1694 = vmatprep.subr.mxu0 %v1160
    %1695 = vmatpush2.msra.mxu0 %v1159
    %1696 = vmatprep.subr.mxu0 %v1154
    %1697 = vmatpush2.msra.mxu0 %v1153
    %1698 = vmatprep.mubr.f32.mxu0 %v670
    %1699 = vmatmul.mubr.f32.gmra.mxu0 %v669
    %v1700 = vpop.f32.mrf.mxu0
    %v1701 = vadd.f32 %v1630, %v1700
    %v1702 = vpop.f32.mrf.mxu0
    %v1703 = vadd.f32 %v1632, %v1702
    %1704 = vdwg.mxu0
    %1705 = vmatprep.subr.mxu0 %v766
    %1706 = vmatpush1.msra.mxu0 %v765
    %1707 = vmatprep.subr.mxu0 %v760
    %1708 = vmatpush1.msra.mxu0 %v759
    %1709 = vmatprep.subr.mxu0 %v754
    %1710 = vmatpush1.msra.mxu0 %v753
    %1711 = vmatprep.subr.mxu0 %v748
    %1712 = vmatpush1.msra.mxu0 %v747
    %1713 = vmatprep.subr.mxu0 %v742
    %1714 = vmatpush1.msra.mxu0 %v741
    %1715 = vmatprep.subr.mxu0 %v736
    %1716 = vmatpush1.msra.mxu0 %v735
    %1717 = vmatprep.subr.mxu0 %v730
    %1718 = vmatpush1.msra.mxu0 %v729
    %1719 = vmatprep.subr.mxu0 %v724
    %1720 = vmatpush1.msra.mxu0 %v723
    %1721 = vmatprep.subr.mxu0 %v718
    %1722 = vmatpush1.msra.mxu0 %v717
    %1723 = vmatprep.subr.mxu0 %v712
    %1724 = vmatpush1.msra.mxu0 %v711
    %1725 = vmatprep.subr.mxu0 %v706
    %1726 = vmatpush1.msra.mxu0 %v705
    %1727 = vmatprep.subr.mxu0 %v700
    %1728 = vmatpush1.msra.mxu0 %v699
    %1729 = vmatprep.subr.mxu0 %v694
    %1730 = vmatpush1.msra.mxu0 %v693
    %1731 = vmatprep.subr.mxu0 %v688
    %1732 = vmatpush1.msra.mxu0 %v687
    %1733 = vmatprep.subr.mxu0 %v682
    %1734 = vmatpush1.msra.mxu0 %v681
    %1735 = vmatprep.subr.mxu0 %v676
    %1736 = vmatpush1.msra.mxu0 %v675
    %1737 = vmatprep.subr.mxu0 %v862
    %1738 = vmatpush2.msra.mxu0 %v861
    %1739 = vmatprep.subr.mxu0 %v856
    %1740 = vmatpush2.msra.mxu0 %v855
    %1741 = vmatprep.subr.mxu0 %v850
    %1742 = vmatpush2.msra.mxu0 %v849
    %1743 = vmatprep.subr.mxu0 %v844
    %1744 = vmatpush2.msra.mxu0 %v843
    %1745 = vmatprep.subr.mxu0 %v838
    %1746 = vmatpush2.msra.mxu0 %v837
    %1747 = vmatprep.subr.mxu0 %v832
    %1748 = vmatpush2.msra.mxu0 %v831
    %1749 = vmatprep.subr.mxu0 %v826
    %1750 = vmatpush2.msra.mxu0 %v825
    %1751 = vmatprep.subr.mxu0 %v820
    %1752 = vmatpush2.msra.mxu0 %v819
    %1753 = vmatprep.subr.mxu0 %v814
    %1754 = vmatpush2.msra.mxu0 %v813
    %1755 = vmatprep.subr.mxu0 %v808
    %1756 = vmatpush2.msra.mxu0 %v807
    %1757 = vmatprep.subr.mxu0 %v802
    %1758 = vmatpush2.msra.mxu0 %v801
    %1759 = vmatprep.subr.mxu0 %v796
    %1760 = vmatpush2.msra.mxu0 %v795
    %1761 = vmatprep.subr.mxu0 %v790
    %1762 = vmatpush2.msra.mxu0 %v789
    %1763 = vmatprep.subr.mxu0 %v784
    %1764 = vmatpush2.msra.mxu0 %v783
    %1765 = vmatprep.subr.mxu0 %v778
    %1766 = vmatpush2.msra.mxu0 %v777
    %1767 = vmatprep.subr.mxu0 %v772
    %1768 = vmatpush2.msra.mxu0 %v771
    %1769 = vmatprep.mubr.f32.mxu0 %v666
    %1770 = vmatmul.mubr.f32.gmra.mxu0 %v665
    %v1771 = vpop.f32.mrf.mxu0
    %v1772 = vadd.f32 %v1268, %v1771
    %v1773 = vpop.f32.mrf.mxu0
    %v1774 = vadd.f32 %v1272, %v1773
    %1775 = vdwg.mxu0
    %1776 = vmatprep.subr.mxu0 %v958
    %1777 = vmatpush1.msra.mxu0 %v957
    %1778 = vmatprep.subr.mxu0 %v952
    %1779 = vmatpush1.msra.mxu0 %v951
    %1780 = vmatprep.subr.mxu0 %v946
    %1781 = vmatpush1.msra.mxu0 %v945
    %1782 = vmatprep.subr.mxu0 %v940
    %1783 = vmatpush1.msra.mxu0 %v939
    %1784 = vmatprep.subr.mxu0 %v934
    %1785 = vmatpush1.msra.mxu0 %v933
    %1786 = vmatprep.subr.mxu0 %v928
    %1787 = vmatpush1.msra.mxu0 %v927
    %1788 = vmatprep.subr.mxu0 %v922
    %1789 = vmatpush1.msra.mxu0 %v921
    %1790 = vmatprep.subr.mxu0 %v916
    %1791 = vmatpush1.msra.mxu0 %v915
    %1792 = vmatprep.subr.mxu0 %v910
    %1793 = vmatpush1.msra.mxu0 %v909
    %1794 = vmatprep.subr.mxu0 %v904
    %1795 = vmatpush1.msra.mxu0 %v903
    %1796 = vmatprep.subr.mxu0 %v898
    %1797 = vmatpush1.msra.mxu0 %v897
    %1798 = vmatprep.subr.mxu0 %v892
    %1799 = vmatpush1.msra.mxu0 %v891
    %1800 = vmatprep.subr.mxu0 %v886
    %1801 = vmatpush1.msra.mxu0 %v885
    %1802 = vmatprep.subr.mxu0 %v880
    %1803 = vmatpush1.msra.mxu0 %v879
    %1804 = vmatprep.subr.mxu0 %v874
    %1805 = vmatpush1.msra.mxu0 %v873
    %1806 = vmatprep.subr.mxu0 %v868
    %1807 = vmatpush1.msra.mxu0 %v867
    %1808 = vmatprep.subr.mxu0 %v1054
    %1809 = vmatpush2.msra.mxu0 %v1053
    %1810 = vmatprep.subr.mxu0 %v1048
    %1811 = vmatpush2.msra.mxu0 %v1047
    %1812 = vmatprep.subr.mxu0 %v1042
    %1813 = vmatpush2.msra.mxu0 %v1041
    %1814 = vmatprep.subr.mxu0 %v1036
    %1815 = vmatpush2.msra.mxu0 %v1035
    %1816 = vmatprep.subr.mxu0 %v1030
    %1817 = vmatpush2.msra.mxu0 %v1029
    %1818 = vmatprep.subr.mxu0 %v1024
    %1819 = vmatpush2.msra.mxu0 %v1023
    %1820 = vmatprep.subr.mxu0 %v1018
    %1821 = vmatpush2.msra.mxu0 %v1017
    %1822 = vmatprep.subr.mxu0 %v1012
    %1823 = vmatpush2.msra.mxu0 %v1011
    %1824 = vmatprep.subr.mxu0 %v1006
    %1825 = vmatpush2.msra.mxu0 %v1005
    %1826 = vmatprep.subr.mxu0 %v1000
    %1827 = vmatpush2.msra.mxu0 %v999
    %1828 = vmatprep.subr.mxu0 %v994
    %1829 = vmatpush2.msra.mxu0 %v993
    %1830 = vmatprep.subr.mxu0 %v988
    %1831 = vmatpush2.msra.mxu0 %v987
    %1832 = vmatprep.subr.mxu0 %v982
    %1833 = vmatpush2.msra.mxu0 %v981
    %1834 = vmatprep.subr.mxu0 %v976
    %1835 = vmatpush2.msra.mxu0 %v975
    %1836 = vmatprep.subr.mxu0 %v970
    %1837 = vmatpush2.msra.mxu0 %v969
    %1838 = vmatprep.subr.mxu0 %v964
    %1839 = vmatpush2.msra.mxu0 %v963
    %1840 = vmatprep.mubr.f32.mxu0 %v668
    %1841 = vmatmul.mubr.f32.gmra.mxu0 %v667
    %v1842 = vpop.f32.mrf.mxu0
    %v1843 = vadd.f32 %v1772, %v1842
    %v1844 = vpop.f32.mrf.mxu0
    %v1845 = vadd.f32 %v1774, %v1844
    %1846 = vdwg.mxu0
    %1847 = vmatprep.subr.mxu0 %v1150
    %1848 = vmatpush1.msra.mxu0 %v1149
    %1849 = vmatprep.subr.mxu0 %v1144
    %1850 = vmatpush1.msra.mxu0 %v1143
    %1851 = vmatprep.subr.mxu0 %v1138
    %1852 = vmatpush1.msra.mxu0 %v1137
    %1853 = vmatprep.subr.mxu0 %v1132
    %1854 = vmatpush1.msra.mxu0 %v1131
    %1855 = vmatprep.subr.mxu0 %v1126
    %1856 = vmatpush1.msra.mxu0 %v1125
    %1857 = vmatprep.subr.mxu0 %v1120
    %1858 = vmatpush1.msra.mxu0 %v1119
    %1859 = vmatprep.subr.mxu0 %v1114
    %1860 = vmatpush1.msra.mxu0 %v1113
    %1861 = vmatprep.subr.mxu0 %v1108
    %1862 = vmatpush1.msra.mxu0 %v1107
    %1863 = vmatprep.subr.mxu0 %v1102
    %1864 = vmatpush1.msra.mxu0 %v1101
    %1865 = vmatprep.subr.mxu0 %v1096
    %1866 = vmatpush1.msra.mxu0 %v1095
    %1867 = vmatprep.subr.mxu0 %v1090
    %1868 = vmatpush1.msra.mxu0 %v1089
    %1869 = vmatprep.subr.mxu0 %v1084
    %1870 = vmatpush1.msra.mxu0 %v1083
    %1871 = vmatprep.subr.mxu0 %v1078
    %1872 = vmatpush1.msra.mxu0 %v1077
    %1873 = vmatprep.subr.mxu0 %v1072
    %1874 = vmatpush1.msra.mxu0 %v1071
    %1875 = vmatprep.subr.mxu0 %v1066
    %1876 = vmatpush1.msra.mxu0 %v1065
    %1877 = vmatprep.subr.mxu0 %v1060
    %1878 = vmatpush1.msra.mxu0 %v1059
    %1879 = vmatprep.subr.mxu0 %v1246
    %1880 = vmatpush2.msra.mxu0 %v1245
    %1881 = vmatprep.subr.mxu0 %v1240
    %1882 = vmatpush2.msra.mxu0 %v1239
    %1883 = vmatprep.subr.mxu0 %v1234
    %1884 = vmatpush2.msra.mxu0 %v1233
    %1885 = vmatprep.subr.mxu0 %v1228
    %1886 = vmatpush2.msra.mxu0 %v1227
    %1887 = vmatprep.subr.mxu0 %v1222
    %1888 = vmatpush2.msra.mxu0 %v1221
    %1889 = vmatprep.subr.mxu0 %v1216
    %1890 = vmatpush2.msra.mxu0 %v1215
    %1891 = vmatprep.subr.mxu0 %v1210
    %1892 = vmatpush2.msra.mxu0 %v1209
    %1893 = vmatprep.subr.mxu0 %v1204
    %1894 = vmatpush2.msra.mxu0 %v1203
    %1895 = vmatprep.subr.mxu0 %v1198
    %1896 = vmatpush2.msra.mxu0 %v1197
    %1897 = vmatprep.subr.mxu0 %v1192
    %1898 = vmatpush2.msra.mxu0 %v1191
    %1899 = vmatprep.subr.mxu0 %v1186
    %1900 = vmatpush2.msra.mxu0 %v1185
    %1901 = vmatprep.subr.mxu0 %v1180
    %1902 = vmatpush2.msra.mxu0 %v1179
    %1903 = vmatprep.subr.mxu0 %v1174
    %1904 = vmatpush2.msra.mxu0 %v1173
    %1905 = vmatprep.subr.mxu0 %v1168
    %1906 = vmatpush2.msra.mxu0 %v1167
    %1907 = vmatprep.subr.mxu0 %v1162
    %1908 = vmatpush2.msra.mxu0 %v1161
    %1909 = vmatprep.subr.mxu0 %v1156
    %1910 = vmatpush2.msra.mxu0 %v1155
    %1911 = vmatprep.mubr.f32.mxu0 %v670
    %1912 = vmatmul.mubr.f32.gmra.mxu0 %v669
    %v1913 = vpop.f32.mrf.mxu0
    %v1914 = vadd.f32 %v1843, %v1913
    %v1915 = vpop.f32.mrf.mxu0
    %v1916 = vadd.f32 %v1845, %v1915
    %1917 = vdwg.mxu0
    %v1918 = vmax.f32 %v1488, 0.0
    %v1919 = vmax.f32 %v1490, 0.0
    %v1920 = vmax.f32 %v1701, 0.0
    %v1921 = vmax.f32 %v1703, 0.0
    %v1922 = vmax.f32 %v1914, 0.0
    %v1923 = vmax.f32 %v1916, 0.0
    %v1924 = vld [vmem:[#allocation14] sm:$0xff]
    %v1925 = vld [vmem:[#allocation14 + $0x8] sm:$0xff]
    %v1926 = vld [vmem:[#allocation14 + $0x10] sm:$0xff]
    %v1927 = vld [vmem:[#allocation14 + $0x18] sm:$0xff]
    %v1928 = vld [vmem:[#allocation14 + $0x20] sm:$0xff]
    %v1929 = vld [vmem:[#allocation14 + $0x28] sm:$0xff]
    %v1930 = vld [vmem:[#allocation14 + $0x30] sm:$0xff]
    %v1931 = vld [vmem:[#allocation14 + $0x38] sm:$0xff]
    %v1932 = vld [vmem:[#allocation14 + $0x40] sm:$0xff]
    %v1933 = vld [vmem:[#allocation14 + $0x48] sm:$0xff]
    %v1934 = vld [vmem:[#allocation14 + $0x50] sm:$0xff]
    %v1935 = vld [vmem:[#allocation14 + $0x58] sm:$0xff]
    %v1936 = vld [vmem:[#allocation14 + $0x60] sm:$0xff]
    %v1937 = vld [vmem:[#allocation14 + $0x68] sm:$0xff]
    %v1938 = vld [vmem:[#allocation14 + $0x70] sm:$0xff]
    %v1939 = vld [vmem:[#allocation14 + $0x78] sm:$0xff]
    %v1940 = vld [vmem:[#allocation14 + $0x80] sm:$0xff]
    %v1941 = vld [vmem:[#allocation14 + $0x88] sm:$0xff]
    %v1942 = vld [vmem:[#allocation14 + $0x90] sm:$0xff]
    %v1943 = vld [vmem:[#allocation14 + $0x98] sm:$0xff]
    %v1944 = vld [vmem:[#allocation14 + $0xa0] sm:$0xff]
    %v1945 = vld [vmem:[#allocation14 + $0xa8] sm:$0xff]
    %v1946 = vld [vmem:[#allocation14 + $0xb0] sm:$0xff]
    %v1947 = vld [vmem:[#allocation14 + $0xb8] sm:$0xff]
    %v1948 = vld [vmem:[#allocation14 + $0xc0] sm:$0xff]
    %v1949 = vld [vmem:[#allocation14 + $0xc8] sm:$0xff]
    %v1950 = vld [vmem:[#allocation14 + $0xd0] sm:$0xff]
    %v1951 = vld [vmem:[#allocation14 + $0xd8] sm:$0xff]
    %v1952 = vld [vmem:[#allocation14 + $0xe0] sm:$0xff]
    %v1953 = vld [vmem:[#allocation14 + $0xe8] sm:$0xff]
    %v1954 = vld [vmem:[#allocation14 + $0xf0] sm:$0xff]
    %v1955 = vld [vmem:[#allocation14 + $0xf8] sm:$0xff]
    %v1956 = vld [vmem:[#allocation14 + $0x100] sm:$0xff]
    %v1957 = vld [vmem:[#allocation14 + $0x108] sm:$0xff]
    %v1958 = vld [vmem:[#allocation14 + $0x110] sm:$0xff]
    %v1959 = vld [vmem:[#allocation14 + $0x118] sm:$0xff]
    %v1960 = vld [vmem:[#allocation14 + $0x120] sm:$0xff]
    %v1961 = vld [vmem:[#allocation14 + $0x128] sm:$0xff]
    %v1962 = vld [vmem:[#allocation14 + $0x130] sm:$0xff]
    %v1963 = vld [vmem:[#allocation14 + $0x138] sm:$0xff]
    %v1964 = vld [vmem:[#allocation14 + $0x140] sm:$0xff]
    %v1965 = vld [vmem:[#allocation14 + $0x148] sm:$0xff]
    %v1966 = vld [vmem:[#allocation14 + $0x150] sm:$0xff]
    %v1967 = vld [vmem:[#allocation14 + $0x158] sm:$0xff]
    %v1968 = vld [vmem:[#allocation14 + $0x160] sm:$0xff]
    %v1969 = vld [vmem:[#allocation14 + $0x168] sm:$0xff]
    %v1970 = vld [vmem:[#allocation14 + $0x170] sm:$0xff]
    %v1971 = vld [vmem:[#allocation14 + $0x178] sm:$0xff]
    %v1972 = vld [vmem:[#allocation14 + $0x180] sm:$0xff]
    %v1973 = vld [vmem:[#allocation14 + $0x188] sm:$0xff]
    %v1974 = vld [vmem:[#allocation14 + $0x190] sm:$0xff]
    %v1975 = vld [vmem:[#allocation14 + $0x198] sm:$0xff]
    %v1976 = vld [vmem:[#allocation14 + $0x1a0] sm:$0xff]
    %v1977 = vld [vmem:[#allocation14 + $0x1a8] sm:$0xff]
    %v1978 = vld [vmem:[#allocation14 + $0x1b0] sm:$0xff]
    %v1979 = vld [vmem:[#allocation14 + $0x1b8] sm:$0xff]
    %v1980 = vld [vmem:[#allocation14 + $0x1c0] sm:$0xff]
    %v1981 = vld [vmem:[#allocation14 + $0x1c8] sm:$0xff]
    %v1982 = vld [vmem:[#allocation14 + $0x1d0] sm:$0xff]
    %v1983 = vld [vmem:[#allocation14 + $0x1d8] sm:$0xff]
    %v1984 = vld [vmem:[#allocation14 + $0x1e0] sm:$0xff]
    %v1985 = vld [vmem:[#allocation14 + $0x1e8] sm:$0xff]
    %v1986 = vld [vmem:[#allocation14 + $0x1f0] sm:$0xff]
    %v1987 = vld [vmem:[#allocation14 + $0x1f8] sm:$0xff]
    %v1988 = vld [vmem:[#allocation14 + $0x200] sm:$0xff]
    %v1989 = vld [vmem:[#allocation14 + $0x208] sm:$0xff]
    %v1990 = vld [vmem:[#allocation14 + $0x210] sm:$0xff]
    %v1991 = vld [vmem:[#allocation14 + $0x218] sm:$0xff]
    %v1992 = vld [vmem:[#allocation14 + $0x220] sm:$0xff]
    %v1993 = vld [vmem:[#allocation14 + $0x228] sm:$0xff]
    %v1994 = vld [vmem:[#allocation14 + $0x230] sm:$0xff]
    %v1995 = vld [vmem:[#allocation14 + $0x238] sm:$0xff]
    %v1996 = vld [vmem:[#allocation14 + $0x240] sm:$0xff]
    %v1997 = vld [vmem:[#allocation14 + $0x248] sm:$0xff]
    %v1998 = vld [vmem:[#allocation14 + $0x250] sm:$0xff]
    %v1999 = vld [vmem:[#allocation14 + $0x258] sm:$0xff]
    %v2000 = vld [vmem:[#allocation14 + $0x260] sm:$0xff]
    %v2001 = vld [vmem:[#allocation14 + $0x268] sm:$0xff]
    %v2002 = vld [vmem:[#allocation14 + $0x270] sm:$0xff]
    %v2003 = vld [vmem:[#allocation14 + $0x278] sm:$0xff]
    %v2004 = vld [vmem:[#allocation14 + $0x280] sm:$0xff]
    %v2005 = vld [vmem:[#allocation14 + $0x288] sm:$0xff]
    %v2006 = vld [vmem:[#allocation14 + $0x290] sm:$0xff]
    %v2007 = vld [vmem:[#allocation14 + $0x298] sm:$0xff]
    %v2008 = vld [vmem:[#allocation14 + $0x2a0] sm:$0xff]
    %v2009 = vld [vmem:[#allocation14 + $0x2a8] sm:$0xff]
    %v2010 = vld [vmem:[#allocation14 + $0x2b0] sm:$0xff]
    %v2011 = vld [vmem:[#allocation14 + $0x2b8] sm:$0xff]
    %v2012 = vld [vmem:[#allocation14 + $0x2c0] sm:$0xff]
    %v2013 = vld [vmem:[#allocation14 + $0x2c8] sm:$0xff]
    %v2014 = vld [vmem:[#allocation14 + $0x2d0] sm:$0xff]
    %v2015 = vld [vmem:[#allocation14 + $0x2d8] sm:$0xff]
    %v2016 = vld [vmem:[#allocation14 + $0x2e0] sm:$0xff]
    %v2017 = vld [vmem:[#allocation14 + $0x2e8] sm:$0xff]
    %v2018 = vld [vmem:[#allocation14 + $0x2f0] sm:$0xff]
    %v2019 = vld [vmem:[#allocation14 + $0x2f8] sm:$0xff]
    %v2020 = vld [vmem:[#allocation14 + $0x300] sm:$0xff]
    %v2021 = vld [vmem:[#allocation14 + $0x308] sm:$0xff]
    %v2022 = vld [vmem:[#allocation14 + $0x310] sm:$0xff]
    %v2023 = vld [vmem:[#allocation14 + $0x318] sm:$0xff]
    %v2024 = vld [vmem:[#allocation14 + $0x320] sm:$0xff]
    %v2025 = vld [vmem:[#allocation14 + $0x328] sm:$0xff]
    %v2026 = vld [vmem:[#allocation14 + $0x330] sm:$0xff]
    %v2027 = vld [vmem:[#allocation14 + $0x338] sm:$0xff]
    %v2028 = vld [vmem:[#allocation14 + $0x340] sm:$0xff]
    %v2029 = vld [vmem:[#allocation14 + $0x348] sm:$0xff]
    %v2030 = vld [vmem:[#allocation14 + $0x350] sm:$0xff]
    %v2031 = vld [vmem:[#allocation14 + $0x358] sm:$0xff]
    %v2032 = vld [vmem:[#allocation14 + $0x360] sm:$0xff]
    %v2033 = vld [vmem:[#allocation14 + $0x368] sm:$0xff]
    %v2034 = vld [vmem:[#allocation14 + $0x370] sm:$0xff]
    %v2035 = vld [vmem:[#allocation14 + $0x378] sm:$0xff]
    %v2036 = vld [vmem:[#allocation14 + $0x380] sm:$0xff]
    %v2037 = vld [vmem:[#allocation14 + $0x388] sm:$0xff]
    %v2038 = vld [vmem:[#allocation14 + $0x390] sm:$0xff]
    %v2039 = vld [vmem:[#allocation14 + $0x398] sm:$0xff]
    %v2040 = vld [vmem:[#allocation14 + $0x3a0] sm:$0xff]
    %v2041 = vld [vmem:[#allocation14 + $0x3a8] sm:$0xff]
    %v2042 = vld [vmem:[#allocation14 + $0x3b0] sm:$0xff]
    %v2043 = vld [vmem:[#allocation14 + $0x3b8] sm:$0xff]
    %v2044 = vld [vmem:[#allocation14 + $0x3c0] sm:$0xff]
    %v2045 = vld [vmem:[#allocation14 + $0x3c8] sm:$0xff]
    %v2046 = vld [vmem:[#allocation14 + $0x3d0] sm:$0xff]
    %v2047 = vld [vmem:[#allocation14 + $0x3d8] sm:$0xff]
    %v2048 = vld [vmem:[#allocation14 + $0x3e0] sm:$0xff]
    %v2049 = vld [vmem:[#allocation14 + $0x3e8] sm:$0xff]
    %v2050 = vld [vmem:[#allocation14 + $0x3f0] sm:$0xff]
    %v2051 = vld [vmem:[#allocation14 + $0x3f8] sm:$0xff]
    %v2052 = vld [vmem:[#allocation14 + $0x400] sm:$0xff]
    %v2053 = vld [vmem:[#allocation14 + $0x408] sm:$0xff]
    %v2054 = vld [vmem:[#allocation14 + $0x410] sm:$0xff]
    %v2055 = vld [vmem:[#allocation14 + $0x418] sm:$0xff]
    %v2056 = vld [vmem:[#allocation14 + $0x420] sm:$0xff]
    %v2057 = vld [vmem:[#allocation14 + $0x428] sm:$0xff]
    %v2058 = vld [vmem:[#allocation14 + $0x430] sm:$0xff]
    %v2059 = vld [vmem:[#allocation14 + $0x438] sm:$0xff]
    %v2060 = vld [vmem:[#allocation14 + $0x440] sm:$0xff]
    %v2061 = vld [vmem:[#allocation14 + $0x448] sm:$0xff]
    %v2062 = vld [vmem:[#allocation14 + $0x450] sm:$0xff]
    %v2063 = vld [vmem:[#allocation14 + $0x458] sm:$0xff]
    %v2064 = vld [vmem:[#allocation14 + $0x460] sm:$0xff]
    %v2065 = vld [vmem:[#allocation14 + $0x468] sm:$0xff]
    %v2066 = vld [vmem:[#allocation14 + $0x470] sm:$0xff]
    %v2067 = vld [vmem:[#allocation14 + $0x478] sm:$0xff]
    %v2068 = vld [vmem:[#allocation14 + $0x480] sm:$0xff]
    %v2069 = vld [vmem:[#allocation14 + $0x488] sm:$0xff]
    %v2070 = vld [vmem:[#allocation14 + $0x490] sm:$0xff]
    %v2071 = vld [vmem:[#allocation14 + $0x498] sm:$0xff]
    %v2072 = vld [vmem:[#allocation14 + $0x4a0] sm:$0xff]
    %v2073 = vld [vmem:[#allocation14 + $0x4a8] sm:$0xff]
    %v2074 = vld [vmem:[#allocation14 + $0x4b0] sm:$0xff]
    %v2075 = vld [vmem:[#allocation14 + $0x4b8] sm:$0xff]
    %v2076 = vld [vmem:[#allocation14 + $0x4c0] sm:$0xff]
    %v2077 = vld [vmem:[#allocation14 + $0x4c8] sm:$0xff]
    %v2078 = vld [vmem:[#allocation14 + $0x4d0] sm:$0xff]
    %v2079 = vld [vmem:[#allocation14 + $0x4d8] sm:$0xff]
    %v2080 = vld [vmem:[#allocation14 + $0x4e0] sm:$0xff]
    %v2081 = vld [vmem:[#allocation14 + $0x4e8] sm:$0xff]
    %v2082 = vld [vmem:[#allocation14 + $0x4f0] sm:$0xff]
    %v2083 = vld [vmem:[#allocation14 + $0x4f8] sm:$0xff]
    %v2084 = vld [vmem:[#allocation14 + $0x500] sm:$0xff]
    %v2085 = vld [vmem:[#allocation14 + $0x508] sm:$0xff]
    %v2086 = vld [vmem:[#allocation14 + $0x510] sm:$0xff]
    %v2087 = vld [vmem:[#allocation14 + $0x518] sm:$0xff]
    %v2088 = vld [vmem:[#allocation14 + $0x520] sm:$0xff]
    %v2089 = vld [vmem:[#allocation14 + $0x528] sm:$0xff]
    %v2090 = vld [vmem:[#allocation14 + $0x530] sm:$0xff]
    %v2091 = vld [vmem:[#allocation14 + $0x538] sm:$0xff]
    %v2092 = vld [vmem:[#allocation14 + $0x540] sm:$0xff]
    %v2093 = vld [vmem:[#allocation14 + $0x548] sm:$0xff]
    %v2094 = vld [vmem:[#allocation14 + $0x550] sm:$0xff]
    %v2095 = vld [vmem:[#allocation14 + $0x558] sm:$0xff]
    %v2096 = vld [vmem:[#allocation14 + $0x560] sm:$0xff]
    %v2097 = vld [vmem:[#allocation14 + $0x568] sm:$0xff]
    %v2098 = vld [vmem:[#allocation14 + $0x570] sm:$0xff]
    %v2099 = vld [vmem:[#allocation14 + $0x578] sm:$0xff]
    %v2100 = vld [vmem:[#allocation14 + $0x580] sm:$0xff]
    %v2101 = vld [vmem:[#allocation14 + $0x588] sm:$0xff]
    %v2102 = vld [vmem:[#allocation14 + $0x590] sm:$0xff]
    %v2103 = vld [vmem:[#allocation14 + $0x598] sm:$0xff]
    %v2104 = vld [vmem:[#allocation14 + $0x5a0] sm:$0xff]
    %v2105 = vld [vmem:[#allocation14 + $0x5a8] sm:$0xff]
    %v2106 = vld [vmem:[#allocation14 + $0x5b0] sm:$0xff]
    %v2107 = vld [vmem:[#allocation14 + $0x5b8] sm:$0xff]
    %v2108 = vld [vmem:[#allocation14 + $0x5c0] sm:$0xff]
    %v2109 = vld [vmem:[#allocation14 + $0x5c8] sm:$0xff]
    %v2110 = vld [vmem:[#allocation14 + $0x5d0] sm:$0xff]
    %v2111 = vld [vmem:[#allocation14 + $0x5d8] sm:$0xff]
    %v2112 = vld [vmem:[#allocation14 + $0x5e0] sm:$0xff]
    %v2113 = vld [vmem:[#allocation14 + $0x5e8] sm:$0xff]
    %v2114 = vld [vmem:[#allocation14 + $0x5f0] sm:$0xff]
    %v2115 = vld [vmem:[#allocation14 + $0x5f8] sm:$0xff]
    %v2116 = vld [vmem:[#allocation15] sm:$0x3]
    %v2118 = vlaneseq
    %v2119 = vshrl.u32 %v2118, 7
    %v2120 = vsub.s32 0, %v2119
    %v2121 = vrot.slane %v2116, %v2120
    %v2122 = vlaneseq
    %v2123 = vshrl.u32 %v2122, 7
    %v2124 = vsub.s32 1, %v2123
    %v2125 = vrot.slane %v2116, %v2124
    %2128 = vmatprep.subr.mxu0 %v1955
    %2129 = vmatpush1.msra.mxu0 %v1954
    %2130 = vmatprep.subr.mxu0 %v1953
    %2131 = vmatpush1.msra.mxu0 %v1952
    %2132 = vmatprep.subr.mxu0 %v1951
    %2133 = vmatpush1.msra.mxu0 %v1950
    %2134 = vmatprep.subr.mxu0 %v1949
    %2135 = vmatpush1.msra.mxu0 %v1948
    %2136 = vmatprep.subr.mxu0 %v1947
    %2137 = vmatpush1.msra.mxu0 %v1946
    %2138 = vmatprep.subr.mxu0 %v1945
    %2139 = vmatpush1.msra.mxu0 %v1944
    %2140 = vmatprep.subr.mxu0 %v1943
    %2141 = vmatpush1.msra.mxu0 %v1942
    %2142 = vmatprep.subr.mxu0 %v1941
    %2143 = vmatpush1.msra.mxu0 %v1940
    %2144 = vmatprep.subr.mxu0 %v1939
    %2145 = vmatpush1.msra.mxu0 %v1938
    %2146 = vmatprep.subr.mxu0 %v1937
    %2147 = vmatpush1.msra.mxu0 %v1936
    %2148 = vmatprep.subr.mxu0 %v1935
    %2149 = vmatpush1.msra.mxu0 %v1934
    %2150 = vmatprep.subr.mxu0 %v1933
    %2151 = vmatpush1.msra.mxu0 %v1932
    %2152 = vmatprep.subr.mxu0 %v1931
    %2153 = vmatpush1.msra.mxu0 %v1930
    %2154 = vmatprep.subr.mxu0 %v1929
    %2155 = vmatpush1.msra.mxu0 %v1928
    %2156 = vmatprep.subr.mxu0 %v1927
    %2157 = vmatpush1.msra.mxu0 %v1926
    %2158 = vmatprep.subr.mxu0 %v1925
    %2159 = vmatpush1.msra.mxu0 %v1924
    %2160 = vmatprep.subr.mxu0 %v1987
    %2161 = vmatpush2.msra.mxu0 %v1986
    %2162 = vmatprep.subr.mxu0 %v1985
    %2163 = vmatpush2.msra.mxu0 %v1984
    %2164 = vmatprep.subr.mxu0 %v1983
    %2165 = vmatpush2.msra.mxu0 %v1982
    %2166 = vmatprep.subr.mxu0 %v1981
    %2167 = vmatpush2.msra.mxu0 %v1980
    %2168 = vmatprep.subr.mxu0 %v1979
    %2169 = vmatpush2.msra.mxu0 %v1978
    %2170 = vmatprep.subr.mxu0 %v1977
    %2171 = vmatpush2.msra.mxu0 %v1976
    %2172 = vmatprep.subr.mxu0 %v1975
    %2173 = vmatpush2.msra.mxu0 %v1974
    %2174 = vmatprep.subr.mxu0 %v1973
    %2175 = vmatpush2.msra.mxu0 %v1972
    %2176 = vmatprep.subr.mxu0 %v1971
    %2177 = vmatpush2.msra.mxu0 %v1970
    %2178 = vmatprep.subr.mxu0 %v1969
    %2179 = vmatpush2.msra.mxu0 %v1968
    %2180 = vmatprep.subr.mxu0 %v1967
    %2181 = vmatpush2.msra.mxu0 %v1966
    %2182 = vmatprep.subr.mxu0 %v1965
    %2183 = vmatpush2.msra.mxu0 %v1964
    %2184 = vmatprep.subr.mxu0 %v1963
    %2185 = vmatpush2.msra.mxu0 %v1962
    %2186 = vmatprep.subr.mxu0 %v1961
    %2187 = vmatpush2.msra.mxu0 %v1960
    %2188 = vmatprep.subr.mxu0 %v1959
    %2189 = vmatpush2.msra.mxu0 %v1958
    %2190 = vmatprep.subr.mxu0 %v1957
    %2191 = vmatpush2.msra.mxu0 %v1956
    %2192 = vmatprep.mubr.f32.mxu0 %v1919
    %2193 = vmatmul.mubr.f32.gmra.mxu0 %v1918
    %v2194 = vpop.f32.mrf.mxu0
    %v2195 = vadd.f32 %v2121, %v2194
    %v2196 = vpop.f32.mrf.mxu0
    %v2197 = vadd.f32 %v2125, %v2196
    %2198 = vdwg.mxu0
    %2199 = vmatprep.subr.mxu0 %v2019
    %2200 = vmatpush1.msra.mxu0 %v2018
    %2201 = vmatprep.subr.mxu0 %v2017
    %2202 = vmatpush1.msra.mxu0 %v2016
    %2203 = vmatprep.subr.mxu0 %v2015
    %2204 = vmatpush1.msra.mxu0 %v2014
    %2205 = vmatprep.subr.mxu0 %v2013
    %2206 = vmatpush1.msra.mxu0 %v2012
    %2207 = vmatprep.subr.mxu0 %v2011
    %2208 = vmatpush1.msra.mxu0 %v2010
    %2209 = vmatprep.subr.mxu0 %v2009
    %2210 = vmatpush1.msra.mxu0 %v2008
    %2211 = vmatprep.subr.mxu0 %v2007
    %2212 = vmatpush1.msra.mxu0 %v2006
    %2213 = vmatprep.subr.mxu0 %v2005
    %2214 = vmatpush1.msra.mxu0 %v2004
    %2215 = vmatprep.subr.mxu0 %v2003
    %2216 = vmatpush1.msra.mxu0 %v2002
    %2217 = vmatprep.subr.mxu0 %v2001
    %2218 = vmatpush1.msra.mxu0 %v2000
    %2219 = vmatprep.subr.mxu0 %v1999
    %2220 = vmatpush1.msra.mxu0 %v1998
    %2221 = vmatprep.subr.mxu0 %v1997
    %2222 = vmatpush1.msra.mxu0 %v1996
    %2223 = vmatprep.subr.mxu0 %v1995
    %2224 = vmatpush1.msra.mxu0 %v1994
    %2225 = vmatprep.subr.mxu0 %v1993
    %2226 = vmatpush1.msra.mxu0 %v1992
    %2227 = vmatprep.subr.mxu0 %v1991
    %2228 = vmatpush1.msra.mxu0 %v1990
    %2229 = vmatprep.subr.mxu0 %v1989
    %2230 = vmatpush1.msra.mxu0 %v1988
    %2231 = vmatprep.subr.mxu0 %v2051
    %2232 = vmatpush2.msra.mxu0 %v2050
    %2233 = vmatprep.subr.mxu0 %v2049
    %2234 = vmatpush2.msra.mxu0 %v2048
    %2235 = vmatprep.subr.mxu0 %v2047
    %2236 = vmatpush2.msra.mxu0 %v2046
    %2237 = vmatprep.subr.mxu0 %v2045
    %2238 = vmatpush2.msra.mxu0 %v2044
    %2239 = vmatprep.subr.mxu0 %v2043
    %2240 = vmatpush2.msra.mxu0 %v2042
    %2241 = vmatprep.subr.mxu0 %v2041
    %2242 = vmatpush2.msra.mxu0 %v2040
    %2243 = vmatprep.subr.mxu0 %v2039
    %2244 = vmatpush2.msra.mxu0 %v2038
    %2245 = vmatprep.subr.mxu0 %v2037
    %2246 = vmatpush2.msra.mxu0 %v2036
    %2247 = vmatprep.subr.mxu0 %v2035
    %2248 = vmatpush2.msra.mxu0 %v2034
    %2249 = vmatprep.subr.mxu0 %v2033
    %2250 = vmatpush2.msra.mxu0 %v2032
    %2251 = vmatprep.subr.mxu0 %v2031
    %2252 = vmatpush2.msra.mxu0 %v2030
    %2253 = vmatprep.subr.mxu0 %v2029
    %2254 = vmatpush2.msra.mxu0 %v2028
    %2255 = vmatprep.subr.mxu0 %v2027
    %2256 = vmatpush2.msra.mxu0 %v2026
    %2257 = vmatprep.subr.mxu0 %v2025
    %2258 = vmatpush2.msra.mxu0 %v2024
    %2259 = vmatprep.subr.mxu0 %v2023
    %2260 = vmatpush2.msra.mxu0 %v2022
    %2261 = vmatprep.subr.mxu0 %v2021
    %2262 = vmatpush2.msra.mxu0 %v2020
    %2263 = vmatprep.mubr.f32.mxu0 %v1921
    %2264 = vmatmul.mubr.f32.gmra.mxu0 %v1920
    %v2265 = vpop.f32.mrf.mxu0
    %v2266 = vadd.f32 %v2195, %v2265
    %v2267 = vpop.f32.mrf.mxu0
    %v2268 = vadd.f32 %v2197, %v2267
    %2269 = vdwg.mxu0
    %2270 = vmatprep.subr.mxu0 %v2083
    %2271 = vmatpush1.msra.mxu0 %v2082
    %2272 = vmatprep.subr.mxu0 %v2081
    %2273 = vmatpush1.msra.mxu0 %v2080
    %2274 = vmatprep.subr.mxu0 %v2079
    %2275 = vmatpush1.msra.mxu0 %v2078
    %2276 = vmatprep.subr.mxu0 %v2077
    %2277 = vmatpush1.msra.mxu0 %v2076
    %2278 = vmatprep.subr.mxu0 %v2075
    %2279 = vmatpush1.msra.mxu0 %v2074
    %2280 = vmatprep.subr.mxu0 %v2073
    %2281 = vmatpush1.msra.mxu0 %v2072
    %2282 = vmatprep.subr.mxu0 %v2071
    %2283 = vmatpush1.msra.mxu0 %v2070
    %2284 = vmatprep.subr.mxu0 %v2069
    %2285 = vmatpush1.msra.mxu0 %v2068
    %2286 = vmatprep.subr.mxu0 %v2067
    %2287 = vmatpush1.msra.mxu0 %v2066
    %2288 = vmatprep.subr.mxu0 %v2065
    %2289 = vmatpush1.msra.mxu0 %v2064
    %2290 = vmatprep.subr.mxu0 %v2063
    %2291 = vmatpush1.msra.mxu0 %v2062
    %2292 = vmatprep.subr.mxu0 %v2061
    %2293 = vmatpush1.msra.mxu0 %v2060
    %2294 = vmatprep.subr.mxu0 %v2059
    %2295 = vmatpush1.msra.mxu0 %v2058
    %2296 = vmatprep.subr.mxu0 %v2057
    %2297 = vmatpush1.msra.mxu0 %v2056
    %2298 = vmatprep.subr.mxu0 %v2055
    %2299 = vmatpush1.msra.mxu0 %v2054
    %2300 = vmatprep.subr.mxu0 %v2053
    %2301 = vmatpush1.msra.mxu0 %v2052
    %2302 = vmatprep.subr.mxu0 %v2115
    %2303 = vmatpush2.msra.mxu0 %v2114
    %2304 = vmatprep.subr.mxu0 %v2113
    %2305 = vmatpush2.msra.mxu0 %v2112
    %2306 = vmatprep.subr.mxu0 %v2111
    %2307 = vmatpush2.msra.mxu0 %v2110
    %2308 = vmatprep.subr.mxu0 %v2109
    %2309 = vmatpush2.msra.mxu0 %v2108
    %2310 = vmatprep.subr.mxu0 %v2107
    %2311 = vmatpush2.msra.mxu0 %v2106
    %2312 = vmatprep.subr.mxu0 %v2105
    %2313 = vmatpush2.msra.mxu0 %v2104
    %2314 = vmatprep.subr.mxu0 %v2103
    %2315 = vmatpush2.msra.mxu0 %v2102
    %2316 = vmatprep.subr.mxu0 %v2101
    %2317 = vmatpush2.msra.mxu0 %v2100
    %2318 = vmatprep.subr.mxu0 %v2099
    %2319 = vmatpush2.msra.mxu0 %v2098
    %2320 = vmatprep.subr.mxu0 %v2097
    %2321 = vmatpush2.msra.mxu0 %v2096
    %2322 = vmatprep.subr.mxu0 %v2095
    %2323 = vmatpush2.msra.mxu0 %v2094
    %2324 = vmatprep.subr.mxu0 %v2093
    %2325 = vmatpush2.msra.mxu0 %v2092
    %2326 = vmatprep.subr.mxu0 %v2091
    %2327 = vmatpush2.msra.mxu0 %v2090
    %2328 = vmatprep.subr.mxu0 %v2089
    %2329 = vmatpush2.msra.mxu0 %v2088
    %2330 = vmatprep.subr.mxu0 %v2087
    %2331 = vmatpush2.msra.mxu0 %v2086
    %2332 = vmatprep.subr.mxu0 %v2085
    %2333 = vmatpush2.msra.mxu0 %v2084
    %2334 = vmatprep.mubr.f32.mxu0 %v1923
    %2335 = vmatmul.mubr.f32.gmra.mxu0 %v1922
    %v2336 = vpop.f32.mrf.mxu0
    %v2337 = vadd.f32 %v2266, %v2336
    %v2338 = vpop.f32.mrf.mxu0
    %v2339 = vadd.f32 %v2268, %v2338
    %2340 = vdwg.mxu0
    %v2341 = vmax.f32 %v2339, -4.0
    %v2342 = vmin.f32 %v2341, 15.0
    %v2343 = vmul.f32 %v2342, 1.442695
    %v2344 = vpow.pop %v2343
    %v2345 = vld [vmem:[#allocation6] sm:$0xff]
    %v2346 = vmul.f32 %v2344, %v2345
    %v2347 = vadd.f32 %v2337, %v2346
    %2348 = vst [vmem:[#allocation2] sm:$0xff] %v226
    %2349 = vst [vmem:[#allocation2 + $0x8] sm:$0xff] %v2347
    %v2350 = vld [vmem:[#allocation2] sm:$0xff]
    %v2351 = vld [vmem:[#allocation2 + $0x8] sm:$0xff]
    %v2352 = vld [vmem:[#allocation17] sm:$0xff]
    %v2353 = vld [vmem:[#allocation17 + $0x8] sm:$0xff]
    %v2354 = vld [vmem:[#allocation17 + $0x10] sm:$0xff]
    %v2355 = vld [vmem:[#allocation17 + $0x18] sm:$0xff]
    %v2356 = vld [vmem:[#allocation17 + $0x20] sm:$0xff]
    %v2357 = vld [vmem:[#allocation17 + $0x28] sm:$0xff]
    %v2358 = vld [vmem:[#allocation17 + $0x30] sm:$0xff]
    %v2359 = vld [vmem:[#allocation17 + $0x38] sm:$0xff]
    %v2360 = vld [vmem:[#allocation17 + $0x40] sm:$0xff]
    %v2361 = vld [vmem:[#allocation17 + $0x48] sm:$0xff]
    %v2362 = vld [vmem:[#allocation17 + $0x50] sm:$0xff]
    %v2363 = vld [vmem:[#allocation17 + $0x58] sm:$0xff]
    %v2364 = vld [vmem:[#allocation17 + $0x60] sm:$0xff]
    %v2365 = vld [vmem:[#allocation17 + $0x68] sm:$0xff]
    %v2366 = vld [vmem:[#allocation17 + $0x70] sm:$0xff]
    %v2367 = vld [vmem:[#allocation17 + $0x78] sm:$0xff]
    %v2368 = vld [vmem:[#allocation17 + $0x80] sm:$0xff]
    %v2369 = vld [vmem:[#allocation17 + $0x88] sm:$0xff]
    %v2370 = vld [vmem:[#allocation17 + $0x90] sm:$0xff]
    %v2371 = vld [vmem:[#allocation17 + $0x98] sm:$0xff]
    %v2372 = vld [vmem:[#allocation17 + $0xa0] sm:$0xff]
    %v2373 = vld [vmem:[#allocation17 + $0xa8] sm:$0xff]
    %v2374 = vld [vmem:[#allocation17 + $0xb0] sm:$0xff]
    %v2375 = vld [vmem:[#allocation17 + $0xb8] sm:$0xff]
    %v2376 = vld [vmem:[#allocation17 + $0xc0] sm:$0xff]
    %v2377 = vld [vmem:[#allocation17 + $0xc8] sm:$0xff]
    %v2378 = vld [vmem:[#allocation17 + $0xd0] sm:$0xff]
    %v2379 = vld [vmem:[#allocation17 + $0xd8] sm:$0xff]
    %v2380 = vld [vmem:[#allocation17 + $0xe0] sm:$0xff]
    %v2381 = vld [vmem:[#allocation17 + $0xe8] sm:$0xff]
    %v2382 = vld [vmem:[#allocation17 + $0xf0] sm:$0xff]
    %v2383 = vld [vmem:[#allocation17 + $0xf8] sm:$0xff]
    %v2384 = vld [vmem:[#allocation17 + $0x100] sm:$0xff]
    %v2385 = vld [vmem:[#allocation17 + $0x108] sm:$0xff]
    %v2386 = vld [vmem:[#allocation17 + $0x110] sm:$0xff]
    %v2387 = vld [vmem:[#allocation17 + $0x118] sm:$0xff]
    %v2388 = vld [vmem:[#allocation17 + $0x120] sm:$0xff]
    %v2389 = vld [vmem:[#allocation17 + $0x128] sm:$0xff]
    %v2390 = vld [vmem:[#allocation17 + $0x130] sm:$0xff]
    %v2391 = vld [vmem:[#allocation17 + $0x138] sm:$0xff]
    %v2392 = vld [vmem:[#allocation17 + $0x140] sm:$0xff]
    %v2393 = vld [vmem:[#allocation17 + $0x148] sm:$0xff]
    %v2394 = vld [vmem:[#allocation17 + $0x150] sm:$0xff]
    %v2395 = vld [vmem:[#allocation17 + $0x158] sm:$0xff]
    %v2396 = vld [vmem:[#allocation17 + $0x160] sm:$0xff]
    %v2397 = vld [vmem:[#allocation17 + $0x168] sm:$0xff]
    %v2398 = vld [vmem:[#allocation17 + $0x170] sm:$0xff]
    %v2399 = vld [vmem:[#allocation17 + $0x178] sm:$0xff]
    %v2400 = vld [vmem:[#allocation17 + $0x180] sm:$0xff]
    %v2401 = vld [vmem:[#allocation17 + $0x188] sm:$0xff]
    %v2402 = vld [vmem:[#allocation17 + $0x190] sm:$0xff]
    %v2403 = vld [vmem:[#allocation17 + $0x198] sm:$0xff]
    %v2404 = vld [vmem:[#allocation17 + $0x1a0] sm:$0xff]
    %v2405 = vld [vmem:[#allocation17 + $0x1a8] sm:$0xff]
    %v2406 = vld [vmem:[#allocation17 + $0x1b0] sm:$0xff]
    %v2407 = vld [vmem:[#allocation17 + $0x1b8] sm:$0xff]
    %v2408 = vld [vmem:[#allocation17 + $0x1c0] sm:$0xff]
    %v2409 = vld [vmem:[#allocation17 + $0x1c8] sm:$0xff]
    %v2410 = vld [vmem:[#allocation17 + $0x1d0] sm:$0xff]
    %v2411 = vld [vmem:[#allocation17 + $0x1d8] sm:$0xff]
    %v2412 = vld [vmem:[#allocation17 + $0x1e0] sm:$0xff]
    %v2413 = vld [vmem:[#allocation17 + $0x1e8] sm:$0xff]
    %v2414 = vld [vmem:[#allocation17 + $0x1f0] sm:$0xff]
    %v2415 = vld [vmem:[#allocation17 + $0x1f8] sm:$0xff]
    %v2416 = vld [vmem:[#allocation17 + $0x200] sm:$0xff]
    %v2417 = vld [vmem:[#allocation17 + $0x208] sm:$0xff]
    %v2418 = vld [vmem:[#allocation17 + $0x210] sm:$0xff]
    %v2419 = vld [vmem:[#allocation17 + $0x218] sm:$0xff]
    %v2420 = vld [vmem:[#allocation17 + $0x220] sm:$0xff]
    %v2421 = vld [vmem:[#allocation17 + $0x228] sm:$0xff]
    %v2422 = vld [vmem:[#allocation17 + $0x230] sm:$0xff]
    %v2423 = vld [vmem:[#allocation17 + $0x238] sm:$0xff]
    %v2424 = vld [vmem:[#allocation17 + $0x240] sm:$0xff]
    %v2425 = vld [vmem:[#allocation17 + $0x248] sm:$0xff]
    %v2426 = vld [vmem:[#allocation17 + $0x250] sm:$0xff]
    %v2427 = vld [vmem:[#allocation17 + $0x258] sm:$0xff]
    %v2428 = vld [vmem:[#allocation17 + $0x260] sm:$0xff]
    %v2429 = vld [vmem:[#allocation17 + $0x268] sm:$0xff]
    %v2430 = vld [vmem:[#allocation17 + $0x270] sm:$0xff]
    %v2431 = vld [vmem:[#allocation17 + $0x278] sm:$0xff]
    %v2432 = vld [vmem:[#allocation17 + $0x280] sm:$0xff]
    %v2433 = vld [vmem:[#allocation17 + $0x288] sm:$0xff]
    %v2434 = vld [vmem:[#allocation17 + $0x290] sm:$0xff]
    %v2435 = vld [vmem:[#allocation17 + $0x298] sm:$0xff]
    %v2436 = vld [vmem:[#allocation17 + $0x2a0] sm:$0xff]
    %v2437 = vld [vmem:[#allocation17 + $0x2a8] sm:$0xff]
    %v2438 = vld [vmem:[#allocation17 + $0x2b0] sm:$0xff]
    %v2439 = vld [vmem:[#allocation17 + $0x2b8] sm:$0xff]
    %v2440 = vld [vmem:[#allocation17 + $0x2c0] sm:$0xff]
    %v2441 = vld [vmem:[#allocation17 + $0x2c8] sm:$0xff]
    %v2442 = vld [vmem:[#allocation17 + $0x2d0] sm:$0xff]
    %v2443 = vld [vmem:[#allocation17 + $0x2d8] sm:$0xff]
    %v2444 = vld [vmem:[#allocation17 + $0x2e0] sm:$0xff]
    %v2445 = vld [vmem:[#allocation17 + $0x2e8] sm:$0xff]
    %v2446 = vld [vmem:[#allocation17 + $0x2f0] sm:$0xff]
    %v2447 = vld [vmem:[#allocation17 + $0x2f8] sm:$0xff]
    %v2448 = vld [vmem:[#allocation17 + $0x300] sm:$0xff]
    %v2449 = vld [vmem:[#allocation17 + $0x308] sm:$0xff]
    %v2450 = vld [vmem:[#allocation17 + $0x310] sm:$0xff]
    %v2451 = vld [vmem:[#allocation17 + $0x318] sm:$0xff]
    %v2452 = vld [vmem:[#allocation17 + $0x320] sm:$0xff]
    %v2453 = vld [vmem:[#allocation17 + $0x328] sm:$0xff]
    %v2454 = vld [vmem:[#allocation17 + $0x330] sm:$0xff]
    %v2455 = vld [vmem:[#allocation17 + $0x338] sm:$0xff]
    %v2456 = vld [vmem:[#allocation17 + $0x340] sm:$0xff]
    %v2457 = vld [vmem:[#allocation17 + $0x348] sm:$0xff]
    %v2458 = vld [vmem:[#allocation17 + $0x350] sm:$0xff]
    %v2459 = vld [vmem:[#allocation17 + $0x358] sm:$0xff]
    %v2460 = vld [vmem:[#allocation17 + $0x360] sm:$0xff]
    %v2461 = vld [vmem:[#allocation17 + $0x368] sm:$0xff]
    %v2462 = vld [vmem:[#allocation17 + $0x370] sm:$0xff]
    %v2463 = vld [vmem:[#allocation17 + $0x378] sm:$0xff]
    %v2464 = vld [vmem:[#allocation17 + $0x380] sm:$0xff]
    %v2465 = vld [vmem:[#allocation17 + $0x388] sm:$0xff]
    %v2466 = vld [vmem:[#allocation17 + $0x390] sm:$0xff]
    %v2467 = vld [vmem:[#allocation17 + $0x398] sm:$0xff]
    %v2468 = vld [vmem:[#allocation17 + $0x3a0] sm:$0xff]
    %v2469 = vld [vmem:[#allocation17 + $0x3a8] sm:$0xff]
    %v2470 = vld [vmem:[#allocation17 + $0x3b0] sm:$0xff]
    %v2471 = vld [vmem:[#allocation17 + $0x3b8] sm:$0xff]
    %v2472 = vld [vmem:[#allocation17 + $0x3c0] sm:$0xff]
    %v2473 = vld [vmem:[#allocation17 + $0x3c8] sm:$0xff]
    %v2474 = vld [vmem:[#allocation17 + $0x3d0] sm:$0xff]
    %v2475 = vld [vmem:[#allocation17 + $0x3d8] sm:$0xff]
    %v2476 = vld [vmem:[#allocation17 + $0x3e0] sm:$0xff]
    %v2477 = vld [vmem:[#allocation17 + $0x3e8] sm:$0xff]
    %v2478 = vld [vmem:[#allocation17 + $0x3f0] sm:$0xff]
    %v2479 = vld [vmem:[#allocation17 + $0x3f8] sm:$0xff]
    %v2480 = vld [vmem:[#allocation17 + $0x400] sm:$0xff]
    %v2481 = vld [vmem:[#allocation17 + $0x408] sm:$0xff]
    %v2482 = vld [vmem:[#allocation17 + $0x410] sm:$0xff]
    %v2483 = vld [vmem:[#allocation17 + $0x418] sm:$0xff]
    %v2484 = vld [vmem:[#allocation17 + $0x420] sm:$0xff]
    %v2485 = vld [vmem:[#allocation17 + $0x428] sm:$0xff]
    %v2486 = vld [vmem:[#allocation17 + $0x430] sm:$0xff]
    %v2487 = vld [vmem:[#allocation17 + $0x438] sm:$0xff]
    %v2488 = vld [vmem:[#allocation17 + $0x440] sm:$0xff]
    %v2489 = vld [vmem:[#allocation17 + $0x448] sm:$0xff]
    %v2490 = vld [vmem:[#allocation17 + $0x450] sm:$0xff]
    %v2491 = vld [vmem:[#allocation17 + $0x458] sm:$0xff]
    %v2492 = vld [vmem:[#allocation17 + $0x460] sm:$0xff]
    %v2493 = vld [vmem:[#allocation17 + $0x468] sm:$0xff]
    %v2494 = vld [vmem:[#allocation17 + $0x470] sm:$0xff]
    %v2495 = vld [vmem:[#allocation17 + $0x478] sm:$0xff]
    %v2496 = vld [vmem:[#allocation17 + $0x480] sm:$0xff]
    %v2497 = vld [vmem:[#allocation17 + $0x488] sm:$0xff]
    %v2498 = vld [vmem:[#allocation17 + $0x490] sm:$0xff]
    %v2499 = vld [vmem:[#allocation17 + $0x498] sm:$0xff]
    %v2500 = vld [vmem:[#allocation17 + $0x4a0] sm:$0xff]
    %v2501 = vld [vmem:[#allocation17 + $0x4a8] sm:$0xff]
    %v2502 = vld [vmem:[#allocation17 + $0x4b0] sm:$0xff]
    %v2503 = vld [vmem:[#allocation17 + $0x4b8] sm:$0xff]
    %v2504 = vld [vmem:[#allocation17 + $0x4c0] sm:$0xff]
    %v2505 = vld [vmem:[#allocation17 + $0x4c8] sm:$0xff]
    %v2506 = vld [vmem:[#allocation17 + $0x4d0] sm:$0xff]
    %v2507 = vld [vmem:[#allocation17 + $0x4d8] sm:$0xff]
    %v2508 = vld [vmem:[#allocation17 + $0x4e0] sm:$0xff]
    %v2509 = vld [vmem:[#allocation17 + $0x4e8] sm:$0xff]
    %v2510 = vld [vmem:[#allocation17 + $0x4f0] sm:$0xff]
    %v2511 = vld [vmem:[#allocation17 + $0x4f8] sm:$0xff]
    %v2512 = vld [vmem:[#allocation17 + $0x500] sm:$0xff]
    %v2513 = vld [vmem:[#allocation17 + $0x508] sm:$0xff]
    %v2514 = vld [vmem:[#allocation17 + $0x510] sm:$0xff]
    %v2515 = vld [vmem:[#allocation17 + $0x518] sm:$0xff]
    %v2516 = vld [vmem:[#allocation17 + $0x520] sm:$0xff]
    %v2517 = vld [vmem:[#allocation17 + $0x528] sm:$0xff]
    %v2518 = vld [vmem:[#allocation17 + $0x530] sm:$0xff]
    %v2519 = vld [vmem:[#allocation17 + $0x538] sm:$0xff]
    %v2520 = vld [vmem:[#allocation17 + $0x540] sm:$0xff]
    %v2521 = vld [vmem:[#allocation17 + $0x548] sm:$0xff]
    %v2522 = vld [vmem:[#allocation17 + $0x550] sm:$0xff]
    %v2523 = vld [vmem:[#allocation17 + $0x558] sm:$0xff]
    %v2524 = vld [vmem:[#allocation17 + $0x560] sm:$0xff]
    %v2525 = vld [vmem:[#allocation17 + $0x568] sm:$0xff]
    %v2526 = vld [vmem:[#allocation17 + $0x570] sm:$0xff]
    %v2527 = vld [vmem:[#allocation17 + $0x578] sm:$0xff]
    %v2528 = vld [vmem:[#allocation17 + $0x580] sm:$0xff]
    %v2529 = vld [vmem:[#allocation17 + $0x588] sm:$0xff]
    %v2530 = vld [vmem:[#allocation17 + $0x590] sm:$0xff]
    %v2531 = vld [vmem:[#allocation17 + $0x598] sm:$0xff]
    %v2532 = vld [vmem:[#allocation17 + $0x5a0] sm:$0xff]
    %v2533 = vld [vmem:[#allocation17 + $0x5a8] sm:$0xff]
    %v2534 = vld [vmem:[#allocation17 + $0x5b0] sm:$0xff]
    %v2535 = vld [vmem:[#allocation17 + $0x5b8] sm:$0xff]
    %v2536 = vld [vmem:[#allocation17 + $0x5c0] sm:$0xff]
    %v2537 = vld [vmem:[#allocation17 + $0x5c8] sm:$0xff]
    %v2538 = vld [vmem:[#allocation17 + $0x5d0] sm:$0xff]
    %v2539 = vld [vmem:[#allocation17 + $0x5d8] sm:$0xff]
    %v2540 = vld [vmem:[#allocation17 + $0x5e0] sm:$0xff]
    %v2541 = vld [vmem:[#allocation17 + $0x5e8] sm:$0xff]
    %v2542 = vld [vmem:[#allocation17 + $0x5f0] sm:$0xff]
    %v2543 = vld [vmem:[#allocation17 + $0x5f8] sm:$0xff]
    %v2544 = vld [vmem:[#allocation18] sm:$0x3f]
    %v2546 = vlaneseq
    %v2547 = vshrl.u32 %v2546, 7
    %v2548 = vsub.s32 0, %v2547
    %v2549 = vrot.slane %v2544, %v2548
    %v2550 = vlaneseq
    %v2551 = vshrl.u32 %v2550, 7
    %v2552 = vsub.s32 1, %v2551
    %v2553 = vrot.slane %v2544, %v2552
    %v2554 = vlaneseq
    %v2555 = vshrl.u32 %v2554, 7
    %v2556 = vsub.s32 2, %v2555
    %v2557 = vrot.slane %v2544, %v2556
    %v2558 = vlaneseq
    %v2559 = vshrl.u32 %v2558, 7
    %v2560 = vsub.s32 3, %v2559
    %v2561 = vrot.slane %v2544, %v2560
    %v2562 = vlaneseq
    %v2563 = vshrl.u32 %v2562, 7
    %v2564 = vsub.s32 4, %v2563
    %v2565 = vrot.slane %v2544, %v2564
    %v2566 = vlaneseq
    %v2567 = vshrl.u32 %v2566, 7
    %v2568 = vsub.s32 5, %v2567
    %v2569 = vrot.slane %v2544, %v2568
    %2576 = vmatprep.subr.mxu0 %v2443
    %2577 = vmatpush1.msra.mxu0 %v2442
    %2578 = vmatprep.subr.mxu0 %v2437
    %2579 = vmatpush1.msra.mxu0 %v2436
    %2580 = vmatprep.subr.mxu0 %v2431
    %2581 = vmatpush1.msra.mxu0 %v2430
    %2582 = vmatprep.subr.mxu0 %v2425
    %2583 = vmatpush1.msra.mxu0 %v2424
    %2584 = vmatprep.subr.mxu0 %v2419
    %2585 = vmatpush1.msra.mxu0 %v2418
    %2586 = vmatprep.subr.mxu0 %v2413
    %2587 = vmatpush1.msra.mxu0 %v2412
    %2588 = vmatprep.subr.mxu0 %v2407
    %2589 = vmatpush1.msra.mxu0 %v2406
    %2590 = vmatprep.subr.mxu0 %v2401
    %2591 = vmatpush1.msra.mxu0 %v2400
    %2592 = vmatprep.subr.mxu0 %v2395
    %2593 = vmatpush1.msra.mxu0 %v2394
    %2594 = vmatprep.subr.mxu0 %v2389
    %2595 = vmatpush1.msra.mxu0 %v2388
    %2596 = vmatprep.subr.mxu0 %v2383
    %2597 = vmatpush1.msra.mxu0 %v2382
    %2598 = vmatprep.subr.mxu0 %v2377
    %2599 = vmatpush1.msra.mxu0 %v2376
    %2600 = vmatprep.subr.mxu0 %v2371
    %2601 = vmatpush1.msra.mxu0 %v2370
    %2602 = vmatprep.subr.mxu0 %v2365
    %2603 = vmatpush1.msra.mxu0 %v2364
    %2604 = vmatprep.subr.mxu0 %v2359
    %2605 = vmatpush1.msra.mxu0 %v2358
    %2606 = vmatprep.subr.mxu0 %v2353
    %2607 = vmatpush1.msra.mxu0 %v2352
    %2608 = vmatprep.subr.mxu0 %v2539
    %2609 = vmatpush2.msra.mxu0 %v2538
    %2610 = vmatprep.subr.mxu0 %v2533
    %2611 = vmatpush2.msra.mxu0 %v2532
    %2612 = vmatprep.subr.mxu0 %v2527
    %2613 = vmatpush2.msra.mxu0 %v2526
    %2614 = vmatprep.subr.mxu0 %v2521
    %2615 = vmatpush2.msra.mxu0 %v2520
    %2616 = vmatprep.subr.mxu0 %v2515
    %2617 = vmatpush2.msra.mxu0 %v2514
    %2618 = vmatprep.subr.mxu0 %v2509
    %2619 = vmatpush2.msra.mxu0 %v2508
    %2620 = vmatprep.subr.mxu0 %v2503
    %2621 = vmatpush2.msra.mxu0 %v2502
    %2622 = vmatprep.subr.mxu0 %v2497
    %2623 = vmatpush2.msra.mxu0 %v2496
    %2624 = vmatprep.subr.mxu0 %v2491
    %2625 = vmatpush2.msra.mxu0 %v2490
    %2626 = vmatprep.subr.mxu0 %v2485
    %2627 = vmatpush2.msra.mxu0 %v2484
    %2628 = vmatprep.subr.mxu0 %v2479
    %2629 = vmatpush2.msra.mxu0 %v2478
    %2630 = vmatprep.subr.mxu0 %v2473
    %2631 = vmatpush2.msra.mxu0 %v2472
    %2632 = vmatprep.subr.mxu0 %v2467
    %2633 = vmatpush2.msra.mxu0 %v2466
    %2634 = vmatprep.subr.mxu0 %v2461
    %2635 = vmatpush2.msra.mxu0 %v2460
    %2636 = vmatprep.subr.mxu0 %v2455
    %2637 = vmatpush2.msra.mxu0 %v2454
    %2638 = vmatprep.subr.mxu0 %v2449
    %2639 = vmatpush2.msra.mxu0 %v2448
    %2640 = vmatprep.mubr.f32.mxu0 %v2351
    %2641 = vmatmul.mubr.f32.gmra.mxu0 %v2350
    %v2642 = vpop.f32.mrf.mxu0
    %v2643 = vadd.f32 %v2549, %v2642
    %v2644 = vpop.f32.mrf.mxu0
    %v2645 = vadd.f32 %v2553, %v2644
    %2646 = vdwg.mxu0
    %2647 = vmatprep.subr.mxu0 %v2445
    %2648 = vmatpush1.msra.mxu0 %v2444
    %2649 = vmatprep.subr.mxu0 %v2439
    %2650 = vmatpush1.msra.mxu0 %v2438
    %2651 = vmatprep.subr.mxu0 %v2433
    %2652 = vmatpush1.msra.mxu0 %v2432
    %2653 = vmatprep.subr.mxu0 %v2427
    %2654 = vmatpush1.msra.mxu0 %v2426
    %2655 = vmatprep.subr.mxu0 %v2421
    %2656 = vmatpush1.msra.mxu0 %v2420
    %2657 = vmatprep.subr.mxu0 %v2415
    %2658 = vmatpush1.msra.mxu0 %v2414
    %2659 = vmatprep.subr.mxu0 %v2409
    %2660 = vmatpush1.msra.mxu0 %v2408
    %2661 = vmatprep.subr.mxu0 %v2403
    %2662 = vmatpush1.msra.mxu0 %v2402
    %2663 = vmatprep.subr.mxu0 %v2397
    %2664 = vmatpush1.msra.mxu0 %v2396
    %2665 = vmatprep.subr.mxu0 %v2391
    %2666 = vmatpush1.msra.mxu0 %v2390
    %2667 = vmatprep.subr.mxu0 %v2385
    %2668 = vmatpush1.msra.mxu0 %v2384
    %2669 = vmatprep.subr.mxu0 %v2379
    %2670 = vmatpush1.msra.mxu0 %v2378
    %2671 = vmatprep.subr.mxu0 %v2373
    %2672 = vmatpush1.msra.mxu0 %v2372
    %2673 = vmatprep.subr.mxu0 %v2367
    %2674 = vmatpush1.msra.mxu0 %v2366
    %2675 = vmatprep.subr.mxu0 %v2361
    %2676 = vmatpush1.msra.mxu0 %v2360
    %2677 = vmatprep.subr.mxu0 %v2355
    %2678 = vmatpush1.msra.mxu0 %v2354
    %2679 = vmatprep.subr.mxu0 %v2541
    %2680 = vmatpush2.msra.mxu0 %v2540
    %2681 = vmatprep.subr.mxu0 %v2535
    %2682 = vmatpush2.msra.mxu0 %v2534
    %2683 = vmatprep.subr.mxu0 %v2529
    %2684 = vmatpush2.msra.mxu0 %v2528
    %2685 = vmatprep.subr.mxu0 %v2523
    %2686 = vmatpush2.msra.mxu0 %v2522
    %2687 = vmatprep.subr.mxu0 %v2517
    %2688 = vmatpush2.msra.mxu0 %v2516
    %2689 = vmatprep.subr.mxu0 %v2511
    %2690 = vmatpush2.msra.mxu0 %v2510
    %2691 = vmatprep.subr.mxu0 %v2505
    %2692 = vmatpush2.msra.mxu0 %v2504
    %2693 = vmatprep.subr.mxu0 %v2499
    %2694 = vmatpush2.msra.mxu0 %v2498
    %2695 = vmatprep.subr.mxu0 %v2493
    %2696 = vmatpush2.msra.mxu0 %v2492
    %2697 = vmatprep.subr.mxu0 %v2487
    %2698 = vmatpush2.msra.mxu0 %v2486
    %2699 = vmatprep.subr.mxu0 %v2481
    %2700 = vmatpush2.msra.mxu0 %v2480
    %2701 = vmatprep.subr.mxu0 %v2475
    %2702 = vmatpush2.msra.mxu0 %v2474
    %2703 = vmatprep.subr.mxu0 %v2469
    %2704 = vmatpush2.msra.mxu0 %v2468
    %2705 = vmatprep.subr.mxu0 %v2463
    %2706 = vmatpush2.msra.mxu0 %v2462
    %2707 = vmatprep.subr.mxu0 %v2457
    %2708 = vmatpush2.msra.mxu0 %v2456
    %2709 = vmatprep.subr.mxu0 %v2451
    %2710 = vmatpush2.msra.mxu0 %v2450
    %2711 = vmatprep.mubr.f32.mxu0 %v2351
    %2712 = vmatmul.mubr.f32.gmra.mxu0 %v2350
    %v2713 = vpop.f32.mrf.mxu0
    %v2714 = vadd.f32 %v2557, %v2713
    %v2715 = vpop.f32.mrf.mxu0
    %v2716 = vadd.f32 %v2561, %v2715
    %2717 = vdwg.mxu0
    %2718 = vmatprep.subr.mxu0 %v2447
    %2719 = vmatpush1.msra.mxu0 %v2446
    %2720 = vmatprep.subr.mxu0 %v2441
    %2721 = vmatpush1.msra.mxu0 %v2440
    %2722 = vmatprep.subr.mxu0 %v2435
    %2723 = vmatpush1.msra.mxu0 %v2434
    %2724 = vmatprep.subr.mxu0 %v2429
    %2725 = vmatpush1.msra.mxu0 %v2428
    %2726 = vmatprep.subr.mxu0 %v2423
    %2727 = vmatpush1.msra.mxu0 %v2422
    %2728 = vmatprep.subr.mxu0 %v2417
    %2729 = vmatpush1.msra.mxu0 %v2416
    %2730 = vmatprep.subr.mxu0 %v2411
    %2731 = vmatpush1.msra.mxu0 %v2410
    %2732 = vmatprep.subr.mxu0 %v2405
    %2733 = vmatpush1.msra.mxu0 %v2404
    %2734 = vmatprep.subr.mxu0 %v2399
    %2735 = vmatpush1.msra.mxu0 %v2398
    %2736 = vmatprep.subr.mxu0 %v2393
    %2737 = vmatpush1.msra.mxu0 %v2392
    %2738 = vmatprep.subr.mxu0 %v2387
    %2739 = vmatpush1.msra.mxu0 %v2386
    %2740 = vmatprep.subr.mxu0 %v2381
    %2741 = vmatpush1.msra.mxu0 %v2380
    %2742 = vmatprep.subr.mxu0 %v2375
    %2743 = vmatpush1.msra.mxu0 %v2374
    %2744 = vmatprep.subr.mxu0 %v2369
    %2745 = vmatpush1.msra.mxu0 %v2368
    %2746 = vmatprep.subr.mxu0 %v2363
    %2747 = vmatpush1.msra.mxu0 %v2362
    %2748 = vmatprep.subr.mxu0 %v2357
    %2749 = vmatpush1.msra.mxu0 %v2356
    %2750 = vmatprep.subr.mxu0 %v2543
    %2751 = vmatpush2.msra.mxu0 %v2542
    %2752 = vmatprep.subr.mxu0 %v2537
    %2753 = vmatpush2.msra.mxu0 %v2536
    %2754 = vmatprep.subr.mxu0 %v2531
    %2755 = vmatpush2.msra.mxu0 %v2530
    %2756 = vmatprep.subr.mxu0 %v2525
    %2757 = vmatpush2.msra.mxu0 %v2524
    %2758 = vmatprep.subr.mxu0 %v2519
    %2759 = vmatpush2.msra.mxu0 %v2518
    %2760 = vmatprep.subr.mxu0 %v2513
    %2761 = vmatpush2.msra.mxu0 %v2512
    %2762 = vmatprep.subr.mxu0 %v2507
    %2763 = vmatpush2.msra.mxu0 %v2506
    %2764 = vmatprep.subr.mxu0 %v2501
    %2765 = vmatpush2.msra.mxu0 %v2500
    %2766 = vmatprep.subr.mxu0 %v2495
    %2767 = vmatpush2.msra.mxu0 %v2494
    %2768 = vmatprep.subr.mxu0 %v2489
    %2769 = vmatpush2.msra.mxu0 %v2488
    %2770 = vmatprep.subr.mxu0 %v2483
    %2771 = vmatpush2.msra.mxu0 %v2482
    %2772 = vmatprep.subr.mxu0 %v2477
    %2773 = vmatpush2.msra.mxu0 %v2476
    %2774 = vmatprep.subr.mxu0 %v2471
    %2775 = vmatpush2.msra.mxu0 %v2470
    %2776 = vmatprep.subr.mxu0 %v2465
    %2777 = vmatpush2.msra.mxu0 %v2464
    %2778 = vmatprep.subr.mxu0 %v2459
    %2779 = vmatpush2.msra.mxu0 %v2458
    %2780 = vmatprep.subr.mxu0 %v2453
    %2781 = vmatpush2.msra.mxu0 %v2452
    %2782 = vmatprep.mubr.f32.mxu0 %v2351
    %2783 = vmatmul.mubr.f32.gmra.mxu0 %v2350
    %v2784 = vpop.f32.mrf.mxu0
    %v2785 = vadd.f32 %v2565, %v2784
    %v2786 = vpop.f32.mrf.mxu0
    %v2787 = vadd.f32 %v2569, %v2786
    %2788 = vdwg.mxu0
    %v2789 = vmax.f32 %v2643, 0.0
    %v2790 = vmax.f32 %v2645, 0.0
    %v2791 = vmax.f32 %v2714, 0.0
    %v2792 = vmax.f32 %v2716, 0.0
    %v2793 = vmax.f32 %v2785, 0.0
    %v2794 = vmax.f32 %v2787, 0.0
    %v2795 = vld [vmem:[#allocation20] sm:$0xff]
    %v2796 = vld [vmem:[#allocation20 + $0x8] sm:$0xff]
    %v2797 = vld [vmem:[#allocation20 + $0x10] sm:$0xff]
    %v2798 = vld [vmem:[#allocation20 + $0x18] sm:$0xff]
    %v2799 = vld [vmem:[#allocation20 + $0x20] sm:$0xff]
    %v2800 = vld [vmem:[#allocation20 + $0x28] sm:$0xff]
    %v2801 = vld [vmem:[#allocation20 + $0x30] sm:$0xff]
    %v2802 = vld [vmem:[#allocation20 + $0x38] sm:$0xff]
    %v2803 = vld [vmem:[#allocation20 + $0x40] sm:$0xff]
    %v2804 = vld [vmem:[#allocation20 + $0x48] sm:$0xff]
    %v2805 = vld [vmem:[#allocation20 + $0x50] sm:$0xff]
    %v2806 = vld [vmem:[#allocation20 + $0x58] sm:$0xff]
    %v2807 = vld [vmem:[#allocation20 + $0x60] sm:$0xff]
    %v2808 = vld [vmem:[#allocation20 + $0x68] sm:$0xff]
    %v2809 = vld [vmem:[#allocation20 + $0x70] sm:$0xff]
    %v2810 = vld [vmem:[#allocation20 + $0x78] sm:$0xff]
    %v2811 = vld [vmem:[#allocation20 + $0x80] sm:$0xff]
    %v2812 = vld [vmem:[#allocation20 + $0x88] sm:$0xff]
    %v2813 = vld [vmem:[#allocation20 + $0x90] sm:$0xff]
    %v2814 = vld [vmem:[#allocation20 + $0x98] sm:$0xff]
    %v2815 = vld [vmem:[#allocation20 + $0xa0] sm:$0xff]
    %v2816 = vld [vmem:[#allocation20 + $0xa8] sm:$0xff]
    %v2817 = vld [vmem:[#allocation20 + $0xb0] sm:$0xff]
    %v2818 = vld [vmem:[#allocation20 + $0xb8] sm:$0xff]
    %v2819 = vld [vmem:[#allocation20 + $0xc0] sm:$0xff]
    %v2820 = vld [vmem:[#allocation20 + $0xc8] sm:$0xff]
    %v2821 = vld [vmem:[#allocation20 + $0xd0] sm:$0xff]
    %v2822 = vld [vmem:[#allocation20 + $0xd8] sm:$0xff]
    %v2823 = vld [vmem:[#allocation20 + $0xe0] sm:$0xff]
    %v2824 = vld [vmem:[#allocation20 + $0xe8] sm:$0xff]
    %v2825 = vld [vmem:[#allocation20 + $0xf0] sm:$0xff]
    %v2826 = vld [vmem:[#allocation20 + $0xf8] sm:$0xff]
    %v2827 = vld [vmem:[#allocation20 + $0x100] sm:$0xff]
    %v2828 = vld [vmem:[#allocation20 + $0x108] sm:$0xff]
    %v2829 = vld [vmem:[#allocation20 + $0x110] sm:$0xff]
    %v2830 = vld [vmem:[#allocation20 + $0x118] sm:$0xff]
    %v2831 = vld [vmem:[#allocation20 + $0x120] sm:$0xff]
    %v2832 = vld [vmem:[#allocation20 + $0x128] sm:$0xff]
    %v2833 = vld [vmem:[#allocation20 + $0x130] sm:$0xff]
    %v2834 = vld [vmem:[#allocation20 + $0x138] sm:$0xff]
    %v2835 = vld [vmem:[#allocation20 + $0x140] sm:$0xff]
    %v2836 = vld [vmem:[#allocation20 + $0x148] sm:$0xff]
    %v2837 = vld [vmem:[#allocation20 + $0x150] sm:$0xff]
    %v2838 = vld [vmem:[#allocation20 + $0x158] sm:$0xff]
    %v2839 = vld [vmem:[#allocation20 + $0x160] sm:$0xff]
    %v2840 = vld [vmem:[#allocation20 + $0x168] sm:$0xff]
    %v2841 = vld [vmem:[#allocation20 + $0x170] sm:$0xff]
    %v2842 = vld [vmem:[#allocation20 + $0x178] sm:$0xff]
    %v2843 = vld [vmem:[#allocation20 + $0x180] sm:$0xff]
    %v2844 = vld [vmem:[#allocation20 + $0x188] sm:$0xff]
    %v2845 = vld [vmem:[#allocation20 + $0x190] sm:$0xff]
    %v2846 = vld [vmem:[#allocation20 + $0x198] sm:$0xff]
    %v2847 = vld [vmem:[#allocation20 + $0x1a0] sm:$0xff]
    %v2848 = vld [vmem:[#allocation20 + $0x1a8] sm:$0xff]
    %v2849 = vld [vmem:[#allocation20 + $0x1b0] sm:$0xff]
    %v2850 = vld [vmem:[#allocation20 + $0x1b8] sm:$0xff]
    %v2851 = vld [vmem:[#allocation20 + $0x1c0] sm:$0xff]
    %v2852 = vld [vmem:[#allocation20 + $0x1c8] sm:$0xff]
    %v2853 = vld [vmem:[#allocation20 + $0x1d0] sm:$0xff]
    %v2854 = vld [vmem:[#allocation20 + $0x1d8] sm:$0xff]
    %v2855 = vld [vmem:[#allocation20 + $0x1e0] sm:$0xff]
    %v2856 = vld [vmem:[#allocation20 + $0x1e8] sm:$0xff]
    %v2857 = vld [vmem:[#allocation20 + $0x1f0] sm:$0xff]
    %v2858 = vld [vmem:[#allocation20 + $0x1f8] sm:$0xff]
    %v2859 = vld [vmem:[#allocation20 + $0x200] sm:$0xff]
    %v2860 = vld [vmem:[#allocation20 + $0x208] sm:$0xff]
    %v2861 = vld [vmem:[#allocation20 + $0x210] sm:$0xff]
    %v2862 = vld [vmem:[#allocation20 + $0x218] sm:$0xff]
    %v2863 = vld [vmem:[#allocation20 + $0x220] sm:$0xff]
    %v2864 = vld [vmem:[#allocation20 + $0x228] sm:$0xff]
    %v2865 = vld [vmem:[#allocation20 + $0x230] sm:$0xff]
    %v2866 = vld [vmem:[#allocation20 + $0x238] sm:$0xff]
    %v2867 = vld [vmem:[#allocation20 + $0x240] sm:$0xff]
    %v2868 = vld [vmem:[#allocation20 + $0x248] sm:$0xff]
    %v2869 = vld [vmem:[#allocation20 + $0x250] sm:$0xff]
    %v2870 = vld [vmem:[#allocation20 + $0x258] sm:$0xff]
    %v2871 = vld [vmem:[#allocation20 + $0x260] sm:$0xff]
    %v2872 = vld [vmem:[#allocation20 + $0x268] sm:$0xff]
    %v2873 = vld [vmem:[#allocation20 + $0x270] sm:$0xff]
    %v2874 = vld [vmem:[#allocation20 + $0x278] sm:$0xff]
    %v2875 = vld [vmem:[#allocation20 + $0x280] sm:$0xff]
    %v2876 = vld [vmem:[#allocation20 + $0x288] sm:$0xff]
    %v2877 = vld [vmem:[#allocation20 + $0x290] sm:$0xff]
    %v2878 = vld [vmem:[#allocation20 + $0x298] sm:$0xff]
    %v2879 = vld [vmem:[#allocation20 + $0x2a0] sm:$0xff]
    %v2880 = vld [vmem:[#allocation20 + $0x2a8] sm:$0xff]
    %v2881 = vld [vmem:[#allocation20 + $0x2b0] sm:$0xff]
    %v2882 = vld [vmem:[#allocation20 + $0x2b8] sm:$0xff]
    %v2883 = vld [vmem:[#allocation20 + $0x2c0] sm:$0xff]
    %v2884 = vld [vmem:[#allocation20 + $0x2c8] sm:$0xff]
    %v2885 = vld [vmem:[#allocation20 + $0x2d0] sm:$0xff]
    %v2886 = vld [vmem:[#allocation20 + $0x2d8] sm:$0xff]
    %v2887 = vld [vmem:[#allocation20 + $0x2e0] sm:$0xff]
    %v2888 = vld [vmem:[#allocation20 + $0x2e8] sm:$0xff]
    %v2889 = vld [vmem:[#allocation20 + $0x2f0] sm:$0xff]
    %v2890 = vld [vmem:[#allocation20 + $0x2f8] sm:$0xff]
    %v2891 = vld [vmem:[#allocation20 + $0x300] sm:$0xff]
    %v2892 = vld [vmem:[#allocation20 + $0x308] sm:$0xff]
    %v2893 = vld [vmem:[#allocation20 + $0x310] sm:$0xff]
    %v2894 = vld [vmem:[#allocation20 + $0x318] sm:$0xff]
    %v2895 = vld [vmem:[#allocation20 + $0x320] sm:$0xff]
    %v2896 = vld [vmem:[#allocation20 + $0x328] sm:$0xff]
    %v2897 = vld [vmem:[#allocation20 + $0x330] sm:$0xff]
    %v2898 = vld [vmem:[#allocation20 + $0x338] sm:$0xff]
    %v2899 = vld [vmem:[#allocation20 + $0x340] sm:$0xff]
    %v2900 = vld [vmem:[#allocation20 + $0x348] sm:$0xff]
    %v2901 = vld [vmem:[#allocation20 + $0x350] sm:$0xff]
    %v2902 = vld [vmem:[#allocation20 + $0x358] sm:$0xff]
    %v2903 = vld [vmem:[#allocation20 + $0x360] sm:$0xff]
    %v2904 = vld [vmem:[#allocation20 + $0x368] sm:$0xff]
    %v2905 = vld [vmem:[#allocation20 + $0x370] sm:$0xff]
    %v2906 = vld [vmem:[#allocation20 + $0x378] sm:$0xff]
    %v2907 = vld [vmem:[#allocation20 + $0x380] sm:$0xff]
    %v2908 = vld [vmem:[#allocation20 + $0x388] sm:$0xff]
    %v2909 = vld [vmem:[#allocation20 + $0x390] sm:$0xff]
    %v2910 = vld [vmem:[#allocation20 + $0x398] sm:$0xff]
    %v2911 = vld [vmem:[#allocation20 + $0x3a0] sm:$0xff]
    %v2912 = vld [vmem:[#allocation20 + $0x3a8] sm:$0xff]
    %v2913 = vld [vmem:[#allocation20 + $0x3b0] sm:$0xff]
    %v2914 = vld [vmem:[#allocation20 + $0x3b8] sm:$0xff]
    %v2915 = vld [vmem:[#allocation20 + $0x3c0] sm:$0xff]
    %v2916 = vld [vmem:[#allocation20 + $0x3c8] sm:$0xff]
    %v2917 = vld [vmem:[#allocation20 + $0x3d0] sm:$0xff]
    %v2918 = vld [vmem:[#allocation20 + $0x3d8] sm:$0xff]
    %v2919 = vld [vmem:[#allocation20 + $0x3e0] sm:$0xff]
    %v2920 = vld [vmem:[#allocation20 + $0x3e8] sm:$0xff]
    %v2921 = vld [vmem:[#allocation20 + $0x3f0] sm:$0xff]
    %v2922 = vld [vmem:[#allocation20 + $0x3f8] sm:$0xff]
    %v2923 = vld [vmem:[#allocation20 + $0x400] sm:$0xff]
    %v2924 = vld [vmem:[#allocation20 + $0x408] sm:$0xff]
    %v2925 = vld [vmem:[#allocation20 + $0x410] sm:$0xff]
    %v2926 = vld [vmem:[#allocation20 + $0x418] sm:$0xff]
    %v2927 = vld [vmem:[#allocation20 + $0x420] sm:$0xff]
    %v2928 = vld [vmem:[#allocation20 + $0x428] sm:$0xff]
    %v2929 = vld [vmem:[#allocation20 + $0x430] sm:$0xff]
    %v2930 = vld [vmem:[#allocation20 + $0x438] sm:$0xff]
    %v2931 = vld [vmem:[#allocation20 + $0x440] sm:$0xff]
    %v2932 = vld [vmem:[#allocation20 + $0x448] sm:$0xff]
    %v2933 = vld [vmem:[#allocation20 + $0x450] sm:$0xff]
    %v2934 = vld [vmem:[#allocation20 + $0x458] sm:$0xff]
    %v2935 = vld [vmem:[#allocation20 + $0x460] sm:$0xff]
    %v2936 = vld [vmem:[#allocation20 + $0x468] sm:$0xff]
    %v2937 = vld [vmem:[#allocation20 + $0x470] sm:$0xff]
    %v2938 = vld [vmem:[#allocation20 + $0x478] sm:$0xff]
    %v2939 = vld [vmem:[#allocation20 + $0x480] sm:$0xff]
    %v2940 = vld [vmem:[#allocation20 + $0x488] sm:$0xff]
    %v2941 = vld [vmem:[#allocation20 + $0x490] sm:$0xff]
    %v2942 = vld [vmem:[#allocation20 + $0x498] sm:$0xff]
    %v2943 = vld [vmem:[#allocation20 + $0x4a0] sm:$0xff]
    %v2944 = vld [vmem:[#allocation20 + $0x4a8] sm:$0xff]
    %v2945 = vld [vmem:[#allocation20 + $0x4b0] sm:$0xff]
    %v2946 = vld [vmem:[#allocation20 + $0x4b8] sm:$0xff]
    %v2947 = vld [vmem:[#allocation20 + $0x4c0] sm:$0xff]
    %v2948 = vld [vmem:[#allocation20 + $0x4c8] sm:$0xff]
    %v2949 = vld [vmem:[#allocation20 + $0x4d0] sm:$0xff]
    %v2950 = vld [vmem:[#allocation20 + $0x4d8] sm:$0xff]
    %v2951 = vld [vmem:[#allocation20 + $0x4e0] sm:$0xff]
    %v2952 = vld [vmem:[#allocation20 + $0x4e8] sm:$0xff]
    %v2953 = vld [vmem:[#allocation20 + $0x4f0] sm:$0xff]
    %v2954 = vld [vmem:[#allocation20 + $0x4f8] sm:$0xff]
    %v2955 = vld [vmem:[#allocation20 + $0x500] sm:$0xff]
    %v2956 = vld [vmem:[#allocation20 + $0x508] sm:$0xff]
    %v2957 = vld [vmem:[#allocation20 + $0x510] sm:$0xff]
    %v2958 = vld [vmem:[#allocation20 + $0x518] sm:$0xff]
    %v2959 = vld [vmem:[#allocation20 + $0x520] sm:$0xff]
    %v2960 = vld [vmem:[#allocation20 + $0x528] sm:$0xff]
    %v2961 = vld [vmem:[#allocation20 + $0x530] sm:$0xff]
    %v2962 = vld [vmem:[#allocation20 + $0x538] sm:$0xff]
    %v2963 = vld [vmem:[#allocation20 + $0x540] sm:$0xff]
    %v2964 = vld [vmem:[#allocation20 + $0x548] sm:$0xff]
    %v2965 = vld [vmem:[#allocation20 + $0x550] sm:$0xff]
    %v2966 = vld [vmem:[#allocation20 + $0x558] sm:$0xff]
    %v2967 = vld [vmem:[#allocation20 + $0x560] sm:$0xff]
    %v2968 = vld [vmem:[#allocation20 + $0x568] sm:$0xff]
    %v2969 = vld [vmem:[#allocation20 + $0x570] sm:$0xff]
    %v2970 = vld [vmem:[#allocation20 + $0x578] sm:$0xff]
    %v2971 = vld [vmem:[#allocation20 + $0x580] sm:$0xff]
    %v2972 = vld [vmem:[#allocation20 + $0x588] sm:$0xff]
    %v2973 = vld [vmem:[#allocation20 + $0x590] sm:$0xff]
    %v2974 = vld [vmem:[#allocation20 + $0x598] sm:$0xff]
    %v2975 = vld [vmem:[#allocation20 + $0x5a0] sm:$0xff]
    %v2976 = vld [vmem:[#allocation20 + $0x5a8] sm:$0xff]
    %v2977 = vld [vmem:[#allocation20 + $0x5b0] sm:$0xff]
    %v2978 = vld [vmem:[#allocation20 + $0x5b8] sm:$0xff]
    %v2979 = vld [vmem:[#allocation20 + $0x5c0] sm:$0xff]
    %v2980 = vld [vmem:[#allocation20 + $0x5c8] sm:$0xff]
    %v2981 = vld [vmem:[#allocation20 + $0x5d0] sm:$0xff]
    %v2982 = vld [vmem:[#allocation20 + $0x5d8] sm:$0xff]
    %v2983 = vld [vmem:[#allocation20 + $0x5e0] sm:$0xff]
    %v2984 = vld [vmem:[#allocation20 + $0x5e8] sm:$0xff]
    %v2985 = vld [vmem:[#allocation20 + $0x5f0] sm:$0xff]
    %v2986 = vld [vmem:[#allocation20 + $0x5f8] sm:$0xff]
    %v2987 = vld [vmem:[#allocation20 + $0x600] sm:$0xff]
    %v2988 = vld [vmem:[#allocation20 + $0x608] sm:$0xff]
    %v2989 = vld [vmem:[#allocation20 + $0x610] sm:$0xff]
    %v2990 = vld [vmem:[#allocation20 + $0x618] sm:$0xff]
    %v2991 = vld [vmem:[#allocation20 + $0x620] sm:$0xff]
    %v2992 = vld [vmem:[#allocation20 + $0x628] sm:$0xff]
    %v2993 = vld [vmem:[#allocation20 + $0x630] sm:$0xff]
    %v2994 = vld [vmem:[#allocation20 + $0x638] sm:$0xff]
    %v2995 = vld [vmem:[#allocation20 + $0x640] sm:$0xff]
    %v2996 = vld [vmem:[#allocation20 + $0x648] sm:$0xff]
    %v2997 = vld [vmem:[#allocation20 + $0x650] sm:$0xff]
    %v2998 = vld [vmem:[#allocation20 + $0x658] sm:$0xff]
    %v2999 = vld [vmem:[#allocation20 + $0x660] sm:$0xff]
    %v3000 = vld [vmem:[#allocation20 + $0x668] sm:$0xff]
    %v3001 = vld [vmem:[#allocation20 + $0x670] sm:$0xff]
    %v3002 = vld [vmem:[#allocation20 + $0x678] sm:$0xff]
    %v3003 = vld [vmem:[#allocation20 + $0x680] sm:$0xff]
    %v3004 = vld [vmem:[#allocation20 + $0x688] sm:$0xff]
    %v3005 = vld [vmem:[#allocation20 + $0x690] sm:$0xff]
    %v3006 = vld [vmem:[#allocation20 + $0x698] sm:$0xff]
    %v3007 = vld [vmem:[#allocation20 + $0x6a0] sm:$0xff]
    %v3008 = vld [vmem:[#allocation20 + $0x6a8] sm:$0xff]
    %v3009 = vld [vmem:[#allocation20 + $0x6b0] sm:$0xff]
    %v3010 = vld [vmem:[#allocation20 + $0x6b8] sm:$0xff]
    %v3011 = vld [vmem:[#allocation20 + $0x6c0] sm:$0xff]
    %v3012 = vld [vmem:[#allocation20 + $0x6c8] sm:$0xff]
    %v3013 = vld [vmem:[#allocation20 + $0x6d0] sm:$0xff]
    %v3014 = vld [vmem:[#allocation20 + $0x6d8] sm:$0xff]
    %v3015 = vld [vmem:[#allocation20 + $0x6e0] sm:$0xff]
    %v3016 = vld [vmem:[#allocation20 + $0x6e8] sm:$0xff]
    %v3017 = vld [vmem:[#allocation20 + $0x6f0] sm:$0xff]
    %v3018 = vld [vmem:[#allocation20 + $0x6f8] sm:$0xff]
    %v3019 = vld [vmem:[#allocation20 + $0x700] sm:$0xff]
    %v3020 = vld [vmem:[#allocation20 + $0x708] sm:$0xff]
    %v3021 = vld [vmem:[#allocation20 + $0x710] sm:$0xff]
    %v3022 = vld [vmem:[#allocation20 + $0x718] sm:$0xff]
    %v3023 = vld [vmem:[#allocation20 + $0x720] sm:$0xff]
    %v3024 = vld [vmem:[#allocation20 + $0x728] sm:$0xff]
    %v3025 = vld [vmem:[#allocation20 + $0x730] sm:$0xff]
    %v3026 = vld [vmem:[#allocation20 + $0x738] sm:$0xff]
    %v3027 = vld [vmem:[#allocation20 + $0x740] sm:$0xff]
    %v3028 = vld [vmem:[#allocation20 + $0x748] sm:$0xff]
    %v3029 = vld [vmem:[#allocation20 + $0x750] sm:$0xff]
    %v3030 = vld [vmem:[#allocation20 + $0x758] sm:$0xff]
    %v3031 = vld [vmem:[#allocation20 + $0x760] sm:$0xff]
    %v3032 = vld [vmem:[#allocation20 + $0x768] sm:$0xff]
    %v3033 = vld [vmem:[#allocation20 + $0x770] sm:$0xff]
    %v3034 = vld [vmem:[#allocation20 + $0x778] sm:$0xff]
    %v3035 = vld [vmem:[#allocation20 + $0x780] sm:$0xff]
    %v3036 = vld [vmem:[#allocation20 + $0x788] sm:$0xff]
    %v3037 = vld [vmem:[#allocation20 + $0x790] sm:$0xff]
    %v3038 = vld [vmem:[#allocation20 + $0x798] sm:$0xff]
    %v3039 = vld [vmem:[#allocation20 + $0x7a0] sm:$0xff]
    %v3040 = vld [vmem:[#allocation20 + $0x7a8] sm:$0xff]
    %v3041 = vld [vmem:[#allocation20 + $0x7b0] sm:$0xff]
    %v3042 = vld [vmem:[#allocation20 + $0x7b8] sm:$0xff]
    %v3043 = vld [vmem:[#allocation20 + $0x7c0] sm:$0xff]
    %v3044 = vld [vmem:[#allocation20 + $0x7c8] sm:$0xff]
    %v3045 = vld [vmem:[#allocation20 + $0x7d0] sm:$0xff]
    %v3046 = vld [vmem:[#allocation20 + $0x7d8] sm:$0xff]
    %v3047 = vld [vmem:[#allocation20 + $0x7e0] sm:$0xff]
    %v3048 = vld [vmem:[#allocation20 + $0x7e8] sm:$0xff]
    %v3049 = vld [vmem:[#allocation20 + $0x7f0] sm:$0xff]
    %v3050 = vld [vmem:[#allocation20 + $0x7f8] sm:$0xff]
    %v3051 = vld [vmem:[#allocation20 + $0x800] sm:$0xff]
    %v3052 = vld [vmem:[#allocation20 + $0x808] sm:$0xff]
    %v3053 = vld [vmem:[#allocation20 + $0x810] sm:$0xff]
    %v3054 = vld [vmem:[#allocation20 + $0x818] sm:$0xff]
    %v3055 = vld [vmem:[#allocation20 + $0x820] sm:$0xff]
    %v3056 = vld [vmem:[#allocation20 + $0x828] sm:$0xff]
    %v3057 = vld [vmem:[#allocation20 + $0x830] sm:$0xff]
    %v3058 = vld [vmem:[#allocation20 + $0x838] sm:$0xff]
    %v3059 = vld [vmem:[#allocation20 + $0x840] sm:$0xff]
    %v3060 = vld [vmem:[#allocation20 + $0x848] sm:$0xff]
    %v3061 = vld [vmem:[#allocation20 + $0x850] sm:$0xff]
    %v3062 = vld [vmem:[#allocation20 + $0x858] sm:$0xff]
    %v3063 = vld [vmem:[#allocation20 + $0x860] sm:$0xff]
    %v3064 = vld [vmem:[#allocation20 + $0x868] sm:$0xff]
    %v3065 = vld [vmem:[#allocation20 + $0x870] sm:$0xff]
    %v3066 = vld [vmem:[#allocation20 + $0x878] sm:$0xff]
    %v3067 = vld [vmem:[#allocation20 + $0x880] sm:$0xff]
    %v3068 = vld [vmem:[#allocation20 + $0x888] sm:$0xff]
    %v3069 = vld [vmem:[#allocation20 + $0x890] sm:$0xff]
    %v3070 = vld [vmem:[#allocation20 + $0x898] sm:$0xff]
    %v3071 = vld [vmem:[#allocation20 + $0x8a0] sm:$0xff]
    %v3072 = vld [vmem:[#allocation20 + $0x8a8] sm:$0xff]
    %v3073 = vld [vmem:[#allocation20 + $0x8b0] sm:$0xff]
    %v3074 = vld [vmem:[#allocation20 + $0x8b8] sm:$0xff]
    %v3075 = vld [vmem:[#allocation20 + $0x8c0] sm:$0xff]
    %v3076 = vld [vmem:[#allocation20 + $0x8c8] sm:$0xff]
    %v3077 = vld [vmem:[#allocation20 + $0x8d0] sm:$0xff]
    %v3078 = vld [vmem:[#allocation20 + $0x8d8] sm:$0xff]
    %v3079 = vld [vmem:[#allocation20 + $0x8e0] sm:$0xff]
    %v3080 = vld [vmem:[#allocation20 + $0x8e8] sm:$0xff]
    %v3081 = vld [vmem:[#allocation20 + $0x8f0] sm:$0xff]
    %v3082 = vld [vmem:[#allocation20 + $0x8f8] sm:$0xff]
    %v3083 = vld [vmem:[#allocation20 + $0x900] sm:$0xff]
    %v3084 = vld [vmem:[#allocation20 + $0x908] sm:$0xff]
    %v3085 = vld [vmem:[#allocation20 + $0x910] sm:$0xff]
    %v3086 = vld [vmem:[#allocation20 + $0x918] sm:$0xff]
    %v3087 = vld [vmem:[#allocation20 + $0x920] sm:$0xff]
    %v3088 = vld [vmem:[#allocation20 + $0x928] sm:$0xff]
    %v3089 = vld [vmem:[#allocation20 + $0x930] sm:$0xff]
    %v3090 = vld [vmem:[#allocation20 + $0x938] sm:$0xff]
    %v3091 = vld [vmem:[#allocation20 + $0x940] sm:$0xff]
    %v3092 = vld [vmem:[#allocation20 + $0x948] sm:$0xff]
    %v3093 = vld [vmem:[#allocation20 + $0x950] sm:$0xff]
    %v3094 = vld [vmem:[#allocation20 + $0x958] sm:$0xff]
    %v3095 = vld [vmem:[#allocation20 + $0x960] sm:$0xff]
    %v3096 = vld [vmem:[#allocation20 + $0x968] sm:$0xff]
    %v3097 = vld [vmem:[#allocation20 + $0x970] sm:$0xff]
    %v3098 = vld [vmem:[#allocation20 + $0x978] sm:$0xff]
    %v3099 = vld [vmem:[#allocation20 + $0x980] sm:$0xff]
    %v3100 = vld [vmem:[#allocation20 + $0x988] sm:$0xff]
    %v3101 = vld [vmem:[#allocation20 + $0x990] sm:$0xff]
    %v3102 = vld [vmem:[#allocation20 + $0x998] sm:$0xff]
    %v3103 = vld [vmem:[#allocation20 + $0x9a0] sm:$0xff]
    %v3104 = vld [vmem:[#allocation20 + $0x9a8] sm:$0xff]
    %v3105 = vld [vmem:[#allocation20 + $0x9b0] sm:$0xff]
    %v3106 = vld [vmem:[#allocation20 + $0x9b8] sm:$0xff]
    %v3107 = vld [vmem:[#allocation20 + $0x9c0] sm:$0xff]
    %v3108 = vld [vmem:[#allocation20 + $0x9c8] sm:$0xff]
    %v3109 = vld [vmem:[#allocation20 + $0x9d0] sm:$0xff]
    %v3110 = vld [vmem:[#allocation20 + $0x9d8] sm:$0xff]
    %v3111 = vld [vmem:[#allocation20 + $0x9e0] sm:$0xff]
    %v3112 = vld [vmem:[#allocation20 + $0x9e8] sm:$0xff]
    %v3113 = vld [vmem:[#allocation20 + $0x9f0] sm:$0xff]
    %v3114 = vld [vmem:[#allocation20 + $0x9f8] sm:$0xff]
    %v3115 = vld [vmem:[#allocation20 + $0xa00] sm:$0xff]
    %v3116 = vld [vmem:[#allocation20 + $0xa08] sm:$0xff]
    %v3117 = vld [vmem:[#allocation20 + $0xa10] sm:$0xff]
    %v3118 = vld [vmem:[#allocation20 + $0xa18] sm:$0xff]
    %v3119 = vld [vmem:[#allocation20 + $0xa20] sm:$0xff]
    %v3120 = vld [vmem:[#allocation20 + $0xa28] sm:$0xff]
    %v3121 = vld [vmem:[#allocation20 + $0xa30] sm:$0xff]
    %v3122 = vld [vmem:[#allocation20 + $0xa38] sm:$0xff]
    %v3123 = vld [vmem:[#allocation20 + $0xa40] sm:$0xff]
    %v3124 = vld [vmem:[#allocation20 + $0xa48] sm:$0xff]
    %v3125 = vld [vmem:[#allocation20 + $0xa50] sm:$0xff]
    %v3126 = vld [vmem:[#allocation20 + $0xa58] sm:$0xff]
    %v3127 = vld [vmem:[#allocation20 + $0xa60] sm:$0xff]
    %v3128 = vld [vmem:[#allocation20 + $0xa68] sm:$0xff]
    %v3129 = vld [vmem:[#allocation20 + $0xa70] sm:$0xff]
    %v3130 = vld [vmem:[#allocation20 + $0xa78] sm:$0xff]
    %v3131 = vld [vmem:[#allocation20 + $0xa80] sm:$0xff]
    %v3132 = vld [vmem:[#allocation20 + $0xa88] sm:$0xff]
    %v3133 = vld [vmem:[#allocation20 + $0xa90] sm:$0xff]
    %v3134 = vld [vmem:[#allocation20 + $0xa98] sm:$0xff]
    %v3135 = vld [vmem:[#allocation20 + $0xaa0] sm:$0xff]
    %v3136 = vld [vmem:[#allocation20 + $0xaa8] sm:$0xff]
    %v3137 = vld [vmem:[#allocation20 + $0xab0] sm:$0xff]
    %v3138 = vld [vmem:[#allocation20 + $0xab8] sm:$0xff]
    %v3139 = vld [vmem:[#allocation20 + $0xac0] sm:$0xff]
    %v3140 = vld [vmem:[#allocation20 + $0xac8] sm:$0xff]
    %v3141 = vld [vmem:[#allocation20 + $0xad0] sm:$0xff]
    %v3142 = vld [vmem:[#allocation20 + $0xad8] sm:$0xff]
    %v3143 = vld [vmem:[#allocation20 + $0xae0] sm:$0xff]
    %v3144 = vld [vmem:[#allocation20 + $0xae8] sm:$0xff]
    %v3145 = vld [vmem:[#allocation20 + $0xaf0] sm:$0xff]
    %v3146 = vld [vmem:[#allocation20 + $0xaf8] sm:$0xff]
    %v3147 = vld [vmem:[#allocation20 + $0xb00] sm:$0xff]
    %v3148 = vld [vmem:[#allocation20 + $0xb08] sm:$0xff]
    %v3149 = vld [vmem:[#allocation20 + $0xb10] sm:$0xff]
    %v3150 = vld [vmem:[#allocation20 + $0xb18] sm:$0xff]
    %v3151 = vld [vmem:[#allocation20 + $0xb20] sm:$0xff]
    %v3152 = vld [vmem:[#allocation20 + $0xb28] sm:$0xff]
    %v3153 = vld [vmem:[#allocation20 + $0xb30] sm:$0xff]
    %v3154 = vld [vmem:[#allocation20 + $0xb38] sm:$0xff]
    %v3155 = vld [vmem:[#allocation20 + $0xb40] sm:$0xff]
    %v3156 = vld [vmem:[#allocation20 + $0xb48] sm:$0xff]
    %v3157 = vld [vmem:[#allocation20 + $0xb50] sm:$0xff]
    %v3158 = vld [vmem:[#allocation20 + $0xb58] sm:$0xff]
    %v3159 = vld [vmem:[#allocation20 + $0xb60] sm:$0xff]
    %v3160 = vld [vmem:[#allocation20 + $0xb68] sm:$0xff]
    %v3161 = vld [vmem:[#allocation20 + $0xb70] sm:$0xff]
    %v3162 = vld [vmem:[#allocation20 + $0xb78] sm:$0xff]
    %v3163 = vld [vmem:[#allocation20 + $0xb80] sm:$0xff]
    %v3164 = vld [vmem:[#allocation20 + $0xb88] sm:$0xff]
    %v3165 = vld [vmem:[#allocation20 + $0xb90] sm:$0xff]
    %v3166 = vld [vmem:[#allocation20 + $0xb98] sm:$0xff]
    %v3167 = vld [vmem:[#allocation20 + $0xba0] sm:$0xff]
    %v3168 = vld [vmem:[#allocation20 + $0xba8] sm:$0xff]
    %v3169 = vld [vmem:[#allocation20 + $0xbb0] sm:$0xff]
    %v3170 = vld [vmem:[#allocation20 + $0xbb8] sm:$0xff]
    %v3171 = vld [vmem:[#allocation20 + $0xbc0] sm:$0xff]
    %v3172 = vld [vmem:[#allocation20 + $0xbc8] sm:$0xff]
    %v3173 = vld [vmem:[#allocation20 + $0xbd0] sm:$0xff]
    %v3174 = vld [vmem:[#allocation20 + $0xbd8] sm:$0xff]
    %v3175 = vld [vmem:[#allocation20 + $0xbe0] sm:$0xff]
    %v3176 = vld [vmem:[#allocation20 + $0xbe8] sm:$0xff]
    %v3177 = vld [vmem:[#allocation20 + $0xbf0] sm:$0xff]
    %v3178 = vld [vmem:[#allocation20 + $0xbf8] sm:$0xff]
    %v3179 = vld [vmem:[#allocation20 + $0xc00] sm:$0xff]
    %v3180 = vld [vmem:[#allocation20 + $0xc08] sm:$0xff]
    %v3181 = vld [vmem:[#allocation20 + $0xc10] sm:$0xff]
    %v3182 = vld [vmem:[#allocation20 + $0xc18] sm:$0xff]
    %v3183 = vld [vmem:[#allocation20 + $0xc20] sm:$0xff]
    %v3184 = vld [vmem:[#allocation20 + $0xc28] sm:$0xff]
    %v3185 = vld [vmem:[#allocation20 + $0xc30] sm:$0xff]
    %v3186 = vld [vmem:[#allocation20 + $0xc38] sm:$0xff]
    %v3187 = vld [vmem:[#allocation20 + $0xc40] sm:$0xff]
    %v3188 = vld [vmem:[#allocation20 + $0xc48] sm:$0xff]
    %v3189 = vld [vmem:[#allocation20 + $0xc50] sm:$0xff]
    %v3190 = vld [vmem:[#allocation20 + $0xc58] sm:$0xff]
    %v3191 = vld [vmem:[#allocation20 + $0xc60] sm:$0xff]
    %v3192 = vld [vmem:[#allocation20 + $0xc68] sm:$0xff]
    %v3193 = vld [vmem:[#allocation20 + $0xc70] sm:$0xff]
    %v3194 = vld [vmem:[#allocation20 + $0xc78] sm:$0xff]
    %v3195 = vld [vmem:[#allocation20 + $0xc80] sm:$0xff]
    %v3196 = vld [vmem:[#allocation20 + $0xc88] sm:$0xff]
    %v3197 = vld [vmem:[#allocation20 + $0xc90] sm:$0xff]
    %v3198 = vld [vmem:[#allocation20 + $0xc98] sm:$0xff]
    %v3199 = vld [vmem:[#allocation20 + $0xca0] sm:$0xff]
    %v3200 = vld [vmem:[#allocation20 + $0xca8] sm:$0xff]
    %v3201 = vld [vmem:[#allocation20 + $0xcb0] sm:$0xff]
    %v3202 = vld [vmem:[#allocation20 + $0xcb8] sm:$0xff]
    %v3203 = vld [vmem:[#allocation20 + $0xcc0] sm:$0xff]
    %v3204 = vld [vmem:[#allocation20 + $0xcc8] sm:$0xff]
    %v3205 = vld [vmem:[#allocation20 + $0xcd0] sm:$0xff]
    %v3206 = vld [vmem:[#allocation20 + $0xcd8] sm:$0xff]
    %v3207 = vld [vmem:[#allocation20 + $0xce0] sm:$0xff]
    %v3208 = vld [vmem:[#allocation20 + $0xce8] sm:$0xff]
    %v3209 = vld [vmem:[#allocation20 + $0xcf0] sm:$0xff]
    %v3210 = vld [vmem:[#allocation20 + $0xcf8] sm:$0xff]
    %v3211 = vld [vmem:[#allocation20 + $0xd00] sm:$0xff]
    %v3212 = vld [vmem:[#allocation20 + $0xd08] sm:$0xff]
    %v3213 = vld [vmem:[#allocation20 + $0xd10] sm:$0xff]
    %v3214 = vld [vmem:[#allocation20 + $0xd18] sm:$0xff]
    %v3215 = vld [vmem:[#allocation20 + $0xd20] sm:$0xff]
    %v3216 = vld [vmem:[#allocation20 + $0xd28] sm:$0xff]
    %v3217 = vld [vmem:[#allocation20 + $0xd30] sm:$0xff]
    %v3218 = vld [vmem:[#allocation20 + $0xd38] sm:$0xff]
    %v3219 = vld [vmem:[#allocation20 + $0xd40] sm:$0xff]
    %v3220 = vld [vmem:[#allocation20 + $0xd48] sm:$0xff]
    %v3221 = vld [vmem:[#allocation20 + $0xd50] sm:$0xff]
    %v3222 = vld [vmem:[#allocation20 + $0xd58] sm:$0xff]
    %v3223 = vld [vmem:[#allocation20 + $0xd60] sm:$0xff]
    %v3224 = vld [vmem:[#allocation20 + $0xd68] sm:$0xff]
    %v3225 = vld [vmem:[#allocation20 + $0xd70] sm:$0xff]
    %v3226 = vld [vmem:[#allocation20 + $0xd78] sm:$0xff]
    %v3227 = vld [vmem:[#allocation20 + $0xd80] sm:$0xff]
    %v3228 = vld [vmem:[#allocation20 + $0xd88] sm:$0xff]
    %v3229 = vld [vmem:[#allocation20 + $0xd90] sm:$0xff]
    %v3230 = vld [vmem:[#allocation20 + $0xd98] sm:$0xff]
    %v3231 = vld [vmem:[#allocation20 + $0xda0] sm:$0xff]
    %v3232 = vld [vmem:[#allocation20 + $0xda8] sm:$0xff]
    %v3233 = vld [vmem:[#allocation20 + $0xdb0] sm:$0xff]
    %v3234 = vld [vmem:[#allocation20 + $0xdb8] sm:$0xff]
    %v3235 = vld [vmem:[#allocation20 + $0xdc0] sm:$0xff]
    %v3236 = vld [vmem:[#allocation20 + $0xdc8] sm:$0xff]
    %v3237 = vld [vmem:[#allocation20 + $0xdd0] sm:$0xff]
    %v3238 = vld [vmem:[#allocation20 + $0xdd8] sm:$0xff]
    %v3239 = vld [vmem:[#allocation20 + $0xde0] sm:$0xff]
    %v3240 = vld [vmem:[#allocation20 + $0xde8] sm:$0xff]
    %v3241 = vld [vmem:[#allocation20 + $0xdf0] sm:$0xff]
    %v3242 = vld [vmem:[#allocation20 + $0xdf8] sm:$0xff]
    %v3243 = vld [vmem:[#allocation20 + $0xe00] sm:$0xff]
    %v3244 = vld [vmem:[#allocation20 + $0xe08] sm:$0xff]
    %v3245 = vld [vmem:[#allocation20 + $0xe10] sm:$0xff]
    %v3246 = vld [vmem:[#allocation20 + $0xe18] sm:$0xff]
    %v3247 = vld [vmem:[#allocation20 + $0xe20] sm:$0xff]
    %v3248 = vld [vmem:[#allocation20 + $0xe28] sm:$0xff]
    %v3249 = vld [vmem:[#allocation20 + $0xe30] sm:$0xff]
    %v3250 = vld [vmem:[#allocation20 + $0xe38] sm:$0xff]
    %v3251 = vld [vmem:[#allocation20 + $0xe40] sm:$0xff]
    %v3252 = vld [vmem:[#allocation20 + $0xe48] sm:$0xff]
    %v3253 = vld [vmem:[#allocation20 + $0xe50] sm:$0xff]
    %v3254 = vld [vmem:[#allocation20 + $0xe58] sm:$0xff]
    %v3255 = vld [vmem:[#allocation20 + $0xe60] sm:$0xff]
    %v3256 = vld [vmem:[#allocation20 + $0xe68] sm:$0xff]
    %v3257 = vld [vmem:[#allocation20 + $0xe70] sm:$0xff]
    %v3258 = vld [vmem:[#allocation20 + $0xe78] sm:$0xff]
    %v3259 = vld [vmem:[#allocation20 + $0xe80] sm:$0xff]
    %v3260 = vld [vmem:[#allocation20 + $0xe88] sm:$0xff]
    %v3261 = vld [vmem:[#allocation20 + $0xe90] sm:$0xff]
    %v3262 = vld [vmem:[#allocation20 + $0xe98] sm:$0xff]
    %v3263 = vld [vmem:[#allocation20 + $0xea0] sm:$0xff]
    %v3264 = vld [vmem:[#allocation20 + $0xea8] sm:$0xff]
    %v3265 = vld [vmem:[#allocation20 + $0xeb0] sm:$0xff]
    %v3266 = vld [vmem:[#allocation20 + $0xeb8] sm:$0xff]
    %v3267 = vld [vmem:[#allocation20 + $0xec0] sm:$0xff]
    %v3268 = vld [vmem:[#allocation20 + $0xec8] sm:$0xff]
    %v3269 = vld [vmem:[#allocation20 + $0xed0] sm:$0xff]
    %v3270 = vld [vmem:[#allocation20 + $0xed8] sm:$0xff]
    %v3271 = vld [vmem:[#allocation20 + $0xee0] sm:$0xff]
    %v3272 = vld [vmem:[#allocation20 + $0xee8] sm:$0xff]
    %v3273 = vld [vmem:[#allocation20 + $0xef0] sm:$0xff]
    %v3274 = vld [vmem:[#allocation20 + $0xef8] sm:$0xff]
    %v3275 = vld [vmem:[#allocation20 + $0xf00] sm:$0xff]
    %v3276 = vld [vmem:[#allocation20 + $0xf08] sm:$0xff]
    %v3277 = vld [vmem:[#allocation20 + $0xf10] sm:$0xff]
    %v3278 = vld [vmem:[#allocation20 + $0xf18] sm:$0xff]
    %v3279 = vld [vmem:[#allocation20 + $0xf20] sm:$0xff]
    %v3280 = vld [vmem:[#allocation20 + $0xf28] sm:$0xff]
    %v3281 = vld [vmem:[#allocation20 + $0xf30] sm:$0xff]
    %v3282 = vld [vmem:[#allocation20 + $0xf38] sm:$0xff]
    %v3283 = vld [vmem:[#allocation20 + $0xf40] sm:$0xff]
    %v3284 = vld [vmem:[#allocation20 + $0xf48] sm:$0xff]
    %v3285 = vld [vmem:[#allocation20 + $0xf50] sm:$0xff]
    %v3286 = vld [vmem:[#allocation20 + $0xf58] sm:$0xff]
    %v3287 = vld [vmem:[#allocation20 + $0xf60] sm:$0xff]
    %v3288 = vld [vmem:[#allocation20 + $0xf68] sm:$0xff]
    %v3289 = vld [vmem:[#allocation20 + $0xf70] sm:$0xff]
    %v3290 = vld [vmem:[#allocation20 + $0xf78] sm:$0xff]
    %v3291 = vld [vmem:[#allocation20 + $0xf80] sm:$0xff]
    %v3292 = vld [vmem:[#allocation20 + $0xf88] sm:$0xff]
    %v3293 = vld [vmem:[#allocation20 + $0xf90] sm:$0xff]
    %v3294 = vld [vmem:[#allocation20 + $0xf98] sm:$0xff]
    %v3295 = vld [vmem:[#allocation20 + $0xfa0] sm:$0xff]
    %v3296 = vld [vmem:[#allocation20 + $0xfa8] sm:$0xff]
    %v3297 = vld [vmem:[#allocation20 + $0xfb0] sm:$0xff]
    %v3298 = vld [vmem:[#allocation20 + $0xfb8] sm:$0xff]
    %v3299 = vld [vmem:[#allocation20 + $0xfc0] sm:$0xff]
    %v3300 = vld [vmem:[#allocation20 + $0xfc8] sm:$0xff]
    %v3301 = vld [vmem:[#allocation20 + $0xfd0] sm:$0xff]
    %v3302 = vld [vmem:[#allocation20 + $0xfd8] sm:$0xff]
    %v3303 = vld [vmem:[#allocation20 + $0xfe0] sm:$0xff]
    %v3304 = vld [vmem:[#allocation20 + $0xfe8] sm:$0xff]
    %v3305 = vld [vmem:[#allocation20 + $0xff0] sm:$0xff]
    %v3306 = vld [vmem:[#allocation20 + $0xff8] sm:$0xff]
    %v3307 = vld [vmem:[#allocation20 + $0x1000] sm:$0xff]
    %v3308 = vld [vmem:[#allocation20 + $0x1008] sm:$0xff]
    %v3309 = vld [vmem:[#allocation20 + $0x1010] sm:$0xff]
    %v3310 = vld [vmem:[#allocation20 + $0x1018] sm:$0xff]
    %v3311 = vld [vmem:[#allocation20 + $0x1020] sm:$0xff]
    %v3312 = vld [vmem:[#allocation20 + $0x1028] sm:$0xff]
    %v3313 = vld [vmem:[#allocation20 + $0x1030] sm:$0xff]
    %v3314 = vld [vmem:[#allocation20 + $0x1038] sm:$0xff]
    %v3315 = vld [vmem:[#allocation20 + $0x1040] sm:$0xff]
    %v3316 = vld [vmem:[#allocation20 + $0x1048] sm:$0xff]
    %v3317 = vld [vmem:[#allocation20 + $0x1050] sm:$0xff]
    %v3318 = vld [vmem:[#allocation20 + $0x1058] sm:$0xff]
    %v3319 = vld [vmem:[#allocation20 + $0x1060] sm:$0xff]
    %v3320 = vld [vmem:[#allocation20 + $0x1068] sm:$0xff]
    %v3321 = vld [vmem:[#allocation20 + $0x1070] sm:$0xff]
    %v3322 = vld [vmem:[#allocation20 + $0x1078] sm:$0xff]
    %v3323 = vld [vmem:[#allocation20 + $0x1080] sm:$0xff]
    %v3324 = vld [vmem:[#allocation20 + $0x1088] sm:$0xff]
    %v3325 = vld [vmem:[#allocation20 + $0x1090] sm:$0xff]
    %v3326 = vld [vmem:[#allocation20 + $0x1098] sm:$0xff]
    %v3327 = vld [vmem:[#allocation20 + $0x10a0] sm:$0xff]
    %v3328 = vld [vmem:[#allocation20 + $0x10a8] sm:$0xff]
    %v3329 = vld [vmem:[#allocation20 + $0x10b0] sm:$0xff]
    %v3330 = vld [vmem:[#allocation20 + $0x10b8] sm:$0xff]
    %v3331 = vld [vmem:[#allocation20 + $0x10c0] sm:$0xff]
    %v3332 = vld [vmem:[#allocation20 + $0x10c8] sm:$0xff]
    %v3333 = vld [vmem:[#allocation20 + $0x10d0] sm:$0xff]
    %v3334 = vld [vmem:[#allocation20 + $0x10d8] sm:$0xff]
    %v3335 = vld [vmem:[#allocation20 + $0x10e0] sm:$0xff]
    %v3336 = vld [vmem:[#allocation20 + $0x10e8] sm:$0xff]
    %v3337 = vld [vmem:[#allocation20 + $0x10f0] sm:$0xff]
    %v3338 = vld [vmem:[#allocation20 + $0x10f8] sm:$0xff]
    %v3339 = vld [vmem:[#allocation20 + $0x1100] sm:$0xff]
    %v3340 = vld [vmem:[#allocation20 + $0x1108] sm:$0xff]
    %v3341 = vld [vmem:[#allocation20 + $0x1110] sm:$0xff]
    %v3342 = vld [vmem:[#allocation20 + $0x1118] sm:$0xff]
    %v3343 = vld [vmem:[#allocation20 + $0x1120] sm:$0xff]
    %v3344 = vld [vmem:[#allocation20 + $0x1128] sm:$0xff]
    %v3345 = vld [vmem:[#allocation20 + $0x1130] sm:$0xff]
    %v3346 = vld [vmem:[#allocation20 + $0x1138] sm:$0xff]
    %v3347 = vld [vmem:[#allocation20 + $0x1140] sm:$0xff]
    %v3348 = vld [vmem:[#allocation20 + $0x1148] sm:$0xff]
    %v3349 = vld [vmem:[#allocation20 + $0x1150] sm:$0xff]
    %v3350 = vld [vmem:[#allocation20 + $0x1158] sm:$0xff]
    %v3351 = vld [vmem:[#allocation20 + $0x1160] sm:$0xff]
    %v3352 = vld [vmem:[#allocation20 + $0x1168] sm:$0xff]
    %v3353 = vld [vmem:[#allocation20 + $0x1170] sm:$0xff]
    %v3354 = vld [vmem:[#allocation20 + $0x1178] sm:$0xff]
    %v3355 = vld [vmem:[#allocation20 + $0x1180] sm:$0xff]
    %v3356 = vld [vmem:[#allocation20 + $0x1188] sm:$0xff]
    %v3357 = vld [vmem:[#allocation20 + $0x1190] sm:$0xff]
    %v3358 = vld [vmem:[#allocation20 + $0x1198] sm:$0xff]
    %v3359 = vld [vmem:[#allocation20 + $0x11a0] sm:$0xff]
    %v3360 = vld [vmem:[#allocation20 + $0x11a8] sm:$0xff]
    %v3361 = vld [vmem:[#allocation20 + $0x11b0] sm:$0xff]
    %v3362 = vld [vmem:[#allocation20 + $0x11b8] sm:$0xff]
    %v3363 = vld [vmem:[#allocation20 + $0x11c0] sm:$0xff]
    %v3364 = vld [vmem:[#allocation20 + $0x11c8] sm:$0xff]
    %v3365 = vld [vmem:[#allocation20 + $0x11d0] sm:$0xff]
    %v3366 = vld [vmem:[#allocation20 + $0x11d8] sm:$0xff]
    %v3367 = vld [vmem:[#allocation20 + $0x11e0] sm:$0xff]
    %v3368 = vld [vmem:[#allocation20 + $0x11e8] sm:$0xff]
    %v3369 = vld [vmem:[#allocation20 + $0x11f0] sm:$0xff]
    %v3370 = vld [vmem:[#allocation20 + $0x11f8] sm:$0xff]
    %v3371 = vld [vmem:[#allocation21] sm:$0x3f]
    %v3373 = vlaneseq
    %v3374 = vshrl.u32 %v3373, 7
    %v3375 = vsub.s32 0, %v3374
    %v3376 = vrot.slane %v3371, %v3375
    %v3377 = vlaneseq
    %v3378 = vshrl.u32 %v3377, 7
    %v3379 = vsub.s32 1, %v3378
    %v3380 = vrot.slane %v3371, %v3379
    %v3381 = vlaneseq
    %v3382 = vshrl.u32 %v3381, 7
    %v3383 = vsub.s32 2, %v3382
    %v3384 = vrot.slane %v3371, %v3383
    %v3385 = vlaneseq
    %v3386 = vshrl.u32 %v3385, 7
    %v3387 = vsub.s32 3, %v3386
    %v3388 = vrot.slane %v3371, %v3387
    %v3389 = vlaneseq
    %v3390 = vshrl.u32 %v3389, 7
    %v3391 = vsub.s32 4, %v3390
    %v3392 = vrot.slane %v3371, %v3391
    %v3393 = vlaneseq
    %v3394 = vshrl.u32 %v3393, 7
    %v3395 = vsub.s32 5, %v3394
    %v3396 = vrot.slane %v3371, %v3395
    %3403 = vmatprep.subr.mxu0 %v2886
    %3404 = vmatpush1.msra.mxu0 %v2885
    %3405 = vmatprep.subr.mxu0 %v2880
    %3406 = vmatpush1.msra.mxu0 %v2879
    %3407 = vmatprep.subr.mxu0 %v2874
    %3408 = vmatpush1.msra.mxu0 %v2873
    %3409 = vmatprep.subr.mxu0 %v2868
    %3410 = vmatpush1.msra.mxu0 %v2867
    %3411 = vmatprep.subr.mxu0 %v2862
    %3412 = vmatpush1.msra.mxu0 %v2861
    %3413 = vmatprep.subr.mxu0 %v2856
    %3414 = vmatpush1.msra.mxu0 %v2855
    %3415 = vmatprep.subr.mxu0 %v2850
    %3416 = vmatpush1.msra.mxu0 %v2849
    %3417 = vmatprep.subr.mxu0 %v2844
    %3418 = vmatpush1.msra.mxu0 %v2843
    %3419 = vmatprep.subr.mxu0 %v2838
    %3420 = vmatpush1.msra.mxu0 %v2837
    %3421 = vmatprep.subr.mxu0 %v2832
    %3422 = vmatpush1.msra.mxu0 %v2831
    %3423 = vmatprep.subr.mxu0 %v2826
    %3424 = vmatpush1.msra.mxu0 %v2825
    %3425 = vmatprep.subr.mxu0 %v2820
    %3426 = vmatpush1.msra.mxu0 %v2819
    %3427 = vmatprep.subr.mxu0 %v2814
    %3428 = vmatpush1.msra.mxu0 %v2813
    %3429 = vmatprep.subr.mxu0 %v2808
    %3430 = vmatpush1.msra.mxu0 %v2807
    %3431 = vmatprep.subr.mxu0 %v2802
    %3432 = vmatpush1.msra.mxu0 %v2801
    %3433 = vmatprep.subr.mxu0 %v2796
    %3434 = vmatpush1.msra.mxu0 %v2795
    %3435 = vmatprep.subr.mxu0 %v2982
    %3436 = vmatpush2.msra.mxu0 %v2981
    %3437 = vmatprep.subr.mxu0 %v2976
    %3438 = vmatpush2.msra.mxu0 %v2975
    %3439 = vmatprep.subr.mxu0 %v2970
    %3440 = vmatpush2.msra.mxu0 %v2969
    %3441 = vmatprep.subr.mxu0 %v2964
    %3442 = vmatpush2.msra.mxu0 %v2963
    %3443 = vmatprep.subr.mxu0 %v2958
    %3444 = vmatpush2.msra.mxu0 %v2957
    %3445 = vmatprep.subr.mxu0 %v2952
    %3446 = vmatpush2.msra.mxu0 %v2951
    %3447 = vmatprep.subr.mxu0 %v2946
    %3448 = vmatpush2.msra.mxu0 %v2945
    %3449 = vmatprep.subr.mxu0 %v2940
    %3450 = vmatpush2.msra.mxu0 %v2939
    %3451 = vmatprep.subr.mxu0 %v2934
    %3452 = vmatpush2.msra.mxu0 %v2933
    %3453 = vmatprep.subr.mxu0 %v2928
    %3454 = vmatpush2.msra.mxu0 %v2927
    %3455 = vmatprep.subr.mxu0 %v2922
    %3456 = vmatpush2.msra.mxu0 %v2921
    %3457 = vmatprep.subr.mxu0 %v2916
    %3458 = vmatpush2.msra.mxu0 %v2915
    %3459 = vmatprep.subr.mxu0 %v2910
    %3460 = vmatpush2.msra.mxu0 %v2909
    %3461 = vmatprep.subr.mxu0 %v2904
    %3462 = vmatpush2.msra.mxu0 %v2903
    %3463 = vmatprep.subr.mxu0 %v2898
    %3464 = vmatpush2.msra.mxu0 %v2897
    %3465 = vmatprep.subr.mxu0 %v2892
    %3466 = vmatpush2.msra.mxu0 %v2891
    %3467 = vmatprep.mubr.f32.mxu0 %v2790
    %3468 = vmatmul.mubr.f32.gmra.mxu0 %v2789
    %v3469 = vpop.f32.mrf.mxu0
    %v3470 = vadd.f32 %v3376, %v3469
    %v3471 = vpop.f32.mrf.mxu0
    %v3472 = vadd.f32 %v3380, %v3471
    %3473 = vdwg.mxu0
    %3474 = vmatprep.subr.mxu0 %v3078
    %3475 = vmatpush1.msra.mxu0 %v3077
    %3476 = vmatprep.subr.mxu0 %v3072
    %3477 = vmatpush1.msra.mxu0 %v3071
    %3478 = vmatprep.subr.mxu0 %v3066
    %3479 = vmatpush1.msra.mxu0 %v3065
    %3480 = vmatprep.subr.mxu0 %v3060
    %3481 = vmatpush1.msra.mxu0 %v3059
    %3482 = vmatprep.subr.mxu0 %v3054
    %3483 = vmatpush1.msra.mxu0 %v3053
    %3484 = vmatprep.subr.mxu0 %v3048
    %3485 = vmatpush1.msra.mxu0 %v3047
    %3486 = vmatprep.subr.mxu0 %v3042
    %3487 = vmatpush1.msra.mxu0 %v3041
    %3488 = vmatprep.subr.mxu0 %v3036
    %3489 = vmatpush1.msra.mxu0 %v3035
    %3490 = vmatprep.subr.mxu0 %v3030
    %3491 = vmatpush1.msra.mxu0 %v3029
    %3492 = vmatprep.subr.mxu0 %v3024
    %3493 = vmatpush1.msra.mxu0 %v3023
    %3494 = vmatprep.subr.mxu0 %v3018
    %3495 = vmatpush1.msra.mxu0 %v3017
    %3496 = vmatprep.subr.mxu0 %v3012
    %3497 = vmatpush1.msra.mxu0 %v3011
    %3498 = vmatprep.subr.mxu0 %v3006
    %3499 = vmatpush1.msra.mxu0 %v3005
    %3500 = vmatprep.subr.mxu0 %v3000
    %3501 = vmatpush1.msra.mxu0 %v2999
    %3502 = vmatprep.subr.mxu0 %v2994
    %3503 = vmatpush1.msra.mxu0 %v2993
    %3504 = vmatprep.subr.mxu0 %v2988
    %3505 = vmatpush1.msra.mxu0 %v2987
    %3506 = vmatprep.subr.mxu0 %v3174
    %3507 = vmatpush2.msra.mxu0 %v3173
    %3508 = vmatprep.subr.mxu0 %v3168
    %3509 = vmatpush2.msra.mxu0 %v3167
    %3510 = vmatprep.subr.mxu0 %v3162
    %3511 = vmatpush2.msra.mxu0 %v3161
    %3512 = vmatprep.subr.mxu0 %v3156
    %3513 = vmatpush2.msra.mxu0 %v3155
    %3514 = vmatprep.subr.mxu0 %v3150
    %3515 = vmatpush2.msra.mxu0 %v3149
    %3516 = vmatprep.subr.mxu0 %v3144
    %3517 = vmatpush2.msra.mxu0 %v3143
    %3518 = vmatprep.subr.mxu0 %v3138
    %3519 = vmatpush2.msra.mxu0 %v3137
    %3520 = vmatprep.subr.mxu0 %v3132
    %3521 = vmatpush2.msra.mxu0 %v3131
    %3522 = vmatprep.subr.mxu0 %v3126
    %3523 = vmatpush2.msra.mxu0 %v3125
    %3524 = vmatprep.subr.mxu0 %v3120
    %3525 = vmatpush2.msra.mxu0 %v3119
    %3526 = vmatprep.subr.mxu0 %v3114
    %3527 = vmatpush2.msra.mxu0 %v3113
    %3528 = vmatprep.subr.mxu0 %v3108
    %3529 = vmatpush2.msra.mxu0 %v3107
    %3530 = vmatprep.subr.mxu0 %v3102
    %3531 = vmatpush2.msra.mxu0 %v3101
    %3532 = vmatprep.subr.mxu0 %v3096
    %3533 = vmatpush2.msra.mxu0 %v3095
    %3534 = vmatprep.subr.mxu0 %v3090
    %3535 = vmatpush2.msra.mxu0 %v3089
    %3536 = vmatprep.subr.mxu0 %v3084
    %3537 = vmatpush2.msra.mxu0 %v3083
    %3538 = vmatprep.mubr.f32.mxu0 %v2792
    %3539 = vmatmul.mubr.f32.gmra.mxu0 %v2791
    %v3540 = vpop.f32.mrf.mxu0
    %v3541 = vadd.f32 %v3470, %v3540
    %v3542 = vpop.f32.mrf.mxu0
    %v3543 = vadd.f32 %v3472, %v3542
    %3544 = vdwg.mxu0
    %3545 = vmatprep.subr.mxu0 %v3270
    %3546 = vmatpush1.msra.mxu0 %v3269
    %3547 = vmatprep.subr.mxu0 %v3264
    %3548 = vmatpush1.msra.mxu0 %v3263
    %3549 = vmatprep.subr.mxu0 %v3258
    %3550 = vmatpush1.msra.mxu0 %v3257
    %3551 = vmatprep.subr.mxu0 %v3252
    %3552 = vmatpush1.msra.mxu0 %v3251
    %3553 = vmatprep.subr.mxu0 %v3246
    %3554 = vmatpush1.msra.mxu0 %v3245
    %3555 = vmatprep.subr.mxu0 %v3240
    %3556 = vmatpush1.msra.mxu0 %v3239
    %3557 = vmatprep.subr.mxu0 %v3234
    %3558 = vmatpush1.msra.mxu0 %v3233
    %3559 = vmatprep.subr.mxu0 %v3228
    %3560 = vmatpush1.msra.mxu0 %v3227
    %3561 = vmatprep.subr.mxu0 %v3222
    %3562 = vmatpush1.msra.mxu0 %v3221
    %3563 = vmatprep.subr.mxu0 %v3216
    %3564 = vmatpush1.msra.mxu0 %v3215
    %3565 = vmatprep.subr.mxu0 %v3210
    %3566 = vmatpush1.msra.mxu0 %v3209
    %3567 = vmatprep.subr.mxu0 %v3204
    %3568 = vmatpush1.msra.mxu0 %v3203
    %3569 = vmatprep.subr.mxu0 %v3198
    %3570 = vmatpush1.msra.mxu0 %v3197
    %3571 = vmatprep.subr.mxu0 %v3192
    %3572 = vmatpush1.msra.mxu0 %v3191
    %3573 = vmatprep.subr.mxu0 %v3186
    %3574 = vmatpush1.msra.mxu0 %v3185
    %3575 = vmatprep.subr.mxu0 %v3180
    %3576 = vmatpush1.msra.mxu0 %v3179
    %3577 = vmatprep.subr.mxu0 %v3366
    %3578 = vmatpush2.msra.mxu0 %v3365
    %3579 = vmatprep.subr.mxu0 %v3360
    %3580 = vmatpush2.msra.mxu0 %v3359
    %3581 = vmatprep.subr.mxu0 %v3354
    %3582 = vmatpush2.msra.mxu0 %v3353
    %3583 = vmatprep.subr.mxu0 %v3348
    %3584 = vmatpush2.msra.mxu0 %v3347
    %3585 = vmatprep.subr.mxu0 %v3342
    %3586 = vmatpush2.msra.mxu0 %v3341
    %3587 = vmatprep.subr.mxu0 %v3336
    %3588 = vmatpush2.msra.mxu0 %v3335
    %3589 = vmatprep.subr.mxu0 %v3330
    %3590 = vmatpush2.msra.mxu0 %v3329
    %3591 = vmatprep.subr.mxu0 %v3324
    %3592 = vmatpush2.msra.mxu0 %v3323
    %3593 = vmatprep.subr.mxu0 %v3318
    %3594 = vmatpush2.msra.mxu0 %v3317
    %3595 = vmatprep.subr.mxu0 %v3312
    %3596 = vmatpush2.msra.mxu0 %v3311
    %3597 = vmatprep.subr.mxu0 %v3306
    %3598 = vmatpush2.msra.mxu0 %v3305
    %3599 = vmatprep.subr.mxu0 %v3300
    %3600 = vmatpush2.msra.mxu0 %v3299
    %3601 = vmatprep.subr.mxu0 %v3294
    %3602 = vmatpush2.msra.mxu0 %v3293
    %3603 = vmatprep.subr.mxu0 %v3288
    %3604 = vmatpush2.msra.mxu0 %v3287
    %3605 = vmatprep.subr.mxu0 %v3282
    %3606 = vmatpush2.msra.mxu0 %v3281
    %3607 = vmatprep.subr.mxu0 %v3276
    %3608 = vmatpush2.msra.mxu0 %v3275
    %3609 = vmatprep.mubr.f32.mxu0 %v2794
    %3610 = vmatmul.mubr.f32.gmra.mxu0 %v2793
    %v3611 = vpop.f32.mrf.mxu0
    %v3612 = vadd.f32 %v3541, %v3611
    %v3613 = vpop.f32.mrf.mxu0
    %v3614 = vadd.f32 %v3543, %v3613
    %3615 = vdwg.mxu0
    %3616 = vmatprep.subr.mxu0 %v2888
    %3617 = vmatpush1.msra.mxu0 %v2887
    %3618 = vmatprep.subr.mxu0 %v2882
    %3619 = vmatpush1.msra.mxu0 %v2881
    %3620 = vmatprep.subr.mxu0 %v2876
    %3621 = vmatpush1.msra.mxu0 %v2875
    %3622 = vmatprep.subr.mxu0 %v2870
    %3623 = vmatpush1.msra.mxu0 %v2869
    %3624 = vmatprep.subr.mxu0 %v2864
    %3625 = vmatpush1.msra.mxu0 %v2863
    %3626 = vmatprep.subr.mxu0 %v2858
    %3627 = vmatpush1.msra.mxu0 %v2857
    %3628 = vmatprep.subr.mxu0 %v2852
    %3629 = vmatpush1.msra.mxu0 %v2851
    %3630 = vmatprep.subr.mxu0 %v2846
    %3631 = vmatpush1.msra.mxu0 %v2845
    %3632 = vmatprep.subr.mxu0 %v2840
    %3633 = vmatpush1.msra.mxu0 %v2839
    %3634 = vmatprep.subr.mxu0 %v2834
    %3635 = vmatpush1.msra.mxu0 %v2833
    %3636 = vmatprep.subr.mxu0 %v2828
    %3637 = vmatpush1.msra.mxu0 %v2827
    %3638 = vmatprep.subr.mxu0 %v2822
    %3639 = vmatpush1.msra.mxu0 %v2821
    %3640 = vmatprep.subr.mxu0 %v2816
    %3641 = vmatpush1.msra.mxu0 %v2815
    %3642 = vmatprep.subr.mxu0 %v2810
    %3643 = vmatpush1.msra.mxu0 %v2809
    %3644 = vmatprep.subr.mxu0 %v2804
    %3645 = vmatpush1.msra.mxu0 %v2803
    %3646 = vmatprep.subr.mxu0 %v2798
    %3647 = vmatpush1.msra.mxu0 %v2797
    %3648 = vmatprep.subr.mxu0 %v2984
    %3649 = vmatpush2.msra.mxu0 %v2983
    %3650 = vmatprep.subr.mxu0 %v2978
    %3651 = vmatpush2.msra.mxu0 %v2977
    %3652 = vmatprep.subr.mxu0 %v2972
    %3653 = vmatpush2.msra.mxu0 %v2971
    %3654 = vmatprep.subr.mxu0 %v2966
    %3655 = vmatpush2.msra.mxu0 %v2965
    %3656 = vmatprep.subr.mxu0 %v2960
    %3657 = vmatpush2.msra.mxu0 %v2959
    %3658 = vmatprep.subr.mxu0 %v2954
    %3659 = vmatpush2.msra.mxu0 %v2953
    %3660 = vmatprep.subr.mxu0 %v2948
    %3661 = vmatpush2.msra.mxu0 %v2947
    %3662 = vmatprep.subr.mxu0 %v2942
    %3663 = vmatpush2.msra.mxu0 %v2941
    %3664 = vmatprep.subr.mxu0 %v2936
    %3665 = vmatpush2.msra.mxu0 %v2935
    %3666 = vmatprep.subr.mxu0 %v2930
    %3667 = vmatpush2.msra.mxu0 %v2929
    %3668 = vmatprep.subr.mxu0 %v2924
    %3669 = vmatpush2.msra.mxu0 %v2923
    %3670 = vmatprep.subr.mxu0 %v2918
    %3671 = vmatpush2.msra.mxu0 %v2917
    %3672 = vmatprep.subr.mxu0 %v2912
    %3673 = vmatpush2.msra.mxu0 %v2911
    %3674 = vmatprep.subr.mxu0 %v2906
    %3675 = vmatpush2.msra.mxu0 %v2905
    %3676 = vmatprep.subr.mxu0 %v2900
    %3677 = vmatpush2.msra.mxu0 %v2899
    %3678 = vmatprep.subr.mxu0 %v2894
    %3679 = vmatpush2.msra.mxu0 %v2893
    %3680 = vmatprep.mubr.f32.mxu0 %v2790
    %3681 = vmatmul.mubr.f32.gmra.mxu0 %v2789
    %v3682 = vpop.f32.mrf.mxu0
    %v3683 = vadd.f32 %v3384, %v3682
    %v3684 = vpop.f32.mrf.mxu0
    %v3685 = vadd.f32 %v3388, %v3684
    %3686 = vdwg.mxu0
    %3687 = vmatprep.subr.mxu0 %v3080
    %3688 = vmatpush1.msra.mxu0 %v3079
    %3689 = vmatprep.subr.mxu0 %v3074
    %3690 = vmatpush1.msra.mxu0 %v3073
    %3691 = vmatprep.subr.mxu0 %v3068
    %3692 = vmatpush1.msra.mxu0 %v3067
    %3693 = vmatprep.subr.mxu0 %v3062
    %3694 = vmatpush1.msra.mxu0 %v3061
    %3695 = vmatprep.subr.mxu0 %v3056
    %3696 = vmatpush1.msra.mxu0 %v3055
    %3697 = vmatprep.subr.mxu0 %v3050
    %3698 = vmatpush1.msra.mxu0 %v3049
    %3699 = vmatprep.subr.mxu0 %v3044
    %3700 = vmatpush1.msra.mxu0 %v3043
    %3701 = vmatprep.subr.mxu0 %v3038
    %3702 = vmatpush1.msra.mxu0 %v3037
    %3703 = vmatprep.subr.mxu0 %v3032
    %3704 = vmatpush1.msra.mxu0 %v3031
    %3705 = vmatprep.subr.mxu0 %v3026
    %3706 = vmatpush1.msra.mxu0 %v3025
    %3707 = vmatprep.subr.mxu0 %v3020
    %3708 = vmatpush1.msra.mxu0 %v3019
    %3709 = vmatprep.subr.mxu0 %v3014
    %3710 = vmatpush1.msra.mxu0 %v3013
    %3711 = vmatprep.subr.mxu0 %v3008
    %3712 = vmatpush1.msra.mxu0 %v3007
    %3713 = vmatprep.subr.mxu0 %v3002
    %3714 = vmatpush1.msra.mxu0 %v3001
    %3715 = vmatprep.subr.mxu0 %v2996
    %3716 = vmatpush1.msra.mxu0 %v2995
    %3717 = vmatprep.subr.mxu0 %v2990
    %3718 = vmatpush1.msra.mxu0 %v2989
    %3719 = vmatprep.subr.mxu0 %v3176
    %3720 = vmatpush2.msra.mxu0 %v3175
    %3721 = vmatprep.subr.mxu0 %v3170
    %3722 = vmatpush2.msra.mxu0 %v3169
    %3723 = vmatprep.subr.mxu0 %v3164
    %3724 = vmatpush2.msra.mxu0 %v3163
    %3725 = vmatprep.subr.mxu0 %v3158
    %3726 = vmatpush2.msra.mxu0 %v3157
    %3727 = vmatprep.subr.mxu0 %v3152
    %3728 = vmatpush2.msra.mxu0 %v3151
    %3729 = vmatprep.subr.mxu0 %v3146
    %3730 = vmatpush2.msra.mxu0 %v3145
    %3731 = vmatprep.subr.mxu0 %v3140
    %3732 = vmatpush2.msra.mxu0 %v3139
    %3733 = vmatprep.subr.mxu0 %v3134
    %3734 = vmatpush2.msra.mxu0 %v3133
    %3735 = vmatprep.subr.mxu0 %v3128
    %3736 = vmatpush2.msra.mxu0 %v3127
    %3737 = vmatprep.subr.mxu0 %v3122
    %3738 = vmatpush2.msra.mxu0 %v3121
    %3739 = vmatprep.subr.mxu0 %v3116
    %3740 = vmatpush2.msra.mxu0 %v3115
    %3741 = vmatprep.subr.mxu0 %v3110
    %3742 = vmatpush2.msra.mxu0 %v3109
    %3743 = vmatprep.subr.mxu0 %v3104
    %3744 = vmatpush2.msra.mxu0 %v3103
    %3745 = vmatprep.subr.mxu0 %v3098
    %3746 = vmatpush2.msra.mxu0 %v3097
    %3747 = vmatprep.subr.mxu0 %v3092
    %3748 = vmatpush2.msra.mxu0 %v3091
    %3749 = vmatprep.subr.mxu0 %v3086
    %3750 = vmatpush2.msra.mxu0 %v3085
    %3751 = vmatprep.mubr.f32.mxu0 %v2792
    %3752 = vmatmul.mubr.f32.gmra.mxu0 %v2791
    %v3753 = vpop.f32.mrf.mxu0
    %v3754 = vadd.f32 %v3683, %v3753
    %v3755 = vpop.f32.mrf.mxu0
    %v3756 = vadd.f32 %v3685, %v3755
    %3757 = vdwg.mxu0
    %3758 = vmatprep.subr.mxu0 %v3272
    %3759 = vmatpush1.msra.mxu0 %v3271
    %3760 = vmatprep.subr.mxu0 %v3266
    %3761 = vmatpush1.msra.mxu0 %v3265
    %3762 = vmatprep.subr.mxu0 %v3260
    %3763 = vmatpush1.msra.mxu0 %v3259
    %3764 = vmatprep.subr.mxu0 %v3254
    %3765 = vmatpush1.msra.mxu0 %v3253
    %3766 = vmatprep.subr.mxu0 %v3248
    %3767 = vmatpush1.msra.mxu0 %v3247
    %3768 = vmatprep.subr.mxu0 %v3242
    %3769 = vmatpush1.msra.mxu0 %v3241
    %3770 = vmatprep.subr.mxu0 %v3236
    %3771 = vmatpush1.msra.mxu0 %v3235
    %3772 = vmatprep.subr.mxu0 %v3230
    %3773 = vmatpush1.msra.mxu0 %v3229
    %3774 = vmatprep.subr.mxu0 %v3224
    %3775 = vmatpush1.msra.mxu0 %v3223
    %3776 = vmatprep.subr.mxu0 %v3218
    %3777 = vmatpush1.msra.mxu0 %v3217
    %3778 = vmatprep.subr.mxu0 %v3212
    %3779 = vmatpush1.msra.mxu0 %v3211
    %3780 = vmatprep.subr.mxu0 %v3206
    %3781 = vmatpush1.msra.mxu0 %v3205
    %3782 = vmatprep.subr.mxu0 %v3200
    %3783 = vmatpush1.msra.mxu0 %v3199
    %3784 = vmatprep.subr.mxu0 %v3194
    %3785 = vmatpush1.msra.mxu0 %v3193
    %3786 = vmatprep.subr.mxu0 %v3188
    %3787 = vmatpush1.msra.mxu0 %v3187
    %3788 = vmatprep.subr.mxu0 %v3182
    %3789 = vmatpush1.msra.mxu0 %v3181
    %3790 = vmatprep.subr.mxu0 %v3368
    %3791 = vmatpush2.msra.mxu0 %v3367
    %3792 = vmatprep.subr.mxu0 %v3362
    %3793 = vmatpush2.msra.mxu0 %v3361
    %3794 = vmatprep.subr.mxu0 %v3356
    %3795 = vmatpush2.msra.mxu0 %v3355
    %3796 = vmatprep.subr.mxu0 %v3350
    %3797 = vmatpush2.msra.mxu0 %v3349
    %3798 = vmatprep.subr.mxu0 %v3344
    %3799 = vmatpush2.msra.mxu0 %v3343
    %3800 = vmatprep.subr.mxu0 %v3338
    %3801 = vmatpush2.msra.mxu0 %v3337
    %3802 = vmatprep.subr.mxu0 %v3332
    %3803 = vmatpush2.msra.mxu0 %v3331
    %3804 = vmatprep.subr.mxu0 %v3326
    %3805 = vmatpush2.msra.mxu0 %v3325
    %3806 = vmatprep.subr.mxu0 %v3320
    %3807 = vmatpush2.msra.mxu0 %v3319
    %3808 = vmatprep.subr.mxu0 %v3314
    %3809 = vmatpush2.msra.mxu0 %v3313
    %3810 = vmatprep.subr.mxu0 %v3308
    %3811 = vmatpush2.msra.mxu0 %v3307
    %3812 = vmatprep.subr.mxu0 %v3302
    %3813 = vmatpush2.msra.mxu0 %v3301
    %3814 = vmatprep.subr.mxu0 %v3296
    %3815 = vmatpush2.msra.mxu0 %v3295
    %3816 = vmatprep.subr.mxu0 %v3290
    %3817 = vmatpush2.msra.mxu0 %v3289
    %3818 = vmatprep.subr.mxu0 %v3284
    %3819 = vmatpush2.msra.mxu0 %v3283
    %3820 = vmatprep.subr.mxu0 %v3278
    %3821 = vmatpush2.msra.mxu0 %v3277
    %3822 = vmatprep.mubr.f32.mxu0 %v2794
    %3823 = vmatmul.mubr.f32.gmra.mxu0 %v2793
    %v3824 = vpop.f32.mrf.mxu0
    %v3825 = vadd.f32 %v3754, %v3824
    %v3826 = vpop.f32.mrf.mxu0
    %v3827 = vadd.f32 %v3756, %v3826
    %3828 = vdwg.mxu0
    %3829 = vmatprep.subr.mxu0 %v2890
    %3830 = vmatpush1.msra.mxu0 %v2889
    %3831 = vmatprep.subr.mxu0 %v2884
    %3832 = vmatpush1.msra.mxu0 %v2883
    %3833 = vmatprep.subr.mxu0 %v2878
    %3834 = vmatpush1.msra.mxu0 %v2877
    %3835 = vmatprep.subr.mxu0 %v2872
    %3836 = vmatpush1.msra.mxu0 %v2871
    %3837 = vmatprep.subr.mxu0 %v2866
    %3838 = vmatpush1.msra.mxu0 %v2865
    %3839 = vmatprep.subr.mxu0 %v2860
    %3840 = vmatpush1.msra.mxu0 %v2859
    %3841 = vmatprep.subr.mxu0 %v2854
    %3842 = vmatpush1.msra.mxu0 %v2853
    %3843 = vmatprep.subr.mxu0 %v2848
    %3844 = vmatpush1.msra.mxu0 %v2847
    %3845 = vmatprep.subr.mxu0 %v2842
    %3846 = vmatpush1.msra.mxu0 %v2841
    %3847 = vmatprep.subr.mxu0 %v2836
    %3848 = vmatpush1.msra.mxu0 %v2835
    %3849 = vmatprep.subr.mxu0 %v2830
    %3850 = vmatpush1.msra.mxu0 %v2829
    %3851 = vmatprep.subr.mxu0 %v2824
    %3852 = vmatpush1.msra.mxu0 %v2823
    %3853 = vmatprep.subr.mxu0 %v2818
    %3854 = vmatpush1.msra.mxu0 %v2817
    %3855 = vmatprep.subr.mxu0 %v2812
    %3856 = vmatpush1.msra.mxu0 %v2811
    %3857 = vmatprep.subr.mxu0 %v2806
    %3858 = vmatpush1.msra.mxu0 %v2805
    %3859 = vmatprep.subr.mxu0 %v2800
    %3860 = vmatpush1.msra.mxu0 %v2799
    %3861 = vmatprep.subr.mxu0 %v2986
    %3862 = vmatpush2.msra.mxu0 %v2985
    %3863 = vmatprep.subr.mxu0 %v2980
    %3864 = vmatpush2.msra.mxu0 %v2979
    %3865 = vmatprep.subr.mxu0 %v2974
    %3866 = vmatpush2.msra.mxu0 %v2973
    %3867 = vmatprep.subr.mxu0 %v2968
    %3868 = vmatpush2.msra.mxu0 %v2967
    %3869 = vmatprep.subr.mxu0 %v2962
    %3870 = vmatpush2.msra.mxu0 %v2961
    %3871 = vmatprep.subr.mxu0 %v2956
    %3872 = vmatpush2.msra.mxu0 %v2955
    %3873 = vmatprep.subr.mxu0 %v2950
    %3874 = vmatpush2.msra.mxu0 %v2949
    %3875 = vmatprep.subr.mxu0 %v2944
    %3876 = vmatpush2.msra.mxu0 %v2943
    %3877 = vmatprep.subr.mxu0 %v2938
    %3878 = vmatpush2.msra.mxu0 %v2937
    %3879 = vmatprep.subr.mxu0 %v2932
    %3880 = vmatpush2.msra.mxu0 %v2931
    %3881 = vmatprep.subr.mxu0 %v2926
    %3882 = vmatpush2.msra.mxu0 %v2925
    %3883 = vmatprep.subr.mxu0 %v2920
    %3884 = vmatpush2.msra.mxu0 %v2919
    %3885 = vmatprep.subr.mxu0 %v2914
    %3886 = vmatpush2.msra.mxu0 %v2913
    %3887 = vmatprep.subr.mxu0 %v2908
    %3888 = vmatpush2.msra.mxu0 %v2907
    %3889 = vmatprep.subr.mxu0 %v2902
    %3890 = vmatpush2.msra.mxu0 %v2901
    %3891 = vmatprep.subr.mxu0 %v2896
    %3892 = vmatpush2.msra.mxu0 %v2895
    %3893 = vmatprep.mubr.f32.mxu0 %v2790
    %3894 = vmatmul.mubr.f32.gmra.mxu0 %v2789
    %v3895 = vpop.f32.mrf.mxu0
    %v3896 = vadd.f32 %v3392, %v3895
    %v3897 = vpop.f32.mrf.mxu0
    %v3898 = vadd.f32 %v3396, %v3897
    %3899 = vdwg.mxu0
    %3900 = vmatprep.subr.mxu0 %v3082
    %3901 = vmatpush1.msra.mxu0 %v3081
    %3902 = vmatprep.subr.mxu0 %v3076
    %3903 = vmatpush1.msra.mxu0 %v3075
    %3904 = vmatprep.subr.mxu0 %v3070
    %3905 = vmatpush1.msra.mxu0 %v3069
    %3906 = vmatprep.subr.mxu0 %v3064
    %3907 = vmatpush1.msra.mxu0 %v3063
    %3908 = vmatprep.subr.mxu0 %v3058
    %3909 = vmatpush1.msra.mxu0 %v3057
    %3910 = vmatprep.subr.mxu0 %v3052
    %3911 = vmatpush1.msra.mxu0 %v3051
    %3912 = vmatprep.subr.mxu0 %v3046
    %3913 = vmatpush1.msra.mxu0 %v3045
    %3914 = vmatprep.subr.mxu0 %v3040
    %3915 = vmatpush1.msra.mxu0 %v3039
    %3916 = vmatprep.subr.mxu0 %v3034
    %3917 = vmatpush1.msra.mxu0 %v3033
    %3918 = vmatprep.subr.mxu0 %v3028
    %3919 = vmatpush1.msra.mxu0 %v3027
    %3920 = vmatprep.subr.mxu0 %v3022
    %3921 = vmatpush1.msra.mxu0 %v3021
    %3922 = vmatprep.subr.mxu0 %v3016
    %3923 = vmatpush1.msra.mxu0 %v3015
    %3924 = vmatprep.subr.mxu0 %v3010
    %3925 = vmatpush1.msra.mxu0 %v3009
    %3926 = vmatprep.subr.mxu0 %v3004
    %3927 = vmatpush1.msra.mxu0 %v3003
    %3928 = vmatprep.subr.mxu0 %v2998
    %3929 = vmatpush1.msra.mxu0 %v2997
    %3930 = vmatprep.subr.mxu0 %v2992
    %3931 = vmatpush1.msra.mxu0 %v2991
    %3932 = vmatprep.subr.mxu0 %v3178
    %3933 = vmatpush2.msra.mxu0 %v3177
    %3934 = vmatprep.subr.mxu0 %v3172
    %3935 = vmatpush2.msra.mxu0 %v3171
    %3936 = vmatprep.subr.mxu0 %v3166
    %3937 = vmatpush2.msra.mxu0 %v3165
    %3938 = vmatprep.subr.mxu0 %v3160
    %3939 = vmatpush2.msra.mxu0 %v3159
    %3940 = vmatprep.subr.mxu0 %v3154
    %3941 = vmatpush2.msra.mxu0 %v3153
    %3942 = vmatprep.subr.mxu0 %v3148
    %3943 = vmatpush2.msra.mxu0 %v3147
    %3944 = vmatprep.subr.mxu0 %v3142
    %3945 = vmatpush2.msra.mxu0 %v3141
    %3946 = vmatprep.subr.mxu0 %v3136
    %3947 = vmatpush2.msra.mxu0 %v3135
    %3948 = vmatprep.subr.mxu0 %v3130
    %3949 = vmatpush2.msra.mxu0 %v3129
    %3950 = vmatprep.subr.mxu0 %v3124
    %3951 = vmatpush2.msra.mxu0 %v3123
    %3952 = vmatprep.subr.mxu0 %v3118
    %3953 = vmatpush2.msra.mxu0 %v3117
    %3954 = vmatprep.subr.mxu0 %v3112
    %3955 = vmatpush2.msra.mxu0 %v3111
    %3956 = vmatprep.subr.mxu0 %v3106
    %3957 = vmatpush2.msra.mxu0 %v3105
    %3958 = vmatprep.subr.mxu0 %v3100
    %3959 = vmatpush2.msra.mxu0 %v3099
    %3960 = vmatprep.subr.mxu0 %v3094
    %3961 = vmatpush2.msra.mxu0 %v3093
    %3962 = vmatprep.subr.mxu0 %v3088
    %3963 = vmatpush2.msra.mxu0 %v3087
    %3964 = vmatprep.mubr.f32.mxu0 %v2792
    %3965 = vmatmul.mubr.f32.gmra.mxu0 %v2791
    %v3966 = vpop.f32.mrf.mxu0
    %v3967 = vadd.f32 %v3896, %v3966
    %v3968 = vpop.f32.mrf.mxu0
    %v3969 = vadd.f32 %v3898, %v3968
    %3970 = vdwg.mxu0
    %3971 = vmatprep.subr.mxu0 %v3274
    %3972 = vmatpush1.msra.mxu0 %v3273
    %3973 = vmatprep.subr.mxu0 %v3268
    %3974 = vmatpush1.msra.mxu0 %v3267
    %3975 = vmatprep.subr.mxu0 %v3262
    %3976 = vmatpush1.msra.mxu0 %v3261
    %3977 = vmatprep.subr.mxu0 %v3256
    %3978 = vmatpush1.msra.mxu0 %v3255
    %3979 = vmatprep.subr.mxu0 %v3250
    %3980 = vmatpush1.msra.mxu0 %v3249
    %3981 = vmatprep.subr.mxu0 %v3244
    %3982 = vmatpush1.msra.mxu0 %v3243
    %3983 = vmatprep.subr.mxu0 %v3238
    %3984 = vmatpush1.msra.mxu0 %v3237
    %3985 = vmatprep.subr.mxu0 %v3232
    %3986 = vmatpush1.msra.mxu0 %v3231
    %3987 = vmatprep.subr.mxu0 %v3226
    %3988 = vmatpush1.msra.mxu0 %v3225
    %3989 = vmatprep.subr.mxu0 %v3220
    %3990 = vmatpush1.msra.mxu0 %v3219
    %3991 = vmatprep.subr.mxu0 %v3214
    %3992 = vmatpush1.msra.mxu0 %v3213
    %3993 = vmatprep.subr.mxu0 %v3208
    %3994 = vmatpush1.msra.mxu0 %v3207
    %3995 = vmatprep.subr.mxu0 %v3202
    %3996 = vmatpush1.msra.mxu0 %v3201
    %3997 = vmatprep.subr.mxu0 %v3196
    %3998 = vmatpush1.msra.mxu0 %v3195
    %3999 = vmatprep.subr.mxu0 %v3190
    %4000 = vmatpush1.msra.mxu0 %v3189
    %4001 = vmatprep.subr.mxu0 %v3184
    %4002 = vmatpush1.msra.mxu0 %v3183
    %4003 = vmatprep.subr.mxu0 %v3370
    %4004 = vmatpush2.msra.mxu0 %v3369
    %4005 = vmatprep.subr.mxu0 %v3364
    %4006 = vmatpush2.msra.mxu0 %v3363
    %4007 = vmatprep.subr.mxu0 %v3358
    %4008 = vmatpush2.msra.mxu0 %v3357
    %4009 = vmatprep.subr.mxu0 %v3352
    %4010 = vmatpush2.msra.mxu0 %v3351
    %4011 = vmatprep.subr.mxu0 %v3346
    %4012 = vmatpush2.msra.mxu0 %v3345
    %4013 = vmatprep.subr.mxu0 %v3340
    %4014 = vmatpush2.msra.mxu0 %v3339
    %4015 = vmatprep.subr.mxu0 %v3334
    %4016 = vmatpush2.msra.mxu0 %v3333
    %4017 = vmatprep.subr.mxu0 %v3328
    %4018 = vmatpush2.msra.mxu0 %v3327
    %4019 = vmatprep.subr.mxu0 %v3322
    %4020 = vmatpush2.msra.mxu0 %v3321
    %4021 = vmatprep.subr.mxu0 %v3316
    %4022 = vmatpush2.msra.mxu0 %v3315
    %4023 = vmatprep.subr.mxu0 %v3310
    %4024 = vmatpush2.msra.mxu0 %v3309
    %4025 = vmatprep.subr.mxu0 %v3304
    %4026 = vmatpush2.msra.mxu0 %v3303
    %4027 = vmatprep.subr.mxu0 %v3298
    %4028 = vmatpush2.msra.mxu0 %v3297
    %4029 = vmatprep.subr.mxu0 %v3292
    %4030 = vmatpush2.msra.mxu0 %v3291
    %4031 = vmatprep.subr.mxu0 %v3286
    %4032 = vmatpush2.msra.mxu0 %v3285
    %4033 = vmatprep.subr.mxu0 %v3280
    %4034 = vmatpush2.msra.mxu0 %v3279
    %4035 = vmatprep.mubr.f32.mxu0 %v2794
    %4036 = vmatmul.mubr.f32.gmra.mxu0 %v2793
    %v4037 = vpop.f32.mrf.mxu0
    %v4038 = vadd.f32 %v3967, %v4037
    %v4039 = vpop.f32.mrf.mxu0
    %v4040 = vadd.f32 %v3969, %v4039
    %4041 = vdwg.mxu0
    %v4042 = vmax.f32 %v3612, 0.0
    %v4043 = vmax.f32 %v3614, 0.0
    %v4044 = vmax.f32 %v3825, 0.0
    %v4045 = vmax.f32 %v3827, 0.0
    %v4046 = vmax.f32 %v4038, 0.0
    %v4047 = vmax.f32 %v4040, 0.0
    %v4048 = vld [vmem:[#allocation23] sm:$0xff]
    %v4049 = vld [vmem:[#allocation23 + $0x8] sm:$0xff]
    %v4050 = vld [vmem:[#allocation23 + $0x10] sm:$0xff]
    %v4051 = vld [vmem:[#allocation23 + $0x18] sm:$0xff]
    %v4052 = vld [vmem:[#allocation23 + $0x20] sm:$0xff]
    %v4053 = vld [vmem:[#allocation23 + $0x28] sm:$0xff]
    %v4054 = vld [vmem:[#allocation23 + $0x30] sm:$0xff]
    %v4055 = vld [vmem:[#allocation23 + $0x38] sm:$0xff]
    %v4056 = vld [vmem:[#allocation23 + $0x40] sm:$0xff]
    %v4057 = vld [vmem:[#allocation23 + $0x48] sm:$0xff]
    %v4058 = vld [vmem:[#allocation23 + $0x50] sm:$0xff]
    %v4059 = vld [vmem:[#allocation23 + $0x58] sm:$0xff]
    %v4060 = vld [vmem:[#allocation23 + $0x60] sm:$0xff]
    %v4061 = vld [vmem:[#allocation23 + $0x68] sm:$0xff]
    %v4062 = vld [vmem:[#allocation23 + $0x70] sm:$0xff]
    %v4063 = vld [vmem:[#allocation23 + $0x78] sm:$0xff]
    %v4064 = vld [vmem:[#allocation23 + $0x80] sm:$0xff]
    %v4065 = vld [vmem:[#allocation23 + $0x88] sm:$0xff]
    %v4066 = vld [vmem:[#allocation23 + $0x90] sm:$0xff]
    %v4067 = vld [vmem:[#allocation23 + $0x98] sm:$0xff]
    %v4068 = vld [vmem:[#allocation23 + $0xa0] sm:$0xff]
    %v4069 = vld [vmem:[#allocation23 + $0xa8] sm:$0xff]
    %v4070 = vld [vmem:[#allocation23 + $0xb0] sm:$0xff]
    %v4071 = vld [vmem:[#allocation23 + $0xb8] sm:$0xff]
    %v4072 = vld [vmem:[#allocation23 + $0xc0] sm:$0xff]
    %v4073 = vld [vmem:[#allocation23 + $0xc8] sm:$0xff]
    %v4074 = vld [vmem:[#allocation23 + $0xd0] sm:$0xff]
    %v4075 = vld [vmem:[#allocation23 + $0xd8] sm:$0xff]
    %v4076 = vld [vmem:[#allocation23 + $0xe0] sm:$0xff]
    %v4077 = vld [vmem:[#allocation23 + $0xe8] sm:$0xff]
    %v4078 = vld [vmem:[#allocation23 + $0xf0] sm:$0xff]
    %v4079 = vld [vmem:[#allocation23 + $0xf8] sm:$0xff]
    %v4080 = vld [vmem:[#allocation23 + $0x100] sm:$0xff]
    %v4081 = vld [vmem:[#allocation23 + $0x108] sm:$0xff]
    %v4082 = vld [vmem:[#allocation23 + $0x110] sm:$0xff]
    %v4083 = vld [vmem:[#allocation23 + $0x118] sm:$0xff]
    %v4084 = vld [vmem:[#allocation23 + $0x120] sm:$0xff]
    %v4085 = vld [vmem:[#allocation23 + $0x128] sm:$0xff]
    %v4086 = vld [vmem:[#allocation23 + $0x130] sm:$0xff]
    %v4087 = vld [vmem:[#allocation23 + $0x138] sm:$0xff]
    %v4088 = vld [vmem:[#allocation23 + $0x140] sm:$0xff]
    %v4089 = vld [vmem:[#allocation23 + $0x148] sm:$0xff]
    %v4090 = vld [vmem:[#allocation23 + $0x150] sm:$0xff]
    %v4091 = vld [vmem:[#allocation23 + $0x158] sm:$0xff]
    %v4092 = vld [vmem:[#allocation23 + $0x160] sm:$0xff]
    %v4093 = vld [vmem:[#allocation23 + $0x168] sm:$0xff]
    %v4094 = vld [vmem:[#allocation23 + $0x170] sm:$0xff]
    %v4095 = vld [vmem:[#allocation23 + $0x178] sm:$0xff]
    %v4096 = vld [vmem:[#allocation23 + $0x180] sm:$0xff]
    %v4097 = vld [vmem:[#allocation23 + $0x188] sm:$0xff]
    %v4098 = vld [vmem:[#allocation23 + $0x190] sm:$0xff]
    %v4099 = vld [vmem:[#allocation23 + $0x198] sm:$0xff]
    %v4100 = vld [vmem:[#allocation23 + $0x1a0] sm:$0xff]
    %v4101 = vld [vmem:[#allocation23 + $0x1a8] sm:$0xff]
    %v4102 = vld [vmem:[#allocation23 + $0x1b0] sm:$0xff]
    %v4103 = vld [vmem:[#allocation23 + $0x1b8] sm:$0xff]
    %v4104 = vld [vmem:[#allocation23 + $0x1c0] sm:$0xff]
    %v4105 = vld [vmem:[#allocation23 + $0x1c8] sm:$0xff]
    %v4106 = vld [vmem:[#allocation23 + $0x1d0] sm:$0xff]
    %v4107 = vld [vmem:[#allocation23 + $0x1d8] sm:$0xff]
    %v4108 = vld [vmem:[#allocation23 + $0x1e0] sm:$0xff]
    %v4109 = vld [vmem:[#allocation23 + $0x1e8] sm:$0xff]
    %v4110 = vld [vmem:[#allocation23 + $0x1f0] sm:$0xff]
    %v4111 = vld [vmem:[#allocation23 + $0x1f8] sm:$0xff]
    %v4112 = vld [vmem:[#allocation23 + $0x200] sm:$0xff]
    %v4113 = vld [vmem:[#allocation23 + $0x208] sm:$0xff]
    %v4114 = vld [vmem:[#allocation23 + $0x210] sm:$0xff]
    %v4115 = vld [vmem:[#allocation23 + $0x218] sm:$0xff]
    %v4116 = vld [vmem:[#allocation23 + $0x220] sm:$0xff]
    %v4117 = vld [vmem:[#allocation23 + $0x228] sm:$0xff]
    %v4118 = vld [vmem:[#allocation23 + $0x230] sm:$0xff]
    %v4119 = vld [vmem:[#allocation23 + $0x238] sm:$0xff]
    %v4120 = vld [vmem:[#allocation23 + $0x240] sm:$0xff]
    %v4121 = vld [vmem:[#allocation23 + $0x248] sm:$0xff]
    %v4122 = vld [vmem:[#allocation23 + $0x250] sm:$0xff]
    %v4123 = vld [vmem:[#allocation23 + $0x258] sm:$0xff]
    %v4124 = vld [vmem:[#allocation23 + $0x260] sm:$0xff]
    %v4125 = vld [vmem:[#allocation23 + $0x268] sm:$0xff]
    %v4126 = vld [vmem:[#allocation23 + $0x270] sm:$0xff]
    %v4127 = vld [vmem:[#allocation23 + $0x278] sm:$0xff]
    %v4128 = vld [vmem:[#allocation23 + $0x280] sm:$0xff]
    %v4129 = vld [vmem:[#allocation23 + $0x288] sm:$0xff]
    %v4130 = vld [vmem:[#allocation23 + $0x290] sm:$0xff]
    %v4131 = vld [vmem:[#allocation23 + $0x298] sm:$0xff]
    %v4132 = vld [vmem:[#allocation23 + $0x2a0] sm:$0xff]
    %v4133 = vld [vmem:[#allocation23 + $0x2a8] sm:$0xff]
    %v4134 = vld [vmem:[#allocation23 + $0x2b0] sm:$0xff]
    %v4135 = vld [vmem:[#allocation23 + $0x2b8] sm:$0xff]
    %v4136 = vld [vmem:[#allocation23 + $0x2c0] sm:$0xff]
    %v4137 = vld [vmem:[#allocation23 + $0x2c8] sm:$0xff]
    %v4138 = vld [vmem:[#allocation23 + $0x2d0] sm:$0xff]
    %v4139 = vld [vmem:[#allocation23 + $0x2d8] sm:$0xff]
    %v4140 = vld [vmem:[#allocation23 + $0x2e0] sm:$0xff]
    %v4141 = vld [vmem:[#allocation23 + $0x2e8] sm:$0xff]
    %v4142 = vld [vmem:[#allocation23 + $0x2f0] sm:$0xff]
    %v4143 = vld [vmem:[#allocation23 + $0x2f8] sm:$0xff]
    %v4144 = vld [vmem:[#allocation24] sm:$0x1]
    %v4146 = vlaneseq
    %v4147 = vshrl.u32 %v4146, 7
    %v4148 = vsub.s32 0, %v4147
    %v4149 = vrot.slane %v4144, %v4148
    %4151 = vmatprep.subr.mxu0 0.0
    %4152 = vmatpush1.msra.mxu0 %v4063
    %4153 = vmatprep.subr.mxu0 0.0
    %4154 = vmatpush1.msra.mxu0 %v4062
    %4155 = vmatprep.subr.mxu0 0.0
    %4156 = vmatpush1.msra.mxu0 %v4061
    %4157 = vmatprep.subr.mxu0 0.0
    %4158 = vmatpush1.msra.mxu0 %v4060
    %4159 = vmatprep.subr.mxu0 0.0
    %4160 = vmatpush1.msra.mxu0 %v4059
    %4161 = vmatprep.subr.mxu0 0.0
    %4162 = vmatpush1.msra.mxu0 %v4058
    %4163 = vmatprep.subr.mxu0 0.0
    %4164 = vmatpush1.msra.mxu0 %v4057
    %4165 = vmatprep.subr.mxu0 0.0
    %4166 = vmatpush1.msra.mxu0 %v4056
    %4167 = vmatprep.subr.mxu0 0.0
    %4168 = vmatpush1.msra.mxu0 %v4055
    %4169 = vmatprep.subr.mxu0 0.0
    %4170 = vmatpush1.msra.mxu0 %v4054
    %4171 = vmatprep.subr.mxu0 0.0
    %4172 = vmatpush1.msra.mxu0 %v4053
    %4173 = vmatprep.subr.mxu0 0.0
    %4174 = vmatpush1.msra.mxu0 %v4052
    %4175 = vmatprep.subr.mxu0 0.0
    %4176 = vmatpush1.msra.mxu0 %v4051
    %4177 = vmatprep.subr.mxu0 0.0
    %4178 = vmatpush1.msra.mxu0 %v4050
    %4179 = vmatprep.subr.mxu0 0.0
    %4180 = vmatpush1.msra.mxu0 %v4049
    %4181 = vmatprep.subr.mxu0 0.0
    %4182 = vmatpush1.msra.mxu0 %v4048
    %4183 = vmatprep.subr.mxu0 0.0
    %4184 = vmatpush2.msra.mxu0 %v4079
    %4185 = vmatprep.subr.mxu0 0.0
    %4186 = vmatpush2.msra.mxu0 %v4078
    %4187 = vmatprep.subr.mxu0 0.0
    %4188 = vmatpush2.msra.mxu0 %v4077
    %4189 = vmatprep.subr.mxu0 0.0
    %4190 = vmatpush2.msra.mxu0 %v4076
    %4191 = vmatprep.subr.mxu0 0.0
    %4192 = vmatpush2.msra.mxu0 %v4075
    %4193 = vmatprep.subr.mxu0 0.0
    %4194 = vmatpush2.msra.mxu0 %v4074
    %4195 = vmatprep.subr.mxu0 0.0
    %4196 = vmatpush2.msra.mxu0 %v4073
    %4197 = vmatprep.subr.mxu0 0.0
    %4198 = vmatpush2.msra.mxu0 %v4072
    %4199 = vmatprep.subr.mxu0 0.0
    %4200 = vmatpush2.msra.mxu0 %v4071
    %4201 = vmatprep.subr.mxu0 0.0
    %4202 = vmatpush2.msra.mxu0 %v4070
    %4203 = vmatprep.subr.mxu0 0.0
    %4204 = vmatpush2.msra.mxu0 %v4069
    %4205 = vmatprep.subr.mxu0 0.0
    %4206 = vmatpush2.msra.mxu0 %v4068
    %4207 = vmatprep.subr.mxu0 0.0
    %4208 = vmatpush2.msra.mxu0 %v4067
    %4209 = vmatprep.subr.mxu0 0.0
    %4210 = vmatpush2.msra.mxu0 %v4066
    %4211 = vmatprep.subr.mxu0 0.0
    %4212 = vmatpush2.msra.mxu0 %v4065
    %4213 = vmatprep.subr.mxu0 0.0
    %4214 = vmatpush2.msra.mxu0 %v4064
    %4215 = vmatprep.mubr.f32.mxu0 %v4043
    %4216 = vmatmul.mubr.f32.gmra.mxu0 %v4042
    %v4217 = vpop.f32.mrf.mxu0
    %v4218 = vadd.f32 %v4149, %v4217
    %v4219 = vpop.f32.mrf.mxu0
    %4220 = vdwg.mxu0
    %4221 = vmatprep.subr.mxu0 0.0
    %4222 = vmatpush1.msra.mxu0 %v4095
    %4223 = vmatprep.subr.mxu0 0.0
    %4224 = vmatpush1.msra.mxu0 %v4094
    %4225 = vmatprep.subr.mxu0 0.0
    %4226 = vmatpush1.msra.mxu0 %v4093
    %4227 = vmatprep.subr.mxu0 0.0
    %4228 = vmatpush1.msra.mxu0 %v4092
    %4229 = vmatprep.subr.mxu0 0.0
    %4230 = vmatpush1.msra.mxu0 %v4091
    %4231 = vmatprep.subr.mxu0 0.0
    %4232 = vmatpush1.msra.mxu0 %v4090
    %4233 = vmatprep.subr.mxu0 0.0
    %4234 = vmatpush1.msra.mxu0 %v4089
    %4235 = vmatprep.subr.mxu0 0.0
    %4236 = vmatpush1.msra.mxu0 %v4088
    %4237 = vmatprep.subr.mxu0 0.0
    %4238 = vmatpush1.msra.mxu0 %v4087
    %4239 = vmatprep.subr.mxu0 0.0
    %4240 = vmatpush1.msra.mxu0 %v4086
    %4241 = vmatprep.subr.mxu0 0.0
    %4242 = vmatpush1.msra.mxu0 %v4085
    %4243 = vmatprep.subr.mxu0 0.0
    %4244 = vmatpush1.msra.mxu0 %v4084
    %4245 = vmatprep.subr.mxu0 0.0
    %4246 = vmatpush1.msra.mxu0 %v4083
    %4247 = vmatprep.subr.mxu0 0.0
    %4248 = vmatpush1.msra.mxu0 %v4082
    %4249 = vmatprep.subr.mxu0 0.0
    %4250 = vmatpush1.msra.mxu0 %v4081
    %4251 = vmatprep.subr.mxu0 0.0
    %4252 = vmatpush1.msra.mxu0 %v4080
    %4253 = vmatprep.subr.mxu0 0.0
    %4254 = vmatpush2.msra.mxu0 %v4111
    %4255 = vmatprep.subr.mxu0 0.0
    %4256 = vmatpush2.msra.mxu0 %v4110
    %4257 = vmatprep.subr.mxu0 0.0
    %4258 = vmatpush2.msra.mxu0 %v4109
    %4259 = vmatprep.subr.mxu0 0.0
    %4260 = vmatpush2.msra.mxu0 %v4108
    %4261 = vmatprep.subr.mxu0 0.0
    %4262 = vmatpush2.msra.mxu0 %v4107
    %4263 = vmatprep.subr.mxu0 0.0
    %4264 = vmatpush2.msra.mxu0 %v4106
    %4265 = vmatprep.subr.mxu0 0.0
    %4266 = vmatpush2.msra.mxu0 %v4105
    %4267 = vmatprep.subr.mxu0 0.0
    %4268 = vmatpush2.msra.mxu0 %v4104
    %4269 = vmatprep.subr.mxu0 0.0
    %4270 = vmatpush2.msra.mxu0 %v4103
    %4271 = vmatprep.subr.mxu0 0.0
    %4272 = vmatpush2.msra.mxu0 %v4102
    %4273 = vmatprep.subr.mxu0 0.0
    %4274 = vmatpush2.msra.mxu0 %v4101
    %4275 = vmatprep.subr.mxu0 0.0
    %4276 = vmatpush2.msra.mxu0 %v4100
    %4277 = vmatprep.subr.mxu0 0.0
    %4278 = vmatpush2.msra.mxu0 %v4099
    %4279 = vmatprep.subr.mxu0 0.0
    %4280 = vmatpush2.msra.mxu0 %v4098
    %4281 = vmatprep.subr.mxu0 0.0
    %4282 = vmatpush2.msra.mxu0 %v4097
    %4283 = vmatprep.subr.mxu0 0.0
    %4284 = vmatpush2.msra.mxu0 %v4096
    %4285 = vmatprep.mubr.f32.mxu0 %v4045
    %4286 = vmatmul.mubr.f32.gmra.mxu0 %v4044
    %v4287 = vpop.f32.mrf.mxu0
    %v4288 = vadd.f32 %v4218, %v4287
    %v4289 = vpop.f32.mrf.mxu0
    %4290 = vdwg.mxu0
    %4291 = vmatprep.subr.mxu0 0.0
    %4292 = vmatpush1.msra.mxu0 %v4127
    %4293 = vmatprep.subr.mxu0 0.0
    %4294 = vmatpush1.msra.mxu0 %v4126
    %4295 = vmatprep.subr.mxu0 0.0
    %4296 = vmatpush1.msra.mxu0 %v4125
    %4297 = vmatprep.subr.mxu0 0.0
    %4298 = vmatpush1.msra.mxu0 %v4124
    %4299 = vmatprep.subr.mxu0 0.0
    %4300 = vmatpush1.msra.mxu0 %v4123
    %4301 = vmatprep.subr.mxu0 0.0
    %4302 = vmatpush1.msra.mxu0 %v4122
    %4303 = vmatprep.subr.mxu0 0.0
    %4304 = vmatpush1.msra.mxu0 %v4121
    %4305 = vmatprep.subr.mxu0 0.0
    %4306 = vmatpush1.msra.mxu0 %v4120
    %4307 = vmatprep.subr.mxu0 0.0
    %4308 = vmatpush1.msra.mxu0 %v4119
    %4309 = vmatprep.subr.mxu0 0.0
    %4310 = vmatpush1.msra.mxu0 %v4118
    %4311 = vmatprep.subr.mxu0 0.0
    %4312 = vmatpush1.msra.mxu0 %v4117
    %4313 = vmatprep.subr.mxu0 0.0
    %4314 = vmatpush1.msra.mxu0 %v4116
    %4315 = vmatprep.subr.mxu0 0.0
    %4316 = vmatpush1.msra.mxu0 %v4115
    %4317 = vmatprep.subr.mxu0 0.0
    %4318 = vmatpush1.msra.mxu0 %v4114
    %4319 = vmatprep.subr.mxu0 0.0
    %4320 = vmatpush1.msra.mxu0 %v4113
    %4321 = vmatprep.subr.mxu0 0.0
    %4322 = vmatpush1.msra.mxu0 %v4112
    %4323 = vmatprep.subr.mxu0 0.0
    %4324 = vmatpush2.msra.mxu0 %v4143
    %4325 = vmatprep.subr.mxu0 0.0
    %4326 = vmatpush2.msra.mxu0 %v4142
    %4327 = vmatprep.subr.mxu0 0.0
    %4328 = vmatpush2.msra.mxu0 %v4141
    %4329 = vmatprep.subr.mxu0 0.0
    %4330 = vmatpush2.msra.mxu0 %v4140
    %4331 = vmatprep.subr.mxu0 0.0
    %4332 = vmatpush2.msra.mxu0 %v4139
    %4333 = vmatprep.subr.mxu0 0.0
    %4334 = vmatpush2.msra.mxu0 %v4138
    %4335 = vmatprep.subr.mxu0 0.0
    %4336 = vmatpush2.msra.mxu0 %v4137
    %4337 = vmatprep.subr.mxu0 0.0
    %4338 = vmatpush2.msra.mxu0 %v4136
    %4339 = vmatprep.subr.mxu0 0.0
    %4340 = vmatpush2.msra.mxu0 %v4135
    %4341 = vmatprep.subr.mxu0 0.0
    %4342 = vmatpush2.msra.mxu0 %v4134
    %4343 = vmatprep.subr.mxu0 0.0
    %4344 = vmatpush2.msra.mxu0 %v4133
    %4345 = vmatprep.subr.mxu0 0.0
    %4346 = vmatpush2.msra.mxu0 %v4132
    %4347 = vmatprep.subr.mxu0 0.0
    %4348 = vmatpush2.msra.mxu0 %v4131
    %4349 = vmatprep.subr.mxu0 0.0
    %4350 = vmatpush2.msra.mxu0 %v4130
    %4351 = vmatprep.subr.mxu0 0.0
    %4352 = vmatpush2.msra.mxu0 %v4129
    %4353 = vmatprep.subr.mxu0 0.0
    %4354 = vmatpush2.msra.mxu0 %v4128
    %4355 = vmatprep.mubr.f32.mxu0 %v4047
    %4356 = vmatmul.mubr.f32.gmra.mxu0 %v4046
    %v4357 = vpop.f32.mrf.mxu0
    %v4358 = vadd.f32 %v4288, %v4357
    %v4359 = vpop.f32.mrf.mxu0
    %4360 = vdwg.mxu0
    %v4361 = vtanh.pop %v4358
    %4362 = vst [vmem:[#allocation26] sm:$0xff] %v4361
    %4363 = vst [vmem:[#allocation27] sm:$0xff] %v2337
    %4364 = vst [vmem:[#allocation29] sm:$0xff] %v2344
    // Predicated region
    $region114: #{tpu_custom_call.1} parent=1 // pred_check
      _
    $region115: #{tpu_custom_call.1} parent=1 // pred_check_branch
      %4366 = sbr.rel (0) target = $region117
    $region116: #{tpu_custom_call.1} parent=1 // pred_region
      %s4368 = ssub.s32 128, 128
      %4369 = vsyncadd [#allocation5], %s4368
      %s4371 = sshll.u32 [#allocation26], 4
      %s4372 = int_to_ptr.vmem [resolvable:$true] %s4371
      %4374 = dma.vmem_to_hbm [thread:$0]  %s4372, 128, %s14, [#allocation5]
    $region117: #{tpu_custom_call.1} parent=1 // pred_fallthru
      _
    // Predicated region
    $region118: #{tpu_custom_call.1} parent=1 // pred_check
      _
    $region119: #{tpu_custom_call.1} parent=1 // pred_check_branch
      %4376 = sbr.rel (0) target = $region121
    $region120: #{tpu_custom_call.1} parent=1 // pred_region
      %s4378 = ssub.s32 128, 128
      %4379 = vsyncadd [#allocation28], %s4378
      %s4381 = sshll.u32 [#allocation27], 4
      %s4382 = int_to_ptr.vmem [resolvable:$true] %s4381
      %4384 = dma.vmem_to_hbm [thread:$0]  %s4382, 128, %s15, [#allocation28]
    $region121: #{tpu_custom_call.1} parent=1 // pred_fallthru
      _
    // Predicated region
    $region122: #{tpu_custom_call.1} parent=1 // pred_check
      _
    $region123: #{tpu_custom_call.1} parent=1 // pred_check_branch
      %4386 = sbr.rel (0) target = $region125
    $region124: #{tpu_custom_call.1} parent=1 // pred_region
      %s4388 = ssub.s32 128, 128
      %4389 = vsyncadd [#allocation28], %s4388
      %s4391 = sshll.u32 [#allocation29], 4
      %s4392 = int_to_ptr.vmem [resolvable:$true] %s4391
      %4394 = dma.vmem_to_hbm [thread:$0]  %s4392, 128, %s16, [#allocation28]
    $region125: #{tpu_custom_call.1} parent=1 // pred_fallthru
      _
    // Predicated region
    $region126: #{tpu_custom_call.1} parent=1 // pred_check
      _
    $region127: #{tpu_custom_call.1} parent=1 // pred_check_branch
      %4396 = sbr.rel (0) target = $region129
    $region128: #{tpu_custom_call.1} parent=1 // pred_region
      %4397 = dma.done [#allocation5], 128
    $region129: #{tpu_custom_call.1} parent=1 // pred_fallthru
      _
    // Predicated region
    $region130: #{tpu_custom_call.1} parent=1 // pred_check
      _
    $region131: #{tpu_custom_call.1} parent=1 // pred_check_branch
      %4399 = sbr.rel (0) target = $region133
    $region132: #{tpu_custom_call.1} parent=1 // pred_region
      %4400 = dma.done [#allocation28], 128
    $region133: #{tpu_custom_call.1} parent=1 // pred_fallthru
      _
    // Predicated region
    $region134: #{tpu_custom_call.1} parent=1 // pred_check
      _
    $region135: #{tpu_custom_call.1} parent=1 // pred_check_branch
      %4402 = sbr.rel (0) target = $region137
    $region136: #{tpu_custom_call.1} parent=1 // pred_region
      %4403 = dma.done [#allocation28], 128
    $region137: #{tpu_custom_call.1} parent=1 // pred_fallthru
      _
    %4404 = vsyncpa [#allocation4], 1
    %4405 = vsyncpa [#allocation7], 1
    %4406 = vsyncpa [#allocation10], 1
    %4407 = vsyncpa [#allocation13], 1
    %4408 = vsyncpa [#allocation16], 1
    %4409 = vsyncpa [#allocation19], 1
    %4410 = vsyncpa [#allocation22], 1
    %4411 = vsyncpa [#allocation25], 1
    %4412 = vsyncpa [#allocation5], 1
    %4413 = vsyncpa [#allocation28], 1

</llo_original>
